<compile_context>
chip_gen: v7x
topology: tpu7x:2x2x1
jax: 0.10.0
libtpu: 0.0.40
codegen_flags: <defaults>
</compile_context>

<pallas_src>
import math
from functools import partial

import jax
import jax.numpy as jnp
from jax.experimental import pallas as pl
from jax.experimental.pallas import tpu as pltpu


def _vmem_limit(frac=0.7):
    # Per-generation VMEM budget (v5e/v6e: 128 MiB physical, v7x: 64 MiB) instead of a
    # hard-coded 32 MiB cap.  Fallback keeps the previously-working default.
    try:
        return int(pltpu.get_tpu_info().vmem_capacity_bytes * frac)
    except Exception:
        return 32 * 1024 * 1024


def _const_spec(shape):
    # Grid-invariant operand: constant index map, single-buffered (no double-buffer VMEM).
    zeros = (0,) * len(shape)
    return pl.BlockSpec(shape, lambda b, _z=zeros: _z, pipeline_mode=pl.Buffered(1))


# ----------------------------------------------------------------------------
# Kernel 1: Fourier-modulated chunked multi-head attention, grid = (B,)
# ----------------------------------------------------------------------------
def _fma_kernel(x_ref, wqkv_ref, bqkv_ref, fbias_ref, hmask_ref, wproj_ref,
                bproj_ref, o_ref, *, num_chunks):
    # x_ref block: (1, C, N) = NCHW flattened; transpose in-kernel (2-D XLU transpose).
    xc = x_ref[0]                                            # (C, N), f32
    x = jnp.transpose(xc, (1, 0))                            # (N, C)
    N, C = x.shape
    L = N // num_chunks

    # Fused QKV projection over the full per-sample token slab (bf16 MXU operands,
    # f32 accumulation).  M = N = 64 instead of 16 -> better MXU fill.
    qkv = jnp.dot(x.astype(jnp.bfloat16), wqkv_ref[...],
                  preferred_element_type=jnp.float32) + bqkv_ref[0]      # (N, 3C)

    # Chunk the tokens with a leading-dim (layout-preserving) reshape; heads stay
    # interleaved on the lane axis (no stack / concatenate / head slicing at all).
    q3 = qkv[:, 0 * C:1 * C].reshape(num_chunks, L, C)
    k3 = qkv[:, 1 * C:2 * C].reshape(num_chunks, L, C)
    v3 = qkv[:, 2 * C:3 * C].reshape(num_chunks, L, C)

    # Per-head scores without moving heads off the lane axis:
    #   t[c,l,m,ch]   = q[c,l,ch] * k[c,m,ch]                      (VPU)
    #   s[c,l,m,ch']  = sum_{ch in head(ch')} t[c,l,m,ch] / sqrt(hd)
    # hmask is the (C, C) block-diagonal head-group matrix with the 1/sqrt(hd)
    # scale folded in, so one small f32 matmul does the per-head reduction and
    # broadcasts it back to every lane of the head group.
    t = q3[:, :, None, :] * k3[:, None, :, :]                            # (nc, L, L, C)
    s = jnp.dot(t.reshape(num_chunks * L * L, C), hmask_ref[...],
                preferred_element_type=jnp.float32)
    s = s.reshape(num_chunks, L, L, C) + fbias_ref[...]                  # + Fourier bias (f32)

    # Softmax over the key axis (sublane reduction); values are identical within a
    # head's lane group, so the lane-local softmax equals the per-head softmax.
    s = s - jnp.max(s, axis=2, keepdims=True)
    p = jnp.exp(s)
    p = p * pl.reciprocal(jnp.sum(p, axis=2, keepdims=True), approx=True)

    # PV: lane-local multiply + sublane reduction -> output already channel-interleaved.
    o3 = jnp.sum(p * v3[:, None, :, :], axis=2)                          # (nc, L, C)
    o2 = o3.reshape(N, C)

    out = jnp.dot(o2.astype(jnp.bfloat16), wproj_ref[...],
                  preferred_element_type=jnp.float32) + bproj_ref[0] + x
    # TODO(synk): at production C (>=128) present a lane-dense output slab; at demo C=32
    # the store is masked (acceptable at this size).
    o_ref[0] = out.astype(o_ref.dtype)


def fma_forward(x_cn, p, hmask, num_chunks):
    B, C, N = x_cn.shape
    L = N // num_chunks
    kern = partial(_fma_kernel, num_chunks=num_chunks)
    return pl.pallas_call(
        kern,
        out_shape=jax.ShapeDtypeStruct((B, N, C), x_cn.dtype),
        grid_spec=pltpu.PrefetchScalarGridSpec(
            num_scalar_prefetch=0,
            grid=(B,),
            in_specs=[
                pl.BlockSpec((1, C, N), lambda b: (b, 0, 0)),
                _const_spec((C, 3 * C)),      # wqkv (bf16)
                _const_spec((1, 3 * C)),      # bqkv (f32)
                _const_spec((L, L, C)),       # fbias, channel-expanded, f32
                _const_spec((C, C)),          # head-group matrix (scale folded in)
                _const_spec((C, C)),          # wproj (bf16)
                _const_spec((1, C)),          # bproj (f32)
            ],
            out_specs=pl.BlockSpec((1, N, C), lambda b: (b, 0, 0)),
        ),
        compiler_params=pltpu.CompilerParams(
            dimension_semantics=("parallel",),
            vmem_limit_bytes=_vmem_limit(),
        ),
    )(x_cn,
      p["wqkv"].astype(jnp.bfloat16),
      p["bqkv"],
      p["fbias_lmc"],
      hmask,
      p["wproj"].astype(jnp.bfloat16),
      p["bproj"])


# ----------------------------------------------------------------------------
# Kernel 2: fused dynamic depthwise convolution, grid = (B,)
#           padding done in-kernel; all kernel-size banks applied, averaged,
#           residual added, and the result stored directly in NCHW.
# ----------------------------------------------------------------------------
def _dml_kernel(*refs, kernel_sizes, max_pad, H, W, C):
    x_ref = refs[0]
    w_refs = refs[1:1 + len(kernel_sizes)]
    o_ref = refs[1 + len(kernel_sizes)]
    xpad_ref = refs[2 + len(kernel_sizes)]

    xin = x_ref[0].astype(jnp.float32)                       # (H, W, C)

    # Zero-pad inside the kernel (no second padded image in HBM).
    xpad_ref[...] = jnp.zeros_like(xpad_ref)
    xpad_ref[max_pad:max_pad + H, max_pad:max_pad + W, :] = xin

    # Independent partial sums per (kernel-size, row) so the VPU isn't stalled on one
    # long serial mul/add chain; taps are ref-level offset loads from the padded scratch
    # and tap weights are full-lane rows of the (ks*ks, C) mixed-weight block.
    partials = []
    for w_ref, ks in zip(w_refs, kernel_sizes):
        off = max_pad - ks // 2
        for di in range(ks):
            row_acc = None
            for dj in range(ks):
                tap = xpad_ref[off + di:off + di + H, off + dj:off + dj + W, :]
                w_tap = w_ref[0, di * ks + dj, :]             # (C,)
                term = tap * w_tap
                row_acc = term if row_acc is None else row_acc + term
            partials.append(row_acc)

    # Tree-sum of the independent partials.
    while len(partials) > 1:
        nxt = [partials[i] + partials[i + 1] for i in range(0, len(partials) - 1, 2)]
        if len(partials) % 2:
            nxt.append(partials[-1])
        partials = nxt

    out = xin + partials[0] * (1.0 / float(len(kernel_sizes)))   # residual + bank average

    # Store NCHW directly: (H, W, C) -> (H*W, C) (free merge) -> 2-D transpose -> (C, H*W).
    o_ref[0] = jnp.transpose(out.reshape(H * W, C), (1, 0)).astype(o_ref.dtype)


def dml_forward(x_nhwc, dml_params, kernel_sizes):
    B, H, W, C = x_nhwc.shape
    max_pad = max(kernel_sizes) // 2
    Hp, Wp = H + 2 * max_pad, W + 2 * max_pad

    # Per-sample mixing weights + kernel-bank mixing (tiny matmuls) stay in XLA; the
    # kernel sees already-mixed taps shaped (B, ks*ks, C) so each tap is a lane row.
    pooled = jnp.mean(x_nhwc, axis=(1, 2))                   # (B, C)
    mixed = []
    for kz in kernel_sizes:
        p = dml_params[kz]
        alpha = jax.nn.softmax(pooled @ p["wattn"] + p["battn"], axis=-1)
        mixed.append((alpha @ p["kbank"]).reshape(B, kz * kz, C))

    kern = partial(_dml_kernel, kernel_sizes=tuple(kernel_sizes),
                   max_pad=max_pad, H=H, W=W, C=C)
    in_specs = [pl.BlockSpec((1, H, W, C), lambda b: (b, 0, 0, 0))]
    for kz in kernel_sizes:
        in_specs.append(pl.BlockSpec((1, kz * kz, C), lambda b: (b, 0, 0)))

    # TODO(synk): for large H*W (and for v7x when B == 1) add a second "parallel" grid
    # axis over H tiles with a halo so both TensorCores stay busy and the per-step VMEM
    # working set stays bounded; whole-image blocks are fine at demo size.
    return pl.pallas_call(
        kern,
        out_shape=jax.ShapeDtypeStruct((B, C, H * W), x_nhwc.dtype),
        grid_spec=pltpu.PrefetchScalarGridSpec(
            num_scalar_prefetch=0,
            grid=(B,),
            in_specs=in_specs,
            out_specs=pl.BlockSpec((1, C, H * W), lambda b: (b, 0, 0)),
            scratch_shapes=[pltpu.VMEM((Hp, Wp, C), jnp.float32)],
        ),
        compiler_params=pltpu.CompilerParams(
            dimension_semantics=("parallel",),
            vmem_limit_bytes=_vmem_limit(),
        ),
    )(x_nhwc, *mixed)


# ----------------------------------------------------------------------------
# Parameter init (deterministic) and full forward pass
# ----------------------------------------------------------------------------
def init_params(key, dim, num_heads, num_chunks, kernel_sizes, num_kernels, seq_len):
    ks = jax.random.split(key, 4 + 2 * len(kernel_sizes))
    L = seq_len // num_chunks
    hd = dim // num_heads
    num_freq = 4

    # Fourier relative-position bias: sum_m a*cos(w*(i-j)) + b*sin(w*(i-j)) per head.
    a = jax.random.normal(ks[0], (num_heads, num_freq), jnp.float32) * 0.1
    b = jax.random.normal(ks[1], (num_heads, num_freq), jnp.float32) * 0.1
    freqs = jnp.arange(1, num_heads * num_freq + 1, dtype=jnp.float32)
    freqs = freqs.reshape(num_heads, num_freq) * (2.0 * math.pi / (4.0 * L))
    pos = jnp.arange(L, dtype=jnp.float32)
    rel = pos[:, None] - pos[None, :]                                   # (L, L)
    ang = freqs[:, :, None, None] * rel[None, None, :, :]
    fbias = (a[:, :, None, None] * jnp.cos(ang)
             + b[:, :, None, None] * jnp.sin(ang)).sum(axis=1)          # (H, L, L)
    # Channel-expanded (L, L, C) f32 form so the kernel adds it with a plain broadcast.
    fbias_lmc = jnp.transpose(jnp.repeat(fbias, hd, axis=0), (1, 2, 0))  # (L, L, C)

    fma = {
        "wqkv": jax.random.normal(ks[2], (dim, 3 * dim), jnp.float32) / math.sqrt(dim),
        "bqkv": jnp.zeros((1, 3 * dim), jnp.float32),
        "wproj": jax.random.normal(ks[3], (dim, dim), jnp.float32) / math.sqrt(dim),
        "bproj": jnp.zeros((1, dim), jnp.float32),
        "fbias_lmc": fbias_lmc,
    }

    dml = {}
    for i, kz in enumerate(kernel_sizes):
        kb = jax.random.normal(ks[4 + 2 * i], (num_kernels, kz, kz, dim),
                               jnp.float32) / float(kz * kz)
        wa = jax.random.normal(ks[5 + 2 * i], (dim, num_kernels),
                               jnp.float32) / math.sqrt(dim)
        dml[kz] = {
            "kbank": kb.reshape(num_kernels, kz * kz * dim),
            "wattn": wa,
            "battn": jnp.zeros((num_kernels,), jnp.float32),
        }
    return {"fma": fma, "dml": dml}


def attentive_conv_block(x_nchw, params, num_heads=8, num_chunks=4,
                         kernel_sizes=(5, 7), num_kernels=16):
    B, C, H, W = x_nchw.shape
    N = H * W
    hd = C // num_heads

    # Block-diagonal head-group matrix (attention scale folded in) used by the FMA
    # kernel to do the per-head score reduction as one small matmul.
    ch = jnp.arange(C)
    hmask = ((ch[:, None] // hd) == (ch[None, :] // hd)).astype(jnp.float32) / math.sqrt(hd)

    # ---- FourierModulatedAttention (Pallas, grid over batch) ----
    x_cn = x_nchw.reshape(B, C, N)                       # free reshape (NCHW contiguous)
    y_seq = fma_forward(x_cn, params["fma"], hmask, num_chunks)          # (B, N, C)
    y_nhwc = y_seq.reshape(B, H, W, C)                   # free reshape

    # ---- DynamicMixingLayer (fused Pallas depthwise conv, writes NCHW) ----
    out_cn = dml_forward(y_nhwc, params["dml"], kernel_sizes)            # (B, C, N)
    return out_cn.reshape(B, C, H, W)


if __name__ == "__main__":
    B, dim, H, W = 2, 32, 8, 8
    num_heads, num_chunks, num_kernels = 8, 4, 16
    kernel_sizes = (5, 7)

    key = jax.random.PRNGKey(0)
    kx, kp = jax.random.split(key)
    x = jax.random.normal(kx, (B, dim, H, W), dtype=jnp.float32)
    params = init_params(kp, dim, num_heads, num_chunks, kernel_sizes,
                         num_kernels, H * W)

    fwd = jax.jit(partial(attentive_conv_block, num_heads=num_heads,
                          num_chunks=num_chunks, kernel_sizes=kernel_sizes,
                          num_kernels=num_kernels))
    out = fwd(x, params)
    out = jax.block_until_ready(out)
    assert out.shape == x.shape
    assert bool(jnp.all(jnp.isfinite(out)))
    print("KERNEL_OK")
</pallas_src>

<mosaic_0001>
module attributes {stable_mosaic.version = 11 : i64} {
  func.func @_fma_kernel(%arg0: i32, %arg1: memref<1x32x64xf32, #tpu.memory_space<vmem>>, %arg2: memref<32x96xbf16, #tpu.memory_space<vmem>>, %arg3: memref<1x96xf32, #tpu.memory_space<vmem>>, %arg4: memref<16x16x32xf32, #tpu.memory_space<vmem>>, %arg5: memref<32x32xf32, #tpu.memory_space<vmem>>, %arg6: memref<32x32xbf16, #tpu.memory_space<vmem>>, %arg7: memref<1x32xf32, #tpu.memory_space<vmem>>, %arg8: memref<1x64x32xf32, #tpu.memory_space<vmem>>) attributes {dimension_semantics = [#tpu.dimension_semantics<parallel>], iteration_bounds = array<i64: 2>, scalar_prefetch = 0 : i64, scratch_operands = 0 : i64, tpu.core_type = #tpu.core_type<tc>, window_params = [{transform_indices = @transform_0, window_bounds = array<i64: 1, 32, 64>}, {pipeline_mode = #tpu.pipeline_mode<synchronous>, transform_indices = @transform_1, window_bounds = array<i64: 32, 96>}, {pipeline_mode = #tpu.pipeline_mode<synchronous>, transform_indices = @transform_2, window_bounds = array<i64: 1, 96>}, {pipeline_mode = #tpu.pipeline_mode<synchronous>, transform_indices = @transform_3, window_bounds = array<i64: 16, 16, 32>}, {pipeline_mode = #tpu.pipeline_mode<synchronous>, transform_indices = @transform_4, window_bounds = array<i64: 32, 32>}, {pipeline_mode = #tpu.pipeline_mode<synchronous>, transform_indices = @transform_5, window_bounds = array<i64: 32, 32>}, {pipeline_mode = #tpu.pipeline_mode<synchronous>, transform_indices = @transform_6, window_bounds = array<i64: 1, 32>}, {transform_indices = @transform_7, window_bounds = array<i64: 1, 64, 32>}]} {
    %c0 = arith.constant 0 : index
    %c0_0 = arith.constant 0 : index
    %c0_1 = arith.constant 0 : index
    %0 = vector.load %arg1[%c0, %c0_0, %c0_1] : memref<1x32x64xf32, #tpu.memory_space<vmem>>, vector<1x32x64xf32>
    %1 = vector.shape_cast %0 : vector<1x32x64xf32> to vector<32x64xf32>
    %2 = tpu.transpose %1, [1, 0] : vector<32x64xf32> -> vector<64x32xf32>
    %3 = arith.truncf %2 : vector<64x32xf32> to vector<64x32xbf16>
    %c0_2 = arith.constant 0 : index
    %c0_3 = arith.constant 0 : index
    %4 = vector.load %arg2[%c0_2, %c0_3] : memref<32x96xbf16, #tpu.memory_space<vmem>>, vector<32x96xbf16>
    %cst = arith.constant dense<0.000000e+00> : vector<64x96xf32>
    %5 = tpu.matmul %3, %4, %cst {dimension_numbers = #tpu.dot_dimension_numbers<[1], [0], [0], [1], [0, 0, 1, 1], [], []>} : vector<64x32xbf16>, vector<32x96xbf16>, vector<64x96xf32> -> vector<64x96xf32>
    %c0_4 = arith.constant 0 : index
    %c0_5 = arith.constant 0 : index
    %6 = vector.load %arg3[%c0_4, %c0_5] : memref<1x96xf32, #tpu.memory_space<vmem>>, vector<1x96xf32>
    %7 = vector.shape_cast %6 : vector<1x96xf32> to vector<96xf32>
    %8 = vector.shape_cast %7 : vector<96xf32> to vector<1x96xf32>
    %9 = vector.broadcast %8 : vector<1x96xf32> to vector<64x96xf32>
    %10 = arith.addf %5, %9 : vector<64x96xf32>
    %11 = vector.extract_strided_slice %10 {offsets = [0, 0], sizes = [64, 32], strides = [1, 1]} : vector<64x96xf32> to vector<64x32xf32>
    %12 = vector.shape_cast %11 : vector<64x32xf32> to vector<4x16x32xf32>
    %13 = vector.extract_strided_slice %10 {offsets = [0, 32], sizes = [64, 32], strides = [1, 1]} : vector<64x96xf32> to vector<64x32xf32>
    %14 = vector.shape_cast %13 : vector<64x32xf32> to vector<4x16x32xf32>
    %15 = vector.extract_strided_slice %10 {offsets = [0, 64], sizes = [64, 32], strides = [1, 1]} : vector<64x96xf32> to vector<64x32xf32>
    %16 = vector.shape_cast %15 : vector<64x32xf32> to vector<4x16x32xf32>
    %17 = vector.shape_cast %12 : vector<4x16x32xf32> to vector<4x16x1x32xf32>
    %18 = vector.shape_cast %14 : vector<4x16x32xf32> to vector<4x1x16x32xf32>
    %19 = vector.broadcast %17 : vector<4x16x1x32xf32> to vector<4x16x16x32xf32>
    %20 = vector.broadcast %18 : vector<4x1x16x32xf32> to vector<4x16x16x32xf32>
    %21 = arith.mulf %19, %20 : vector<4x16x16x32xf32>
    %22 = vector.shape_cast %21 : vector<4x16x16x32xf32> to vector<1024x32xf32>
    %c0_6 = arith.constant 0 : index
    %c0_7 = arith.constant 0 : index
    %23 = vector.load %arg5[%c0_6, %c0_7] : memref<32x32xf32, #tpu.memory_space<vmem>>, vector<32x32xf32>
    %cst_8 = arith.constant dense<0.000000e+00> : vector<1024x32xf32>
    %24 = tpu.matmul %22, %23, %cst_8 {dimension_numbers = #tpu.dot_dimension_numbers<[1], [0], [0], [1], [0, 0, 1, 1], [], []>} : vector<1024x32xf32>, vector<32x32xf32>, vector<1024x32xf32> -> vector<1024x32xf32>
    %25 = vector.shape_cast %24 : vector<1024x32xf32> to vector<4x16x16x32xf32>
    %c0_9 = arith.constant 0 : index
    %c0_10 = arith.constant 0 : index
    %c0_11 = arith.constant 0 : index
    %26 = vector.load %arg4[%c0_9, %c0_10, %c0_11] : memref<16x16x32xf32, #tpu.memory_space<vmem>>, vector<16x16x32xf32>
    %27 = vector.shape_cast %26 : vector<16x16x32xf32> to vector<1x16x16x32xf32>
    %28 = vector.broadcast %27 : vector<1x16x16x32xf32> to vector<4x16x16x32xf32>
    %29 = arith.addf %25, %28 : vector<4x16x16x32xf32>
    %cst_12 = arith.constant dense<0xFF800000> : vector<4x16x32xf32>
    %30 = vector.multi_reduction <maximumf>, %29, %cst_12 [2] : vector<4x16x16x32xf32> to vector<4x16x32xf32>
    %31 = vector.shape_cast %30 : vector<4x16x32xf32> to vector<4x16x1x32xf32>
    %32 = vector.broadcast %31 : vector<4x16x1x32xf32> to vector<4x16x16x32xf32>
    %33 = arith.subf %29, %32 : vector<4x16x16x32xf32>
    %34 = math.exp %33 : vector<4x16x16x32xf32>
    %cst_13 = arith.constant dense<0.000000e+00> : vector<4x16x32xf32>
    %35 = vector.multi_reduction <add>, %34, %cst_13 [2] : vector<4x16x16x32xf32> to vector<4x16x32xf32>
    %36 = vector.shape_cast %35 : vector<4x16x32xf32> to vector<4x16x1x32xf32>
    %37 = tpu.reciprocal %36 {approx = true} : vector<4x16x1x32xf32> -> vector<4x16x1x32xf32>
    %38 = vector.broadcast %37 : vector<4x16x1x32xf32> to vector<4x16x16x32xf32>
    %39 = arith.mulf %34, %38 : vector<4x16x16x32xf32>
    %40 = vector.shape_cast %16 : vector<4x16x32xf32> to vector<4x1x16x32xf32>
    %41 = vector.broadcast %40 : vector<4x1x16x32xf32> to vector<4x16x16x32xf32>
    %42 = arith.mulf %39, %41 : vector<4x16x16x32xf32>
    %cst_14 = arith.constant dense<0.000000e+00> : vector<4x16x32xf32>
    %43 = vector.multi_reduction <add>, %42, %cst_14 [2] : vector<4x16x16x32xf32> to vector<4x16x32xf32>
    %44 = vector.shape_cast %43 : vector<4x16x32xf32> to vector<64x32xf32>
    %45 = arith.truncf %44 : vector<64x32xf32> to vector<64x32xbf16>
    %c0_15 = arith.constant 0 : index
    %c0_16 = arith.constant 0 : index
    %46 = vector.load %arg6[%c0_15, %c0_16] : memref<32x32xbf16, #tpu.memory_space<vmem>>, vector<32x32xbf16>
    %cst_17 = arith.constant dense<0.000000e+00> : vector<64x32xf32>
    %47 = tpu.matmul %45, %46, %cst_17 {dimension_numbers = #tpu.dot_dimension_numbers<[1], [0], [0], [1], [0, 0, 1, 1], [], []>} : vector<64x32xbf16>, vector<32x32xbf16>, vector<64x32xf32> -> vector<64x32xf32>
    %c0_18 = arith.constant 0 : index
    %c0_19 = arith.constant 0 : index
    %48 = vector.load %arg7[%c0_18, %c0_19] : memref<1x32xf32, #tpu.memory_space<vmem>>, vector<1x32xf32>
    %49 = vector.shape_cast %48 : vector<1x32xf32> to vector<32xf32>
    %50 = vector.shape_cast %49 : vector<32xf32> to vector<1x32xf32>
    %51 = vector.broadcast %50 : vector<1x32xf32> to vector<64x32xf32>
    %52 = arith.addf %47, %51 : vector<64x32xf32>
    %53 = arith.addf %52, %2 : vector<64x32xf32>
    %c0_20 = arith.constant 0 : index
    %c0_21 = arith.constant 0 : index
    %c0_22 = arith.constant 0 : index
    %54 = vector.load %arg8[%c0_20, %c0_21, %c0_22] : memref<1x64x32xf32, #tpu.memory_space<vmem>>, vector<1x64x32xf32>
    %55 = vector.shape_cast %54 : vector<1x64x32xf32> to vector<64x32xf32>
    %56 = vector.shape_cast %53 : vector<64x32xf32> to vector<1x64x32xf32>
    tpu.vector_store %arg8[%c0_20, %c0_21, %c0_22], %56 {strides = array<i32>} : memref<1x64x32xf32, #tpu.memory_space<vmem>>, vector<1x64x32xf32>,
    return
  }
  func.func @transform_0(%arg0: i32) -> (i32, i32, i32) {
    %c0_i32 = arith.constant 0 : i32
    %c0_i32_0 = arith.constant 0 : i32
    %c0_i32_1 = arith.constant 0 : i32
    return %arg0, %c0_i32, %c0_i32_0 : i32, i32, i32
  }
  func.func @transform_1(%arg0: i32) -> (i32, i32) {
    %c0_i32 = arith.constant 0 : i32
    %c0_i32_0 = arith.constant 0 : i32
    %c0_i32_1 = arith.constant 0 : i32
    return %c0_i32, %c0_i32_0 : i32, i32
  }
  func.func @transform_2(%arg0: i32) -> (i32, i32) {
    %c0_i32 = arith.constant 0 : i32
    %c0_i32_0 = arith.constant 0 : i32
    %c0_i32_1 = arith.constant 0 : i32
    return %c0_i32, %c0_i32_0 : i32, i32
  }
  func.func @transform_3(%arg0: i32) -> (i32, i32, i32) {
    %c0_i32 = arith.constant 0 : i32
    %c0_i32_0 = arith.constant 0 : i32
    %c0_i32_1 = arith.constant 0 : i32
    %c0_i32_2 = arith.constant 0 : i32
    return %c0_i32, %c0_i32_0, %c0_i32_1 : i32, i32, i32
  }
  func.func @transform_4(%arg0: i32) -> (i32, i32) {
    %c0_i32 = arith.constant 0 : i32
    %c0_i32_0 = arith.constant 0 : i32
    %c0_i32_1 = arith.constant 0 : i32
    return %c0_i32, %c0_i32_0 : i32, i32
  }
  func.func @transform_5(%arg0: i32) -> (i32, i32) {
    %c0_i32 = arith.constant 0 : i32
    %c0_i32_0 = arith.constant 0 : i32
    %c0_i32_1 = arith.constant 0 : i32
    return %c0_i32, %c0_i32_0 : i32, i32
  }
  func.func @transform_6(%arg0: i32) -> (i32, i32) {
    %c0_i32 = arith.constant 0 : i32
    %c0_i32_0 = arith.constant 0 : i32
    %c0_i32_1 = arith.constant 0 : i32
    return %c0_i32, %c0_i32_0 : i32, i32
  }
  func.func @transform_7(%arg0: i32) -> (i32, i32, i32) {
    %c0_i32 = arith.constant 0 : i32
    %c0_i32_0 = arith.constant 0 : i32
    %c0_i32_1 = arith.constant 0 : i32
    return %arg0, %c0_i32, %c0_i32_0 : i32, i32, i32
  }
}

module attributes {stable_mosaic.version = 11 : i64} {
  func.func @_dml_kernel(%arg0: i32, %arg1: memref<1x8x8x32xf32, #tpu.memory_space<vmem>>, %arg2: memref<1x25x32xf32, #tpu.memory_space<vmem>>, %arg3: memref<1x49x32xf32, #tpu.memory_space<vmem>>, %arg4: memref<1x32x64xf32, #tpu.memory_space<vmem>>, %arg5: memref<14x14x32xf32, #tpu.memory_space<vmem>>) attributes {dimension_semantics = [#tpu.dimension_semantics<parallel>], iteration_bounds = array<i64: 2>, scalar_prefetch = 0 : i64, scratch_operands = 1 : i64, tpu.core_type = #tpu.core_type<tc>, window_params = [{transform_indices = @transform_0, window_bounds = array<i64: 1, 8, 8, 32>}, {transform_indices = @transform_1, window_bounds = array<i64: 1, 25, 32>}, {transform_indices = @transform_2, window_bounds = array<i64: 1, 49, 32>}, {transform_indices = @transform_3, window_bounds = array<i64: 1, 32, 64>}]} {
    %c0 = arith.constant 0 : index
    %c0_0 = arith.constant 0 : index
    %c0_1 = arith.constant 0 : index
    %c0_2 = arith.constant 0 : index
    %0 = vector.load %arg1[%c0, %c0_0, %c0_1, %c0_2] : memref<1x8x8x32xf32, #tpu.memory_space<vmem>>, vector<1x8x8x32xf32>
    %1 = vector.shape_cast %0 : vector<1x8x8x32xf32> to vector<8x8x32xf32>
    %cst = arith.constant 0.000000e+00 : f32
    %2 = vector.broadcast %cst : f32 to vector<14x14x32xf32>
    %c0_3 = arith.constant 0 : index
    %c0_4 = arith.constant 0 : index
    %c0_5 = arith.constant 0 : index
    %3 = vector.load %arg5[%c0_3, %c0_4, %c0_5] : memref<14x14x32xf32, #tpu.memory_space<vmem>>, vector<14x14x32xf32>
    tpu.vector_store %arg5[%c0_3, %c0_4, %c0_5], %2 {strides = array<i32>} : memref<14x14x32xf32, #tpu.memory_space<vmem>>, vector<14x14x32xf32>,
    %c3 = arith.constant 3 : index
    %c3_6 = arith.constant 3 : index
    %c0_7 = arith.constant 0 : index
    %4 = vector.load %arg5[%c3, %c3_6, %c0_7] : memref<14x14x32xf32, #tpu.memory_space<vmem>>, vector<8x8x32xf32>
    tpu.vector_store %arg5[%c3, %c3_6, %c0_7], %1 {strides = array<i32>} : memref<14x14x32xf32, #tpu.memory_space<vmem>>, vector<8x8x32xf32>,
    %c1 = arith.constant 1 : index
    %c1_8 = arith.constant 1 : index
    %c0_9 = arith.constant 0 : index
    %5 = vector.load %arg5[%c1, %c1_8, %c0_9] : memref<14x14x32xf32, #tpu.memory_space<vmem>>, vector<8x8x32xf32>
    %c0_10 = arith.constant 0 : index
    %c0_11 = arith.constant 0 : index
    %c0_12 = arith.constant 0 : index
    %6 = vector.load %arg2[%c0_10, %c0_11, %c0_12] : memref<1x25x32xf32, #tpu.memory_space<vmem>>, vector<1x1x32xf32>
    %7 = vector.shape_cast %6 : vector<1x1x32xf32> to vector<32xf32>
    %8 = vector.shape_cast %7 : vector<32xf32> to vector<1x1x32xf32>
    %9 = vector.broadcast %8 : vector<1x1x32xf32> to vector<8x8x32xf32>
    %10 = arith.mulf %5, %9 : vector<8x8x32xf32>
    %c1_13 = arith.constant 1 : index
    %c2 = arith.constant 2 : index
    %c0_14 = arith.constant 0 : index
    %11 = vector.load %arg5[%c1_13, %c2, %c0_14] : memref<14x14x32xf32, #tpu.memory_space<vmem>>, vector<8x8x32xf32>
    %c0_15 = arith.constant 0 : index
    %c1_16 = arith.constant 1 : index
    %c0_17 = arith.constant 0 : index
    %12 = vector.load %arg2[%c0_15, %c1_16, %c0_17] : memref<1x25x32xf32, #tpu.memory_space<vmem>>, vector<1x1x32xf32>
    %13 = vector.shape_cast %12 : vector<1x1x32xf32> to vector<32xf32>
    %14 = vector.shape_cast %13 : vector<32xf32> to vector<1x1x32xf32>
    %15 = vector.broadcast %14 : vector<1x1x32xf32> to vector<8x8x32xf32>
    %16 = arith.mulf %11, %15 : vector<8x8x32xf32>
    %17 = arith.addf %10, %16 : vector<8x8x32xf32>
    %c1_18 = arith.constant 1 : index
    %c3_19 = arith.constant 3 : index
    %c0_20 = arith.constant 0 : index
    %18 = vector.load %arg5[%c1_18, %c3_19, %c0_20] : memref<14x14x32xf32, #tpu.memory_space<vmem>>, vector<8x8x32xf32>
    %c0_21 = arith.constant 0 : index
    %c2_22 = arith.constant 2 : index
    %c0_23 = arith.constant 0 : index
    %19 = vector.load %arg2[%c0_21, %c2_22, %c0_23] : memref<1x25x32xf32, #tpu.memory_space<vmem>>, vector<1x1x32xf32>
    %20 = vector.shape_cast %19 : vector<1x1x32xf32> to vector<32xf32>
    %21 = vector.shape_cast %20 : vector<32xf32> to vector<1x1x32xf32>
    %22 = vector.broadcast %21 : vector<1x1x32xf32> to vector<8x8x32xf32>
    %23 = arith.mulf %18, %22 : vector<8x8x32xf32>
    %24 = arith.addf %17, %23 : vector<8x8x32xf32>
    %c1_24 = arith.constant 1 : index
    %c4 = arith.constant 4 : index
    %c0_25 = arith.constant 0 : index
    %25 = vector.load %arg5[%c1_24, %c4, %c0_25] : memref<14x14x32xf32, #tpu.memory_space<vmem>>, vector<8x8x32xf32>
    %c0_26 = arith.constant 0 : index
    %c3_27 = arith.constant 3 : index
    %c0_28 = arith.constant 0 : index
    %26 = vector.load %arg2[%c0_26, %c3_27, %c0_28] : memref<1x25x32xf32, #tpu.memory_space<vmem>>, vector<1x1x32xf32>
    %27 = vector.shape_cast %26 : vector<1x1x32xf32> to vector<32xf32>
    %28 = vector.shape_cast %27 : vector<32xf32> to vector<1x1x32xf32>
    %29 = vector.broadcast %28 : vector<1x1x32xf32> to vector<8x8x32xf32>
    %30 = arith.mulf %25, %29 : vector<8x8x32xf32>
    %31 = arith.addf %24, %30 : vector<8x8x32xf32>
    %c1_29 = arith.constant 1 : index
    %c5 = arith.constant 5 : index
    %c0_30 = arith.constant 0 : index
    %32 = vector.load %arg5[%c1_29, %c5, %c0_30] : memref<14x14x32xf32, #tpu.memory_space<vmem>>, vector<8x8x32xf32>
    %c0_31 = arith.constant 0 : index
    %c4_32 = arith.constant 4 : index
    %c0_33 = arith.constant 0 : index
    %33 = vector.load %arg2[%c0_31, %c4_32, %c0_33] : memref<1x25x32xf32, #tpu.memory_space<vmem>>, vector<1x1x32xf32>
    %34 = vector.shape_cast %33 : vector<1x1x32xf32> to vector<32xf32>
    %35 = vector.shape_cast %34 : vector<32xf32> to vector<1x1x32xf32>
    %36 = vector.broadcast %35 : vector<1x1x32xf32> to vector<8x8x32xf32>
    %37 = arith.mulf %32, %36 : vector<8x8x32xf32>
    %38 = arith.addf %31, %37 : vector<8x8x32xf32>
    %c2_34 = arith.constant 2 : index
    %c1_35 = arith.constant 1 : index
    %c0_36 = arith.constant 0 : index
    %39 = vector.load %arg5[%c2_34, %c1_35, %c0_36] : memref<14x14x32xf32, #tpu.memory_space<vmem>>, vector<8x8x32xf32>
    %c0_37 = arith.constant 0 : index
    %c5_38 = arith.constant 5 : index
    %c0_39 = arith.constant 0 : index
    %40 = vector.load %arg2[%c0_37, %c5_38, %c0_39] : memref<1x25x32xf32, #tpu.memory_space<vmem>>, vector<1x1x32xf32>
    %41 = vector.shape_cast %40 : vector<1x1x32xf32> to vector<32xf32>
    %42 = vector.shape_cast %41 : vector<32xf32> to vector<1x1x32xf32>
    %43 = vector.broadcast %42 : vector<1x1x32xf32> to vector<8x8x32xf32>
    %44 = arith.mulf %39, %43 : vector<8x8x32xf32>
    %c2_40 = arith.constant 2 : index
    %c2_41 = arith.constant 2 : index
    %c0_42 = arith.constant 0 : index
    %45 = vector.load %arg5[%c2_40, %c2_41, %c0_42] : memref<14x14x32xf32, #tpu.memory_space<vmem>>, vector<8x8x32xf32>
    %c0_43 = arith.constant 0 : index
    %c6 = arith.constant 6 : index
    %c0_44 = arith.constant 0 : index
    %46 = vector.load %arg2[%c0_43, %c6, %c0_44] : memref<1x25x32xf32, #tpu.memory_space<vmem>>, vector<1x1x32xf32>
    %47 = vector.shape_cast %46 : vector<1x1x32xf32> to vector<32xf32>
    %48 = vector.shape_cast %47 : vector<32xf32> to vector<1x1x32xf32>
    %49 = vector.broadcast %48 : vector<1x1x32xf32> to vector<8x8x32xf32>
    %50 = arith.mulf %45, %49 : vector<8x8x32xf32>
    %51 = arith.addf %44, %50 : vector<8x8x32xf32>
    %c2_45 = arith.constant 2 : index
    %c3_46 = arith.constant 3 : index
    %c0_47 = arith.constant 0 : index
    %52 = vector.load %arg5[%c2_45, %c3_46, %c0_47] : memref<14x14x32xf32, #tpu.memory_space<vmem>>, vector<8x8x32xf32>
    %c0_48 = arith.constant 0 : index
    %c7 = arith.constant 7 : index
    %c0_49 = arith.constant 0 : index
    %53 = vector.load %arg2[%c0_48, %c7, %c0_49] : memref<1x25x32xf32, #tpu.memory_space<vmem>>, vector<1x1x32xf32>
    %54 = vector.shape_cast %53 : vector<1x1x32xf32> to vector<32xf32>
    %55 = vector.shape_cast %54 : vector<32xf32> to vector<1x1x32xf32>
    %56 = vector.broadcast %55 : vector<1x1x32xf32> to vector<8x8x32xf32>
    %57 = arith.mulf %52, %56 : vector<8x8x32xf32>
    %58 = arith.addf %51, %57 : vector<8x8x32xf32>
    %c2_50 = arith.constant 2 : index
    %c4_51 = arith.constant 4 : index
    %c0_52 = arith.constant 0 : index
    %59 = vector.load %arg5[%c2_50, %c4_51, %c0_52] : memref<14x14x32xf32, #tpu.memory_space<vmem>>, vector<8x8x32xf32>
    %c0_53 = arith.constant 0 : index
    %c8 = arith.constant 8 : index
    %c0_54 = arith.constant 0 : index
    %60 = vector.load %arg2[%c0_53, %c8, %c0_54] : memref<1x25x32xf32, #tpu.memory_space<vmem>>, vector<1x1x32xf32>
    %61 = vector.shape_cast %60 : vector<1x1x32xf32> to vector<32xf32>
    %62 = vector.shape_cast %61 : vector<32xf32> to vector<1x1x32xf32>
    %63 = vector.broadcast %62 : vector<1x1x32xf32> to vector<8x8x32xf32>
    %64 = arith.mulf %59, %63 : vector<8x8x32xf32>
    %65 = arith.addf %58, %64 : vector<8x8x32xf32>
    %c2_55 = arith.constant 2 : index
    %c5_56 = arith.constant 5 : index
    %c0_57 = arith.constant 0 : index
    %66 = vector.load %arg5[%c2_55, %c5_56, %c0_57] : memref<14x14x32xf32, #tpu.memory_space<vmem>>, vector<8x8x32xf32>
    %c0_58 = arith.constant 0 : index
    %c9 = arith.constant 9 : index
    %c0_59 = arith.constant 0 : index
    %67 = vector.load %arg2[%c0_58, %c9, %c0_59] : memref<1x25x32xf32, #tpu.memory_space<vmem>>, vector<1x1x32xf32>
    %68 = vector.shape_cast %67 : vector<1x1x32xf32> to vector<32xf32>
    %69 = vector.shape_cast %68 : vector<32xf32> to vector<1x1x32xf32>
    %70 = vector.broadcast %69 : vector<1x1x32xf32> to vector<8x8x32xf32>
    %71 = arith.mulf %66, %70 : vector<8x8x32xf32>
    %72 = arith.addf %65, %71 : vector<8x8x32xf32>
    %c3_60 = arith.constant 3 : index
    %c1_61 = arith.constant 1 : index
    %c0_62 = arith.constant 0 : index
    %73 = vector.load %arg5[%c3_60, %c1_61, %c0_62] : memref<14x14x32xf32, #tpu.memory_space<vmem>>, vector<8x8x32xf32>
    %c0_63 = arith.constant 0 : index
    %c10 = arith.constant 10 : index
    %c0_64 = arith.constant 0 : index
    %74 = vector.load %arg2[%c0_63, %c10, %c0_64] : memref<1x25x32xf32, #tpu.memory_space<vmem>>, vector<1x1x32xf32>
    %75 = vector.shape_cast %74 : vector<1x1x32xf32> to vector<32xf32>
    %76 = vector.shape_cast %75 : vector<32xf32> to vector<1x1x32xf32>
    %77 = vector.broadcast %76 : vector<1x1x32xf32> to vector<8x8x32xf32>
    %78 = arith.mulf %73, %77 : vector<8x8x32xf32>
    %c3_65 = arith.constant 3 : index
    %c2_66 = arith.constant 2 : index
    %c0_67 = arith.constant 0 : index
    %79 = vector.load %arg5[%c3_65, %c2_66, %c0_67] : memref<14x14x32xf32, #tpu.memory_space<vmem>>, vector<8x8x32xf32>
    %c0_68 = arith.constant 0 : index
    %c11 = arith.constant 11 : index
    %c0_69 = arith.constant 0 : index
    %80 = vector.load %arg2[%c0_68, %c11, %c0_69] : memref<1x25x32xf32, #tpu.memory_space<vmem>>, vector<1x1x32xf32>
    %81 = vector.shape_cast %80 : vector<1x1x32xf32> to vector<32xf32>
    %82 = vector.shape_cast %81 : vector<32xf32> to vector<1x1x32xf32>
    %83 = vector.broadcast %82 : vector<1x1x32xf32> to vector<8x8x32xf32>
    %84 = arith.mulf %79, %83 : vector<8x8x32xf32>
    %85 = arith.addf %78, %84 : vector<8x8x32xf32>
    %c3_70 = arith.constant 3 : index
    %c3_71 = arith.constant 3 : index
    %c0_72 = arith.constant 0 : index
    %86 = vector.load %arg5[%c3_70, %c3_71, %c0_72] : memref<14x14x32xf32, #tpu.memory_space<vmem>>, vector<8x8x32xf32>
    %c0_73 = arith.constant 0 : index
    %c12 = arith.constant 12 : index
    %c0_74 = arith.constant 0 : index
    %87 = vector.load %arg2[%c0_73, %c12, %c0_74] : memref<1x25x32xf32, #tpu.memory_space<vmem>>, vector<1x1x32xf32>
    %88 = vector.shape_cast %87 : vector<1x1x32xf32> to vector<32xf32>
    %89 = vector.shape_cast %88 : vector<32xf32> to vector<1x1x32xf32>
    %90 = vector.broadcast %89 : vector<1x1x32xf32> to vector<8x8x32xf32>
    %91 = arith.mulf %86, %90 : vector<8x8x32xf32>
    %92 = arith.addf %85, %91 : vector<8x8x32xf32>
    %c3_75 = arith.constant 3 : index
    %c4_76 = arith.constant 4 : index
    %c0_77 = arith.constant 0 : index
    %93 = vector.load %arg5[%c3_75, %c4_76, %c0_77] : memref<14x14x32xf32, #tpu.memory_space<vmem>>, vector<8x8x32xf32>
    %c0_78 = arith.constant 0 : index
    %c13 = arith.constant 13 : index
    %c0_79 = arith.constant 0 : index
    %94 = vector.load %arg2[%c0_78, %c13, %c0_79] : memref<1x25x32xf32, #tpu.memory_space<vmem>>, vector<1x1x32xf32>
    %95 = vector.shape_cast %94 : vector<1x1x32xf32> to vector<32xf32>
    %96 = vector.shape_cast %95 : vector<32xf32> to vector<1x1x32xf32>
    %97 = vector.broadcast %96 : vector<1x1x32xf32> to vector<8x8x32xf32>
    %98 = arith.mulf %93, %97 : vector<8x8x32xf32>
    %99 = arith.addf %92, %98 : vector<8x8x32xf32>
    %c3_80 = arith.constant 3 : index
    %c5_81 = arith.constant 5 : index
    %c0_82 = arith.constant 0 : index
    %100 = vector.load %arg5[%c3_80, %c5_81, %c0_82] : memref<14x14x32xf32, #tpu.memory_space<vmem>>, vector<8x8x32xf32>
    %c0_83 = arith.constant 0 : index
    %c14 = arith.constant 14 : index
    %c0_84 = arith.constant 0 : index
    %101 = vector.load %arg2[%c0_83, %c14, %c0_84] : memref<1x25x32xf32, #tpu.memory_space<vmem>>, vector<1x1x32xf32>
    %102 = vector.shape_cast %101 : vector<1x1x32xf32> to vector<32xf32>
    %103 = vector.shape_cast %102 : vector<32xf32> to vector<1x1x32xf32>
    %104 = vector.broadcast %103 : vector<1x1x32xf32> to vector<8x8x32xf32>
    %105 = arith.mulf %100, %104 : vector<8x8x32xf32>
    %106 = arith.addf %99, %105 : vector<8x8x32xf32>
    %c4_85 = arith.constant 4 : index
    %c1_86 = arith.constant 1 : index
    %c0_87 = arith.constant 0 : index
    %107 = vector.load %arg5[%c4_85, %c1_86, %c0_87] : memref<14x14x32xf32, #tpu.memory_space<vmem>>, vector<8x8x32xf32>
    %c0_88 = arith.constant 0 : index
    %c15 = arith.constant 15 : index
    %c0_89 = arith.constant 0 : index
    %108 = vector.load %arg2[%c0_88, %c15, %c0_89] : memref<1x25x32xf32, #tpu.memory_space<vmem>>, vector<1x1x32xf32>
    %109 = vector.shape_cast %108 : vector<1x1x32xf32> to vector<32xf32>
    %110 = vector.shape_cast %109 : vector<32xf32> to vector<1x1x32xf32>
    %111 = vector.broadcast %110 : vector<1x1x32xf32> to vector<8x8x32xf32>
    %112 = arith.mulf %107, %111 : vector<8x8x32xf32>
    %c4_90 = arith.constant 4 : index
    %c2_91 = arith.constant 2 : index
    %c0_92 = arith.constant 0 : index
    %113 = vector.load %arg5[%c4_90, %c2_91, %c0_92] : memref<14x14x32xf32, #tpu.memory_space<vmem>>, vector<8x8x32xf32>
    %c0_93 = arith.constant 0 : index
    %c16 = arith.constant 16 : index
    %c0_94 = arith.constant 0 : index
    %114 = vector.load %arg2[%c0_93, %c16, %c0_94] : memref<1x25x32xf32, #tpu.memory_space<vmem>>, vector<1x1x32xf32>
    %115 = vector.shape_cast %114 : vector<1x1x32xf32> to vector<32xf32>
    %116 = vector.shape_cast %115 : vector<32xf32> to vector<1x1x32xf32>
    %117 = vector.broadcast %116 : vector<1x1x32xf32> to vector<8x8x32xf32>
    %118 = arith.mulf %113, %117 : vector<8x8x32xf32>
    %119 = arith.addf %112, %118 : vector<8x8x32xf32>
    %c4_95 = arith.constant 4 : index
    %c3_96 = arith.constant 3 : index
    %c0_97 = arith.constant 0 : index
    %120 = vector.load %arg5[%c4_95, %c3_96, %c0_97] : memref<14x14x32xf32, #tpu.memory_space<vmem>>, vector<8x8x32xf32>
    %c0_98 = arith.constant 0 : index
    %c17 = arith.constant 17 : index
    %c0_99 = arith.constant 0 : index
    %121 = vector.load %arg2[%c0_98, %c17, %c0_99] : memref<1x25x32xf32, #tpu.memory_space<vmem>>, vector<1x1x32xf32>
    %122 = vector.shape_cast %121 : vector<1x1x32xf32> to vector<32xf32>
    %123 = vector.shape_cast %122 : vector<32xf32> to vector<1x1x32xf32>
    %124 = vector.broadcast %123 : vector<1x1x32xf32> to vector<8x8x32xf32>
    %125 = arith.mulf %120, %124 : vector<8x8x32xf32>
    %126 = arith.addf %119, %125 : vector<8x8x32xf32>
    %c4_100 = arith.constant 4 : index
    %c4_101 = arith.constant 4 : index
    %c0_102 = arith.constant 0 : index
    %127 = vector.load %arg5[%c4_100, %c4_101, %c0_102] : memref<14x14x32xf32, #tpu.memory_space<vmem>>, vector<8x8x32xf32>
    %c0_103 = arith.constant 0 : index
    %c18 = arith.constant 18 : index
    %c0_104 = arith.constant 0 : index
    %128 = vector.load %arg2[%c0_103, %c18, %c0_104] : memref<1x25x32xf32, #tpu.memory_space<vmem>>, vector<1x1x32xf32>
    %129 = vector.shape_cast %128 : vector<1x1x32xf32> to vector<32xf32>
    %130 = vector.shape_cast %129 : vector<32xf32> to vector<1x1x32xf32>
    %131 = vector.broadcast %130 : vector<1x1x32xf32> to vector<8x8x32xf32>
    %132 = arith.mulf %127, %131 : vector<8x8x32xf32>
    %133 = arith.addf %126, %132 : vector<8x8x32xf32>
    %c4_105 = arith.constant 4 : index
    %c5_106 = arith.constant 5 : index
    %c0_107 = arith.constant 0 : index
    %134 = vector.load %arg5[%c4_105, %c5_106, %c0_107] : memref<14x14x32xf32, #tpu.memory_space<vmem>>, vector<8x8x32xf32>
    %c0_108 = arith.constant 0 : index
    %c19 = arith.constant 19 : index
    %c0_109 = arith.constant 0 : index
    %135 = vector.load %arg2[%c0_108, %c19, %c0_109] : memref<1x25x32xf32, #tpu.memory_space<vmem>>, vector<1x1x32xf32>
    %136 = vector.shape_cast %135 : vector<1x1x32xf32> to vector<32xf32>
    %137 = vector.shape_cast %136 : vector<32xf32> to vector<1x1x32xf32>
    %138 = vector.broadcast %137 : vector<1x1x32xf32> to vector<8x8x32xf32>
    %139 = arith.mulf %134, %138 : vector<8x8x32xf32>
    %140 = arith.addf %133, %139 : vector<8x8x32xf32>
    %c5_110 = arith.constant 5 : index
    %c1_111 = arith.constant 1 : index
    %c0_112 = arith.constant 0 : index
    %141 = vector.load %arg5[%c5_110, %c1_111, %c0_112] : memref<14x14x32xf32, #tpu.memory_space<vmem>>, vector<8x8x32xf32>
    %c0_113 = arith.constant 0 : index
    %c20 = arith.constant 20 : index
    %c0_114 = arith.constant 0 : index
    %142 = vector.load %arg2[%c0_113, %c20, %c0_114] : memref<1x25x32xf32, #tpu.memory_space<vmem>>, vector<1x1x32xf32>
    %143 = vector.shape_cast %142 : vector<1x1x32xf32> to vector<32xf32>
    %144 = vector.shape_cast %143 : vector<32xf32> to vector<1x1x32xf32>
    %145 = vector.broadcast %144 : vector<1x1x32xf32> to vector<8x8x32xf32>
    %146 = arith.mulf %141, %145 : vector<8x8x32xf32>
    %c5_115 = arith.constant 5 : index
    %c2_116 = arith.constant 2 : index
    %c0_117 = arith.constant 0 : index
    %147 = vector.load %arg5[%c5_115, %c2_116, %c0_117] : memref<14x14x32xf32, #tpu.memory_space<vmem>>, vector<8x8x32xf32>
    %c0_118 = arith.constant 0 : index
    %c21 = arith.constant 21 : index
    %c0_119 = arith.constant 0 : index
    %148 = vector.load %arg2[%c0_118, %c21, %c0_119] : memref<1x25x32xf32, #tpu.memory_space<vmem>>, vector<1x1x32xf32>
    %149 = vector.shape_cast %148 : vector<1x1x32xf32> to vector<32xf32>
    %150 = vector.shape_cast %149 : vector<32xf32> to vector<1x1x32xf32>
    %151 = vector.broadcast %150 : vector<1x1x32xf32> to vector<8x8x32xf32>
    %152 = arith.mulf %147, %151 : vector<8x8x32xf32>
    %153 = arith.addf %146, %152 : vector<8x8x32xf32>
    %c5_120 = arith.constant 5 : index
    %c3_121 = arith.constant 3 : index
    %c0_122 = arith.constant 0 : index
    %154 = vector.load %arg5[%c5_120, %c3_121, %c0_122] : memref<14x14x32xf32, #tpu.memory_space<vmem>>, vector<8x8x32xf32>
    %c0_123 = arith.constant 0 : index
    %c22 = arith.constant 22 : index
    %c0_124 = arith.constant 0 : index
    %155 = vector.load %arg2[%c0_123, %c22, %c0_124] : memref<1x25x32xf32, #tpu.memory_space<vmem>>, vector<1x1x32xf32>
    %156 = vector.shape_cast %155 : vector<1x1x32xf32> to vector<32xf32>
    %157 = vector.shape_cast %156 : vector<32xf32> to vector<1x1x32xf32>
    %158 = vector.broadcast %157 : vector<1x1x32xf32> to vector<8x8x32xf32>
    %159 = arith.mulf %154, %158 : vector<8x8x32xf32>
    %160 = arith.addf %153, %159 : vector<8x8x32xf32>
    %c5_125 = arith.constant 5 : index
    %c4_126 = arith.constant 4 : index
    %c0_127 = arith.constant 0 : index
    %161 = vector.load %arg5[%c5_125, %c4_126, %c0_127] : memref<14x14x32xf32, #tpu.memory_space<vmem>>, vector<8x8x32xf32>
    %c0_128 = arith.constant 0 : index
    %c23 = arith.constant 23 : index
    %c0_129 = arith.constant 0 : index
    %162 = vector.load %arg2[%c0_128, %c23, %c0_129] : memref<1x25x32xf32, #tpu.memory_space<vmem>>, vector<1x1x32xf32>
    %163 = vector.shape_cast %162 : vector<1x1x32xf32> to vector<32xf32>
    %164 = vector.shape_cast %163 : vector<32xf32> to vector<1x1x32xf32>
    %165 = vector.broadcast %164 : vector<1x1x32xf32> to vector<8x8x32xf32>
    %166 = arith.mulf %161, %165 : vector<8x8x32xf32>
    %167 = arith.addf %160, %166 : vector<8x8x32xf32>
    %c5_130 = arith.constant 5 : index
    %c5_131 = arith.constant 5 : index
    %c0_132 = arith.constant 0 : index
    %168 = vector.load %arg5[%c5_130, %c5_131, %c0_132] : memref<14x14x32xf32, #tpu.memory_space<vmem>>, vector<8x8x32xf32>
    %c0_133 = arith.constant 0 : index
    %c24 = arith.constant 24 : index
    %c0_134 = arith.constant 0 : index
    %169 = vector.load %arg2[%c0_133, %c24, %c0_134] : memref<1x25x32xf32, #tpu.memory_space<vmem>>, vector<1x1x32xf32>
    %170 = vector.shape_cast %169 : vector<1x1x32xf32> to vector<32xf32>
    %171 = vector.shape_cast %170 : vector<32xf32> to vector<1x1x32xf32>
    %172 = vector.broadcast %171 : vector<1x1x32xf32> to vector<8x8x32xf32>
    %173 = arith.mulf %168, %172 : vector<8x8x32xf32>
    %174 = arith.addf %167, %173 : vector<8x8x32xf32>
    %c0_135 = arith.constant 0 : index
    %c0_136 = arith.constant 0 : index
    %c0_137 = arith.constant 0 : index
    %175 = vector.load %arg5[%c0_135, %c0_136, %c0_137] : memref<14x14x32xf32, #tpu.memory_space<vmem>>, vector<8x8x32xf32>
    %c0_138 = arith.constant 0 : index
    %c0_139 = arith.constant 0 : index
    %c0_140 = arith.constant 0 : index
    %176 = vector.load %arg3[%c0_138, %c0_139, %c0_140] : memref<1x49x32xf32, #tpu.memory_space<vmem>>, vector<1x1x32xf32>
    %177 = vector.shape_cast %176 : vector<1x1x32xf32> to vector<32xf32>
    %178 = vector.shape_cast %177 : vector<32xf32> to vector<1x1x32xf32>
    %179 = vector.broadcast %178 : vector<1x1x32xf32> to vector<8x8x32xf32>
    %180 = arith.mulf %175, %179 : vector<8x8x32xf32>
    %c0_141 = arith.constant 0 : index
    %c1_142 = arith.constant 1 : index
    %c0_143 = arith.constant 0 : index
    %181 = vector.load %arg5[%c0_141, %c1_142, %c0_143] : memref<14x14x32xf32, #tpu.memory_space<vmem>>, vector<8x8x32xf32>
    %c0_144 = arith.constant 0 : index
    %c1_145 = arith.constant 1 : index
    %c0_146 = arith.constant 0 : index
    %182 = vector.load %arg3[%c0_144, %c1_145, %c0_146] : memref<1x49x32xf32, #tpu.memory_space<vmem>>, vector<1x1x32xf32>
    %183 = vector.shape_cast %182 : vector<1x1x32xf32> to vector<32xf32>
    %184 = vector.shape_cast %183 : vector<32xf32> to vector<1x1x32xf32>
    %185 = vector.broadcast %184 : vector<1x1x32xf32> to vector<8x8x32xf32>
    %186 = arith.mulf %181, %185 : vector<8x8x32xf32>
    %187 = arith.addf %180, %186 : vector<8x8x32xf32>
    %c0_147 = arith.constant 0 : index
    %c2_148 = arith.constant 2 : index
    %c0_149 = arith.constant 0 : index
    %188 = vector.load %arg5[%c0_147, %c2_148, %c0_149] : memref<14x14x32xf32, #tpu.memory_space<vmem>>, vector<8x8x32xf32>
    %c0_150 = arith.constant 0 : index
    %c2_151 = arith.constant 2 : index
    %c0_152 = arith.constant 0 : index
    %189 = vector.load %arg3[%c0_150, %c2_151, %c0_152] : memref<1x49x32xf32, #tpu.memory_space<vmem>>, vector<1x1x32xf32>
    %190 = vector.shape_cast %189 : vector<1x1x32xf32> to vector<32xf32>
    %191 = vector.shape_cast %190 : vector<32xf32> to vector<1x1x32xf32>
    %192 = vector.broadcast %191 : vector<1x1x32xf32> to vector<8x8x32xf32>
    %193 = arith.mulf %188, %192 : vector<8x8x32xf32>
    %194 = arith.addf %187, %193 : vector<8x8x32xf32>
    %c0_153 = arith.constant 0 : index
    %c3_154 = arith.constant 3 : index
    %c0_155 = arith.constant 0 : index
    %195 = vector.load %arg5[%c0_153, %c3_154, %c0_155] : memref<14x14x32xf32, #tpu.memory_space<vmem>>, vector<8x8x32xf32>
    %c0_156 = arith.constant 0 : index
    %c3_157 = arith.constant 3 : index
    %c0_158 = arith.constant 0 : index
    %196 = vector.load %arg3[%c0_156, %c3_157, %c0_158] : memref<1x49x32xf32, #tpu.memory_space<vmem>>, vector<1x1x32xf32>
    %197 = vector.shape_cast %196 : vector<1x1x32xf32> to vector<32xf32>
    %198 = vector.shape_cast %197 : vector<32xf32> to vector<1x1x32xf32>
    %199 = vector.broadcast %198 : vector<1x1x32xf32> to vector<8x8x32xf32>
    %200 = arith.mulf %195, %199 : vector<8x8x32xf32>
    %201 = arith.addf %194, %200 : vector<8x8x32xf32>
    %c0_159 = arith.constant 0 : index
    %c4_160 = arith.constant 4 : index
    %c0_161 = arith.constant 0 : index
    %202 = vector.load %arg5[%c0_159, %c4_160, %c0_161] : memref<14x14x32xf32, #tpu.memory_space<vmem>>, vector<8x8x32xf32>
    %c0_162 = arith.constant 0 : index
    %c4_163 = arith.constant 4 : index
    %c0_164 = arith.constant 0 : index
    %203 = vector.load %arg3[%c0_162, %c4_163, %c0_164] : memref<1x49x32xf32, #tpu.memory_space<vmem>>, vector<1x1x32xf32>
    %204 = vector.shape_cast %203 : vector<1x1x32xf32> to vector<32xf32>
    %205 = vector.shape_cast %204 : vector<32xf32> to vector<1x1x32xf32>
    %206 = vector.broadcast %205 : vector<1x1x32xf32> to vector<8x8x32xf32>
    %207 = arith.mulf %202, %206 : vector<8x8x32xf32>
    %208 = arith.addf %201, %207 : vector<8x8x32xf32>
    %c0_165 = arith.constant 0 : index
    %c5_166 = arith.constant 5 : index
    %c0_167 = arith.constant 0 : index
    %209 = vector.load %arg5[%c0_165, %c5_166, %c0_167] : memref<14x14x32xf32, #tpu.memory_space<vmem>>, vector<8x8x32xf32>
    %c0_168 = arith.constant 0 : index
    %c5_169 = arith.constant 5 : index
    %c0_170 = arith.constant 0 : index
    %210 = vector.load %arg3[%c0_168, %c5_169, %c0_170] : memref<1x49x32xf32, #tpu.memory_space<vmem>>, vector<1x1x32xf32>
    %211 = vector.shape_cast %210 : vector<1x1x32xf32> to vector<32xf32>
    %212 = vector.shape_cast %211 : vector<32xf32> to vector<1x1x32xf32>
    %213 = vector.broadcast %212 : vector<1x1x32xf32> to vector<8x8x32xf32>
    %214 = arith.mulf %209, %213 : vector<8x8x32xf32>
    %215 = arith.addf %208, %214 : vector<8x8x32xf32>
    %c0_171 = arith.constant 0 : index
    %c6_172 = arith.constant 6 : index
    %c0_173 = arith.constant 0 : index
    %216 = vector.load %arg5[%c0_171, %c6_172, %c0_173] : memref<14x14x32xf32, #tpu.memory_space<vmem>>, vector<8x8x32xf32>
    %c0_174 = arith.constant 0 : index
    %c6_175 = arith.constant 6 : index
    %c0_176 = arith.constant 0 : index
    %217 = vector.load %arg3[%c0_174, %c6_175, %c0_176] : memref<1x49x32xf32, #tpu.memory_space<vmem>>, vector<1x1x32xf32>
    %218 = vector.shape_cast %217 : vector<1x1x32xf32> to vector<32xf32>
    %219 = vector.shape_cast %218 : vector<32xf32> to vector<1x1x32xf32>
    %220 = vector.broadcast %219 : vector<1x1x32xf32> to vector<8x8x32xf32>
    %221 = arith.mulf %216, %220 : vector<8x8x32xf32>
    %222 = arith.addf %215, %221 : vector<8x8x32xf32>
    %c1_177 = arith.constant 1 : index
    %c0_178 = arith.constant 0 : index
    %c0_179 = arith.constant 0 : index
    %223 = vector.load %arg5[%c1_177, %c0_178, %c0_179] : memref<14x14x32xf32, #tpu.memory_space<vmem>>, vector<8x8x32xf32>
    %c0_180 = arith.constant 0 : index
    %c7_181 = arith.constant 7 : index
    %c0_182 = arith.constant 0 : index
    %224 = vector.load %arg3[%c0_180, %c7_181, %c0_182] : memref<1x49x32xf32, #tpu.memory_space<vmem>>, vector<1x1x32xf32>
    %225 = vector.shape_cast %224 : vector<1x1x32xf32> to vector<32xf32>
    %226 = vector.shape_cast %225 : vector<32xf32> to vector<1x1x32xf32>
    %227 = vector.broadcast %226 : vector<1x1x32xf32> to vector<8x8x32xf32>
    %228 = arith.mulf %223, %227 : vector<8x8x32xf32>
    %c1_183 = arith.constant 1 : index
    %c1_184 = arith.constant 1 : index
    %c0_185 = arith.constant 0 : index
    %229 = vector.load %arg5[%c1_183, %c1_184, %c0_185] : memref<14x14x32xf32, #tpu.memory_space<vmem>>, vector<8x8x32xf32>
    %c0_186 = arith.constant 0 : index
    %c8_187 = arith.constant 8 : index
    %c0_188 = arith.constant 0 : index
    %230 = vector.load %arg3[%c0_186, %c8_187, %c0_188] : memref<1x49x32xf32, #tpu.memory_space<vmem>>, vector<1x1x32xf32>
    %231 = vector.shape_cast %230 : vector<1x1x32xf32> to vector<32xf32>
    %232 = vector.shape_cast %231 : vector<32xf32> to vector<1x1x32xf32>
    %233 = vector.broadcast %232 : vector<1x1x32xf32> to vector<8x8x32xf32>
    %234 = arith.mulf %229, %233 : vector<8x8x32xf32>
    %235 = arith.addf %228, %234 : vector<8x8x32xf32>
    %c1_189 = arith.constant 1 : index
    %c2_190 = arith.constant 2 : index
    %c0_191 = arith.constant 0 : index
    %236 = vector.load %arg5[%c1_189, %c2_190, %c0_191] : memref<14x14x32xf32, #tpu.memory_space<vmem>>, vector<8x8x32xf32>
    %c0_192 = arith.constant 0 : index
    %c9_193 = arith.constant 9 : index
    %c0_194 = arith.constant 0 : index
    %237 = vector.load %arg3[%c0_192, %c9_193, %c0_194] : memref<1x49x32xf32, #tpu.memory_space<vmem>>, vector<1x1x32xf32>
    %238 = vector.shape_cast %237 : vector<1x1x32xf32> to vector<32xf32>
    %239 = vector.shape_cast %238 : vector<32xf32> to vector<1x1x32xf32>
    %240 = vector.broadcast %239 : vector<1x1x32xf32> to vector<8x8x32xf32>
    %241 = arith.mulf %236, %240 : vector<8x8x32xf32>
    %242 = arith.addf %235, %241 : vector<8x8x32xf32>
    %c1_195 = arith.constant 1 : index
    %c3_196 = arith.constant 3 : index
    %c0_197 = arith.constant 0 : index
    %243 = vector.load %arg5[%c1_195, %c3_196, %c0_197] : memref<14x14x32xf32, #tpu.memory_space<vmem>>, vector<8x8x32xf32>
    %c0_198 = arith.constant 0 : index
    %c10_199 = arith.constant 10 : index
    %c0_200 = arith.constant 0 : index
    %244 = vector.load %arg3[%c0_198, %c10_199, %c0_200] : memref<1x49x32xf32, #tpu.memory_space<vmem>>, vector<1x1x32xf32>
    %245 = vector.shape_cast %244 : vector<1x1x32xf32> to vector<32xf32>
    %246 = vector.shape_cast %245 : vector<32xf32> to vector<1x1x32xf32>
    %247 = vector.broadcast %246 : vector<1x1x32xf32> to vector<8x8x32xf32>
    %248 = arith.mulf %243, %247 : vector<8x8x32xf32>
    %249 = arith.addf %242, %248 : vector<8x8x32xf32>
    %c1_201 = arith.constant 1 : index
    %c4_202 = arith.constant 4 : index
    %c0_203 = arith.constant 0 : index
    %250 = vector.load %arg5[%c1_201, %c4_202, %c0_203] : memref<14x14x32xf32, #tpu.memory_space<vmem>>, vector<8x8x32xf32>
    %c0_204 = arith.constant 0 : index
    %c11_205 = arith.constant 11 : index
    %c0_206 = arith.constant 0 : index
    %251 = vector.load %arg3[%c0_204, %c11_205, %c0_206] : memref<1x49x32xf32, #tpu.memory_space<vmem>>, vector<1x1x32xf32>
    %252 = vector.shape_cast %251 : vector<1x1x32xf32> to vector<32xf32>
    %253 = vector.shape_cast %252 : vector<32xf32> to vector<1x1x32xf32>
    %254 = vector.broadcast %253 : vector<1x1x32xf32> to vector<8x8x32xf32>
    %255 = arith.mulf %250, %254 : vector<8x8x32xf32>
    %256 = arith.addf %249, %255 : vector<8x8x32xf32>
    %c1_207 = arith.constant 1 : index
    %c5_208 = arith.constant 5 : index
    %c0_209 = arith.constant 0 : index
    %257 = vector.load %arg5[%c1_207, %c5_208, %c0_209] : memref<14x14x32xf32, #tpu.memory_space<vmem>>, vector<8x8x32xf32>
    %c0_210 = arith.constant 0 : index
    %c12_211 = arith.constant 12 : index
    %c0_212 = arith.constant 0 : index
    %258 = vector.load %arg3[%c0_210, %c12_211, %c0_212] : memref<1x49x32xf32, #tpu.memory_space<vmem>>, vector<1x1x32xf32>
    %259 = vector.shape_cast %258 : vector<1x1x32xf32> to vector<32xf32>
    %260 = vector.shape_cast %259 : vector<32xf32> to vector<1x1x32xf32>
    %261 = vector.broadcast %260 : vector<1x1x32xf32> to vector<8x8x32xf32>
    %262 = arith.mulf %257, %261 : vector<8x8x32xf32>
    %263 = arith.addf %256, %262 : vector<8x8x32xf32>
    %c1_213 = arith.constant 1 : index
    %c6_214 = arith.constant 6 : index
    %c0_215 = arith.constant 0 : index
    %264 = vector.load %arg5[%c1_213, %c6_214, %c0_215] : memref<14x14x32xf32, #tpu.memory_space<vmem>>, vector<8x8x32xf32>
    %c0_216 = arith.constant 0 : index
    %c13_217 = arith.constant 13 : index
    %c0_218 = arith.constant 0 : index
    %265 = vector.load %arg3[%c0_216, %c13_217, %c0_218] : memref<1x49x32xf32, #tpu.memory_space<vmem>>, vector<1x1x32xf32>
    %266 = vector.shape_cast %265 : vector<1x1x32xf32> to vector<32xf32>
    %267 = vector.shape_cast %266 : vector<32xf32> to vector<1x1x32xf32>
    %268 = vector.broadcast %267 : vector<1x1x32xf32> to vector<8x8x32xf32>
    %269 = arith.mulf %264, %268 : vector<8x8x32xf32>
    %270 = arith.addf %263, %269 : vector<8x8x32xf32>
    %c2_219 = arith.constant 2 : index
    %c0_220 = arith.constant 0 : index
    %c0_221 = arith.constant 0 : index
    %271 = vector.load %arg5[%c2_219, %c0_220, %c0_221] : memref<14x14x32xf32, #tpu.memory_space<vmem>>, vector<8x8x32xf32>
    %c0_222 = arith.constant 0 : index
    %c14_223 = arith.constant 14 : index
    %c0_224 = arith.constant 0 : index
    %272 = vector.load %arg3[%c0_222, %c14_223, %c0_224] : memref<1x49x32xf32, #tpu.memory_space<vmem>>, vector<1x1x32xf32>
    %273 = vector.shape_cast %272 : vector<1x1x32xf32> to vector<32xf32>
    %274 = vector.shape_cast %273 : vector<32xf32> to vector<1x1x32xf32>
    %275 = vector.broadcast %274 : vector<1x1x32xf32> to vector<8x8x32xf32>
    %276 = arith.mulf %271, %275 : vector<8x8x32xf32>
    %c2_225 = arith.constant 2 : index
    %c1_226 = arith.constant 1 : index
    %c0_227 = arith.constant 0 : index
    %277 = vector.load %arg5[%c2_225, %c1_226, %c0_227] : memref<14x14x32xf32, #tpu.memory_space<vmem>>, vector<8x8x32xf32>
    %c0_228 = arith.constant 0 : index
    %c15_229 = arith.constant 15 : index
    %c0_230 = arith.constant 0 : index
    %278 = vector.load %arg3[%c0_228, %c15_229, %c0_230] : memref<1x49x32xf32, #tpu.memory_space<vmem>>, vector<1x1x32xf32>
    %279 = vector.shape_cast %278 : vector<1x1x32xf32> to vector<32xf32>
    %280 = vector.shape_cast %279 : vector<32xf32> to vector<1x1x32xf32>
    %281 = vector.broadcast %280 : vector<1x1x32xf32> to vector<8x8x32xf32>
    %282 = arith.mulf %277, %281 : vector<8x8x32xf32>
    %283 = arith.addf %276, %282 : vector<8x8x32xf32>
    %c2_231 = arith.constant 2 : index
    %c2_232 = arith.constant 2 : index
    %c0_233 = arith.constant 0 : index
    %284 = vector.load %arg5[%c2_231, %c2_232, %c0_233] : memref<14x14x32xf32, #tpu.memory_space<vmem>>, vector<8x8x32xf32>
    %c0_234 = arith.constant 0 : index
    %c16_235 = arith.constant 16 : index
    %c0_236 = arith.constant 0 : index
    %285 = vector.load %arg3[%c0_234, %c16_235, %c0_236] : memref<1x49x32xf32, #tpu.memory_space<vmem>>, vector<1x1x32xf32>
    %286 = vector.shape_cast %285 : vector<1x1x32xf32> to vector<32xf32>
    %287 = vector.shape_cast %286 : vector<32xf32> to vector<1x1x32xf32>
    %288 = vector.broadcast %287 : vector<1x1x32xf32> to vector<8x8x32xf32>
    %289 = arith.mulf %284, %288 : vector<8x8x32xf32>
    %290 = arith.addf %283, %289 : vector<8x8x32xf32>
    %c2_237 = arith.constant 2 : index
    %c3_238 = arith.constant 3 : index
    %c0_239 = arith.constant 0 : index
    %291 = vector.load %arg5[%c2_237, %c3_238, %c0_239] : memref<14x14x32xf32, #tpu.memory_space<vmem>>, vector<8x8x32xf32>
    %c0_240 = arith.constant 0 : index
    %c17_241 = arith.constant 17 : index
    %c0_242 = arith.constant 0 : index
    %292 = vector.load %arg3[%c0_240, %c17_241, %c0_242] : memref<1x49x32xf32, #tpu.memory_space<vmem>>, vector<1x1x32xf32>
    %293 = vector.shape_cast %292 : vector<1x1x32xf32> to vector<32xf32>
    %294 = vector.shape_cast %293 : vector<32xf32> to vector<1x1x32xf32>
    %295 = vector.broadcast %294 : vector<1x1x32xf32> to vector<8x8x32xf32>
    %296 = arith.mulf %291, %295 : vector<8x8x32xf32>
    %297 = arith.addf %290, %296 : vector<8x8x32xf32>
    %c2_243 = arith.constant 2 : index
    %c4_244 = arith.constant 4 : index
    %c0_245 = arith.constant 0 : index
    %298 = vector.load %arg5[%c2_243, %c4_244, %c0_245] : memref<14x14x32xf32, #tpu.memory_space<vmem>>, vector<8x8x32xf32>
    %c0_246 = arith.constant 0 : index
    %c18_247 = arith.constant 18 : index
    %c0_248 = arith.constant 0 : index
    %299 = vector.load %arg3[%c0_246, %c18_247, %c0_248] : memref<1x49x32xf32, #tpu.memory_space<vmem>>, vector<1x1x32xf32>
    %300 = vector.shape_cast %299 : vector<1x1x32xf32> to vector<32xf32>
    %301 = vector.shape_cast %300 : vector<32xf32> to vector<1x1x32xf32>
    %302 = vector.broadcast %301 : vector<1x1x32xf32> to vector<8x8x32xf32>
    %303 = arith.mulf %298, %302 : vector<8x8x32xf32>
    %304 = arith.addf %297, %303 : vector<8x8x32xf32>
    %c2_249 = arith.constant 2 : index
    %c5_250 = arith.constant 5 : index
    %c0_251 = arith.constant 0 : index
    %305 = vector.load %arg5[%c2_249, %c5_250, %c0_251] : memref<14x14x32xf32, #tpu.memory_space<vmem>>, vector<8x8x32xf32>
    %c0_252 = arith.constant 0 : index
    %c19_253 = arith.constant 19 : index
    %c0_254 = arith.constant 0 : index
    %306 = vector.load %arg3[%c0_252, %c19_253, %c0_254] : memref<1x49x32xf32, #tpu.memory_space<vmem>>, vector<1x1x32xf32>
    %307 = vector.shape_cast %306 : vector<1x1x32xf32> to vector<32xf32>
    %308 = vector.shape_cast %307 : vector<32xf32> to vector<1x1x32xf32>
    %309 = vector.broadcast %308 : vector<1x1x32xf32> to vector<8x8x32xf32>
    %310 = arith.mulf %305, %309 : vector<8x8x32xf32>
    %311 = arith.addf %304, %310 : vector<8x8x32xf32>
    %c2_255 = arith.constant 2 : index
    %c6_256 = arith.constant 6 : index
    %c0_257 = arith.constant 0 : index
    %312 = vector.load %arg5[%c2_255, %c6_256, %c0_257] : memref<14x14x32xf32, #tpu.memory_space<vmem>>, vector<8x8x32xf32>
    %c0_258 = arith.constant 0 : index
    %c20_259 = arith.constant 20 : index
    %c0_260 = arith.constant 0 : index
    %313 = vector.load %arg3[%c0_258, %c20_259, %c0_260] : memref<1x49x32xf32, #tpu.memory_space<vmem>>, vector<1x1x32xf32>
    %314 = vector.shape_cast %313 : vector<1x1x32xf32> to vector<32xf32>
    %315 = vector.shape_cast %314 : vector<32xf32> to vector<1x1x32xf32>
    %316 = vector.broadcast %315 : vector<1x1x32xf32> to vector<8x8x32xf32>
    %317 = arith.mulf %312, %316 : vector<8x8x32xf32>
    %318 = arith.addf %311, %317 : vector<8x8x32xf32>
    %c3_261 = arith.constant 3 : index
    %c0_262 = arith.constant 0 : index
    %c0_263 = arith.constant 0 : index
    %319 = vector.load %arg5[%c3_261, %c0_262, %c0_263] : memref<14x14x32xf32, #tpu.memory_space<vmem>>, vector<8x8x32xf32>
    %c0_264 = arith.constant 0 : index
    %c21_265 = arith.constant 21 : index
    %c0_266 = arith.constant 0 : index
    %320 = vector.load %arg3[%c0_264, %c21_265, %c0_266] : memref<1x49x32xf32, #tpu.memory_space<vmem>>, vector<1x1x32xf32>
    %321 = vector.shape_cast %320 : vector<1x1x32xf32> to vector<32xf32>
    %322 = vector.shape_cast %321 : vector<32xf32> to vector<1x1x32xf32>
    %323 = vector.broadcast %322 : vector<1x1x32xf32> to vector<8x8x32xf32>
    %324 = arith.mulf %319, %323 : vector<8x8x32xf32>
    %c3_267 = arith.constant 3 : index
    %c1_268 = arith.constant 1 : index
    %c0_269 = arith.constant 0 : index
    %325 = vector.load %arg5[%c3_267, %c1_268, %c0_269] : memref<14x14x32xf32, #tpu.memory_space<vmem>>, vector<8x8x32xf32>
    %c0_270 = arith.constant 0 : index
    %c22_271 = arith.constant 22 : index
    %c0_272 = arith.constant 0 : index
    %326 = vector.load %arg3[%c0_270, %c22_271, %c0_272] : memref<1x49x32xf32, #tpu.memory_space<vmem>>, vector<1x1x32xf32>
    %327 = vector.shape_cast %326 : vector<1x1x32xf32> to vector<32xf32>
    %328 = vector.shape_cast %327 : vector<32xf32> to vector<1x1x32xf32>
    %329 = vector.broadcast %328 : vector<1x1x32xf32> to vector<8x8x32xf32>
    %330 = arith.mulf %325, %329 : vector<8x8x32xf32>
    %331 = arith.addf %324, %330 : vector<8x8x32xf32>
    %c3_273 = arith.constant 3 : index
    %c2_274 = arith.constant 2 : index
    %c0_275 = arith.constant 0 : index
    %332 = vector.load %arg5[%c3_273, %c2_274, %c0_275] : memref<14x14x32xf32, #tpu.memory_space<vmem>>, vector<8x8x32xf32>
    %c0_276 = arith.constant 0 : index
    %c23_277 = arith.constant 23 : index
    %c0_278 = arith.constant 0 : index
    %333 = vector.load %arg3[%c0_276, %c23_277, %c0_278] : memref<1x49x32xf32, #tpu.memory_space<vmem>>, vector<1x1x32xf32>
    %334 = vector.shape_cast %333 : vector<1x1x32xf32> to vector<32xf32>
    %335 = vector.shape_cast %334 : vector<32xf32> to vector<1x1x32xf32>
    %336 = vector.broadcast %335 : vector<1x1x32xf32> to vector<8x8x32xf32>
    %337 = arith.mulf %332, %336 : vector<8x8x32xf32>
    %338 = arith.addf %331, %337 : vector<8x8x32xf32>
    %c3_279 = arith.constant 3 : index
    %c3_280 = arith.constant 3 : index
    %c0_281 = arith.constant 0 : index
    %339 = vector.load %arg5[%c3_279, %c3_280, %c0_281] : memref<14x14x32xf32, #tpu.memory_space<vmem>>, vector<8x8x32xf32>
    %c0_282 = arith.constant 0 : index
    %c24_283 = arith.constant 24 : index
    %c0_284 = arith.constant 0 : index
    %340 = vector.load %arg3[%c0_282, %c24_283, %c0_284] : memref<1x49x32xf32, #tpu.memory_space<vmem>>, vector<1x1x32xf32>
    %341 = vector.shape_cast %340 : vector<1x1x32xf32> to vector<32xf32>
    %342 = vector.shape_cast %341 : vector<32xf32> to vector<1x1x32xf32>
    %343 = vector.broadcast %342 : vector<1x1x32xf32> to vector<8x8x32xf32>
    %344 = arith.mulf %339, %343 : vector<8x8x32xf32>
    %345 = arith.addf %338, %344 : vector<8x8x32xf32>
    %c3_285 = arith.constant 3 : index
    %c4_286 = arith.constant 4 : index
    %c0_287 = arith.constant 0 : index
    %346 = vector.load %arg5[%c3_285, %c4_286, %c0_287] : memref<14x14x32xf32, #tpu.memory_space<vmem>>, vector<8x8x32xf32>
    %c0_288 = arith.constant 0 : index
    %c25 = arith.constant 25 : index
    %c0_289 = arith.constant 0 : index
    %347 = vector.load %arg3[%c0_288, %c25, %c0_289] : memref<1x49x32xf32, #tpu.memory_space<vmem>>, vector<1x1x32xf32>
    %348 = vector.shape_cast %347 : vector<1x1x32xf32> to vector<32xf32>
    %349 = vector.shape_cast %348 : vector<32xf32> to vector<1x1x32xf32>
    %350 = vector.broadcast %349 : vector<1x1x32xf32> to vector<8x8x32xf32>
    %351 = arith.mulf %346, %350 : vector<8x8x32xf32>
    %352 = arith.addf %345, %351 : vector<8x8x32xf32>
    %c3_290 = arith.constant 3 : index
    %c5_291 = arith.constant 5 : index
    %c0_292 = arith.constant 0 : index
    %353 = vector.load %arg5[%c3_290, %c5_291, %c0_292] : memref<14x14x32xf32, #tpu.memory_space<vmem>>, vector<8x8x32xf32>
    %c0_293 = arith.constant 0 : index
    %c26 = arith.constant 26 : index
    %c0_294 = arith.constant 0 : index
    %354 = vector.load %arg3[%c0_293, %c26, %c0_294] : memref<1x49x32xf32, #tpu.memory_space<vmem>>, vector<1x1x32xf32>
    %355 = vector.shape_cast %354 : vector<1x1x32xf32> to vector<32xf32>
    %356 = vector.shape_cast %355 : vector<32xf32> to vector<1x1x32xf32>
    %357 = vector.broadcast %356 : vector<1x1x32xf32> to vector<8x8x32xf32>
    %358 = arith.mulf %353, %357 : vector<8x8x32xf32>
    %359 = arith.addf %352, %358 : vector<8x8x32xf32>
    %c3_295 = arith.constant 3 : index
    %c6_296 = arith.constant 6 : index
    %c0_297 = arith.constant 0 : index
    %360 = vector.load %arg5[%c3_295, %c6_296, %c0_297] : memref<14x14x32xf32, #tpu.memory_space<vmem>>, vector<8x8x32xf32>
    %c0_298 = arith.constant 0 : index
    %c27 = arith.constant 27 : index
    %c0_299 = arith.constant 0 : index
    %361 = vector.load %arg3[%c0_298, %c27, %c0_299] : memref<1x49x32xf32, #tpu.memory_space<vmem>>, vector<1x1x32xf32>
    %362 = vector.shape_cast %361 : vector<1x1x32xf32> to vector<32xf32>
    %363 = vector.shape_cast %362 : vector<32xf32> to vector<1x1x32xf32>
    %364 = vector.broadcast %363 : vector<1x1x32xf32> to vector<8x8x32xf32>
    %365 = arith.mulf %360, %364 : vector<8x8x32xf32>
    %366 = arith.addf %359, %365 : vector<8x8x32xf32>
    %c4_300 = arith.constant 4 : index
    %c0_301 = arith.constant 0 : index
    %c0_302 = arith.constant 0 : index
    %367 = vector.load %arg5[%c4_300, %c0_301, %c0_302] : memref<14x14x32xf32, #tpu.memory_space<vmem>>, vector<8x8x32xf32>
    %c0_303 = arith.constant 0 : index
    %c28 = arith.constant 28 : index
    %c0_304 = arith.constant 0 : index
    %368 = vector.load %arg3[%c0_303, %c28, %c0_304] : memref<1x49x32xf32, #tpu.memory_space<vmem>>, vector<1x1x32xf32>
    %369 = vector.shape_cast %368 : vector<1x1x32xf32> to vector<32xf32>
    %370 = vector.shape_cast %369 : vector<32xf32> to vector<1x1x32xf32>
    %371 = vector.broadcast %370 : vector<1x1x32xf32> to vector<8x8x32xf32>
    %372 = arith.mulf %367, %371 : vector<8x8x32xf32>
    %c4_305 = arith.constant 4 : index
    %c1_306 = arith.constant 1 : index
    %c0_307 = arith.constant 0 : index
    %373 = vector.load %arg5[%c4_305, %c1_306, %c0_307] : memref<14x14x32xf32, #tpu.memory_space<vmem>>, vector<8x8x32xf32>
    %c0_308 = arith.constant 0 : index
    %c29 = arith.constant 29 : index
    %c0_309 = arith.constant 0 : index
    %374 = vector.load %arg3[%c0_308, %c29, %c0_309] : memref<1x49x32xf32, #tpu.memory_space<vmem>>, vector<1x1x32xf32>
    %375 = vector.shape_cast %374 : vector<1x1x32xf32> to vector<32xf32>
    %376 = vector.shape_cast %375 : vector<32xf32> to vector<1x1x32xf32>
    %377 = vector.broadcast %376 : vector<1x1x32xf32> to vector<8x8x32xf32>
    %378 = arith.mulf %373, %377 : vector<8x8x32xf32>
    %379 = arith.addf %372, %378 : vector<8x8x32xf32>
    %c4_310 = arith.constant 4 : index
    %c2_311 = arith.constant 2 : index
    %c0_312 = arith.constant 0 : index
    %380 = vector.load %arg5[%c4_310, %c2_311, %c0_312] : memref<14x14x32xf32, #tpu.memory_space<vmem>>, vector<8x8x32xf32>
    %c0_313 = arith.constant 0 : index
    %c30 = arith.constant 30 : index
    %c0_314 = arith.constant 0 : index
    %381 = vector.load %arg3[%c0_313, %c30, %c0_314] : memref<1x49x32xf32, #tpu.memory_space<vmem>>, vector<1x1x32xf32>
    %382 = vector.shape_cast %381 : vector<1x1x32xf32> to vector<32xf32>
    %383 = vector.shape_cast %382 : vector<32xf32> to vector<1x1x32xf32>
    %384 = vector.broadcast %383 : vector<1x1x32xf32> to vector<8x8x32xf32>
    %385 = arith.mulf %380, %384 : vector<8x8x32xf32>
    %386 = arith.addf %379, %385 : vector<8x8x32xf32>
    %c4_315 = arith.constant 4 : index
    %c3_316 = arith.constant 3 : index
    %c0_317 = arith.constant 0 : index
    %387 = vector.load %arg5[%c4_315, %c3_316, %c0_317] : memref<14x14x32xf32, #tpu.memory_space<vmem>>, vector<8x8x32xf32>
    %c0_318 = arith.constant 0 : index
    %c31 = arith.constant 31 : index
    %c0_319 = arith.constant 0 : index
    %388 = vector.load %arg3[%c0_318, %c31, %c0_319] : memref<1x49x32xf32, #tpu.memory_space<vmem>>, vector<1x1x32xf32>
    %389 = vector.shape_cast %388 : vector<1x1x32xf32> to vector<32xf32>
    %390 = vector.shape_cast %389 : vector<32xf32> to vector<1x1x32xf32>
    %391 = vector.broadcast %390 : vector<1x1x32xf32> to vector<8x8x32xf32>
    %392 = arith.mulf %387, %391 : vector<8x8x32xf32>
    %393 = arith.addf %386, %392 : vector<8x8x32xf32>
    %c4_320 = arith.constant 4 : index
    %c4_321 = arith.constant 4 : index
    %c0_322 = arith.constant 0 : index
    %394 = vector.load %arg5[%c4_320, %c4_321, %c0_322] : memref<14x14x32xf32, #tpu.memory_space<vmem>>, vector<8x8x32xf32>
    %c0_323 = arith.constant 0 : index
    %c32 = arith.constant 32 : index
    %c0_324 = arith.constant 0 : index
    %395 = vector.load %arg3[%c0_323, %c32, %c0_324] : memref<1x49x32xf32, #tpu.memory_space<vmem>>, vector<1x1x32xf32>
    %396 = vector.shape_cast %395 : vector<1x1x32xf32> to vector<32xf32>
    %397 = vector.shape_cast %396 : vector<32xf32> to vector<1x1x32xf32>
    %398 = vector.broadcast %397 : vector<1x1x32xf32> to vector<8x8x32xf32>
    %399 = arith.mulf %394, %398 : vector<8x8x32xf32>
    %400 = arith.addf %393, %399 : vector<8x8x32xf32>
    %c4_325 = arith.constant 4 : index
    %c5_326 = arith.constant 5 : index
    %c0_327 = arith.constant 0 : index
    %401 = vector.load %arg5[%c4_325, %c5_326, %c0_327] : memref<14x14x32xf32, #tpu.memory_space<vmem>>, vector<8x8x32xf32>
    %c0_328 = arith.constant 0 : index
    %c33 = arith.constant 33 : index
    %c0_329 = arith.constant 0 : index
    %402 = vector.load %arg3[%c0_328, %c33, %c0_329] : memref<1x49x32xf32, #tpu.memory_space<vmem>>, vector<1x1x32xf32>
    %403 = vector.shape_cast %402 : vector<1x1x32xf32> to vector<32xf32>
    %404 = vector.shape_cast %403 : vector<32xf32> to vector<1x1x32xf32>
    %405 = vector.broadcast %404 : vector<1x1x32xf32> to vector<8x8x32xf32>
    %406 = arith.mulf %401, %405 : vector<8x8x32xf32>
    %407 = arith.addf %400, %406 : vector<8x8x32xf32>
    %c4_330 = arith.constant 4 : index
    %c6_331 = arith.constant 6 : index
    %c0_332 = arith.constant 0 : index
    %408 = vector.load %arg5[%c4_330, %c6_331, %c0_332] : memref<14x14x32xf32, #tpu.memory_space<vmem>>, vector<8x8x32xf32>
    %c0_333 = arith.constant 0 : index
    %c34 = arith.constant 34 : index
    %c0_334 = arith.constant 0 : index
    %409 = vector.load %arg3[%c0_333, %c34, %c0_334] : memref<1x49x32xf32, #tpu.memory_space<vmem>>, vector<1x1x32xf32>
    %410 = vector.shape_cast %409 : vector<1x1x32xf32> to vector<32xf32>
    %411 = vector.shape_cast %410 : vector<32xf32> to vector<1x1x32xf32>
    %412 = vector.broadcast %411 : vector<1x1x32xf32> to vector<8x8x32xf32>
    %413 = arith.mulf %408, %412 : vector<8x8x32xf32>
    %414 = arith.addf %407, %413 : vector<8x8x32xf32>
    %c5_335 = arith.constant 5 : index
    %c0_336 = arith.constant 0 : index
    %c0_337 = arith.constant 0 : index
    %415 = vector.load %arg5[%c5_335, %c0_336, %c0_337] : memref<14x14x32xf32, #tpu.memory_space<vmem>>, vector<8x8x32xf32>
    %c0_338 = arith.constant 0 : index
    %c35 = arith.constant 35 : index
    %c0_339 = arith.constant 0 : index
    %416 = vector.load %arg3[%c0_338, %c35, %c0_339] : memref<1x49x32xf32, #tpu.memory_space<vmem>>, vector<1x1x32xf32>
    %417 = vector.shape_cast %416 : vector<1x1x32xf32> to vector<32xf32>
    %418 = vector.shape_cast %417 : vector<32xf32> to vector<1x1x32xf32>
    %419 = vector.broadcast %418 : vector<1x1x32xf32> to vector<8x8x32xf32>
    %420 = arith.mulf %415, %419 : vector<8x8x32xf32>
    %c5_340 = arith.constant 5 : index
    %c1_341 = arith.constant 1 : index
    %c0_342 = arith.constant 0 : index
    %421 = vector.load %arg5[%c5_340, %c1_341, %c0_342] : memref<14x14x32xf32, #tpu.memory_space<vmem>>, vector<8x8x32xf32>
    %c0_343 = arith.constant 0 : index
    %c36 = arith.constant 36 : index
    %c0_344 = arith.constant 0 : index
    %422 = vector.load %arg3[%c0_343, %c36, %c0_344] : memref<1x49x32xf32, #tpu.memory_space<vmem>>, vector<1x1x32xf32>
    %423 = vector.shape_cast %422 : vector<1x1x32xf32> to vector<32xf32>
    %424 = vector.shape_cast %423 : vector<32xf32> to vector<1x1x32xf32>
    %425 = vector.broadcast %424 : vector<1x1x32xf32> to vector<8x8x32xf32>
    %426 = arith.mulf %421, %425 : vector<8x8x32xf32>
    %427 = arith.addf %420, %426 : vector<8x8x32xf32>
    %c5_345 = arith.constant 5 : index
    %c2_346 = arith.constant 2 : index
    %c0_347 = arith.constant 0 : index
    %428 = vector.load %arg5[%c5_345, %c2_346, %c0_347] : memref<14x14x32xf32, #tpu.memory_space<vmem>>, vector<8x8x32xf32>
    %c0_348 = arith.constant 0 : index
    %c37 = arith.constant 37 : index
    %c0_349 = arith.constant 0 : index
    %429 = vector.load %arg3[%c0_348, %c37, %c0_349] : memref<1x49x32xf32, #tpu.memory_space<vmem>>, vector<1x1x32xf32>
    %430 = vector.shape_cast %429 : vector<1x1x32xf32> to vector<32xf32>
    %431 = vector.shape_cast %430 : vector<32xf32> to vector<1x1x32xf32>
    %432 = vector.broadcast %431 : vector<1x1x32xf32> to vector<8x8x32xf32>
    %433 = arith.mulf %428, %432 : vector<8x8x32xf32>
    %434 = arith.addf %427, %433 : vector<8x8x32xf32>
    %c5_350 = arith.constant 5 : index
    %c3_351 = arith.constant 3 : index
    %c0_352 = arith.constant 0 : index
    %435 = vector.load %arg5[%c5_350, %c3_351, %c0_352] : memref<14x14x32xf32, #tpu.memory_space<vmem>>, vector<8x8x32xf32>
    %c0_353 = arith.constant 0 : index
    %c38 = arith.constant 38 : index
    %c0_354 = arith.constant 0 : index
    %436 = vector.load %arg3[%c0_353, %c38, %c0_354] : memref<1x49x32xf32, #tpu.memory_space<vmem>>, vector<1x1x32xf32>
    %437 = vector.shape_cast %436 : vector<1x1x32xf32> to vector<32xf32>
    %438 = vector.shape_cast %437 : vector<32xf32> to vector<1x1x32xf32>
    %439 = vector.broadcast %438 : vector<1x1x32xf32> to vector<8x8x32xf32>
    %440 = arith.mulf %435, %439 : vector<8x8x32xf32>
    %441 = arith.addf %434, %440 : vector<8x8x32xf32>
    %c5_355 = arith.constant 5 : index
    %c4_356 = arith.constant 4 : index
    %c0_357 = arith.constant 0 : index
    %442 = vector.load %arg5[%c5_355, %c4_356, %c0_357] : memref<14x14x32xf32, #tpu.memory_space<vmem>>, vector<8x8x32xf32>
    %c0_358 = arith.constant 0 : index
    %c39 = arith.constant 39 : index
    %c0_359 = arith.constant 0 : index
    %443 = vector.load %arg3[%c0_358, %c39, %c0_359] : memref<1x49x32xf32, #tpu.memory_space<vmem>>, vector<1x1x32xf32>
    %444 = vector.shape_cast %443 : vector<1x1x32xf32> to vector<32xf32>
    %445 = vector.shape_cast %444 : vector<32xf32> to vector<1x1x32xf32>
    %446 = vector.broadcast %445 : vector<1x1x32xf32> to vector<8x8x32xf32>
    %447 = arith.mulf %442, %446 : vector<8x8x32xf32>
    %448 = arith.addf %441, %447 : vector<8x8x32xf32>
    %c5_360 = arith.constant 5 : index
    %c5_361 = arith.constant 5 : index
    %c0_362 = arith.constant 0 : index
    %449 = vector.load %arg5[%c5_360, %c5_361, %c0_362] : memref<14x14x32xf32, #tpu.memory_space<vmem>>, vector<8x8x32xf32>
    %c0_363 = arith.constant 0 : index
    %c40 = arith.constant 40 : index
    %c0_364 = arith.constant 0 : index
    %450 = vector.load %arg3[%c0_363, %c40, %c0_364] : memref<1x49x32xf32, #tpu.memory_space<vmem>>, vector<1x1x32xf32>
    %451 = vector.shape_cast %450 : vector<1x1x32xf32> to vector<32xf32>
    %452 = vector.shape_cast %451 : vector<32xf32> to vector<1x1x32xf32>
    %453 = vector.broadcast %452 : vector<1x1x32xf32> to vector<8x8x32xf32>
    %454 = arith.mulf %449, %453 : vector<8x8x32xf32>
    %455 = arith.addf %448, %454 : vector<8x8x32xf32>
    %c5_365 = arith.constant 5 : index
    %c6_366 = arith.constant 6 : index
    %c0_367 = arith.constant 0 : index
    %456 = vector.load %arg5[%c5_365, %c6_366, %c0_367] : memref<14x14x32xf32, #tpu.memory_space<vmem>>, vector<8x8x32xf32>
    %c0_368 = arith.constant 0 : index
    %c41 = arith.constant 41 : index
    %c0_369 = arith.constant 0 : index
    %457 = vector.load %arg3[%c0_368, %c41, %c0_369] : memref<1x49x32xf32, #tpu.memory_space<vmem>>, vector<1x1x32xf32>
    %458 = vector.shape_cast %457 : vector<1x1x32xf32> to vector<32xf32>
    %459 = vector.shape_cast %458 : vector<32xf32> to vector<1x1x32xf32>
    %460 = vector.broadcast %459 : vector<1x1x32xf32> to vector<8x8x32xf32>
    %461 = arith.mulf %456, %460 : vector<8x8x32xf32>
    %462 = arith.addf %455, %461 : vector<8x8x32xf32>
    %c6_370 = arith.constant 6 : index
    %c0_371 = arith.constant 0 : index
    %c0_372 = arith.constant 0 : index
    %463 = vector.load %arg5[%c6_370, %c0_371, %c0_372] : memref<14x14x32xf32, #tpu.memory_space<vmem>>, vector<8x8x32xf32>
    %c0_373 = arith.constant 0 : index
    %c42 = arith.constant 42 : index
    %c0_374 = arith.constant 0 : index
    %464 = vector.load %arg3[%c0_373, %c42, %c0_374] : memref<1x49x32xf32, #tpu.memory_space<vmem>>, vector<1x1x32xf32>
    %465 = vector.shape_cast %464 : vector<1x1x32xf32> to vector<32xf32>
    %466 = vector.shape_cast %465 : vector<32xf32> to vector<1x1x32xf32>
    %467 = vector.broadcast %466 : vector<1x1x32xf32> to vector<8x8x32xf32>
    %468 = arith.mulf %463, %467 : vector<8x8x32xf32>
    %c6_375 = arith.constant 6 : index
    %c1_376 = arith.constant 1 : index
    %c0_377 = arith.constant 0 : index
    %469 = vector.load %arg5[%c6_375, %c1_376, %c0_377] : memref<14x14x32xf32, #tpu.memory_space<vmem>>, vector<8x8x32xf32>
    %c0_378 = arith.constant 0 : index
    %c43 = arith.constant 43 : index
    %c0_379 = arith.constant 0 : index
    %470 = vector.load %arg3[%c0_378, %c43, %c0_379] : memref<1x49x32xf32, #tpu.memory_space<vmem>>, vector<1x1x32xf32>
    %471 = vector.shape_cast %470 : vector<1x1x32xf32> to vector<32xf32>
    %472 = vector.shape_cast %471 : vector<32xf32> to vector<1x1x32xf32>
    %473 = vector.broadcast %472 : vector<1x1x32xf32> to vector<8x8x32xf32>
    %474 = arith.mulf %469, %473 : vector<8x8x32xf32>
    %475 = arith.addf %468, %474 : vector<8x8x32xf32>
    %c6_380 = arith.constant 6 : index
    %c2_381 = arith.constant 2 : index
    %c0_382 = arith.constant 0 : index
    %476 = vector.load %arg5[%c6_380, %c2_381, %c0_382] : memref<14x14x32xf32, #tpu.memory_space<vmem>>, vector<8x8x32xf32>
    %c0_383 = arith.constant 0 : index
    %c44 = arith.constant 44 : index
    %c0_384 = arith.constant 0 : index
    %477 = vector.load %arg3[%c0_383, %c44, %c0_384] : memref<1x49x32xf32, #tpu.memory_space<vmem>>, vector<1x1x32xf32>
    %478 = vector.shape_cast %477 : vector<1x1x32xf32> to vector<32xf32>
    %479 = vector.shape_cast %478 : vector<32xf32> to vector<1x1x32xf32>
    %480 = vector.broadcast %479 : vector<1x1x32xf32> to vector<8x8x32xf32>
    %481 = arith.mulf %476, %480 : vector<8x8x32xf32>
    %482 = arith.addf %475, %481 : vector<8x8x32xf32>
    %c6_385 = arith.constant 6 : index
    %c3_386 = arith.constant 3 : index
    %c0_387 = arith.constant 0 : index
    %483 = vector.load %arg5[%c6_385, %c3_386, %c0_387] : memref<14x14x32xf32, #tpu.memory_space<vmem>>, vector<8x8x32xf32>
    %c0_388 = arith.constant 0 : index
    %c45 = arith.constant 45 : index
    %c0_389 = arith.constant 0 : index
    %484 = vector.load %arg3[%c0_388, %c45, %c0_389] : memref<1x49x32xf32, #tpu.memory_space<vmem>>, vector<1x1x32xf32>
    %485 = vector.shape_cast %484 : vector<1x1x32xf32> to vector<32xf32>
    %486 = vector.shape_cast %485 : vector<32xf32> to vector<1x1x32xf32>
    %487 = vector.broadcast %486 : vector<1x1x32xf32> to vector<8x8x32xf32>
    %488 = arith.mulf %483, %487 : vector<8x8x32xf32>
    %489 = arith.addf %482, %488 : vector<8x8x32xf32>
    %c6_390 = arith.constant 6 : index
    %c4_391 = arith.constant 4 : index
    %c0_392 = arith.constant 0 : index
    %490 = vector.load %arg5[%c6_390, %c4_391, %c0_392] : memref<14x14x32xf32, #tpu.memory_space<vmem>>, vector<8x8x32xf32>
    %c0_393 = arith.constant 0 : index
    %c46 = arith.constant 46 : index
    %c0_394 = arith.constant 0 : index
    %491 = vector.load %arg3[%c0_393, %c46, %c0_394] : memref<1x49x32xf32, #tpu.memory_space<vmem>>, vector<1x1x32xf32>
    %492 = vector.shape_cast %491 : vector<1x1x32xf32> to vector<32xf32>
    %493 = vector.shape_cast %492 : vector<32xf32> to vector<1x1x32xf32>
    %494 = vector.broadcast %493 : vector<1x1x32xf32> to vector<8x8x32xf32>
    %495 = arith.mulf %490, %494 : vector<8x8x32xf32>
    %496 = arith.addf %489, %495 : vector<8x8x32xf32>
    %c6_395 = arith.constant 6 : index
    %c5_396 = arith.constant 5 : index
    %c0_397 = arith.constant 0 : index
    %497 = vector.load %arg5[%c6_395, %c5_396, %c0_397] : memref<14x14x32xf32, #tpu.memory_space<vmem>>, vector<8x8x32xf32>
    %c0_398 = arith.constant 0 : index
    %c47 = arith.constant 47 : index
    %c0_399 = arith.constant 0 : index
    %498 = vector.load %arg3[%c0_398, %c47, %c0_399] : memref<1x49x32xf32, #tpu.memory_space<vmem>>, vector<1x1x32xf32>
    %499 = vector.shape_cast %498 : vector<1x1x32xf32> to vector<32xf32>
    %500 = vector.shape_cast %499 : vector<32xf32> to vector<1x1x32xf32>
    %501 = vector.broadcast %500 : vector<1x1x32xf32> to vector<8x8x32xf32>
    %502 = arith.mulf %497, %501 : vector<8x8x32xf32>
    %503 = arith.addf %496, %502 : vector<8x8x32xf32>
    %c6_400 = arith.constant 6 : index
    %c6_401 = arith.constant 6 : index
    %c0_402 = arith.constant 0 : index
    %504 = vector.load %arg5[%c6_400, %c6_401, %c0_402] : memref<14x14x32xf32, #tpu.memory_space<vmem>>, vector<8x8x32xf32>
    %c0_403 = arith.constant 0 : index
    %c48 = arith.constant 48 : index
    %c0_404 = arith.constant 0 : index
    %505 = vector.load %arg3[%c0_403, %c48, %c0_404] : memref<1x49x32xf32, #tpu.memory_space<vmem>>, vector<1x1x32xf32>
    %506 = vector.shape_cast %505 : vector<1x1x32xf32> to vector<32xf32>
    %507 = vector.shape_cast %506 : vector<32xf32> to vector<1x1x32xf32>
    %508 = vector.broadcast %507 : vector<1x1x32xf32> to vector<8x8x32xf32>
    %509 = arith.mulf %504, %508 : vector<8x8x32xf32>
    %510 = arith.addf %503, %509 : vector<8x8x32xf32>
    %511 = arith.addf %38, %72 : vector<8x8x32xf32>
    %512 = arith.addf %106, %140 : vector<8x8x32xf32>
    %513 = arith.addf %174, %222 : vector<8x8x32xf32>
    %514 = arith.addf %270, %318 : vector<8x8x32xf32>
    %515 = arith.addf %366, %414 : vector<8x8x32xf32>
    %516 = arith.addf %462, %510 : vector<8x8x32xf32>
    %517 = arith.addf %511, %512 : vector<8x8x32xf32>
    %518 = arith.addf %513, %514 : vector<8x8x32xf32>
    %519 = arith.addf %515, %516 : vector<8x8x32xf32>
    %520 = arith.addf %517, %518 : vector<8x8x32xf32>
    %521 = arith.addf %520, %519 : vector<8x8x32xf32>
    %cst_405 = arith.constant 5.000000e-01 : f32
    %522 = vector.broadcast %cst_405 : f32 to vector<8x8x32xf32>
    %523 = arith.mulf %521, %522 : vector<8x8x32xf32>
    %524 = arith.addf %1, %523 : vector<8x8x32xf32>
    %525 = vector.shape_cast %524 : vector<8x8x32xf32> to vector<64x32xf32>
    %526 = tpu.transpose %525, [1, 0] : vector<64x32xf32> -> vector<32x64xf32>
    %c0_406 = arith.constant 0 : index
    %c0_407 = arith.constant 0 : index
    %c0_408 = arith.constant 0 : index
    %527 = vector.load %arg4[%c0_406, %c0_407, %c0_408] : memref<1x32x64xf32, #tpu.memory_space<vmem>>, vector<1x32x64xf32>
    %528 = vector.shape_cast %527 : vector<1x32x64xf32> to vector<32x64xf32>
    %529 = vector.shape_cast %526 : vector<32x64xf32> to vector<1x32x64xf32>
    tpu.vector_store %arg4[%c0_406, %c0_407, %c0_408], %529 {strides = array<i32>} : memref<1x32x64xf32, #tpu.memory_space<vmem>>, vector<1x32x64xf32>,
    return
  }
  func.func @transform_0(%arg0: i32) -> (i32, i32, i32, i32) {
    %c0_i32 = arith.constant 0 : i32
    %c0_i32_0 = arith.constant 0 : i32
    %c0_i32_1 = arith.constant 0 : i32
    %c0_i32_2 = arith.constant 0 : i32
    return %arg0, %c0_i32, %c0_i32_0, %c0_i32_1 : i32, i32, i32, i32
  }
  func.func @transform_1(%arg0: i32) -> (i32, i32, i32) {
    %c0_i32 = arith.constant 0 : i32
    %c0_i32_0 = arith.constant 0 : i32
    %c0_i32_1 = arith.constant 0 : i32
    return %arg0, %c0_i32, %c0_i32_0 : i32, i32, i32
  }
  func.func @transform_2(%arg0: i32) -> (i32, i32, i32) {
    %c0_i32 = arith.constant 0 : i32
    %c0_i32_0 = arith.constant 0 : i32
    %c0_i32_1 = arith.constant 0 : i32
    return %arg0, %c0_i32, %c0_i32_0 : i32, i32, i32
  }
  func.func @transform_3(%arg0: i32) -> (i32, i32, i32) {
    %c0_i32 = arith.constant 0 : i32
    %c0_i32_0 = arith.constant 0 : i32
    %c0_i32_1 = arith.constant 0 : i32
    return %arg0, %c0_i32, %c0_i32_0 : i32, i32, i32
  }
}

</mosaic_0001>

<llo_original>
// kernel: attentive_conv_block.3
$region0: #{attentive_conv_block.3}
  #allocation0 [shape = 'u32[]', space=smem, size = 0x4, offset = 0x4, fixed_abs, tag = 'smem constant byte address 0x4 - core index']
  #allocation1 [shape = 'u32[144,128]{1,0:T(1,128)}', space=vmem, size = 0x12000, scoped, tag = 'internal scratch']
  #allocation2 [shape = 'f32[14,14,32]{2,1,0:T(8,128)}', space=vmem, size = 0x1c000, scoped, tag = 'scratch operand']
  %s0 = inlined_call_operand.vmem [shape: f32[2,8,8,32], index: 0, kind: input, shape index: {}]
  %s1 = inlined_call_operand.vmem [shape: f32[2,25,32], index: 1, kind: input, shape index: {}]
  %s2 = inlined_call_operand.vmem [shape: f32[2,49,32], index: 2, kind: input, shape index: {}]
  %s3 = inlined_call_operand.vmem [shape: f32[2,32,64], index: 3, kind: output, shape index: {}]
  %s4 = sld [smem:[#allocation0]]
  $region45: #{attentive_conv_block.3} parent=0
    _
  %s6 = ssub.s32 1, %s4
  %s7 = scalar_select 0, %s6, %s4
  loop: start=0, step=1, limit=4
  $region2: #{attentive_conv_block.3} parent=0 // loop_pre_header
    _
  $region3: #{attentive_conv_block.3} parent=0 // loop_header
    %s9 = sphi 0, %s13
    %p10 = scmp.ge.s32.totalorder %s9, 4
    %s19 = sphi 0, %s21
    %s22 = sphi 0, %s19
    %s23 = sphi 0, %s22
    %s39 = sphi 0, %s23
    %s45 = sphi 0, %s47
    %s48 = sphi 0, %s45
    %s49 = sphi 0, %s48
    %s65 = sphi 0, %s49
    %s71 = sphi 0, %s73
    %s74 = sphi 0, %s71
    %s75 = sphi 0, %s74
    %s91 = sphi 0, %s75
    %s97 = sphi 0, %s99
    %s100 = sphi 0, %s97
    %s101 = sphi 0, %s100
    %s117 = sphi 0, %s101
  $region4: #{attentive_conv_block.3} parent=0 // loop_header_branch
    %12 = sbr.rel (%p10) target = $region8
  $region5: #{attentive_conv_block.3} parent=0 // loop_body
    %s14 = ssub.s32 %s9, 1
    %s15 = ssub.s32 %s9, 2
    %s16 = sadd.s32 %s9, 1
    %s17 = ssub.s32 %s9, %s16
    %p18 = scmp.eq.s32.totalorder %s17, 0
    %s20 = sadd.s32 %s19, 1
    %s21 = scalar_select %p18, %s19, %s20
    %p24 = pneg %p18
    %p25 = scmp.eq.s32.totalorder %s9, 1
    %p26 = por %p24, %p25
    %p27 = scmp.ne.s32.totalorder %s19, %s22
    %p28 = scmp.eq.s32.totalorder %s9, 0
    %p29 = por %p27, %p28
    %p30 = scmp.ne.s32.totalorder %s19, %s22
    %p31 = scmp.eq.s32.totalorder %s14, 1
    %p32 = por %p30, %p31
    %p33 = scmp.ne.s32.totalorder %s22, %s23
    %p34 = scmp.eq.s32.totalorder %s14, 0
    %p35 = por %p33, %p34
    %p36 = scmp.ne.s32.totalorder %s22, %s23
    %p37 = scmp.eq.s32.totalorder %s15, 1
    %p38 = por %p36, %p37
    %p40 = scmp.ne.s32.totalorder %s23, %s39
    %p41 = scmp.eq.s32.totalorder %s15, 0
    %p42 = por %p40, %p41
    %s43 = ssub.s32 %s9, %s16
    %p44 = scmp.eq.s32.totalorder %s43, 0
    %s46 = sadd.s32 %s45, 1
    %s47 = scalar_select %p44, %s45, %s46
    %p50 = pneg %p44
    %p51 = scmp.eq.s32.totalorder %s9, 1
    %p52 = por %p50, %p51
    %p53 = scmp.ne.s32.totalorder %s45, %s48
    %p54 = scmp.eq.s32.totalorder %s9, 0
    %p55 = por %p53, %p54
    %p56 = scmp.ne.s32.totalorder %s45, %s48
    %p57 = scmp.eq.s32.totalorder %s14, 1
    %p58 = por %p56, %p57
    %p59 = scmp.ne.s32.totalorder %s48, %s49
    %p60 = scmp.eq.s32.totalorder %s14, 0
    %p61 = por %p59, %p60
    %p62 = scmp.ne.s32.totalorder %s48, %s49
    %p63 = scmp.eq.s32.totalorder %s15, 1
    %p64 = por %p62, %p63
    %p66 = scmp.ne.s32.totalorder %s49, %s65
    %p67 = scmp.eq.s32.totalorder %s15, 0
    %p68 = por %p66, %p67
    %s69 = ssub.s32 %s9, %s16
    %p70 = scmp.eq.s32.totalorder %s69, 0
    %s72 = sadd.s32 %s71, 1
    %s73 = scalar_select %p70, %s71, %s72
    %p76 = pneg %p70
    %p77 = scmp.eq.s32.totalorder %s9, 1
    %p78 = por %p76, %p77
    %p79 = scmp.ne.s32.totalorder %s71, %s74
    %p80 = scmp.eq.s32.totalorder %s9, 0
    %p81 = por %p79, %p80
    %p82 = scmp.ne.s32.totalorder %s71, %s74
    %p83 = scmp.eq.s32.totalorder %s14, 1
    %p84 = por %p82, %p83
    %p85 = scmp.ne.s32.totalorder %s74, %s75
    %p86 = scmp.eq.s32.totalorder %s14, 0
    %p87 = por %p85, %p86
    %p88 = scmp.ne.s32.totalorder %s74, %s75
    %p89 = scmp.eq.s32.totalorder %s15, 1
    %p90 = por %p88, %p89
    %p92 = scmp.ne.s32.totalorder %s75, %s91
    %p93 = scmp.eq.s32.totalorder %s15, 0
    %p94 = por %p92, %p93
    %s95 = ssub.s32 %s9, %s16
    %p96 = scmp.eq.s32.totalorder %s95, 0
    %s98 = sadd.s32 %s97, 1
    %s99 = scalar_select %p96, %s97, %s98
    %p102 = pneg %p96
    %p103 = scmp.eq.s32.totalorder %s9, 1
    %p104 = por %p102, %p103
    %p105 = scmp.ne.s32.totalorder %s97, %s100
    %p106 = scmp.eq.s32.totalorder %s9, 0
    %p107 = por %p105, %p106
    %p108 = scmp.ne.s32.totalorder %s97, %s100
    %p109 = scmp.eq.s32.totalorder %s14, 1
    %p110 = por %p108, %p109
    %p111 = scmp.ne.s32.totalorder %s100, %s101
    %p112 = scmp.eq.s32.totalorder %s14, 0
    %p113 = por %p111, %p112
    %p114 = scmp.ne.s32.totalorder %s100, %s101
    %p115 = scmp.eq.s32.totalorder %s15, 1
    %p116 = por %p114, %p115
    %p118 = scmp.ne.s32.totalorder %s101, %s117
    %p119 = scmp.eq.s32.totalorder %s15, 0
    %p120 = por %p118, %p119
    %p121 = scmp.le.s32.totalorder 1, %s9
    %p122 = scmp.lt.s32.totalorder %s9, 3
    %p123 = pnand %p121, %p122
    %p124 = pneg %p123
    // Predicated region
    $region9: #{attentive_conv_block.3} parent=5 // pred_check
      _
    $region10: #{attentive_conv_block.3} parent=5 // pred_check_branch
      %126 = sbr.rel (%p123) target = $region12
    $region11: #{attentive_conv_block.3} parent=5 // pred_region
      %s127 = ssub.s32 %s9, 1
    $region12: #{attentive_conv_block.3} parent=5 // pred_fallthru
      _
    %p128 = scmp.lt.s32.totalorder %s9, 2
    // Predicated region
    $region13: #{attentive_conv_block.3} parent=5 // pred_check
      %p129 = pneg %p128
    $region14: #{attentive_conv_block.3} parent=5 // pred_check_branch
      %131 = sbr.rel (%p129) target = $region16
    $region15: #{attentive_conv_block.3} parent=5 // pred_region
      // Predicated region
      $region17: #{attentive_conv_block.3} parent=15 // pred_check
        %p132 = pneg %p29
      $region18: #{attentive_conv_block.3} parent=15 // pred_check_branch
        %134 = sbr.rel (%p132) target = $region20
      $region19: #{attentive_conv_block.3} parent=15 // pred_region
        %p135 = scmp.lt.s32.totalorder %s9, 1
        %s136 = scalar_select %p135, %s9, 1
        %s137 = smul.addr %s136, 8
        %s138 = smul.addr %s137, 8
        %s139 = scalar_lea.vmem %s0, %s138
      $region20: #{attentive_conv_block.3} parent=15 // pred_fallthru
        _
      // Predicated region
      $region21: #{attentive_conv_block.3} parent=15 // pred_check
        %p140 = pneg %p55
      $region22: #{attentive_conv_block.3} parent=15 // pred_check_branch
        %142 = sbr.rel (%p140) target = $region24
      $region23: #{attentive_conv_block.3} parent=15 // pred_region
        %p143 = scmp.lt.s32.totalorder %s9, 1
        %s144 = scalar_select %p143, %s9, 1
        %s145 = smul.addr %s144, 4
        %s146 = smul.addr %s145, 8
        %s147 = scalar_lea.vmem %s1, %s146
      $region24: #{attentive_conv_block.3} parent=15 // pred_fallthru
        _
      // Predicated region
      $region25: #{attentive_conv_block.3} parent=15 // pred_check
        %p148 = pneg %p81
      $region26: #{attentive_conv_block.3} parent=15 // pred_check_branch
        %150 = sbr.rel (%p148) target = $region28
      $region27: #{attentive_conv_block.3} parent=15 // pred_region
        %p151 = scmp.lt.s32.totalorder %s9, 1
        %s152 = scalar_select %p151, %s9, 1
        %s153 = smul.addr %s152, 7
        %s154 = smul.addr %s153, 8
        %s155 = scalar_lea.vmem %s2, %s154
      $region28: #{attentive_conv_block.3} parent=15 // pred_fallthru
        _
    $region16: #{attentive_conv_block.3} parent=5 // pred_fallthru
      _
    %p156 = scmp.le.s32.totalorder 1, %s9
    %p157 = scmp.lt.s32.totalorder %s9, 3
    %p158 = pnand %p156, %p157
    %p159 = pneg %p158
    // Predicated region
    $region29: #{attentive_conv_block.3} parent=5 // pred_check
      _
    $region30: #{attentive_conv_block.3} parent=5 // pred_check_branch
      %161 = sbr.rel (%p158) target = $region32
    $region31: #{attentive_conv_block.3} parent=5 // pred_region
      %s162 = ssub.s32 %s9, 1
      %p163 = scmp.lt.s32.totalorder %s14, 1
      %s164 = scalar_select %p163, %s14, 1
      %s165 = smul.addr %s164, 8
      %s166 = smul.addr %s165, 8
      %s167 = scalar_lea.vmem %s0, %s166
      %p168 = pneg %p35
      %p169 = pneg %p32
      %p170 = scmp.lt.s32.totalorder %s14, 1
      %s171 = scalar_select %p170, %s14, 1
      %s172 = smul.addr %s171, 4
      %s173 = smul.addr %s172, 8
      %s174 = scalar_lea.vmem %s1, %s173
      %p175 = pneg %p61
      %p176 = pneg %p58
      %p177 = scmp.lt.s32.totalorder %s14, 1
      %s178 = scalar_select %p177, %s14, 1
      %s179 = smul.addr %s178, 7
      %s180 = smul.addr %s179, 8
      %s181 = scalar_lea.vmem %s2, %s180
      %p182 = pneg %p87
      %p183 = pneg %p84
      %p184 = pneg %p113
      %p185 = pneg %p110
      %p186 = scmp.lt.s32.totalorder %s14, 1
      %s187 = scalar_select %p186, %s14, 1
      %s188 = smul.addr %s187, 4
      %s189 = smul.addr %s188, 8
      %s190 = scalar_lea.vmem %s3, %s189
      %p191 = scmp.lt.s32.totalorder %s14, 1
      %s192 = scalar_select %p191, %s14, 1
      %s193 = smul.addr %s192, 8
      %s194 = smul.addr %s193, 8
      %s195 = scalar_lea.vmem %s0, %s194
      %p196 = scmp.lt.s32.totalorder %s14, 1
      %s197 = scalar_select %p196, %s14, 1
      %s198 = smul.addr %s197, 4
      %s199 = smul.addr %s198, 8
      %s200 = scalar_lea.vmem %s1, %s199
      %p201 = scmp.lt.s32.totalorder %s14, 1
      %s202 = scalar_select %p201, %s14, 1
      %s203 = smul.addr %s202, 7
      %s204 = smul.addr %s203, 8
      %s205 = scalar_lea.vmem %s2, %s204
      %p206 = scmp.lt.s32.totalorder %s14, 1
      %s207 = scalar_select %p206, %s14, 1
      %s208 = smul.addr %s207, 4
      %s209 = smul.addr %s208, 8
      %s210 = scalar_lea.vmem %s3, %s209
      %v211 = vld [vmem:[%s195] sm:$0xff]
      %v212 = vld [vmem:[%s195 + $0x8] sm:$0xff]
      %v213 = vld [vmem:[%s195 + $0x10] sm:$0xff]
      %v214 = vld [vmem:[%s195 + $0x18] sm:$0xff]
      %v215 = vld [vmem:[%s195 + $0x20] sm:$0xff]
      %v216 = vld [vmem:[%s195 + $0x28] sm:$0xff]
      %v217 = vld [vmem:[%s195 + $0x30] sm:$0xff]
      %v218 = vld [vmem:[%s195 + $0x38] sm:$0xff]
      %vm219 = vcmask 261120
      %220 = vst.msk [vmem:[#allocation2] sm:$0xff] %vm219, 0.0
      %vm221 = vcmask 259072
      %222 = vst.msk [vmem:[#allocation2 + $0x8] sm:$0x3f] %vm221, 0.0
      %223 = vst.msk [vmem:[#allocation2 + $0x10] sm:$0xff] %vm219, 0.0
      %224 = vst.msk [vmem:[#allocation2 + $0x18] sm:$0x3f] %vm221, 0.0
      %225 = vst.msk [vmem:[#allocation2 + $0x20] sm:$0xff] %vm219, 0.0
      %226 = vst.msk [vmem:[#allocation2 + $0x28] sm:$0x3f] %vm221, 0.0
      %227 = vst.msk [vmem:[#allocation2 + $0x30] sm:$0xff] %vm219, 0.0
      %228 = vst.msk [vmem:[#allocation2 + $0x38] sm:$0x3f] %vm221, 0.0
      %229 = vst.msk [vmem:[#allocation2 + $0x40] sm:$0xff] %vm219, 0.0
      %230 = vst.msk [vmem:[#allocation2 + $0x48] sm:$0x3f] %vm221, 0.0
      %231 = vst.msk [vmem:[#allocation2 + $0x50] sm:$0xff] %vm219, 0.0
      %232 = vst.msk [vmem:[#allocation2 + $0x58] sm:$0x3f] %vm221, 0.0
      %233 = vst.msk [vmem:[#allocation2 + $0x60] sm:$0xff] %vm219, 0.0
      %234 = vst.msk [vmem:[#allocation2 + $0x68] sm:$0x3f] %vm221, 0.0
      %235 = vst.msk [vmem:[#allocation2 + $0x70] sm:$0xff] %vm219, 0.0
      %236 = vst.msk [vmem:[#allocation2 + $0x78] sm:$0x3f] %vm221, 0.0
      %237 = vst.msk [vmem:[#allocation2 + $0x80] sm:$0xff] %vm219, 0.0
      %238 = vst.msk [vmem:[#allocation2 + $0x88] sm:$0x3f] %vm221, 0.0
      %239 = vst.msk [vmem:[#allocation2 + $0x90] sm:$0xff] %vm219, 0.0
      %240 = vst.msk [vmem:[#allocation2 + $0x98] sm:$0x3f] %vm221, 0.0
      %241 = vst.msk [vmem:[#allocation2 + $0xa0] sm:$0xff] %vm219, 0.0
      %242 = vst.msk [vmem:[#allocation2 + $0xa8] sm:$0x3f] %vm221, 0.0
      %243 = vst.msk [vmem:[#allocation2 + $0xb0] sm:$0xff] %vm219, 0.0
      %244 = vst.msk [vmem:[#allocation2 + $0xb8] sm:$0x3f] %vm221, 0.0
      %245 = vst.msk [vmem:[#allocation2 + $0xc0] sm:$0xff] %vm219, 0.0
      %246 = vst.msk [vmem:[#allocation2 + $0xc8] sm:$0x3f] %vm221, 0.0
      %247 = vst.msk [vmem:[#allocation2 + $0xd0] sm:$0xff] %vm219, 0.0
      %248 = vst.msk [vmem:[#allocation2 + $0xd8] sm:$0x3f] %vm221, 0.0
      %s249 = scalar_lea.vmem [#allocation2], 48
      %250 = vst.msk [vmem:[%s249 + $0x3] sm:$0xff] %vm219, %v211
      %251 = vst.msk [vmem:[%s249 + $0x13] sm:$0xff] %vm219, %v212
      %252 = vst.msk [vmem:[%s249 + $0x23] sm:$0xff] %vm219, %v213
      %253 = vst.msk [vmem:[%s249 + $0x33] sm:$0xff] %vm219, %v214
      %254 = vst.msk [vmem:[%s249 + $0x43] sm:$0xff] %vm219, %v215
      %255 = vst.msk [vmem:[%s249 + $0x53] sm:$0xff] %vm219, %v216
      %256 = vst.msk [vmem:[%s249 + $0x63] sm:$0xff] %vm219, %v217
      %257 = vst.msk [vmem:[%s249 + $0x73] sm:$0xff] %vm219, %v218
      %s258 = scalar_lea.vmem [#allocation2], 16
      %v259 = vld [vmem:[%s258 + $0x1] sm:$0xff]
      %v260 = vld [vmem:[%s258 + $0x11] sm:$0xff]
      %v261 = vld [vmem:[%s258 + $0x21] sm:$0xff]
      %v262 = vld [vmem:[%s258 + $0x31] sm:$0xff]
      %v263 = vld [vmem:[%s258 + $0x41] sm:$0xff]
      %v264 = vld [vmem:[%s258 + $0x51] sm:$0xff]
      %v265 = vld [vmem:[%s258 + $0x61] sm:$0xff]
      %v266 = vld [vmem:[%s258 + $0x71] sm:$0xff]
      %v267 = vld [vmem:[%s200] sm:$0x1]
      %v268 = vlaneseq
      %v269 = vshrl.u32 %v268, 7
      %v270 = vsub.s32 0, %v269
      %v271 = vrot.slane %v267, %v270
      %v272 = vmul.f32 %v259, %v271
      %v273 = vmul.f32 %v260, %v271
      %v274 = vmul.f32 %v261, %v271
      %v275 = vmul.f32 %v262, %v271
      %v276 = vmul.f32 %v263, %v271
      %v277 = vmul.f32 %v264, %v271
      %v278 = vmul.f32 %v265, %v271
      %v279 = vmul.f32 %v266, %v271
      %v280 = vld [vmem:[%s258 + $0x2] sm:$0xff]
      %v281 = vld [vmem:[%s258 + $0x12] sm:$0xff]
      %v282 = vld [vmem:[%s258 + $0x22] sm:$0xff]
      %v283 = vld [vmem:[%s258 + $0x32] sm:$0xff]
      %v284 = vld [vmem:[%s258 + $0x42] sm:$0xff]
      %v285 = vld [vmem:[%s258 + $0x52] sm:$0xff]
      %v286 = vld [vmem:[%s258 + $0x62] sm:$0xff]
      %v287 = vld [vmem:[%s258 + $0x72] sm:$0xff]
      %v288 = vld [vmem:[%s200 + $0x1] sm:$0x1]
      %v289 = vlaneseq
      %v290 = vshrl.u32 %v289, 7
      %v291 = vsub.s32 0, %v290
      %v292 = vrot.slane %v288, %v291
      %v293 = vmul.f32 %v280, %v292
      %v294 = vmul.f32 %v281, %v292
      %v295 = vmul.f32 %v282, %v292
      %v296 = vmul.f32 %v283, %v292
      %v297 = vmul.f32 %v284, %v292
      %v298 = vmul.f32 %v285, %v292
      %v299 = vmul.f32 %v286, %v292
      %v300 = vmul.f32 %v287, %v292
      %v301 = vadd.f32 %v272, %v293
      %v302 = vadd.f32 %v273, %v294
      %v303 = vadd.f32 %v274, %v295
      %v304 = vadd.f32 %v275, %v296
      %v305 = vadd.f32 %v276, %v297
      %v306 = vadd.f32 %v277, %v298
      %v307 = vadd.f32 %v278, %v299
      %v308 = vadd.f32 %v279, %v300
      %v309 = vld [vmem:[%s258 + $0x3] sm:$0xff]
      %v310 = vld [vmem:[%s258 + $0x13] sm:$0xff]
      %v311 = vld [vmem:[%s258 + $0x23] sm:$0xff]
      %v312 = vld [vmem:[%s258 + $0x33] sm:$0xff]
      %v313 = vld [vmem:[%s258 + $0x43] sm:$0xff]
      %v314 = vld [vmem:[%s258 + $0x53] sm:$0xff]
      %v315 = vld [vmem:[%s258 + $0x63] sm:$0xff]
      %v316 = vld [vmem:[%s258 + $0x73] sm:$0xff]
      %v317 = vld [vmem:[%s200 + $0x2] sm:$0x1]
      %v318 = vlaneseq
      %v319 = vshrl.u32 %v318, 7
      %v320 = vsub.s32 0, %v319
      %v321 = vrot.slane %v317, %v320
      %v322 = vmul.f32 %v309, %v321
      %v323 = vmul.f32 %v310, %v321
      %v324 = vmul.f32 %v311, %v321
      %v325 = vmul.f32 %v312, %v321
      %v326 = vmul.f32 %v313, %v321
      %v327 = vmul.f32 %v314, %v321
      %v328 = vmul.f32 %v315, %v321
      %v329 = vmul.f32 %v316, %v321
      %v330 = vadd.f32 %v301, %v322
      %v331 = vadd.f32 %v302, %v323
      %v332 = vadd.f32 %v303, %v324
      %v333 = vadd.f32 %v304, %v325
      %v334 = vadd.f32 %v305, %v326
      %v335 = vadd.f32 %v306, %v327
      %v336 = vadd.f32 %v307, %v328
      %v337 = vadd.f32 %v308, %v329
      %v338 = vld [vmem:[%s258 + $0x4] sm:$0xff]
      %v339 = vld [vmem:[%s258 + $0x14] sm:$0xff]
      %v340 = vld [vmem:[%s258 + $0x24] sm:$0xff]
      %v341 = vld [vmem:[%s258 + $0x34] sm:$0xff]
      %v342 = vld [vmem:[%s258 + $0x44] sm:$0xff]
      %v343 = vld [vmem:[%s258 + $0x54] sm:$0xff]
      %v344 = vld [vmem:[%s258 + $0x64] sm:$0xff]
      %v345 = vld [vmem:[%s258 + $0x74] sm:$0xff]
      %v346 = vld [vmem:[%s200 + $0x3] sm:$0x1]
      %v347 = vlaneseq
      %v348 = vshrl.u32 %v347, 7
      %v349 = vsub.s32 0, %v348
      %v350 = vrot.slane %v346, %v349
      %v351 = vmul.f32 %v338, %v350
      %v352 = vmul.f32 %v339, %v350
      %v353 = vmul.f32 %v340, %v350
      %v354 = vmul.f32 %v341, %v350
      %v355 = vmul.f32 %v342, %v350
      %v356 = vmul.f32 %v343, %v350
      %v357 = vmul.f32 %v344, %v350
      %v358 = vmul.f32 %v345, %v350
      %v359 = vadd.f32 %v330, %v351
      %v360 = vadd.f32 %v331, %v352
      %v361 = vadd.f32 %v332, %v353
      %v362 = vadd.f32 %v333, %v354
      %v363 = vadd.f32 %v334, %v355
      %v364 = vadd.f32 %v335, %v356
      %v365 = vadd.f32 %v336, %v357
      %v366 = vadd.f32 %v337, %v358
      %v367 = vld [vmem:[%s258 + $0x5] sm:$0xff]
      %v368 = vld [vmem:[%s258 + $0x15] sm:$0xff]
      %v369 = vld [vmem:[%s258 + $0x25] sm:$0xff]
      %v370 = vld [vmem:[%s258 + $0x35] sm:$0xff]
      %v371 = vld [vmem:[%s258 + $0x45] sm:$0xff]
      %v372 = vld [vmem:[%s258 + $0x55] sm:$0xff]
      %v373 = vld [vmem:[%s258 + $0x65] sm:$0xff]
      %v374 = vld [vmem:[%s258 + $0x75] sm:$0xff]
      %v375 = vld [vmem:[%s200 + $0x4] sm:$0x1]
      %v376 = vlaneseq
      %v377 = vshrl.u32 %v376, 7
      %v378 = vsub.s32 0, %v377
      %v379 = vrot.slane %v375, %v378
      %v380 = vmul.f32 %v367, %v379
      %v381 = vmul.f32 %v368, %v379
      %v382 = vmul.f32 %v369, %v379
      %v383 = vmul.f32 %v370, %v379
      %v384 = vmul.f32 %v371, %v379
      %v385 = vmul.f32 %v372, %v379
      %v386 = vmul.f32 %v373, %v379
      %v387 = vmul.f32 %v374, %v379
      %v388 = vadd.f32 %v359, %v380
      %v389 = vadd.f32 %v360, %v381
      %v390 = vadd.f32 %v361, %v382
      %v391 = vadd.f32 %v362, %v383
      %v392 = vadd.f32 %v363, %v384
      %v393 = vadd.f32 %v364, %v385
      %v394 = vadd.f32 %v365, %v386
      %v395 = vadd.f32 %v366, %v387
      %s396 = scalar_lea.vmem [#allocation2], 32
      %v397 = vld [vmem:[%s396 + $0x1] sm:$0xff]
      %v398 = vld [vmem:[%s396 + $0x11] sm:$0xff]
      %v399 = vld [vmem:[%s396 + $0x21] sm:$0xff]
      %v400 = vld [vmem:[%s396 + $0x31] sm:$0xff]
      %v401 = vld [vmem:[%s396 + $0x41] sm:$0xff]
      %v402 = vld [vmem:[%s396 + $0x51] sm:$0xff]
      %v403 = vld [vmem:[%s396 + $0x61] sm:$0xff]
      %v404 = vld [vmem:[%s396 + $0x71] sm:$0xff]
      %v405 = vld [vmem:[%s200 + $0x5] sm:$0x1]
      %v406 = vlaneseq
      %v407 = vshrl.u32 %v406, 7
      %v408 = vsub.s32 0, %v407
      %v409 = vrot.slane %v405, %v408
      %v410 = vmul.f32 %v397, %v409
      %v411 = vmul.f32 %v398, %v409
      %v412 = vmul.f32 %v399, %v409
      %v413 = vmul.f32 %v400, %v409
      %v414 = vmul.f32 %v401, %v409
      %v415 = vmul.f32 %v402, %v409
      %v416 = vmul.f32 %v403, %v409
      %v417 = vmul.f32 %v404, %v409
      %v418 = vld [vmem:[%s396 + $0x2] sm:$0xff]
      %v419 = vld [vmem:[%s396 + $0x12] sm:$0xff]
      %v420 = vld [vmem:[%s396 + $0x22] sm:$0xff]
      %v421 = vld [vmem:[%s396 + $0x32] sm:$0xff]
      %v422 = vld [vmem:[%s396 + $0x42] sm:$0xff]
      %v423 = vld [vmem:[%s396 + $0x52] sm:$0xff]
      %v424 = vld [vmem:[%s396 + $0x62] sm:$0xff]
      %v425 = vld [vmem:[%s396 + $0x72] sm:$0xff]
      %v426 = vld [vmem:[%s200 + $0x6] sm:$0x1]
      %v427 = vlaneseq
      %v428 = vshrl.u32 %v427, 7
      %v429 = vsub.s32 0, %v428
      %v430 = vrot.slane %v426, %v429
      %v431 = vmul.f32 %v418, %v430
      %v432 = vmul.f32 %v419, %v430
      %v433 = vmul.f32 %v420, %v430
      %v434 = vmul.f32 %v421, %v430
      %v435 = vmul.f32 %v422, %v430
      %v436 = vmul.f32 %v423, %v430
      %v437 = vmul.f32 %v424, %v430
      %v438 = vmul.f32 %v425, %v430
      %v439 = vadd.f32 %v410, %v431
      %v440 = vadd.f32 %v411, %v432
      %v441 = vadd.f32 %v412, %v433
      %v442 = vadd.f32 %v413, %v434
      %v443 = vadd.f32 %v414, %v435
      %v444 = vadd.f32 %v415, %v436
      %v445 = vadd.f32 %v416, %v437
      %v446 = vadd.f32 %v417, %v438
      %v447 = vld [vmem:[%s396 + $0x3] sm:$0xff]
      %v448 = vld [vmem:[%s396 + $0x13] sm:$0xff]
      %v449 = vld [vmem:[%s396 + $0x23] sm:$0xff]
      %v450 = vld [vmem:[%s396 + $0x33] sm:$0xff]
      %v451 = vld [vmem:[%s396 + $0x43] sm:$0xff]
      %v452 = vld [vmem:[%s396 + $0x53] sm:$0xff]
      %v453 = vld [vmem:[%s396 + $0x63] sm:$0xff]
      %v454 = vld [vmem:[%s396 + $0x73] sm:$0xff]
      %v455 = vld [vmem:[%s200 + $0x7] sm:$0x1]
      %v456 = vlaneseq
      %v457 = vshrl.u32 %v456, 7
      %v458 = vsub.s32 0, %v457
      %v459 = vrot.slane %v455, %v458
      %v460 = vmul.f32 %v447, %v459
      %v461 = vmul.f32 %v448, %v459
      %v462 = vmul.f32 %v449, %v459
      %v463 = vmul.f32 %v450, %v459
      %v464 = vmul.f32 %v451, %v459
      %v465 = vmul.f32 %v452, %v459
      %v466 = vmul.f32 %v453, %v459
      %v467 = vmul.f32 %v454, %v459
      %v468 = vadd.f32 %v439, %v460
      %v469 = vadd.f32 %v440, %v461
      %v470 = vadd.f32 %v441, %v462
      %v471 = vadd.f32 %v442, %v463
      %v472 = vadd.f32 %v443, %v464
      %v473 = vadd.f32 %v444, %v465
      %v474 = vadd.f32 %v445, %v466
      %v475 = vadd.f32 %v446, %v467
      %v476 = vld [vmem:[%s396 + $0x4] sm:$0xff]
      %v477 = vld [vmem:[%s396 + $0x14] sm:$0xff]
      %v478 = vld [vmem:[%s396 + $0x24] sm:$0xff]
      %v479 = vld [vmem:[%s396 + $0x34] sm:$0xff]
      %v480 = vld [vmem:[%s396 + $0x44] sm:$0xff]
      %v481 = vld [vmem:[%s396 + $0x54] sm:$0xff]
      %v482 = vld [vmem:[%s396 + $0x64] sm:$0xff]
      %v483 = vld [vmem:[%s396 + $0x74] sm:$0xff]
      %v484 = vld [vmem:[%s200 + $0x8] sm:$0x1]
      %v485 = vlaneseq
      %v486 = vshrl.u32 %v485, 7
      %v487 = vsub.s32 0, %v486
      %v488 = vrot.slane %v484, %v487
      %v489 = vmul.f32 %v476, %v488
      %v490 = vmul.f32 %v477, %v488
      %v491 = vmul.f32 %v478, %v488
      %v492 = vmul.f32 %v479, %v488
      %v493 = vmul.f32 %v480, %v488
      %v494 = vmul.f32 %v481, %v488
      %v495 = vmul.f32 %v482, %v488
      %v496 = vmul.f32 %v483, %v488
      %v497 = vadd.f32 %v468, %v489
      %v498 = vadd.f32 %v469, %v490
      %v499 = vadd.f32 %v470, %v491
      %v500 = vadd.f32 %v471, %v492
      %v501 = vadd.f32 %v472, %v493
      %v502 = vadd.f32 %v473, %v494
      %v503 = vadd.f32 %v474, %v495
      %v504 = vadd.f32 %v475, %v496
      %v505 = vld [vmem:[%s396 + $0x5] sm:$0xff]
      %v506 = vld [vmem:[%s396 + $0x15] sm:$0xff]
      %v507 = vld [vmem:[%s396 + $0x25] sm:$0xff]
      %v508 = vld [vmem:[%s396 + $0x35] sm:$0xff]
      %v509 = vld [vmem:[%s396 + $0x45] sm:$0xff]
      %v510 = vld [vmem:[%s396 + $0x55] sm:$0xff]
      %v511 = vld [vmem:[%s396 + $0x65] sm:$0xff]
      %v512 = vld [vmem:[%s396 + $0x75] sm:$0xff]
      %v513 = vld [vmem:[%s200 + $0x9] sm:$0x1]
      %v514 = vlaneseq
      %v515 = vshrl.u32 %v514, 7
      %v516 = vsub.s32 0, %v515
      %v517 = vrot.slane %v513, %v516
      %v518 = vmul.f32 %v505, %v517
      %v519 = vmul.f32 %v506, %v517
      %v520 = vmul.f32 %v507, %v517
      %v521 = vmul.f32 %v508, %v517
      %v522 = vmul.f32 %v509, %v517
      %v523 = vmul.f32 %v510, %v517
      %v524 = vmul.f32 %v511, %v517
      %v525 = vmul.f32 %v512, %v517
      %v526 = vadd.f32 %v497, %v518
      %v527 = vadd.f32 %v498, %v519
      %v528 = vadd.f32 %v499, %v520
      %v529 = vadd.f32 %v500, %v521
      %v530 = vadd.f32 %v501, %v522
      %v531 = vadd.f32 %v502, %v523
      %v532 = vadd.f32 %v503, %v524
      %v533 = vadd.f32 %v504, %v525
      %v534 = vld [vmem:[%s249 + $0x1] sm:$0xff]
      %v535 = vld [vmem:[%s249 + $0x11] sm:$0xff]
      %v536 = vld [vmem:[%s249 + $0x21] sm:$0xff]
      %v537 = vld [vmem:[%s249 + $0x31] sm:$0xff]
      %v538 = vld [vmem:[%s249 + $0x41] sm:$0xff]
      %v539 = vld [vmem:[%s249 + $0x51] sm:$0xff]
      %v540 = vld [vmem:[%s249 + $0x61] sm:$0xff]
      %v541 = vld [vmem:[%s249 + $0x71] sm:$0xff]
      %v542 = vld [vmem:[%s200 + $0xa] sm:$0x1]
      %v543 = vlaneseq
      %v544 = vshrl.u32 %v543, 7
      %v545 = vsub.s32 0, %v544
      %v546 = vrot.slane %v542, %v545
      %v547 = vmul.f32 %v534, %v546
      %v548 = vmul.f32 %v535, %v546
      %v549 = vmul.f32 %v536, %v546
      %v550 = vmul.f32 %v537, %v546
      %v551 = vmul.f32 %v538, %v546
      %v552 = vmul.f32 %v539, %v546
      %v553 = vmul.f32 %v540, %v546
      %v554 = vmul.f32 %v541, %v546
      %v555 = vld [vmem:[%s249 + $0x2] sm:$0xff]
      %v556 = vld [vmem:[%s249 + $0x12] sm:$0xff]
      %v557 = vld [vmem:[%s249 + $0x22] sm:$0xff]
      %v558 = vld [vmem:[%s249 + $0x32] sm:$0xff]
      %v559 = vld [vmem:[%s249 + $0x42] sm:$0xff]
      %v560 = vld [vmem:[%s249 + $0x52] sm:$0xff]
      %v561 = vld [vmem:[%s249 + $0x62] sm:$0xff]
      %v562 = vld [vmem:[%s249 + $0x72] sm:$0xff]
      %v563 = vld [vmem:[%s200 + $0xb] sm:$0x1]
      %v564 = vlaneseq
      %v565 = vshrl.u32 %v564, 7
      %v566 = vsub.s32 0, %v565
      %v567 = vrot.slane %v563, %v566
      %v568 = vmul.f32 %v555, %v567
      %v569 = vmul.f32 %v556, %v567
      %v570 = vmul.f32 %v557, %v567
      %v571 = vmul.f32 %v558, %v567
      %v572 = vmul.f32 %v559, %v567
      %v573 = vmul.f32 %v560, %v567
      %v574 = vmul.f32 %v561, %v567
      %v575 = vmul.f32 %v562, %v567
      %v576 = vadd.f32 %v547, %v568
      %v577 = vadd.f32 %v548, %v569
      %v578 = vadd.f32 %v549, %v570
      %v579 = vadd.f32 %v550, %v571
      %v580 = vadd.f32 %v551, %v572
      %v581 = vadd.f32 %v552, %v573
      %v582 = vadd.f32 %v553, %v574
      %v583 = vadd.f32 %v554, %v575
      %v584 = vld [vmem:[%s249 + $0x3] sm:$0xff]
      %v585 = vld [vmem:[%s249 + $0x13] sm:$0xff]
      %v586 = vld [vmem:[%s249 + $0x23] sm:$0xff]
      %v587 = vld [vmem:[%s249 + $0x33] sm:$0xff]
      %v588 = vld [vmem:[%s249 + $0x43] sm:$0xff]
      %v589 = vld [vmem:[%s249 + $0x53] sm:$0xff]
      %v590 = vld [vmem:[%s249 + $0x63] sm:$0xff]
      %v591 = vld [vmem:[%s249 + $0x73] sm:$0xff]
      %v592 = vld [vmem:[%s200 + $0xc] sm:$0x1]
      %v593 = vlaneseq
      %v594 = vshrl.u32 %v593, 7
      %v595 = vsub.s32 0, %v594
      %v596 = vrot.slane %v592, %v595
      %v597 = vmul.f32 %v584, %v596
      %v598 = vmul.f32 %v585, %v596
      %v599 = vmul.f32 %v586, %v596
      %v600 = vmul.f32 %v587, %v596
      %v601 = vmul.f32 %v588, %v596
      %v602 = vmul.f32 %v589, %v596
      %v603 = vmul.f32 %v590, %v596
      %v604 = vmul.f32 %v591, %v596
      %v605 = vadd.f32 %v576, %v597
      %v606 = vadd.f32 %v577, %v598
      %v607 = vadd.f32 %v578, %v599
      %v608 = vadd.f32 %v579, %v600
      %v609 = vadd.f32 %v580, %v601
      %v610 = vadd.f32 %v581, %v602
      %v611 = vadd.f32 %v582, %v603
      %v612 = vadd.f32 %v583, %v604
      %v613 = vld [vmem:[%s249 + $0x4] sm:$0xff]
      %v614 = vld [vmem:[%s249 + $0x14] sm:$0xff]
      %v615 = vld [vmem:[%s249 + $0x24] sm:$0xff]
      %v616 = vld [vmem:[%s249 + $0x34] sm:$0xff]
      %v617 = vld [vmem:[%s249 + $0x44] sm:$0xff]
      %v618 = vld [vmem:[%s249 + $0x54] sm:$0xff]
      %v619 = vld [vmem:[%s249 + $0x64] sm:$0xff]
      %v620 = vld [vmem:[%s249 + $0x74] sm:$0xff]
      %v621 = vld [vmem:[%s200 + $0xd] sm:$0x1]
      %v622 = vlaneseq
      %v623 = vshrl.u32 %v622, 7
      %v624 = vsub.s32 0, %v623
      %v625 = vrot.slane %v621, %v624
      %v626 = vmul.f32 %v613, %v625
      %v627 = vmul.f32 %v614, %v625
      %v628 = vmul.f32 %v615, %v625
      %v629 = vmul.f32 %v616, %v625
      %v630 = vmul.f32 %v617, %v625
      %v631 = vmul.f32 %v618, %v625
      %v632 = vmul.f32 %v619, %v625
      %v633 = vmul.f32 %v620, %v625
      %v634 = vadd.f32 %v605, %v626
      %v635 = vadd.f32 %v606, %v627
      %v636 = vadd.f32 %v607, %v628
      %v637 = vadd.f32 %v608, %v629
      %v638 = vadd.f32 %v609, %v630
      %v639 = vadd.f32 %v610, %v631
      %v640 = vadd.f32 %v611, %v632
      %v641 = vadd.f32 %v612, %v633
      %v642 = vld [vmem:[%s249 + $0x5] sm:$0xff]
      %v643 = vld [vmem:[%s249 + $0x15] sm:$0xff]
      %v644 = vld [vmem:[%s249 + $0x25] sm:$0xff]
      %v645 = vld [vmem:[%s249 + $0x35] sm:$0xff]
      %v646 = vld [vmem:[%s249 + $0x45] sm:$0xff]
      %v647 = vld [vmem:[%s249 + $0x55] sm:$0xff]
      %v648 = vld [vmem:[%s249 + $0x65] sm:$0xff]
      %v649 = vld [vmem:[%s249 + $0x75] sm:$0xff]
      %v650 = vld [vmem:[%s200 + $0xe] sm:$0x1]
      %v651 = vlaneseq
      %v652 = vshrl.u32 %v651, 7
      %v653 = vsub.s32 0, %v652
      %v654 = vrot.slane %v650, %v653
      %v655 = vmul.f32 %v642, %v654
      %v656 = vmul.f32 %v643, %v654
      %v657 = vmul.f32 %v644, %v654
      %v658 = vmul.f32 %v645, %v654
      %v659 = vmul.f32 %v646, %v654
      %v660 = vmul.f32 %v647, %v654
      %v661 = vmul.f32 %v648, %v654
      %v662 = vmul.f32 %v649, %v654
      %v663 = vadd.f32 %v634, %v655
      %v664 = vadd.f32 %v635, %v656
      %v665 = vadd.f32 %v636, %v657
      %v666 = vadd.f32 %v637, %v658
      %v667 = vadd.f32 %v638, %v659
      %v668 = vadd.f32 %v639, %v660
      %v669 = vadd.f32 %v640, %v661
      %v670 = vadd.f32 %v641, %v662
      %s671 = scalar_lea.vmem [#allocation2], 64
      %v672 = vld [vmem:[%s671 + $0x1] sm:$0xff]
      %v673 = vld [vmem:[%s671 + $0x11] sm:$0xff]
      %v674 = vld [vmem:[%s671 + $0x21] sm:$0xff]
      %v675 = vld [vmem:[%s671 + $0x31] sm:$0xff]
      %v676 = vld [vmem:[%s671 + $0x41] sm:$0xff]
      %v677 = vld [vmem:[%s671 + $0x51] sm:$0xff]
      %v678 = vld [vmem:[%s671 + $0x61] sm:$0xff]
      %v679 = vld [vmem:[%s671 + $0x71] sm:$0xff]
      %v680 = vld [vmem:[%s200 + $0xf] sm:$0x1]
      %v681 = vlaneseq
      %v682 = vshrl.u32 %v681, 7
      %v683 = vsub.s32 0, %v682
      %v684 = vrot.slane %v680, %v683
      %v685 = vmul.f32 %v672, %v684
      %v686 = vmul.f32 %v673, %v684
      %v687 = vmul.f32 %v674, %v684
      %v688 = vmul.f32 %v675, %v684
      %v689 = vmul.f32 %v676, %v684
      %v690 = vmul.f32 %v677, %v684
      %v691 = vmul.f32 %v678, %v684
      %v692 = vmul.f32 %v679, %v684
      %v693 = vld [vmem:[%s671 + $0x2] sm:$0xff]
      %v694 = vld [vmem:[%s671 + $0x12] sm:$0xff]
      %v695 = vld [vmem:[%s671 + $0x22] sm:$0xff]
      %v696 = vld [vmem:[%s671 + $0x32] sm:$0xff]
      %v697 = vld [vmem:[%s671 + $0x42] sm:$0xff]
      %v698 = vld [vmem:[%s671 + $0x52] sm:$0xff]
      %v699 = vld [vmem:[%s671 + $0x62] sm:$0xff]
      %v700 = vld [vmem:[%s671 + $0x72] sm:$0xff]
      %v701 = vld [vmem:[%s200 + $0x10] sm:$0x1]
      %v702 = vlaneseq
      %v703 = vshrl.u32 %v702, 7
      %v704 = vsub.s32 0, %v703
      %v705 = vrot.slane %v701, %v704
      %v706 = vmul.f32 %v693, %v705
      %v707 = vmul.f32 %v694, %v705
      %v708 = vmul.f32 %v695, %v705
      %v709 = vmul.f32 %v696, %v705
      %v710 = vmul.f32 %v697, %v705
      %v711 = vmul.f32 %v698, %v705
      %v712 = vmul.f32 %v699, %v705
      %v713 = vmul.f32 %v700, %v705
      %v714 = vadd.f32 %v685, %v706
      %v715 = vadd.f32 %v686, %v707
      %v716 = vadd.f32 %v687, %v708
      %v717 = vadd.f32 %v688, %v709
      %v718 = vadd.f32 %v689, %v710
      %v719 = vadd.f32 %v690, %v711
      %v720 = vadd.f32 %v691, %v712
      %v721 = vadd.f32 %v692, %v713
      %v722 = vld [vmem:[%s671 + $0x3] sm:$0xff]
      %v723 = vld [vmem:[%s671 + $0x13] sm:$0xff]
      %v724 = vld [vmem:[%s671 + $0x23] sm:$0xff]
      %v725 = vld [vmem:[%s671 + $0x33] sm:$0xff]
      %v726 = vld [vmem:[%s671 + $0x43] sm:$0xff]
      %v727 = vld [vmem:[%s671 + $0x53] sm:$0xff]
      %v728 = vld [vmem:[%s671 + $0x63] sm:$0xff]
      %v729 = vld [vmem:[%s671 + $0x73] sm:$0xff]
      %v730 = vld [vmem:[%s200 + $0x11] sm:$0x1]
      %v731 = vlaneseq
      %v732 = vshrl.u32 %v731, 7
      %v733 = vsub.s32 0, %v732
      %v734 = vrot.slane %v730, %v733
      %v735 = vmul.f32 %v722, %v734
      %v736 = vmul.f32 %v723, %v734
      %v737 = vmul.f32 %v724, %v734
      %v738 = vmul.f32 %v725, %v734
      %v739 = vmul.f32 %v726, %v734
      %v740 = vmul.f32 %v727, %v734
      %v741 = vmul.f32 %v728, %v734
      %v742 = vmul.f32 %v729, %v734
      %v743 = vadd.f32 %v714, %v735
      %v744 = vadd.f32 %v715, %v736
      %v745 = vadd.f32 %v716, %v737
      %v746 = vadd.f32 %v717, %v738
      %v747 = vadd.f32 %v718, %v739
      %v748 = vadd.f32 %v719, %v740
      %v749 = vadd.f32 %v720, %v741
      %v750 = vadd.f32 %v721, %v742
      %v751 = vld [vmem:[%s671 + $0x4] sm:$0xff]
      %v752 = vld [vmem:[%s671 + $0x14] sm:$0xff]
      %v753 = vld [vmem:[%s671 + $0x24] sm:$0xff]
      %v754 = vld [vmem:[%s671 + $0x34] sm:$0xff]
      %v755 = vld [vmem:[%s671 + $0x44] sm:$0xff]
      %v756 = vld [vmem:[%s671 + $0x54] sm:$0xff]
      %v757 = vld [vmem:[%s671 + $0x64] sm:$0xff]
      %v758 = vld [vmem:[%s671 + $0x74] sm:$0xff]
      %v759 = vld [vmem:[%s200 + $0x12] sm:$0x1]
      %v760 = vlaneseq
      %v761 = vshrl.u32 %v760, 7
      %v762 = vsub.s32 0, %v761
      %v763 = vrot.slane %v759, %v762
      %v764 = vmul.f32 %v751, %v763
      %v765 = vmul.f32 %v752, %v763
      %v766 = vmul.f32 %v753, %v763
      %v767 = vmul.f32 %v754, %v763
      %v768 = vmul.f32 %v755, %v763
      %v769 = vmul.f32 %v756, %v763
      %v770 = vmul.f32 %v757, %v763
      %v771 = vmul.f32 %v758, %v763
      %v772 = vadd.f32 %v743, %v764
      %v773 = vadd.f32 %v744, %v765
      %v774 = vadd.f32 %v745, %v766
      %v775 = vadd.f32 %v746, %v767
      %v776 = vadd.f32 %v747, %v768
      %v777 = vadd.f32 %v748, %v769
      %v778 = vadd.f32 %v749, %v770
      %v779 = vadd.f32 %v750, %v771
      %v780 = vld [vmem:[%s671 + $0x5] sm:$0xff]
      %v781 = vld [vmem:[%s671 + $0x15] sm:$0xff]
      %v782 = vld [vmem:[%s671 + $0x25] sm:$0xff]
      %v783 = vld [vmem:[%s671 + $0x35] sm:$0xff]
      %v784 = vld [vmem:[%s671 + $0x45] sm:$0xff]
      %v785 = vld [vmem:[%s671 + $0x55] sm:$0xff]
      %v786 = vld [vmem:[%s671 + $0x65] sm:$0xff]
      %v787 = vld [vmem:[%s671 + $0x75] sm:$0xff]
      %v788 = vld [vmem:[%s200 + $0x13] sm:$0x1]
      %v789 = vlaneseq
      %v790 = vshrl.u32 %v789, 7
      %v791 = vsub.s32 0, %v790
      %v792 = vrot.slane %v788, %v791
      %v793 = vmul.f32 %v780, %v792
      %v794 = vmul.f32 %v781, %v792
      %v795 = vmul.f32 %v782, %v792
      %v796 = vmul.f32 %v783, %v792
      %v797 = vmul.f32 %v784, %v792
      %v798 = vmul.f32 %v785, %v792
      %v799 = vmul.f32 %v786, %v792
      %v800 = vmul.f32 %v787, %v792
      %v801 = vadd.f32 %v772, %v793
      %v802 = vadd.f32 %v773, %v794
      %v803 = vadd.f32 %v774, %v795
      %v804 = vadd.f32 %v775, %v796
      %v805 = vadd.f32 %v776, %v797
      %v806 = vadd.f32 %v777, %v798
      %v807 = vadd.f32 %v778, %v799
      %v808 = vadd.f32 %v779, %v800
      %s809 = scalar_lea.vmem [#allocation2], 80
      %v810 = vld [vmem:[%s809 + $0x1] sm:$0xff]
      %v811 = vld [vmem:[%s809 + $0x11] sm:$0xff]
      %v812 = vld [vmem:[%s809 + $0x21] sm:$0xff]
      %v813 = vld [vmem:[%s809 + $0x31] sm:$0xff]
      %v814 = vld [vmem:[%s809 + $0x41] sm:$0xff]
      %v815 = vld [vmem:[%s809 + $0x51] sm:$0xff]
      %v816 = vld [vmem:[%s809 + $0x61] sm:$0xff]
      %v817 = vld [vmem:[%s809 + $0x71] sm:$0xff]
      %v818 = vld [vmem:[%s200 + $0x14] sm:$0x1]
      %v819 = vlaneseq
      %v820 = vshrl.u32 %v819, 7
      %v821 = vsub.s32 0, %v820
      %v822 = vrot.slane %v818, %v821
      %v823 = vmul.f32 %v810, %v822
      %v824 = vmul.f32 %v811, %v822
      %v825 = vmul.f32 %v812, %v822
      %v826 = vmul.f32 %v813, %v822
      %v827 = vmul.f32 %v814, %v822
      %v828 = vmul.f32 %v815, %v822
      %v829 = vmul.f32 %v816, %v822
      %v830 = vmul.f32 %v817, %v822
      %v831 = vld [vmem:[%s809 + $0x2] sm:$0xff]
      %v832 = vld [vmem:[%s809 + $0x12] sm:$0xff]
      %v833 = vld [vmem:[%s809 + $0x22] sm:$0xff]
      %v834 = vld [vmem:[%s809 + $0x32] sm:$0xff]
      %v835 = vld [vmem:[%s809 + $0x42] sm:$0xff]
      %v836 = vld [vmem:[%s809 + $0x52] sm:$0xff]
      %v837 = vld [vmem:[%s809 + $0x62] sm:$0xff]
      %v838 = vld [vmem:[%s809 + $0x72] sm:$0xff]
      %v839 = vld [vmem:[%s200 + $0x15] sm:$0x1]
      %v840 = vlaneseq
      %v841 = vshrl.u32 %v840, 7
      %v842 = vsub.s32 0, %v841
      %v843 = vrot.slane %v839, %v842
      %v844 = vmul.f32 %v831, %v843
      %v845 = vmul.f32 %v832, %v843
      %v846 = vmul.f32 %v833, %v843
      %v847 = vmul.f32 %v834, %v843
      %v848 = vmul.f32 %v835, %v843
      %v849 = vmul.f32 %v836, %v843
      %v850 = vmul.f32 %v837, %v843
      %v851 = vmul.f32 %v838, %v843
      %v852 = vadd.f32 %v823, %v844
      %v853 = vadd.f32 %v824, %v845
      %v854 = vadd.f32 %v825, %v846
      %v855 = vadd.f32 %v826, %v847
      %v856 = vadd.f32 %v827, %v848
      %v857 = vadd.f32 %v828, %v849
      %v858 = vadd.f32 %v829, %v850
      %v859 = vadd.f32 %v830, %v851
      %v860 = vld [vmem:[%s809 + $0x3] sm:$0xff]
      %v861 = vld [vmem:[%s809 + $0x13] sm:$0xff]
      %v862 = vld [vmem:[%s809 + $0x23] sm:$0xff]
      %v863 = vld [vmem:[%s809 + $0x33] sm:$0xff]
      %v864 = vld [vmem:[%s809 + $0x43] sm:$0xff]
      %v865 = vld [vmem:[%s809 + $0x53] sm:$0xff]
      %v866 = vld [vmem:[%s809 + $0x63] sm:$0xff]
      %v867 = vld [vmem:[%s809 + $0x73] sm:$0xff]
      %v868 = vld [vmem:[%s200 + $0x16] sm:$0x1]
      %v869 = vlaneseq
      %v870 = vshrl.u32 %v869, 7
      %v871 = vsub.s32 0, %v870
      %v872 = vrot.slane %v868, %v871
      %v873 = vmul.f32 %v860, %v872
      %v874 = vmul.f32 %v861, %v872
      %v875 = vmul.f32 %v862, %v872
      %v876 = vmul.f32 %v863, %v872
      %v877 = vmul.f32 %v864, %v872
      %v878 = vmul.f32 %v865, %v872
      %v879 = vmul.f32 %v866, %v872
      %v880 = vmul.f32 %v867, %v872
      %v881 = vadd.f32 %v852, %v873
      %v882 = vadd.f32 %v853, %v874
      %v883 = vadd.f32 %v854, %v875
      %v884 = vadd.f32 %v855, %v876
      %v885 = vadd.f32 %v856, %v877
      %v886 = vadd.f32 %v857, %v878
      %v887 = vadd.f32 %v858, %v879
      %v888 = vadd.f32 %v859, %v880
      %v889 = vld [vmem:[%s809 + $0x4] sm:$0xff]
      %v890 = vld [vmem:[%s809 + $0x14] sm:$0xff]
      %v891 = vld [vmem:[%s809 + $0x24] sm:$0xff]
      %v892 = vld [vmem:[%s809 + $0x34] sm:$0xff]
      %v893 = vld [vmem:[%s809 + $0x44] sm:$0xff]
      %v894 = vld [vmem:[%s809 + $0x54] sm:$0xff]
      %v895 = vld [vmem:[%s809 + $0x64] sm:$0xff]
      %v896 = vld [vmem:[%s809 + $0x74] sm:$0xff]
      %v897 = vld [vmem:[%s200 + $0x17] sm:$0x1]
      %v898 = vlaneseq
      %v899 = vshrl.u32 %v898, 7
      %v900 = vsub.s32 0, %v899
      %v901 = vrot.slane %v897, %v900
      %v902 = vmul.f32 %v889, %v901
      %v903 = vmul.f32 %v890, %v901
      %v904 = vmul.f32 %v891, %v901
      %v905 = vmul.f32 %v892, %v901
      %v906 = vmul.f32 %v893, %v901
      %v907 = vmul.f32 %v894, %v901
      %v908 = vmul.f32 %v895, %v901
      %v909 = vmul.f32 %v896, %v901
      %v910 = vadd.f32 %v881, %v902
      %v911 = vadd.f32 %v882, %v903
      %v912 = vadd.f32 %v883, %v904
      %v913 = vadd.f32 %v884, %v905
      %v914 = vadd.f32 %v885, %v906
      %v915 = vadd.f32 %v886, %v907
      %v916 = vadd.f32 %v887, %v908
      %v917 = vadd.f32 %v888, %v909
      %v918 = vld [vmem:[%s809 + $0x5] sm:$0xff]
      %v919 = vld [vmem:[%s809 + $0x15] sm:$0xff]
      %v920 = vld [vmem:[%s809 + $0x25] sm:$0xff]
      %v921 = vld [vmem:[%s809 + $0x35] sm:$0xff]
      %v922 = vld [vmem:[%s809 + $0x45] sm:$0xff]
      %v923 = vld [vmem:[%s809 + $0x55] sm:$0xff]
      %v924 = vld [vmem:[%s809 + $0x65] sm:$0xff]
      %v925 = vld [vmem:[%s809 + $0x75] sm:$0xff]
      %v926 = vld [vmem:[%s200 + $0x18] sm:$0x1]
      %v927 = vlaneseq
      %v928 = vshrl.u32 %v927, 7
      %v929 = vsub.s32 0, %v928
      %v930 = vrot.slane %v926, %v929
      %v931 = vmul.f32 %v918, %v930
      %v932 = vmul.f32 %v919, %v930
      %v933 = vmul.f32 %v920, %v930
      %v934 = vmul.f32 %v921, %v930
      %v935 = vmul.f32 %v922, %v930
      %v936 = vmul.f32 %v923, %v930
      %v937 = vmul.f32 %v924, %v930
      %v938 = vmul.f32 %v925, %v930
      %v939 = vadd.f32 %v910, %v931
      %v940 = vadd.f32 %v911, %v932
      %v941 = vadd.f32 %v912, %v933
      %v942 = vadd.f32 %v913, %v934
      %v943 = vadd.f32 %v914, %v935
      %v944 = vadd.f32 %v915, %v936
      %v945 = vadd.f32 %v916, %v937
      %v946 = vadd.f32 %v917, %v938
      %v947 = vld [vmem:[#allocation2] sm:$0xff]
      %v948 = vld [vmem:[#allocation2 + $0x10] sm:$0xff]
      %v949 = vld [vmem:[#allocation2 + $0x20] sm:$0xff]
      %v950 = vld [vmem:[#allocation2 + $0x30] sm:$0xff]
      %v951 = vld [vmem:[#allocation2 + $0x40] sm:$0xff]
      %v952 = vld [vmem:[#allocation2 + $0x50] sm:$0xff]
      %v953 = vld [vmem:[#allocation2 + $0x60] sm:$0xff]
      %v954 = vld [vmem:[#allocation2 + $0x70] sm:$0xff]
      %v955 = vld [vmem:[%s205] sm:$0x1]
      %v956 = vlaneseq
      %v957 = vshrl.u32 %v956, 7
      %v958 = vsub.s32 0, %v957
      %v959 = vrot.slane %v955, %v958
      %v960 = vmul.f32 %v947, %v959
      %v961 = vmul.f32 %v948, %v959
      %v962 = vmul.f32 %v949, %v959
      %v963 = vmul.f32 %v950, %v959
      %v964 = vmul.f32 %v951, %v959
      %v965 = vmul.f32 %v952, %v959
      %v966 = vmul.f32 %v953, %v959
      %v967 = vmul.f32 %v954, %v959
      %v968 = vld [vmem:[#allocation2 + $0x1] sm:$0xff]
      %v969 = vld [vmem:[#allocation2 + $0x11] sm:$0xff]
      %v970 = vld [vmem:[#allocation2 + $0x21] sm:$0xff]
      %v971 = vld [vmem:[#allocation2 + $0x31] sm:$0xff]
      %v972 = vld [vmem:[#allocation2 + $0x41] sm:$0xff]
      %v973 = vld [vmem:[#allocation2 + $0x51] sm:$0xff]
      %v974 = vld [vmem:[#allocation2 + $0x61] sm:$0xff]
      %v975 = vld [vmem:[#allocation2 + $0x71] sm:$0xff]
      %v976 = vld [vmem:[%s205 + $0x1] sm:$0x1]
      %v977 = vlaneseq
      %v978 = vshrl.u32 %v977, 7
      %v979 = vsub.s32 0, %v978
      %v980 = vrot.slane %v976, %v979
      %v981 = vmul.f32 %v968, %v980
      %v982 = vmul.f32 %v969, %v980
      %v983 = vmul.f32 %v970, %v980
      %v984 = vmul.f32 %v971, %v980
      %v985 = vmul.f32 %v972, %v980
      %v986 = vmul.f32 %v973, %v980
      %v987 = vmul.f32 %v974, %v980
      %v988 = vmul.f32 %v975, %v980
      %v989 = vadd.f32 %v960, %v981
      %v990 = vadd.f32 %v961, %v982
      %v991 = vadd.f32 %v962, %v983
      %v992 = vadd.f32 %v963, %v984
      %v993 = vadd.f32 %v964, %v985
      %v994 = vadd.f32 %v965, %v986
      %v995 = vadd.f32 %v966, %v987
      %v996 = vadd.f32 %v967, %v988
      %v997 = vld [vmem:[#allocation2 + $0x2] sm:$0xff]
      %v998 = vld [vmem:[#allocation2 + $0x12] sm:$0xff]
      %v999 = vld [vmem:[#allocation2 + $0x22] sm:$0xff]
      %v1000 = vld [vmem:[#allocation2 + $0x32] sm:$0xff]
      %v1001 = vld [vmem:[#allocation2 + $0x42] sm:$0xff]
      %v1002 = vld [vmem:[#allocation2 + $0x52] sm:$0xff]
      %v1003 = vld [vmem:[#allocation2 + $0x62] sm:$0xff]
      %v1004 = vld [vmem:[#allocation2 + $0x72] sm:$0xff]
      %v1005 = vld [vmem:[%s205 + $0x2] sm:$0x1]
      %v1006 = vlaneseq
      %v1007 = vshrl.u32 %v1006, 7
      %v1008 = vsub.s32 0, %v1007
      %v1009 = vrot.slane %v1005, %v1008
      %v1010 = vmul.f32 %v997, %v1009
      %v1011 = vmul.f32 %v998, %v1009
      %v1012 = vmul.f32 %v999, %v1009
      %v1013 = vmul.f32 %v1000, %v1009
      %v1014 = vmul.f32 %v1001, %v1009
      %v1015 = vmul.f32 %v1002, %v1009
      %v1016 = vmul.f32 %v1003, %v1009
      %v1017 = vmul.f32 %v1004, %v1009
      %v1018 = vadd.f32 %v989, %v1010
      %v1019 = vadd.f32 %v990, %v1011
      %v1020 = vadd.f32 %v991, %v1012
      %v1021 = vadd.f32 %v992, %v1013
      %v1022 = vadd.f32 %v993, %v1014
      %v1023 = vadd.f32 %v994, %v1015
      %v1024 = vadd.f32 %v995, %v1016
      %v1025 = vadd.f32 %v996, %v1017
      %v1026 = vld [vmem:[#allocation2 + $0x3] sm:$0xff]
      %v1027 = vld [vmem:[#allocation2 + $0x13] sm:$0xff]
      %v1028 = vld [vmem:[#allocation2 + $0x23] sm:$0xff]
      %v1029 = vld [vmem:[#allocation2 + $0x33] sm:$0xff]
      %v1030 = vld [vmem:[#allocation2 + $0x43] sm:$0xff]
      %v1031 = vld [vmem:[#allocation2 + $0x53] sm:$0xff]
      %v1032 = vld [vmem:[#allocation2 + $0x63] sm:$0xff]
      %v1033 = vld [vmem:[#allocation2 + $0x73] sm:$0xff]
      %v1034 = vld [vmem:[%s205 + $0x3] sm:$0x1]
      %v1035 = vlaneseq
      %v1036 = vshrl.u32 %v1035, 7
      %v1037 = vsub.s32 0, %v1036
      %v1038 = vrot.slane %v1034, %v1037
      %v1039 = vmul.f32 %v1026, %v1038
      %v1040 = vmul.f32 %v1027, %v1038
      %v1041 = vmul.f32 %v1028, %v1038
      %v1042 = vmul.f32 %v1029, %v1038
      %v1043 = vmul.f32 %v1030, %v1038
      %v1044 = vmul.f32 %v1031, %v1038
      %v1045 = vmul.f32 %v1032, %v1038
      %v1046 = vmul.f32 %v1033, %v1038
      %v1047 = vadd.f32 %v1018, %v1039
      %v1048 = vadd.f32 %v1019, %v1040
      %v1049 = vadd.f32 %v1020, %v1041
      %v1050 = vadd.f32 %v1021, %v1042
      %v1051 = vadd.f32 %v1022, %v1043
      %v1052 = vadd.f32 %v1023, %v1044
      %v1053 = vadd.f32 %v1024, %v1045
      %v1054 = vadd.f32 %v1025, %v1046
      %v1055 = vld [vmem:[#allocation2 + $0x4] sm:$0xff]
      %v1056 = vld [vmem:[#allocation2 + $0x14] sm:$0xff]
      %v1057 = vld [vmem:[#allocation2 + $0x24] sm:$0xff]
      %v1058 = vld [vmem:[#allocation2 + $0x34] sm:$0xff]
      %v1059 = vld [vmem:[#allocation2 + $0x44] sm:$0xff]
      %v1060 = vld [vmem:[#allocation2 + $0x54] sm:$0xff]
      %v1061 = vld [vmem:[#allocation2 + $0x64] sm:$0xff]
      %v1062 = vld [vmem:[#allocation2 + $0x74] sm:$0xff]
      %v1063 = vld [vmem:[%s205 + $0x4] sm:$0x1]
      %v1064 = vlaneseq
      %v1065 = vshrl.u32 %v1064, 7
      %v1066 = vsub.s32 0, %v1065
      %v1067 = vrot.slane %v1063, %v1066
      %v1068 = vmul.f32 %v1055, %v1067
      %v1069 = vmul.f32 %v1056, %v1067
      %v1070 = vmul.f32 %v1057, %v1067
      %v1071 = vmul.f32 %v1058, %v1067
      %v1072 = vmul.f32 %v1059, %v1067
      %v1073 = vmul.f32 %v1060, %v1067
      %v1074 = vmul.f32 %v1061, %v1067
      %v1075 = vmul.f32 %v1062, %v1067
      %v1076 = vadd.f32 %v1047, %v1068
      %v1077 = vadd.f32 %v1048, %v1069
      %v1078 = vadd.f32 %v1049, %v1070
      %v1079 = vadd.f32 %v1050, %v1071
      %v1080 = vadd.f32 %v1051, %v1072
      %v1081 = vadd.f32 %v1052, %v1073
      %v1082 = vadd.f32 %v1053, %v1074
      %v1083 = vadd.f32 %v1054, %v1075
      %v1084 = vld [vmem:[#allocation2 + $0x5] sm:$0xff]
      %v1085 = vld [vmem:[#allocation2 + $0x15] sm:$0xff]
      %v1086 = vld [vmem:[#allocation2 + $0x25] sm:$0xff]
      %v1087 = vld [vmem:[#allocation2 + $0x35] sm:$0xff]
      %v1088 = vld [vmem:[#allocation2 + $0x45] sm:$0xff]
      %v1089 = vld [vmem:[#allocation2 + $0x55] sm:$0xff]
      %v1090 = vld [vmem:[#allocation2 + $0x65] sm:$0xff]
      %v1091 = vld [vmem:[#allocation2 + $0x75] sm:$0xff]
      %v1092 = vld [vmem:[%s205 + $0x5] sm:$0x1]
      %v1093 = vlaneseq
      %v1094 = vshrl.u32 %v1093, 7
      %v1095 = vsub.s32 0, %v1094
      %v1096 = vrot.slane %v1092, %v1095
      %v1097 = vmul.f32 %v1084, %v1096
      %v1098 = vmul.f32 %v1085, %v1096
      %v1099 = vmul.f32 %v1086, %v1096
      %v1100 = vmul.f32 %v1087, %v1096
      %v1101 = vmul.f32 %v1088, %v1096
      %v1102 = vmul.f32 %v1089, %v1096
      %v1103 = vmul.f32 %v1090, %v1096
      %v1104 = vmul.f32 %v1091, %v1096
      %v1105 = vadd.f32 %v1076, %v1097
      %v1106 = vadd.f32 %v1077, %v1098
      %v1107 = vadd.f32 %v1078, %v1099
      %v1108 = vadd.f32 %v1079, %v1100
      %v1109 = vadd.f32 %v1080, %v1101
      %v1110 = vadd.f32 %v1081, %v1102
      %v1111 = vadd.f32 %v1082, %v1103
      %v1112 = vadd.f32 %v1083, %v1104
      %v1113 = vld [vmem:[#allocation2 + $0x6] sm:$0xff]
      %v1114 = vld [vmem:[#allocation2 + $0x16] sm:$0xff]
      %v1115 = vld [vmem:[#allocation2 + $0x26] sm:$0xff]
      %v1116 = vld [vmem:[#allocation2 + $0x36] sm:$0xff]
      %v1117 = vld [vmem:[#allocation2 + $0x46] sm:$0xff]
      %v1118 = vld [vmem:[#allocation2 + $0x56] sm:$0xff]
      %v1119 = vld [vmem:[#allocation2 + $0x66] sm:$0xff]
      %v1120 = vld [vmem:[#allocation2 + $0x76] sm:$0xff]
      %v1121 = vld [vmem:[%s205 + $0x6] sm:$0x1]
      %v1122 = vlaneseq
      %v1123 = vshrl.u32 %v1122, 7
      %v1124 = vsub.s32 0, %v1123
      %v1125 = vrot.slane %v1121, %v1124
      %v1126 = vmul.f32 %v1113, %v1125
      %v1127 = vmul.f32 %v1114, %v1125
      %v1128 = vmul.f32 %v1115, %v1125
      %v1129 = vmul.f32 %v1116, %v1125
      %v1130 = vmul.f32 %v1117, %v1125
      %v1131 = vmul.f32 %v1118, %v1125
      %v1132 = vmul.f32 %v1119, %v1125
      %v1133 = vmul.f32 %v1120, %v1125
      %v1134 = vadd.f32 %v1105, %v1126
      %v1135 = vadd.f32 %v1106, %v1127
      %v1136 = vadd.f32 %v1107, %v1128
      %v1137 = vadd.f32 %v1108, %v1129
      %v1138 = vadd.f32 %v1109, %v1130
      %v1139 = vadd.f32 %v1110, %v1131
      %v1140 = vadd.f32 %v1111, %v1132
      %v1141 = vadd.f32 %v1112, %v1133
      %v1142 = vld [vmem:[%s258] sm:$0xff]
      %v1143 = vld [vmem:[%s258 + $0x10] sm:$0xff]
      %v1144 = vld [vmem:[%s258 + $0x20] sm:$0xff]
      %v1145 = vld [vmem:[%s258 + $0x30] sm:$0xff]
      %v1146 = vld [vmem:[%s258 + $0x40] sm:$0xff]
      %v1147 = vld [vmem:[%s258 + $0x50] sm:$0xff]
      %v1148 = vld [vmem:[%s258 + $0x60] sm:$0xff]
      %v1149 = vld [vmem:[%s258 + $0x70] sm:$0xff]
      %v1150 = vld [vmem:[%s205 + $0x7] sm:$0x1]
      %v1151 = vlaneseq
      %v1152 = vshrl.u32 %v1151, 7
      %v1153 = vsub.s32 0, %v1152
      %v1154 = vrot.slane %v1150, %v1153
      %v1155 = vmul.f32 %v1142, %v1154
      %v1156 = vmul.f32 %v1143, %v1154
      %v1157 = vmul.f32 %v1144, %v1154
      %v1158 = vmul.f32 %v1145, %v1154
      %v1159 = vmul.f32 %v1146, %v1154
      %v1160 = vmul.f32 %v1147, %v1154
      %v1161 = vmul.f32 %v1148, %v1154
      %v1162 = vmul.f32 %v1149, %v1154
      %v1163 = vld [vmem:[%s205 + $0x8] sm:$0x1]
      %v1164 = vlaneseq
      %v1165 = vshrl.u32 %v1164, 7
      %v1166 = vsub.s32 0, %v1165
      %v1167 = vrot.slane %v1163, %v1166
      %v1168 = vmul.f32 %v259, %v1167
      %v1169 = vmul.f32 %v260, %v1167
      %v1170 = vmul.f32 %v261, %v1167
      %v1171 = vmul.f32 %v262, %v1167
      %v1172 = vmul.f32 %v263, %v1167
      %v1173 = vmul.f32 %v264, %v1167
      %v1174 = vmul.f32 %v265, %v1167
      %v1175 = vmul.f32 %v266, %v1167
      %v1176 = vadd.f32 %v1155, %v1168
      %v1177 = vadd.f32 %v1156, %v1169
      %v1178 = vadd.f32 %v1157, %v1170
      %v1179 = vadd.f32 %v1158, %v1171
      %v1180 = vadd.f32 %v1159, %v1172
      %v1181 = vadd.f32 %v1160, %v1173
      %v1182 = vadd.f32 %v1161, %v1174
      %v1183 = vadd.f32 %v1162, %v1175
      %v1184 = vld [vmem:[%s205 + $0x9] sm:$0x1]
      %v1185 = vlaneseq
      %v1186 = vshrl.u32 %v1185, 7
      %v1187 = vsub.s32 0, %v1186
      %v1188 = vrot.slane %v1184, %v1187
      %v1189 = vmul.f32 %v280, %v1188
      %v1190 = vmul.f32 %v281, %v1188
      %v1191 = vmul.f32 %v282, %v1188
      %v1192 = vmul.f32 %v283, %v1188
      %v1193 = vmul.f32 %v284, %v1188
      %v1194 = vmul.f32 %v285, %v1188
      %v1195 = vmul.f32 %v286, %v1188
      %v1196 = vmul.f32 %v287, %v1188
      %v1197 = vadd.f32 %v1176, %v1189
      %v1198 = vadd.f32 %v1177, %v1190
      %v1199 = vadd.f32 %v1178, %v1191
      %v1200 = vadd.f32 %v1179, %v1192
      %v1201 = vadd.f32 %v1180, %v1193
      %v1202 = vadd.f32 %v1181, %v1194
      %v1203 = vadd.f32 %v1182, %v1195
      %v1204 = vadd.f32 %v1183, %v1196
      %v1205 = vld [vmem:[%s205 + $0xa] sm:$0x1]
      %v1206 = vlaneseq
      %v1207 = vshrl.u32 %v1206, 7
      %v1208 = vsub.s32 0, %v1207
      %v1209 = vrot.slane %v1205, %v1208
      %v1210 = vmul.f32 %v309, %v1209
      %v1211 = vmul.f32 %v310, %v1209
      %v1212 = vmul.f32 %v311, %v1209
      %v1213 = vmul.f32 %v312, %v1209
      %v1214 = vmul.f32 %v313, %v1209
      %v1215 = vmul.f32 %v314, %v1209
      %v1216 = vmul.f32 %v315, %v1209
      %v1217 = vmul.f32 %v316, %v1209
      %v1218 = vadd.f32 %v1197, %v1210
      %v1219 = vadd.f32 %v1198, %v1211
      %v1220 = vadd.f32 %v1199, %v1212
      %v1221 = vadd.f32 %v1200, %v1213
      %v1222 = vadd.f32 %v1201, %v1214
      %v1223 = vadd.f32 %v1202, %v1215
      %v1224 = vadd.f32 %v1203, %v1216
      %v1225 = vadd.f32 %v1204, %v1217
      %v1226 = vld [vmem:[%s205 + $0xb] sm:$0x1]
      %v1227 = vlaneseq
      %v1228 = vshrl.u32 %v1227, 7
      %v1229 = vsub.s32 0, %v1228
      %v1230 = vrot.slane %v1226, %v1229
      %v1231 = vmul.f32 %v338, %v1230
      %v1232 = vmul.f32 %v339, %v1230
      %v1233 = vmul.f32 %v340, %v1230
      %v1234 = vmul.f32 %v341, %v1230
      %v1235 = vmul.f32 %v342, %v1230
      %v1236 = vmul.f32 %v343, %v1230
      %v1237 = vmul.f32 %v344, %v1230
      %v1238 = vmul.f32 %v345, %v1230
      %v1239 = vadd.f32 %v1218, %v1231
      %v1240 = vadd.f32 %v1219, %v1232
      %v1241 = vadd.f32 %v1220, %v1233
      %v1242 = vadd.f32 %v1221, %v1234
      %v1243 = vadd.f32 %v1222, %v1235
      %v1244 = vadd.f32 %v1223, %v1236
      %v1245 = vadd.f32 %v1224, %v1237
      %v1246 = vadd.f32 %v1225, %v1238
      %v1247 = vld [vmem:[%s205 + $0xc] sm:$0x1]
      %v1248 = vlaneseq
      %v1249 = vshrl.u32 %v1248, 7
      %v1250 = vsub.s32 0, %v1249
      %v1251 = vrot.slane %v1247, %v1250
      %v1252 = vmul.f32 %v367, %v1251
      %v1253 = vmul.f32 %v368, %v1251
      %v1254 = vmul.f32 %v369, %v1251
      %v1255 = vmul.f32 %v370, %v1251
      %v1256 = vmul.f32 %v371, %v1251
      %v1257 = vmul.f32 %v372, %v1251
      %v1258 = vmul.f32 %v373, %v1251
      %v1259 = vmul.f32 %v374, %v1251
      %v1260 = vadd.f32 %v1239, %v1252
      %v1261 = vadd.f32 %v1240, %v1253
      %v1262 = vadd.f32 %v1241, %v1254
      %v1263 = vadd.f32 %v1242, %v1255
      %v1264 = vadd.f32 %v1243, %v1256
      %v1265 = vadd.f32 %v1244, %v1257
      %v1266 = vadd.f32 %v1245, %v1258
      %v1267 = vadd.f32 %v1246, %v1259
      %v1268 = vld [vmem:[%s258 + $0x6] sm:$0xff]
      %v1269 = vld [vmem:[%s258 + $0x16] sm:$0xff]
      %v1270 = vld [vmem:[%s258 + $0x26] sm:$0xff]
      %v1271 = vld [vmem:[%s258 + $0x36] sm:$0xff]
      %v1272 = vld [vmem:[%s258 + $0x46] sm:$0xff]
      %v1273 = vld [vmem:[%s258 + $0x56] sm:$0xff]
      %v1274 = vld [vmem:[%s258 + $0x66] sm:$0xff]
      %v1275 = vld [vmem:[%s258 + $0x76] sm:$0xff]
      %v1276 = vld [vmem:[%s205 + $0xd] sm:$0x1]
      %v1277 = vlaneseq
      %v1278 = vshrl.u32 %v1277, 7
      %v1279 = vsub.s32 0, %v1278
      %v1280 = vrot.slane %v1276, %v1279
      %v1281 = vmul.f32 %v1268, %v1280
      %v1282 = vmul.f32 %v1269, %v1280
      %v1283 = vmul.f32 %v1270, %v1280
      %v1284 = vmul.f32 %v1271, %v1280
      %v1285 = vmul.f32 %v1272, %v1280
      %v1286 = vmul.f32 %v1273, %v1280
      %v1287 = vmul.f32 %v1274, %v1280
      %v1288 = vmul.f32 %v1275, %v1280
      %v1289 = vadd.f32 %v1260, %v1281
      %v1290 = vadd.f32 %v1261, %v1282
      %v1291 = vadd.f32 %v1262, %v1283
      %v1292 = vadd.f32 %v1263, %v1284
      %v1293 = vadd.f32 %v1264, %v1285
      %v1294 = vadd.f32 %v1265, %v1286
      %v1295 = vadd.f32 %v1266, %v1287
      %v1296 = vadd.f32 %v1267, %v1288
      %v1297 = vld [vmem:[%s396] sm:$0xff]
      %v1298 = vld [vmem:[%s396 + $0x10] sm:$0xff]
      %v1299 = vld [vmem:[%s396 + $0x20] sm:$0xff]
      %v1300 = vld [vmem:[%s396 + $0x30] sm:$0xff]
      %v1301 = vld [vmem:[%s396 + $0x40] sm:$0xff]
      %v1302 = vld [vmem:[%s396 + $0x50] sm:$0xff]
      %v1303 = vld [vmem:[%s396 + $0x60] sm:$0xff]
      %v1304 = vld [vmem:[%s396 + $0x70] sm:$0xff]
      %v1305 = vld [vmem:[%s205 + $0xe] sm:$0x1]
      %v1306 = vlaneseq
      %v1307 = vshrl.u32 %v1306, 7
      %v1308 = vsub.s32 0, %v1307
      %v1309 = vrot.slane %v1305, %v1308
      %v1310 = vmul.f32 %v1297, %v1309
      %v1311 = vmul.f32 %v1298, %v1309
      %v1312 = vmul.f32 %v1299, %v1309
      %v1313 = vmul.f32 %v1300, %v1309
      %v1314 = vmul.f32 %v1301, %v1309
      %v1315 = vmul.f32 %v1302, %v1309
      %v1316 = vmul.f32 %v1303, %v1309
      %v1317 = vmul.f32 %v1304, %v1309
      %v1318 = vld [vmem:[%s205 + $0xf] sm:$0x1]
      %v1319 = vlaneseq
      %v1320 = vshrl.u32 %v1319, 7
      %v1321 = vsub.s32 0, %v1320
      %v1322 = vrot.slane %v1318, %v1321
      %v1323 = vmul.f32 %v397, %v1322
      %v1324 = vmul.f32 %v398, %v1322
      %v1325 = vmul.f32 %v399, %v1322
      %v1326 = vmul.f32 %v400, %v1322
      %v1327 = vmul.f32 %v401, %v1322
      %v1328 = vmul.f32 %v402, %v1322
      %v1329 = vmul.f32 %v403, %v1322
      %v1330 = vmul.f32 %v404, %v1322
      %v1331 = vadd.f32 %v1310, %v1323
      %v1332 = vadd.f32 %v1311, %v1324
      %v1333 = vadd.f32 %v1312, %v1325
      %v1334 = vadd.f32 %v1313, %v1326
      %v1335 = vadd.f32 %v1314, %v1327
      %v1336 = vadd.f32 %v1315, %v1328
      %v1337 = vadd.f32 %v1316, %v1329
      %v1338 = vadd.f32 %v1317, %v1330
      %v1339 = vld [vmem:[%s205 + $0x10] sm:$0x1]
      %v1340 = vlaneseq
      %v1341 = vshrl.u32 %v1340, 7
      %v1342 = vsub.s32 0, %v1341
      %v1343 = vrot.slane %v1339, %v1342
      %v1344 = vmul.f32 %v418, %v1343
      %v1345 = vmul.f32 %v419, %v1343
      %v1346 = vmul.f32 %v420, %v1343
      %v1347 = vmul.f32 %v421, %v1343
      %v1348 = vmul.f32 %v422, %v1343
      %v1349 = vmul.f32 %v423, %v1343
      %v1350 = vmul.f32 %v424, %v1343
      %v1351 = vmul.f32 %v425, %v1343
      %v1352 = vadd.f32 %v1331, %v1344
      %v1353 = vadd.f32 %v1332, %v1345
      %v1354 = vadd.f32 %v1333, %v1346
      %v1355 = vadd.f32 %v1334, %v1347
      %v1356 = vadd.f32 %v1335, %v1348
      %v1357 = vadd.f32 %v1336, %v1349
      %v1358 = vadd.f32 %v1337, %v1350
      %v1359 = vadd.f32 %v1338, %v1351
      %v1360 = vld [vmem:[%s205 + $0x11] sm:$0x1]
      %v1361 = vlaneseq
      %v1362 = vshrl.u32 %v1361, 7
      %v1363 = vsub.s32 0, %v1362
      %v1364 = vrot.slane %v1360, %v1363
      %v1365 = vmul.f32 %v447, %v1364
      %v1366 = vmul.f32 %v448, %v1364
      %v1367 = vmul.f32 %v449, %v1364
      %v1368 = vmul.f32 %v450, %v1364
      %v1369 = vmul.f32 %v451, %v1364
      %v1370 = vmul.f32 %v452, %v1364
      %v1371 = vmul.f32 %v453, %v1364
      %v1372 = vmul.f32 %v454, %v1364
      %v1373 = vadd.f32 %v1352, %v1365
      %v1374 = vadd.f32 %v1353, %v1366
      %v1375 = vadd.f32 %v1354, %v1367
      %v1376 = vadd.f32 %v1355, %v1368
      %v1377 = vadd.f32 %v1356, %v1369
      %v1378 = vadd.f32 %v1357, %v1370
      %v1379 = vadd.f32 %v1358, %v1371
      %v1380 = vadd.f32 %v1359, %v1372
      %v1381 = vld [vmem:[%s205 + $0x12] sm:$0x1]
      %v1382 = vlaneseq
      %v1383 = vshrl.u32 %v1382, 7
      %v1384 = vsub.s32 0, %v1383
      %v1385 = vrot.slane %v1381, %v1384
      %v1386 = vmul.f32 %v476, %v1385
      %v1387 = vmul.f32 %v477, %v1385
      %v1388 = vmul.f32 %v478, %v1385
      %v1389 = vmul.f32 %v479, %v1385
      %v1390 = vmul.f32 %v480, %v1385
      %v1391 = vmul.f32 %v481, %v1385
      %v1392 = vmul.f32 %v482, %v1385
      %v1393 = vmul.f32 %v483, %v1385
      %v1394 = vadd.f32 %v1373, %v1386
      %v1395 = vadd.f32 %v1374, %v1387
      %v1396 = vadd.f32 %v1375, %v1388
      %v1397 = vadd.f32 %v1376, %v1389
      %v1398 = vadd.f32 %v1377, %v1390
      %v1399 = vadd.f32 %v1378, %v1391
      %v1400 = vadd.f32 %v1379, %v1392
      %v1401 = vadd.f32 %v1380, %v1393
      %v1402 = vld [vmem:[%s205 + $0x13] sm:$0x1]
      %v1403 = vlaneseq
      %v1404 = vshrl.u32 %v1403, 7
      %v1405 = vsub.s32 0, %v1404
      %v1406 = vrot.slane %v1402, %v1405
      %v1407 = vmul.f32 %v505, %v1406
      %v1408 = vmul.f32 %v506, %v1406
      %v1409 = vmul.f32 %v507, %v1406
      %v1410 = vmul.f32 %v508, %v1406
      %v1411 = vmul.f32 %v509, %v1406
      %v1412 = vmul.f32 %v510, %v1406
      %v1413 = vmul.f32 %v511, %v1406
      %v1414 = vmul.f32 %v512, %v1406
      %v1415 = vadd.f32 %v1394, %v1407
      %v1416 = vadd.f32 %v1395, %v1408
      %v1417 = vadd.f32 %v1396, %v1409
      %v1418 = vadd.f32 %v1397, %v1410
      %v1419 = vadd.f32 %v1398, %v1411
      %v1420 = vadd.f32 %v1399, %v1412
      %v1421 = vadd.f32 %v1400, %v1413
      %v1422 = vadd.f32 %v1401, %v1414
      %v1423 = vld [vmem:[%s396 + $0x6] sm:$0xff]
      %v1424 = vld [vmem:[%s396 + $0x16] sm:$0xff]
      %v1425 = vld [vmem:[%s396 + $0x26] sm:$0xff]
      %v1426 = vld [vmem:[%s396 + $0x36] sm:$0xff]
      %v1427 = vld [vmem:[%s396 + $0x46] sm:$0xff]
      %v1428 = vld [vmem:[%s396 + $0x56] sm:$0xff]
      %v1429 = vld [vmem:[%s396 + $0x66] sm:$0xff]
      %v1430 = vld [vmem:[%s396 + $0x76] sm:$0xff]
      %v1431 = vld [vmem:[%s205 + $0x14] sm:$0x1]
      %v1432 = vlaneseq
      %v1433 = vshrl.u32 %v1432, 7
      %v1434 = vsub.s32 0, %v1433
      %v1435 = vrot.slane %v1431, %v1434
      %v1436 = vmul.f32 %v1423, %v1435
      %v1437 = vmul.f32 %v1424, %v1435
      %v1438 = vmul.f32 %v1425, %v1435
      %v1439 = vmul.f32 %v1426, %v1435
      %v1440 = vmul.f32 %v1427, %v1435
      %v1441 = vmul.f32 %v1428, %v1435
      %v1442 = vmul.f32 %v1429, %v1435
      %v1443 = vmul.f32 %v1430, %v1435
      %v1444 = vadd.f32 %v1415, %v1436
      %v1445 = vadd.f32 %v1416, %v1437
      %v1446 = vadd.f32 %v1417, %v1438
      %v1447 = vadd.f32 %v1418, %v1439
      %v1448 = vadd.f32 %v1419, %v1440
      %v1449 = vadd.f32 %v1420, %v1441
      %v1450 = vadd.f32 %v1421, %v1442
      %v1451 = vadd.f32 %v1422, %v1443
      %v1452 = vld [vmem:[%s249] sm:$0xff]
      %v1453 = vld [vmem:[%s249 + $0x10] sm:$0xff]
      %v1454 = vld [vmem:[%s249 + $0x20] sm:$0xff]
      %v1455 = vld [vmem:[%s249 + $0x30] sm:$0xff]
      %v1456 = vld [vmem:[%s249 + $0x40] sm:$0xff]
      %v1457 = vld [vmem:[%s249 + $0x50] sm:$0xff]
      %v1458 = vld [vmem:[%s249 + $0x60] sm:$0xff]
      %v1459 = vld [vmem:[%s249 + $0x70] sm:$0xff]
      %v1460 = vld [vmem:[%s205 + $0x15] sm:$0x1]
      %v1461 = vlaneseq
      %v1462 = vshrl.u32 %v1461, 7
      %v1463 = vsub.s32 0, %v1462
      %v1464 = vrot.slane %v1460, %v1463
      %v1465 = vmul.f32 %v1452, %v1464
      %v1466 = vmul.f32 %v1453, %v1464
      %v1467 = vmul.f32 %v1454, %v1464
      %v1468 = vmul.f32 %v1455, %v1464
      %v1469 = vmul.f32 %v1456, %v1464
      %v1470 = vmul.f32 %v1457, %v1464
      %v1471 = vmul.f32 %v1458, %v1464
      %v1472 = vmul.f32 %v1459, %v1464
      %v1473 = vld [vmem:[%s205 + $0x16] sm:$0x1]
      %v1474 = vlaneseq
      %v1475 = vshrl.u32 %v1474, 7
      %v1476 = vsub.s32 0, %v1475
      %v1477 = vrot.slane %v1473, %v1476
      %v1478 = vmul.f32 %v534, %v1477
      %v1479 = vmul.f32 %v535, %v1477
      %v1480 = vmul.f32 %v536, %v1477
      %v1481 = vmul.f32 %v537, %v1477
      %v1482 = vmul.f32 %v538, %v1477
      %v1483 = vmul.f32 %v539, %v1477
      %v1484 = vmul.f32 %v540, %v1477
      %v1485 = vmul.f32 %v541, %v1477
      %v1486 = vadd.f32 %v1465, %v1478
      %v1487 = vadd.f32 %v1466, %v1479
      %v1488 = vadd.f32 %v1467, %v1480
      %v1489 = vadd.f32 %v1468, %v1481
      %v1490 = vadd.f32 %v1469, %v1482
      %v1491 = vadd.f32 %v1470, %v1483
      %v1492 = vadd.f32 %v1471, %v1484
      %v1493 = vadd.f32 %v1472, %v1485
      %v1494 = vld [vmem:[%s205 + $0x17] sm:$0x1]
      %v1495 = vlaneseq
      %v1496 = vshrl.u32 %v1495, 7
      %v1497 = vsub.s32 0, %v1496
      %v1498 = vrot.slane %v1494, %v1497
      %v1499 = vmul.f32 %v555, %v1498
      %v1500 = vmul.f32 %v556, %v1498
      %v1501 = vmul.f32 %v557, %v1498
      %v1502 = vmul.f32 %v558, %v1498
      %v1503 = vmul.f32 %v559, %v1498
      %v1504 = vmul.f32 %v560, %v1498
      %v1505 = vmul.f32 %v561, %v1498
      %v1506 = vmul.f32 %v562, %v1498
      %v1507 = vadd.f32 %v1486, %v1499
      %v1508 = vadd.f32 %v1487, %v1500
      %v1509 = vadd.f32 %v1488, %v1501
      %v1510 = vadd.f32 %v1489, %v1502
      %v1511 = vadd.f32 %v1490, %v1503
      %v1512 = vadd.f32 %v1491, %v1504
      %v1513 = vadd.f32 %v1492, %v1505
      %v1514 = vadd.f32 %v1493, %v1506
      %v1515 = vld [vmem:[%s205 + $0x18] sm:$0x1]
      %v1516 = vlaneseq
      %v1517 = vshrl.u32 %v1516, 7
      %v1518 = vsub.s32 0, %v1517
      %v1519 = vrot.slane %v1515, %v1518
      %v1520 = vmul.f32 %v584, %v1519
      %v1521 = vmul.f32 %v585, %v1519
      %v1522 = vmul.f32 %v586, %v1519
      %v1523 = vmul.f32 %v587, %v1519
      %v1524 = vmul.f32 %v588, %v1519
      %v1525 = vmul.f32 %v589, %v1519
      %v1526 = vmul.f32 %v590, %v1519
      %v1527 = vmul.f32 %v591, %v1519
      %v1528 = vadd.f32 %v1507, %v1520
      %v1529 = vadd.f32 %v1508, %v1521
      %v1530 = vadd.f32 %v1509, %v1522
      %v1531 = vadd.f32 %v1510, %v1523
      %v1532 = vadd.f32 %v1511, %v1524
      %v1533 = vadd.f32 %v1512, %v1525
      %v1534 = vadd.f32 %v1513, %v1526
      %v1535 = vadd.f32 %v1514, %v1527
      %v1536 = vld [vmem:[%s205 + $0x19] sm:$0x1]
      %v1537 = vlaneseq
      %v1538 = vshrl.u32 %v1537, 7
      %v1539 = vsub.s32 0, %v1538
      %v1540 = vrot.slane %v1536, %v1539
      %v1541 = vmul.f32 %v613, %v1540
      %v1542 = vmul.f32 %v614, %v1540
      %v1543 = vmul.f32 %v615, %v1540
      %v1544 = vmul.f32 %v616, %v1540
      %v1545 = vmul.f32 %v617, %v1540
      %v1546 = vmul.f32 %v618, %v1540
      %v1547 = vmul.f32 %v619, %v1540
      %v1548 = vmul.f32 %v620, %v1540
      %v1549 = vadd.f32 %v1528, %v1541
      %v1550 = vadd.f32 %v1529, %v1542
      %v1551 = vadd.f32 %v1530, %v1543
      %v1552 = vadd.f32 %v1531, %v1544
      %v1553 = vadd.f32 %v1532, %v1545
      %v1554 = vadd.f32 %v1533, %v1546
      %v1555 = vadd.f32 %v1534, %v1547
      %v1556 = vadd.f32 %v1535, %v1548
      %v1557 = vld [vmem:[%s205 + $0x1a] sm:$0x1]
      %v1558 = vlaneseq
      %v1559 = vshrl.u32 %v1558, 7
      %v1560 = vsub.s32 0, %v1559
      %v1561 = vrot.slane %v1557, %v1560
      %v1562 = vmul.f32 %v642, %v1561
      %v1563 = vmul.f32 %v643, %v1561
      %v1564 = vmul.f32 %v644, %v1561
      %v1565 = vmul.f32 %v645, %v1561
      %v1566 = vmul.f32 %v646, %v1561
      %v1567 = vmul.f32 %v647, %v1561
      %v1568 = vmul.f32 %v648, %v1561
      %v1569 = vmul.f32 %v649, %v1561
      %v1570 = vadd.f32 %v1549, %v1562
      %v1571 = vadd.f32 %v1550, %v1563
      %v1572 = vadd.f32 %v1551, %v1564
      %v1573 = vadd.f32 %v1552, %v1565
      %v1574 = vadd.f32 %v1553, %v1566
      %v1575 = vadd.f32 %v1554, %v1567
      %v1576 = vadd.f32 %v1555, %v1568
      %v1577 = vadd.f32 %v1556, %v1569
      %v1578 = vld [vmem:[%s249 + $0x6] sm:$0xff]
      %v1579 = vld [vmem:[%s249 + $0x16] sm:$0xff]
      %v1580 = vld [vmem:[%s249 + $0x26] sm:$0xff]
      %v1581 = vld [vmem:[%s249 + $0x36] sm:$0xff]
      %v1582 = vld [vmem:[%s249 + $0x46] sm:$0xff]
      %v1583 = vld [vmem:[%s249 + $0x56] sm:$0xff]
      %v1584 = vld [vmem:[%s249 + $0x66] sm:$0xff]
      %v1585 = vld [vmem:[%s249 + $0x76] sm:$0xff]
      %v1586 = vld [vmem:[%s205 + $0x1b] sm:$0x1]
      %v1587 = vlaneseq
      %v1588 = vshrl.u32 %v1587, 7
      %v1589 = vsub.s32 0, %v1588
      %v1590 = vrot.slane %v1586, %v1589
      %v1591 = vmul.f32 %v1578, %v1590
      %v1592 = vmul.f32 %v1579, %v1590
      %v1593 = vmul.f32 %v1580, %v1590
      %v1594 = vmul.f32 %v1581, %v1590
      %v1595 = vmul.f32 %v1582, %v1590
      %v1596 = vmul.f32 %v1583, %v1590
      %v1597 = vmul.f32 %v1584, %v1590
      %v1598 = vmul.f32 %v1585, %v1590
      %v1599 = vadd.f32 %v1570, %v1591
      %v1600 = vadd.f32 %v1571, %v1592
      %v1601 = vadd.f32 %v1572, %v1593
      %v1602 = vadd.f32 %v1573, %v1594
      %v1603 = vadd.f32 %v1574, %v1595
      %v1604 = vadd.f32 %v1575, %v1596
      %v1605 = vadd.f32 %v1576, %v1597
      %v1606 = vadd.f32 %v1577, %v1598
      %v1607 = vld [vmem:[%s671] sm:$0xff]
      %v1608 = vld [vmem:[%s671 + $0x10] sm:$0xff]
      %v1609 = vld [vmem:[%s671 + $0x20] sm:$0xff]
      %v1610 = vld [vmem:[%s671 + $0x30] sm:$0xff]
      %v1611 = vld [vmem:[%s671 + $0x40] sm:$0xff]
      %v1612 = vld [vmem:[%s671 + $0x50] sm:$0xff]
      %v1613 = vld [vmem:[%s671 + $0x60] sm:$0xff]
      %v1614 = vld [vmem:[%s671 + $0x70] sm:$0xff]
      %v1615 = vld [vmem:[%s205 + $0x1c] sm:$0x1]
      %v1616 = vlaneseq
      %v1617 = vshrl.u32 %v1616, 7
      %v1618 = vsub.s32 0, %v1617
      %v1619 = vrot.slane %v1615, %v1618
      %v1620 = vmul.f32 %v1607, %v1619
      %v1621 = vmul.f32 %v1608, %v1619
      %v1622 = vmul.f32 %v1609, %v1619
      %v1623 = vmul.f32 %v1610, %v1619
      %v1624 = vmul.f32 %v1611, %v1619
      %v1625 = vmul.f32 %v1612, %v1619
      %v1626 = vmul.f32 %v1613, %v1619
      %v1627 = vmul.f32 %v1614, %v1619
      %v1628 = vld [vmem:[%s205 + $0x1d] sm:$0x1]
      %v1629 = vlaneseq
      %v1630 = vshrl.u32 %v1629, 7
      %v1631 = vsub.s32 0, %v1630
      %v1632 = vrot.slane %v1628, %v1631
      %v1633 = vmul.f32 %v672, %v1632
      %v1634 = vmul.f32 %v673, %v1632
      %v1635 = vmul.f32 %v674, %v1632
      %v1636 = vmul.f32 %v675, %v1632
      %v1637 = vmul.f32 %v676, %v1632
      %v1638 = vmul.f32 %v677, %v1632
      %v1639 = vmul.f32 %v678, %v1632
      %v1640 = vmul.f32 %v679, %v1632
      %v1641 = vadd.f32 %v1620, %v1633
      %v1642 = vadd.f32 %v1621, %v1634
      %v1643 = vadd.f32 %v1622, %v1635
      %v1644 = vadd.f32 %v1623, %v1636
      %v1645 = vadd.f32 %v1624, %v1637
      %v1646 = vadd.f32 %v1625, %v1638
      %v1647 = vadd.f32 %v1626, %v1639
      %v1648 = vadd.f32 %v1627, %v1640
      %v1649 = vld [vmem:[%s205 + $0x1e] sm:$0x1]
      %v1650 = vlaneseq
      %v1651 = vshrl.u32 %v1650, 7
      %v1652 = vsub.s32 0, %v1651
      %v1653 = vrot.slane %v1649, %v1652
      %v1654 = vmul.f32 %v693, %v1653
      %v1655 = vmul.f32 %v694, %v1653
      %v1656 = vmul.f32 %v695, %v1653
      %v1657 = vmul.f32 %v696, %v1653
      %v1658 = vmul.f32 %v697, %v1653
      %v1659 = vmul.f32 %v698, %v1653
      %v1660 = vmul.f32 %v699, %v1653
      %v1661 = vmul.f32 %v700, %v1653
      %v1662 = vadd.f32 %v1641, %v1654
      %v1663 = vadd.f32 %v1642, %v1655
      %v1664 = vadd.f32 %v1643, %v1656
      %v1665 = vadd.f32 %v1644, %v1657
      %v1666 = vadd.f32 %v1645, %v1658
      %v1667 = vadd.f32 %v1646, %v1659
      %v1668 = vadd.f32 %v1647, %v1660
      %v1669 = vadd.f32 %v1648, %v1661
      %v1670 = vld [vmem:[%s205 + $0x1f] sm:$0x1]
      %v1671 = vlaneseq
      %v1672 = vshrl.u32 %v1671, 7
      %v1673 = vsub.s32 0, %v1672
      %v1674 = vrot.slane %v1670, %v1673
      %v1675 = vmul.f32 %v722, %v1674
      %v1676 = vmul.f32 %v723, %v1674
      %v1677 = vmul.f32 %v724, %v1674
      %v1678 = vmul.f32 %v725, %v1674
      %v1679 = vmul.f32 %v726, %v1674
      %v1680 = vmul.f32 %v727, %v1674
      %v1681 = vmul.f32 %v728, %v1674
      %v1682 = vmul.f32 %v729, %v1674
      %v1683 = vadd.f32 %v1662, %v1675
      %v1684 = vadd.f32 %v1663, %v1676
      %v1685 = vadd.f32 %v1664, %v1677
      %v1686 = vadd.f32 %v1665, %v1678
      %v1687 = vadd.f32 %v1666, %v1679
      %v1688 = vadd.f32 %v1667, %v1680
      %v1689 = vadd.f32 %v1668, %v1681
      %v1690 = vadd.f32 %v1669, %v1682
      %v1691 = vld [vmem:[%s205 + $0x20] sm:$0x1]
      %v1692 = vlaneseq
      %v1693 = vshrl.u32 %v1692, 7
      %v1694 = vsub.s32 0, %v1693
      %v1695 = vrot.slane %v1691, %v1694
      %v1696 = vmul.f32 %v751, %v1695
      %v1697 = vmul.f32 %v752, %v1695
      %v1698 = vmul.f32 %v753, %v1695
      %v1699 = vmul.f32 %v754, %v1695
      %v1700 = vmul.f32 %v755, %v1695
      %v1701 = vmul.f32 %v756, %v1695
      %v1702 = vmul.f32 %v757, %v1695
      %v1703 = vmul.f32 %v758, %v1695
      %v1704 = vadd.f32 %v1683, %v1696
      %v1705 = vadd.f32 %v1684, %v1697
      %v1706 = vadd.f32 %v1685, %v1698
      %v1707 = vadd.f32 %v1686, %v1699
      %v1708 = vadd.f32 %v1687, %v1700
      %v1709 = vadd.f32 %v1688, %v1701
      %v1710 = vadd.f32 %v1689, %v1702
      %v1711 = vadd.f32 %v1690, %v1703
      %v1712 = vld [vmem:[%s205 + $0x21] sm:$0x1]
      %v1713 = vlaneseq
      %v1714 = vshrl.u32 %v1713, 7
      %v1715 = vsub.s32 0, %v1714
      %v1716 = vrot.slane %v1712, %v1715
      %v1717 = vmul.f32 %v780, %v1716
      %v1718 = vmul.f32 %v781, %v1716
      %v1719 = vmul.f32 %v782, %v1716
      %v1720 = vmul.f32 %v783, %v1716
      %v1721 = vmul.f32 %v784, %v1716
      %v1722 = vmul.f32 %v785, %v1716
      %v1723 = vmul.f32 %v786, %v1716
      %v1724 = vmul.f32 %v787, %v1716
      %v1725 = vadd.f32 %v1704, %v1717
      %v1726 = vadd.f32 %v1705, %v1718
      %v1727 = vadd.f32 %v1706, %v1719
      %v1728 = vadd.f32 %v1707, %v1720
      %v1729 = vadd.f32 %v1708, %v1721
      %v1730 = vadd.f32 %v1709, %v1722
      %v1731 = vadd.f32 %v1710, %v1723
      %v1732 = vadd.f32 %v1711, %v1724
      %v1733 = vld [vmem:[%s671 + $0x6] sm:$0xff]
      %v1734 = vld [vmem:[%s671 + $0x16] sm:$0xff]
      %v1735 = vld [vmem:[%s671 + $0x26] sm:$0xff]
      %v1736 = vld [vmem:[%s671 + $0x36] sm:$0xff]
      %v1737 = vld [vmem:[%s671 + $0x46] sm:$0xff]
      %v1738 = vld [vmem:[%s671 + $0x56] sm:$0xff]
      %v1739 = vld [vmem:[%s671 + $0x66] sm:$0xff]
      %v1740 = vld [vmem:[%s671 + $0x76] sm:$0xff]
      %v1741 = vld [vmem:[%s205 + $0x22] sm:$0x1]
      %v1742 = vlaneseq
      %v1743 = vshrl.u32 %v1742, 7
      %v1744 = vsub.s32 0, %v1743
      %v1745 = vrot.slane %v1741, %v1744
      %v1746 = vmul.f32 %v1733, %v1745
      %v1747 = vmul.f32 %v1734, %v1745
      %v1748 = vmul.f32 %v1735, %v1745
      %v1749 = vmul.f32 %v1736, %v1745
      %v1750 = vmul.f32 %v1737, %v1745
      %v1751 = vmul.f32 %v1738, %v1745
      %v1752 = vmul.f32 %v1739, %v1745
      %v1753 = vmul.f32 %v1740, %v1745
      %v1754 = vadd.f32 %v1725, %v1746
      %v1755 = vadd.f32 %v1726, %v1747
      %v1756 = vadd.f32 %v1727, %v1748
      %v1757 = vadd.f32 %v1728, %v1749
      %v1758 = vadd.f32 %v1729, %v1750
      %v1759 = vadd.f32 %v1730, %v1751
      %v1760 = vadd.f32 %v1731, %v1752
      %v1761 = vadd.f32 %v1732, %v1753
      %v1762 = vld [vmem:[%s809] sm:$0xff]
      %v1763 = vld [vmem:[%s809 + $0x10] sm:$0xff]
      %v1764 = vld [vmem:[%s809 + $0x20] sm:$0xff]
      %v1765 = vld [vmem:[%s809 + $0x30] sm:$0xff]
      %v1766 = vld [vmem:[%s809 + $0x40] sm:$0xff]
      %v1767 = vld [vmem:[%s809 + $0x50] sm:$0xff]
      %v1768 = vld [vmem:[%s809 + $0x60] sm:$0xff]
      %v1769 = vld [vmem:[%s809 + $0x70] sm:$0xff]
      %v1770 = vld [vmem:[%s205 + $0x23] sm:$0x1]
      %v1771 = vlaneseq
      %v1772 = vshrl.u32 %v1771, 7
      %v1773 = vsub.s32 0, %v1772
      %v1774 = vrot.slane %v1770, %v1773
      %v1775 = vmul.f32 %v1762, %v1774
      %v1776 = vmul.f32 %v1763, %v1774
      %v1777 = vmul.f32 %v1764, %v1774
      %v1778 = vmul.f32 %v1765, %v1774
      %v1779 = vmul.f32 %v1766, %v1774
      %v1780 = vmul.f32 %v1767, %v1774
      %v1781 = vmul.f32 %v1768, %v1774
      %v1782 = vmul.f32 %v1769, %v1774
      %v1783 = vld [vmem:[%s205 + $0x24] sm:$0x1]
      %v1784 = vlaneseq
      %v1785 = vshrl.u32 %v1784, 7
      %v1786 = vsub.s32 0, %v1785
      %v1787 = vrot.slane %v1783, %v1786
      %v1788 = vmul.f32 %v810, %v1787
      %v1789 = vmul.f32 %v811, %v1787
      %v1790 = vmul.f32 %v812, %v1787
      %v1791 = vmul.f32 %v813, %v1787
      %v1792 = vmul.f32 %v814, %v1787
      %v1793 = vmul.f32 %v815, %v1787
      %v1794 = vmul.f32 %v816, %v1787
      %v1795 = vmul.f32 %v817, %v1787
      %v1796 = vadd.f32 %v1775, %v1788
      %v1797 = vadd.f32 %v1776, %v1789
      %v1798 = vadd.f32 %v1777, %v1790
      %v1799 = vadd.f32 %v1778, %v1791
      %v1800 = vadd.f32 %v1779, %v1792
      %v1801 = vadd.f32 %v1780, %v1793
      %v1802 = vadd.f32 %v1781, %v1794
      %v1803 = vadd.f32 %v1782, %v1795
      %v1804 = vld [vmem:[%s205 + $0x25] sm:$0x1]
      %v1805 = vlaneseq
      %v1806 = vshrl.u32 %v1805, 7
      %v1807 = vsub.s32 0, %v1806
      %v1808 = vrot.slane %v1804, %v1807
      %v1809 = vmul.f32 %v831, %v1808
      %v1810 = vmul.f32 %v832, %v1808
      %v1811 = vmul.f32 %v833, %v1808
      %v1812 = vmul.f32 %v834, %v1808
      %v1813 = vmul.f32 %v835, %v1808
      %v1814 = vmul.f32 %v836, %v1808
      %v1815 = vmul.f32 %v837, %v1808
      %v1816 = vmul.f32 %v838, %v1808
      %v1817 = vadd.f32 %v1796, %v1809
      %v1818 = vadd.f32 %v1797, %v1810
      %v1819 = vadd.f32 %v1798, %v1811
      %v1820 = vadd.f32 %v1799, %v1812
      %v1821 = vadd.f32 %v1800, %v1813
      %v1822 = vadd.f32 %v1801, %v1814
      %v1823 = vadd.f32 %v1802, %v1815
      %v1824 = vadd.f32 %v1803, %v1816
      %v1825 = vld [vmem:[%s205 + $0x26] sm:$0x1]
      %v1826 = vlaneseq
      %v1827 = vshrl.u32 %v1826, 7
      %v1828 = vsub.s32 0, %v1827
      %v1829 = vrot.slane %v1825, %v1828
      %v1830 = vmul.f32 %v860, %v1829
      %v1831 = vmul.f32 %v861, %v1829
      %v1832 = vmul.f32 %v862, %v1829
      %v1833 = vmul.f32 %v863, %v1829
      %v1834 = vmul.f32 %v864, %v1829
      %v1835 = vmul.f32 %v865, %v1829
      %v1836 = vmul.f32 %v866, %v1829
      %v1837 = vmul.f32 %v867, %v1829
      %v1838 = vadd.f32 %v1817, %v1830
      %v1839 = vadd.f32 %v1818, %v1831
      %v1840 = vadd.f32 %v1819, %v1832
      %v1841 = vadd.f32 %v1820, %v1833
      %v1842 = vadd.f32 %v1821, %v1834
      %v1843 = vadd.f32 %v1822, %v1835
      %v1844 = vadd.f32 %v1823, %v1836
      %v1845 = vadd.f32 %v1824, %v1837
      %v1846 = vld [vmem:[%s205 + $0x27] sm:$0x1]
      %v1847 = vlaneseq
      %v1848 = vshrl.u32 %v1847, 7
      %v1849 = vsub.s32 0, %v1848
      %v1850 = vrot.slane %v1846, %v1849
      %v1851 = vmul.f32 %v889, %v1850
      %v1852 = vmul.f32 %v890, %v1850
      %v1853 = vmul.f32 %v891, %v1850
      %v1854 = vmul.f32 %v892, %v1850
      %v1855 = vmul.f32 %v893, %v1850
      %v1856 = vmul.f32 %v894, %v1850
      %v1857 = vmul.f32 %v895, %v1850
      %v1858 = vmul.f32 %v896, %v1850
      %v1859 = vadd.f32 %v1838, %v1851
      %v1860 = vadd.f32 %v1839, %v1852
      %v1861 = vadd.f32 %v1840, %v1853
      %v1862 = vadd.f32 %v1841, %v1854
      %v1863 = vadd.f32 %v1842, %v1855
      %v1864 = vadd.f32 %v1843, %v1856
      %v1865 = vadd.f32 %v1844, %v1857
      %v1866 = vadd.f32 %v1845, %v1858
      %v1867 = vld [vmem:[%s205 + $0x28] sm:$0x1]
      %v1868 = vlaneseq
      %v1869 = vshrl.u32 %v1868, 7
      %v1870 = vsub.s32 0, %v1869
      %v1871 = vrot.slane %v1867, %v1870
      %v1872 = vmul.f32 %v918, %v1871
      %v1873 = vmul.f32 %v919, %v1871
      %v1874 = vmul.f32 %v920, %v1871
      %v1875 = vmul.f32 %v921, %v1871
      %v1876 = vmul.f32 %v922, %v1871
      %v1877 = vmul.f32 %v923, %v1871
      %v1878 = vmul.f32 %v924, %v1871
      %v1879 = vmul.f32 %v925, %v1871
      %v1880 = vadd.f32 %v1859, %v1872
      %v1881 = vadd.f32 %v1860, %v1873
      %v1882 = vadd.f32 %v1861, %v1874
      %v1883 = vadd.f32 %v1862, %v1875
      %v1884 = vadd.f32 %v1863, %v1876
      %v1885 = vadd.f32 %v1864, %v1877
      %v1886 = vadd.f32 %v1865, %v1878
      %v1887 = vadd.f32 %v1866, %v1879
      %v1888 = vld [vmem:[%s809 + $0x6] sm:$0xff]
      %v1889 = vld [vmem:[%s809 + $0x16] sm:$0xff]
      %v1890 = vld [vmem:[%s809 + $0x26] sm:$0xff]
      %v1891 = vld [vmem:[%s809 + $0x36] sm:$0xff]
      %v1892 = vld [vmem:[%s809 + $0x46] sm:$0xff]
      %v1893 = vld [vmem:[%s809 + $0x56] sm:$0xff]
      %v1894 = vld [vmem:[%s809 + $0x66] sm:$0xff]
      %v1895 = vld [vmem:[%s809 + $0x76] sm:$0xff]
      %v1896 = vld [vmem:[%s205 + $0x29] sm:$0x1]
      %v1897 = vlaneseq
      %v1898 = vshrl.u32 %v1897, 7
      %v1899 = vsub.s32 0, %v1898
      %v1900 = vrot.slane %v1896, %v1899
      %v1901 = vmul.f32 %v1888, %v1900
      %v1902 = vmul.f32 %v1889, %v1900
      %v1903 = vmul.f32 %v1890, %v1900
      %v1904 = vmul.f32 %v1891, %v1900
      %v1905 = vmul.f32 %v1892, %v1900
      %v1906 = vmul.f32 %v1893, %v1900
      %v1907 = vmul.f32 %v1894, %v1900
      %v1908 = vmul.f32 %v1895, %v1900
      %v1909 = vadd.f32 %v1880, %v1901
      %v1910 = vadd.f32 %v1881, %v1902
      %v1911 = vadd.f32 %v1882, %v1903
      %v1912 = vadd.f32 %v1883, %v1904
      %v1913 = vadd.f32 %v1884, %v1905
      %v1914 = vadd.f32 %v1885, %v1906
      %v1915 = vadd.f32 %v1886, %v1907
      %v1916 = vadd.f32 %v1887, %v1908
      %s1917 = scalar_lea.vmem [#allocation2], 96
      %v1918 = vld [vmem:[%s1917] sm:$0xff]
      %v1919 = vld [vmem:[%s1917 + $0x10] sm:$0xff]
      %v1920 = vld [vmem:[%s1917 + $0x20] sm:$0xff]
      %v1921 = vld [vmem:[%s1917 + $0x30] sm:$0xff]
      %v1922 = vld [vmem:[%s1917 + $0x40] sm:$0xff]
      %v1923 = vld [vmem:[%s1917 + $0x50] sm:$0xff]
      %v1924 = vld [vmem:[%s1917 + $0x60] sm:$0xff]
      %v1925 = vld [vmem:[%s1917 + $0x70] sm:$0xff]
      %v1926 = vld [vmem:[%s205 + $0x2a] sm:$0x1]
      %v1927 = vlaneseq
      %v1928 = vshrl.u32 %v1927, 7
      %v1929 = vsub.s32 0, %v1928
      %v1930 = vrot.slane %v1926, %v1929
      %v1931 = vmul.f32 %v1918, %v1930
      %v1932 = vmul.f32 %v1919, %v1930
      %v1933 = vmul.f32 %v1920, %v1930
      %v1934 = vmul.f32 %v1921, %v1930
      %v1935 = vmul.f32 %v1922, %v1930
      %v1936 = vmul.f32 %v1923, %v1930
      %v1937 = vmul.f32 %v1924, %v1930
      %v1938 = vmul.f32 %v1925, %v1930
      %v1939 = vld [vmem:[%s1917 + $0x1] sm:$0xff]
      %v1940 = vld [vmem:[%s1917 + $0x11] sm:$0xff]
      %v1941 = vld [vmem:[%s1917 + $0x21] sm:$0xff]
      %v1942 = vld [vmem:[%s1917 + $0x31] sm:$0xff]
      %v1943 = vld [vmem:[%s1917 + $0x41] sm:$0xff]
      %v1944 = vld [vmem:[%s1917 + $0x51] sm:$0xff]
      %v1945 = vld [vmem:[%s1917 + $0x61] sm:$0xff]
      %v1946 = vld [vmem:[%s1917 + $0x71] sm:$0xff]
      %v1947 = vld [vmem:[%s205 + $0x2b] sm:$0x1]
      %v1948 = vlaneseq
      %v1949 = vshrl.u32 %v1948, 7
      %v1950 = vsub.s32 0, %v1949
      %v1951 = vrot.slane %v1947, %v1950
      %v1952 = vmul.f32 %v1939, %v1951
      %v1953 = vmul.f32 %v1940, %v1951
      %v1954 = vmul.f32 %v1941, %v1951
      %v1955 = vmul.f32 %v1942, %v1951
      %v1956 = vmul.f32 %v1943, %v1951
      %v1957 = vmul.f32 %v1944, %v1951
      %v1958 = vmul.f32 %v1945, %v1951
      %v1959 = vmul.f32 %v1946, %v1951
      %v1960 = vadd.f32 %v1931, %v1952
      %v1961 = vadd.f32 %v1932, %v1953
      %v1962 = vadd.f32 %v1933, %v1954
      %v1963 = vadd.f32 %v1934, %v1955
      %v1964 = vadd.f32 %v1935, %v1956
      %v1965 = vadd.f32 %v1936, %v1957
      %v1966 = vadd.f32 %v1937, %v1958
      %v1967 = vadd.f32 %v1938, %v1959
      %v1968 = vld [vmem:[%s1917 + $0x2] sm:$0xff]
      %v1969 = vld [vmem:[%s1917 + $0x12] sm:$0xff]
      %v1970 = vld [vmem:[%s1917 + $0x22] sm:$0xff]
      %v1971 = vld [vmem:[%s1917 + $0x32] sm:$0xff]
      %v1972 = vld [vmem:[%s1917 + $0x42] sm:$0xff]
      %v1973 = vld [vmem:[%s1917 + $0x52] sm:$0xff]
      %v1974 = vld [vmem:[%s1917 + $0x62] sm:$0xff]
      %v1975 = vld [vmem:[%s1917 + $0x72] sm:$0xff]
      %v1976 = vld [vmem:[%s205 + $0x2c] sm:$0x1]
      %v1977 = vlaneseq
      %v1978 = vshrl.u32 %v1977, 7
      %v1979 = vsub.s32 0, %v1978
      %v1980 = vrot.slane %v1976, %v1979
      %v1981 = vmul.f32 %v1968, %v1980
      %v1982 = vmul.f32 %v1969, %v1980
      %v1983 = vmul.f32 %v1970, %v1980
      %v1984 = vmul.f32 %v1971, %v1980
      %v1985 = vmul.f32 %v1972, %v1980
      %v1986 = vmul.f32 %v1973, %v1980
      %v1987 = vmul.f32 %v1974, %v1980
      %v1988 = vmul.f32 %v1975, %v1980
      %v1989 = vadd.f32 %v1960, %v1981
      %v1990 = vadd.f32 %v1961, %v1982
      %v1991 = vadd.f32 %v1962, %v1983
      %v1992 = vadd.f32 %v1963, %v1984
      %v1993 = vadd.f32 %v1964, %v1985
      %v1994 = vadd.f32 %v1965, %v1986
      %v1995 = vadd.f32 %v1966, %v1987
      %v1996 = vadd.f32 %v1967, %v1988
      %v1997 = vld [vmem:[%s1917 + $0x3] sm:$0xff]
      %v1998 = vld [vmem:[%s1917 + $0x13] sm:$0xff]
      %v1999 = vld [vmem:[%s1917 + $0x23] sm:$0xff]
      %v2000 = vld [vmem:[%s1917 + $0x33] sm:$0xff]
      %v2001 = vld [vmem:[%s1917 + $0x43] sm:$0xff]
      %v2002 = vld [vmem:[%s1917 + $0x53] sm:$0xff]
      %v2003 = vld [vmem:[%s1917 + $0x63] sm:$0xff]
      %v2004 = vld [vmem:[%s1917 + $0x73] sm:$0xff]
      %v2005 = vld [vmem:[%s205 + $0x2d] sm:$0x1]
      %v2006 = vlaneseq
      %v2007 = vshrl.u32 %v2006, 7
      %v2008 = vsub.s32 0, %v2007
      %v2009 = vrot.slane %v2005, %v2008
      %v2010 = vmul.f32 %v1997, %v2009
      %v2011 = vmul.f32 %v1998, %v2009
      %v2012 = vmul.f32 %v1999, %v2009
      %v2013 = vmul.f32 %v2000, %v2009
      %v2014 = vmul.f32 %v2001, %v2009
      %v2015 = vmul.f32 %v2002, %v2009
      %v2016 = vmul.f32 %v2003, %v2009
      %v2017 = vmul.f32 %v2004, %v2009
      %v2018 = vadd.f32 %v1989, %v2010
      %v2019 = vadd.f32 %v1990, %v2011
      %v2020 = vadd.f32 %v1991, %v2012
      %v2021 = vadd.f32 %v1992, %v2013
      %v2022 = vadd.f32 %v1993, %v2014
      %v2023 = vadd.f32 %v1994, %v2015
      %v2024 = vadd.f32 %v1995, %v2016
      %v2025 = vadd.f32 %v1996, %v2017
      %v2026 = vld [vmem:[%s1917 + $0x4] sm:$0xff]
      %v2027 = vld [vmem:[%s1917 + $0x14] sm:$0xff]
      %v2028 = vld [vmem:[%s1917 + $0x24] sm:$0xff]
      %v2029 = vld [vmem:[%s1917 + $0x34] sm:$0xff]
      %v2030 = vld [vmem:[%s1917 + $0x44] sm:$0xff]
      %v2031 = vld [vmem:[%s1917 + $0x54] sm:$0xff]
      %v2032 = vld [vmem:[%s1917 + $0x64] sm:$0xff]
      %v2033 = vld [vmem:[%s1917 + $0x74] sm:$0xff]
      %v2034 = vld [vmem:[%s205 + $0x2e] sm:$0x1]
      %v2035 = vlaneseq
      %v2036 = vshrl.u32 %v2035, 7
      %v2037 = vsub.s32 0, %v2036
      %v2038 = vrot.slane %v2034, %v2037
      %v2039 = vmul.f32 %v2026, %v2038
      %v2040 = vmul.f32 %v2027, %v2038
      %v2041 = vmul.f32 %v2028, %v2038
      %v2042 = vmul.f32 %v2029, %v2038
      %v2043 = vmul.f32 %v2030, %v2038
      %v2044 = vmul.f32 %v2031, %v2038
      %v2045 = vmul.f32 %v2032, %v2038
      %v2046 = vmul.f32 %v2033, %v2038
      %v2047 = vadd.f32 %v2018, %v2039
      %v2048 = vadd.f32 %v2019, %v2040
      %v2049 = vadd.f32 %v2020, %v2041
      %v2050 = vadd.f32 %v2021, %v2042
      %v2051 = vadd.f32 %v2022, %v2043
      %v2052 = vadd.f32 %v2023, %v2044
      %v2053 = vadd.f32 %v2024, %v2045
      %v2054 = vadd.f32 %v2025, %v2046
      %v2055 = vld [vmem:[%s1917 + $0x5] sm:$0xff]
      %v2056 = vld [vmem:[%s1917 + $0x15] sm:$0xff]
      %v2057 = vld [vmem:[%s1917 + $0x25] sm:$0xff]
      %v2058 = vld [vmem:[%s1917 + $0x35] sm:$0xff]
      %v2059 = vld [vmem:[%s1917 + $0x45] sm:$0xff]
      %v2060 = vld [vmem:[%s1917 + $0x55] sm:$0xff]
      %v2061 = vld [vmem:[%s1917 + $0x65] sm:$0xff]
      %v2062 = vld [vmem:[%s1917 + $0x75] sm:$0xff]
      %v2063 = vld [vmem:[%s205 + $0x2f] sm:$0x1]
      %v2064 = vlaneseq
      %v2065 = vshrl.u32 %v2064, 7
      %v2066 = vsub.s32 0, %v2065
      %v2067 = vrot.slane %v2063, %v2066
      %v2068 = vmul.f32 %v2055, %v2067
      %v2069 = vmul.f32 %v2056, %v2067
      %v2070 = vmul.f32 %v2057, %v2067
      %v2071 = vmul.f32 %v2058, %v2067
      %v2072 = vmul.f32 %v2059, %v2067
      %v2073 = vmul.f32 %v2060, %v2067
      %v2074 = vmul.f32 %v2061, %v2067
      %v2075 = vmul.f32 %v2062, %v2067
      %v2076 = vadd.f32 %v2047, %v2068
      %v2077 = vadd.f32 %v2048, %v2069
      %v2078 = vadd.f32 %v2049, %v2070
      %v2079 = vadd.f32 %v2050, %v2071
      %v2080 = vadd.f32 %v2051, %v2072
      %v2081 = vadd.f32 %v2052, %v2073
      %v2082 = vadd.f32 %v2053, %v2074
      %v2083 = vadd.f32 %v2054, %v2075
      %v2084 = vld [vmem:[%s1917 + $0x6] sm:$0xff]
      %v2085 = vld [vmem:[%s1917 + $0x16] sm:$0xff]
      %v2086 = vld [vmem:[%s1917 + $0x26] sm:$0xff]
      %v2087 = vld [vmem:[%s1917 + $0x36] sm:$0xff]
      %v2088 = vld [vmem:[%s1917 + $0x46] sm:$0xff]
      %v2089 = vld [vmem:[%s1917 + $0x56] sm:$0xff]
      %v2090 = vld [vmem:[%s1917 + $0x66] sm:$0xff]
      %v2091 = vld [vmem:[%s1917 + $0x76] sm:$0xff]
      %v2092 = vld [vmem:[%s205 + $0x30] sm:$0x1]
      %v2093 = vlaneseq
      %v2094 = vshrl.u32 %v2093, 7
      %v2095 = vsub.s32 0, %v2094
      %v2096 = vrot.slane %v2092, %v2095
      %v2097 = vmul.f32 %v2084, %v2096
      %v2098 = vmul.f32 %v2085, %v2096
      %v2099 = vmul.f32 %v2086, %v2096
      %v2100 = vmul.f32 %v2087, %v2096
      %v2101 = vmul.f32 %v2088, %v2096
      %v2102 = vmul.f32 %v2089, %v2096
      %v2103 = vmul.f32 %v2090, %v2096
      %v2104 = vmul.f32 %v2091, %v2096
      %v2105 = vadd.f32 %v2076, %v2097
      %v2106 = vadd.f32 %v2077, %v2098
      %v2107 = vadd.f32 %v2078, %v2099
      %v2108 = vadd.f32 %v2079, %v2100
      %v2109 = vadd.f32 %v2080, %v2101
      %v2110 = vadd.f32 %v2081, %v2102
      %v2111 = vadd.f32 %v2082, %v2103
      %v2112 = vadd.f32 %v2083, %v2104
      %v2113 = vadd.f32 %v388, %v526
      %v2114 = vadd.f32 %v389, %v527
      %v2115 = vadd.f32 %v390, %v528
      %v2116 = vadd.f32 %v391, %v529
      %v2117 = vadd.f32 %v392, %v530
      %v2118 = vadd.f32 %v393, %v531
      %v2119 = vadd.f32 %v394, %v532
      %v2120 = vadd.f32 %v395, %v533
      %v2121 = vadd.f32 %v663, %v801
      %v2122 = vadd.f32 %v664, %v802
      %v2123 = vadd.f32 %v665, %v803
      %v2124 = vadd.f32 %v666, %v804
      %v2125 = vadd.f32 %v667, %v805
      %v2126 = vadd.f32 %v668, %v806
      %v2127 = vadd.f32 %v669, %v807
      %v2128 = vadd.f32 %v670, %v808
      %v2129 = vadd.f32 %v939, %v1134
      %v2130 = vadd.f32 %v940, %v1135
      %v2131 = vadd.f32 %v941, %v1136
      %v2132 = vadd.f32 %v942, %v1137
      %v2133 = vadd.f32 %v943, %v1138
      %v2134 = vadd.f32 %v944, %v1139
      %v2135 = vadd.f32 %v945, %v1140
      %v2136 = vadd.f32 %v946, %v1141
      %v2137 = vadd.f32 %v1289, %v1444
      %v2138 = vadd.f32 %v1290, %v1445
      %v2139 = vadd.f32 %v1291, %v1446
      %v2140 = vadd.f32 %v1292, %v1447
      %v2141 = vadd.f32 %v1293, %v1448
      %v2142 = vadd.f32 %v1294, %v1449
      %v2143 = vadd.f32 %v1295, %v1450
      %v2144 = vadd.f32 %v1296, %v1451
      %v2145 = vadd.f32 %v1599, %v1754
      %v2146 = vadd.f32 %v1600, %v1755
      %v2147 = vadd.f32 %v1601, %v1756
      %v2148 = vadd.f32 %v1602, %v1757
      %v2149 = vadd.f32 %v1603, %v1758
      %v2150 = vadd.f32 %v1604, %v1759
      %v2151 = vadd.f32 %v1605, %v1760
      %v2152 = vadd.f32 %v1606, %v1761
      %v2153 = vadd.f32 %v1909, %v2105
      %v2154 = vadd.f32 %v1910, %v2106
      %v2155 = vadd.f32 %v1911, %v2107
      %v2156 = vadd.f32 %v1912, %v2108
      %v2157 = vadd.f32 %v1913, %v2109
      %v2158 = vadd.f32 %v1914, %v2110
      %v2159 = vadd.f32 %v1915, %v2111
      %v2160 = vadd.f32 %v1916, %v2112
      %v2161 = vadd.f32 %v2113, %v2121
      %v2162 = vadd.f32 %v2114, %v2122
      %v2163 = vadd.f32 %v2115, %v2123
      %v2164 = vadd.f32 %v2116, %v2124
      %v2165 = vadd.f32 %v2117, %v2125
      %v2166 = vadd.f32 %v2118, %v2126
      %v2167 = vadd.f32 %v2119, %v2127
      %v2168 = vadd.f32 %v2120, %v2128
      %v2169 = vadd.f32 %v2129, %v2137
      %v2170 = vadd.f32 %v2130, %v2138
      %v2171 = vadd.f32 %v2131, %v2139
      %v2172 = vadd.f32 %v2132, %v2140
      %v2173 = vadd.f32 %v2133, %v2141
      %v2174 = vadd.f32 %v2134, %v2142
      %v2175 = vadd.f32 %v2135, %v2143
      %v2176 = vadd.f32 %v2136, %v2144
      %v2177 = vadd.f32 %v2145, %v2153
      %v2178 = vadd.f32 %v2146, %v2154
      %v2179 = vadd.f32 %v2147, %v2155
      %v2180 = vadd.f32 %v2148, %v2156
      %v2181 = vadd.f32 %v2149, %v2157
      %v2182 = vadd.f32 %v2150, %v2158
      %v2183 = vadd.f32 %v2151, %v2159
      %v2184 = vadd.f32 %v2152, %v2160
      %v2185 = vadd.f32 %v2161, %v2169
      %v2186 = vadd.f32 %v2162, %v2170
      %v2187 = vadd.f32 %v2163, %v2171
      %v2188 = vadd.f32 %v2164, %v2172
      %v2189 = vadd.f32 %v2165, %v2173
      %v2190 = vadd.f32 %v2166, %v2174
      %v2191 = vadd.f32 %v2167, %v2175
      %v2192 = vadd.f32 %v2168, %v2176
      %v2193 = vadd.f32 %v2185, %v2177
      %v2194 = vadd.f32 %v2186, %v2178
      %v2195 = vadd.f32 %v2187, %v2179
      %v2196 = vadd.f32 %v2188, %v2180
      %v2197 = vadd.f32 %v2189, %v2181
      %v2198 = vadd.f32 %v2190, %v2182
      %v2199 = vadd.f32 %v2191, %v2183
      %v2200 = vadd.f32 %v2192, %v2184
      %v2201 = vmul.f32 %v2193, 0.5
      %v2202 = vmul.f32 %v2194, 0.5
      %v2203 = vmul.f32 %v2195, 0.5
      %v2204 = vmul.f32 %v2196, 0.5
      %v2205 = vmul.f32 %v2197, 0.5
      %v2206 = vmul.f32 %v2198, 0.5
      %v2207 = vmul.f32 %v2199, 0.5
      %v2208 = vmul.f32 %v2200, 0.5
      %v2209 = vadd.f32 %v211, %v2201
      %v2210 = vadd.f32 %v212, %v2202
      %v2211 = vadd.f32 %v213, %v2203
      %v2212 = vadd.f32 %v214, %v2204
      %v2213 = vadd.f32 %v215, %v2205
      %v2214 = vadd.f32 %v216, %v2206
      %v2215 = vadd.f32 %v217, %v2207
      %v2216 = vadd.f32 %v218, %v2208
      %2217 = vxpose.xlu0.b32.start [1/16] %v2209, 128
      %2218 = vxpose.xlu0.b32.cont [2/16] %v2210, 128
      %2219 = vxpose.xlu0.b32.cont [3/16] %v2211, 128
      %2220 = vxpose.xlu0.b32.cont [4/16] %v2212, 128
      %2221 = vxpose.xlu0.b32.cont [5/16] %v2213, 128
      %2222 = vxpose.xlu0.b32.cont [6/16] %v2214, 128
      %2223 = vxpose.xlu0.b32.cont [7/16] %v2215, 128
      %2224 = vxpose.xlu0.b32.cont [8/16] %v2216, 128
      %2225 = vxpose.xlu0.b32.cont [9/16] 0.0, 128
      %2226 = vxpose.xlu0.b32.cont [10/16] 0.0, 128
      %2227 = vxpose.xlu0.b32.cont [11/16] 0.0, 128
      %2228 = vxpose.xlu0.b32.cont [12/16] 0.0, 128
      %2229 = vxpose.xlu0.b32.cont [13/16] 0.0, 128
      %2230 = vxpose.xlu0.b32.cont [14/16] 0.0, 128
      %2231 = vxpose.xlu0.b32.cont [15/16] 0.0, 128
      %2232 = vxpose.xlu0.b32.end [16/16] 0.0, 128
      %v2233 = vpop.trf.xlu0
      %v2234 = vpop.trf.xlu0
      %v2235 = vpop.trf.xlu0
      %v2236 = vpop.trf.xlu0
      %v2237 = vpop.trf.xlu0
      %v2238 = vpop.trf.xlu0
      %v2239 = vpop.trf.xlu0
      %v2240 = vpop.trf.xlu0
      %v2241 = vpop.trf.xlu0
      %v2242 = vpop.trf.xlu0
      %v2243 = vpop.trf.xlu0
      %v2244 = vpop.trf.xlu0
      %v2245 = vpop.trf.xlu0
      %v2246 = vpop.trf.xlu0
      %v2247 = vpop.trf.xlu0
      %v2248 = vpop.trf.xlu0
      %vm2249 = vcmask 523264
      %2250 = vst.msk [vmem:[%s210] sm:$0xff] %vm2249, %v2233
      %2251 = vst.msk [vmem:[%s210 + $0x8] sm:$0xff] %vm2249, %v2234
      %2252 = vst.msk [vmem:[%s210 + $0x10] sm:$0xff] %vm2249, %v2235
      %2253 = vst.msk [vmem:[%s210 + $0x18] sm:$0xff] %vm2249, %v2236
      %p2254 = scmp.lt.s32.totalorder %s14, 1
      %s2255 = scalar_select %p2254, %s14, 1
      %s2256 = smul.addr %s2255, 4
      %s2257 = smul.addr %s2256, 8
      %s2258 = scalar_lea.vmem %s3, %s2257
      // Predicated region
      $region33: #{attentive_conv_block.3} parent=31 // pred_check
        %p2259 = pneg %p110
      $region34: #{attentive_conv_block.3} parent=31 // pred_check_branch
        %2261 = sbr.rel (%p2259) target = $region36
      $region35: #{attentive_conv_block.3} parent=31 // pred_region
        _
      $region36: #{attentive_conv_block.3} parent=31 // pred_fallthru
        _
    $region32: #{attentive_conv_block.3} parent=5 // pred_fallthru
      _
    %p2262 = scmp.le.s32.totalorder 2, %s9
    // Predicated region
    $region37: #{attentive_conv_block.3} parent=5 // pred_check
      %p2263 = pneg %p2262
    $region38: #{attentive_conv_block.3} parent=5 // pred_check_branch
      %2265 = sbr.rel (%p2263) target = $region40
    $region39: #{attentive_conv_block.3} parent=5 // pred_region
      %s2266 = ssub.s32 %s9, 2
      // Predicated region
      $region41: #{attentive_conv_block.3} parent=39 // pred_check
        %p2267 = pneg %p116
      $region42: #{attentive_conv_block.3} parent=39 // pred_check_branch
        %2269 = sbr.rel (%p2267) target = $region44
      $region43: #{attentive_conv_block.3} parent=39 // pred_region
        %p2270 = scmp.lt.s32.totalorder %s15, 1
        %s2271 = scalar_select %p2270, %s15, 1
        %s2272 = smul.addr %s2271, 4
        %s2273 = smul.addr %s2272, 8
        %s2274 = scalar_lea.vmem %s3, %s2273
      $region44: #{attentive_conv_block.3} parent=39 // pred_fallthru
        _
    $region40: #{attentive_conv_block.3} parent=5 // pred_fallthru
      _
  $region6: #{attentive_conv_block.3} parent=0 // loop_footer
    %s13 = sadd.s32 1, %s9
  $region7: #{attentive_conv_block.3} parent=0 // loop_footer_branch
    %8 = sbr.rel target = $region3
  $region8: #{attentive_conv_block.3} parent=0 // loop_exit
    _

// kernel: attentive_conv_block.2
$region0: #{attentive_conv_block.2}
  #allocation0 [shape = 'u32[]', space=smem, size = 0x4, offset = 0x4, fixed_abs, tag = 'smem constant byte address 0x4 - core index']
  #allocation1 [shape = 'u32[144,128]{1,0:T(1,128)}', space=vmem, size = 0x12000, scoped, tag = 'internal scratch']
  %s0 = inlined_call_operand.vmem [shape: f32[2,32,64], index: 0, kind: input, shape index: {}]
  %s1 = inlined_call_operand.vmem [shape: bf16[32,96], index: 1, kind: input, shape index: {}]
  %s2 = inlined_call_operand.vmem [shape: f32[1,96], index: 2, kind: input, shape index: {}]
  %s3 = inlined_call_operand.vmem [shape: f32[16,16,32], index: 3, kind: input, shape index: {}]
  %s4 = inlined_call_operand.vmem [shape: f32[32,32], index: 4, kind: input, shape index: {}]
  %s5 = inlined_call_operand.vmem [shape: bf16[32,32], index: 5, kind: input, shape index: {}]
  %s6 = inlined_call_operand.vmem [shape: f32[1,32], index: 6, kind: input, shape index: {}]
  %s7 = inlined_call_operand.vmem [shape: f32[2,64,32], index: 7, kind: output, shape index: {}]
  %s8 = sld [smem:[#allocation0]]
  $region61: #{attentive_conv_block.2} parent=0
    _
  %s10 = ssub.s32 1, %s8
  %s11 = scalar_select 0, %s10, %s8
  loop: start=0, step=1, limit=4
  $region2: #{attentive_conv_block.2} parent=0 // loop_pre_header
    _
  $region3: #{attentive_conv_block.2} parent=0 // loop_header
    %s13 = sphi 0, %s17
    %p14 = scmp.ge.s32.totalorder %s13, 4
    %s23 = sphi 0, %s25
    %s26 = sphi 0, %s23
    %s27 = sphi 0, %s26
    %s43 = sphi 0, %s27
    %s47 = sphi 0, %s47
    %s49 = sphi 0, %s47
    %s50 = sphi 0, %s49
    %s64 = sphi 0, %s50
    %s68 = sphi 0, %s68
    %s70 = sphi 0, %s68
    %s71 = sphi 0, %s70
    %s85 = sphi 0, %s71
    %s89 = sphi 0, %s89
    %s91 = sphi 0, %s89
    %s92 = sphi 0, %s91
    %s106 = sphi 0, %s92
    %s110 = sphi 0, %s110
    %s112 = sphi 0, %s110
    %s113 = sphi 0, %s112
    %s127 = sphi 0, %s113
    %s131 = sphi 0, %s131
    %s133 = sphi 0, %s131
    %s134 = sphi 0, %s133
    %s148 = sphi 0, %s134
    %s152 = sphi 0, %s152
    %s154 = sphi 0, %s152
    %s155 = sphi 0, %s154
    %s169 = sphi 0, %s155
    %s175 = sphi 0, %s177
    %s178 = sphi 0, %s175
    %s179 = sphi 0, %s178
    %s195 = sphi 0, %s179
  $region4: #{attentive_conv_block.2} parent=0 // loop_header_branch
    %16 = sbr.rel (%p14) target = $region8
  $region5: #{attentive_conv_block.2} parent=0 // loop_body
    %s18 = ssub.s32 %s13, 1
    %s19 = ssub.s32 %s13, 2
    %s20 = sadd.s32 %s13, 1
    %s21 = ssub.s32 %s13, %s20
    %p22 = scmp.eq.s32.totalorder %s21, 0
    %s24 = sadd.s32 %s23, 1
    %s25 = scalar_select %p22, %s23, %s24
    %p28 = pneg %p22
    %p29 = scmp.eq.s32.totalorder %s13, 1
    %p30 = por %p28, %p29
    %p31 = scmp.ne.s32.totalorder %s23, %s26
    %p32 = scmp.eq.s32.totalorder %s13, 0
    %p33 = por %p31, %p32
    %p34 = scmp.ne.s32.totalorder %s23, %s26
    %p35 = scmp.eq.s32.totalorder %s18, 1
    %p36 = por %p34, %p35
    %p37 = scmp.ne.s32.totalorder %s26, %s27
    %p38 = scmp.eq.s32.totalorder %s18, 0
    %p39 = por %p37, %p38
    %p40 = scmp.ne.s32.totalorder %s26, %s27
    %p41 = scmp.eq.s32.totalorder %s19, 1
    %p42 = por %p40, %p41
    %p44 = scmp.ne.s32.totalorder %s27, %s43
    %p45 = scmp.eq.s32.totalorder %s19, 0
    %p46 = por %p44, %p45
    %s48 = sadd.s32 %s47, 1
    %p51 = scmp.eq.s32.totalorder %s13, 1
    %p52 = scmp.ne.s32.totalorder %s47, %s49
    %p53 = scmp.eq.s32.totalorder %s13, 0
    %p54 = por %p52, %p53
    %p55 = scmp.ne.s32.totalorder %s47, %s49
    %p56 = scmp.eq.s32.totalorder %s18, 1
    %p57 = por %p55, %p56
    %p58 = scmp.ne.s32.totalorder %s49, %s50
    %p59 = scmp.eq.s32.totalorder %s18, 0
    %p60 = por %p58, %p59
    %p61 = scmp.ne.s32.totalorder %s49, %s50
    %p62 = scmp.eq.s32.totalorder %s19, 1
    %p63 = por %p61, %p62
    %p65 = scmp.ne.s32.totalorder %s50, %s64
    %p66 = scmp.eq.s32.totalorder %s19, 0
    %p67 = por %p65, %p66
    %s69 = sadd.s32 %s68, 1
    %p72 = scmp.eq.s32.totalorder %s13, 1
    %p73 = scmp.ne.s32.totalorder %s68, %s70
    %p74 = scmp.eq.s32.totalorder %s13, 0
    %p75 = por %p73, %p74
    %p76 = scmp.ne.s32.totalorder %s68, %s70
    %p77 = scmp.eq.s32.totalorder %s18, 1
    %p78 = por %p76, %p77
    %p79 = scmp.ne.s32.totalorder %s70, %s71
    %p80 = scmp.eq.s32.totalorder %s18, 0
    %p81 = por %p79, %p80
    %p82 = scmp.ne.s32.totalorder %s70, %s71
    %p83 = scmp.eq.s32.totalorder %s19, 1
    %p84 = por %p82, %p83
    %p86 = scmp.ne.s32.totalorder %s71, %s85
    %p87 = scmp.eq.s32.totalorder %s19, 0
    %p88 = por %p86, %p87
    %s90 = sadd.s32 %s89, 1
    %p93 = scmp.eq.s32.totalorder %s13, 1
    %p94 = scmp.ne.s32.totalorder %s89, %s91
    %p95 = scmp.eq.s32.totalorder %s13, 0
    %p96 = por %p94, %p95
    %p97 = scmp.ne.s32.totalorder %s89, %s91
    %p98 = scmp.eq.s32.totalorder %s18, 1
    %p99 = por %p97, %p98
    %p100 = scmp.ne.s32.totalorder %s91, %s92
    %p101 = scmp.eq.s32.totalorder %s18, 0
    %p102 = por %p100, %p101
    %p103 = scmp.ne.s32.totalorder %s91, %s92
    %p104 = scmp.eq.s32.totalorder %s19, 1
    %p105 = por %p103, %p104
    %p107 = scmp.ne.s32.totalorder %s92, %s106
    %p108 = scmp.eq.s32.totalorder %s19, 0
    %p109 = por %p107, %p108
    %s111 = sadd.s32 %s110, 1
    %p114 = scmp.eq.s32.totalorder %s13, 1
    %p115 = scmp.ne.s32.totalorder %s110, %s112
    %p116 = scmp.eq.s32.totalorder %s13, 0
    %p117 = por %p115, %p116
    %p118 = scmp.ne.s32.totalorder %s110, %s112
    %p119 = scmp.eq.s32.totalorder %s18, 1
    %p120 = por %p118, %p119
    %p121 = scmp.ne.s32.totalorder %s112, %s113
    %p122 = scmp.eq.s32.totalorder %s18, 0
    %p123 = por %p121, %p122
    %p124 = scmp.ne.s32.totalorder %s112, %s113
    %p125 = scmp.eq.s32.totalorder %s19, 1
    %p126 = por %p124, %p125
    %p128 = scmp.ne.s32.totalorder %s113, %s127
    %p129 = scmp.eq.s32.totalorder %s19, 0
    %p130 = por %p128, %p129
    %s132 = sadd.s32 %s131, 1
    %p135 = scmp.eq.s32.totalorder %s13, 1
    %p136 = scmp.ne.s32.totalorder %s131, %s133
    %p137 = scmp.eq.s32.totalorder %s13, 0
    %p138 = por %p136, %p137
    %p139 = scmp.ne.s32.totalorder %s131, %s133
    %p140 = scmp.eq.s32.totalorder %s18, 1
    %p141 = por %p139, %p140
    %p142 = scmp.ne.s32.totalorder %s133, %s134
    %p143 = scmp.eq.s32.totalorder %s18, 0
    %p144 = por %p142, %p143
    %p145 = scmp.ne.s32.totalorder %s133, %s134
    %p146 = scmp.eq.s32.totalorder %s19, 1
    %p147 = por %p145, %p146
    %p149 = scmp.ne.s32.totalorder %s134, %s148
    %p150 = scmp.eq.s32.totalorder %s19, 0
    %p151 = por %p149, %p150
    %s153 = sadd.s32 %s152, 1
    %p156 = scmp.eq.s32.totalorder %s13, 1
    %p157 = scmp.ne.s32.totalorder %s152, %s154
    %p158 = scmp.eq.s32.totalorder %s13, 0
    %p159 = por %p157, %p158
    %p160 = scmp.ne.s32.totalorder %s152, %s154
    %p161 = scmp.eq.s32.totalorder %s18, 1
    %p162 = por %p160, %p161
    %p163 = scmp.ne.s32.totalorder %s154, %s155
    %p164 = scmp.eq.s32.totalorder %s18, 0
    %p165 = por %p163, %p164
    %p166 = scmp.ne.s32.totalorder %s154, %s155
    %p167 = scmp.eq.s32.totalorder %s19, 1
    %p168 = por %p166, %p167
    %p170 = scmp.ne.s32.totalorder %s155, %s169
    %p171 = scmp.eq.s32.totalorder %s19, 0
    %p172 = por %p170, %p171
    %s173 = ssub.s32 %s13, %s20
    %p174 = scmp.eq.s32.totalorder %s173, 0
    %s176 = sadd.s32 %s175, 1
    %s177 = scalar_select %p174, %s175, %s176
    %p180 = pneg %p174
    %p181 = scmp.eq.s32.totalorder %s13, 1
    %p182 = por %p180, %p181
    %p183 = scmp.ne.s32.totalorder %s175, %s178
    %p184 = scmp.eq.s32.totalorder %s13, 0
    %p185 = por %p183, %p184
    %p186 = scmp.ne.s32.totalorder %s175, %s178
    %p187 = scmp.eq.s32.totalorder %s18, 1
    %p188 = por %p186, %p187
    %p189 = scmp.ne.s32.totalorder %s178, %s179
    %p190 = scmp.eq.s32.totalorder %s18, 0
    %p191 = por %p189, %p190
    %p192 = scmp.ne.s32.totalorder %s178, %s179
    %p193 = scmp.eq.s32.totalorder %s19, 1
    %p194 = por %p192, %p193
    %p196 = scmp.ne.s32.totalorder %s179, %s195
    %p197 = scmp.eq.s32.totalorder %s19, 0
    %p198 = por %p196, %p197
    %p199 = scmp.le.s32.totalorder 1, %s13
    %p200 = scmp.lt.s32.totalorder %s13, 3
    %p201 = pnand %p199, %p200
    %p202 = pneg %p201
    // Predicated region
    $region9: #{attentive_conv_block.2} parent=5 // pred_check
      _
    $region10: #{attentive_conv_block.2} parent=5 // pred_check_branch
      %204 = sbr.rel (%p201) target = $region12
    $region11: #{attentive_conv_block.2} parent=5 // pred_region
      %s205 = ssub.s32 %s13, 1
      // Predicated region
      $region13: #{attentive_conv_block.2} parent=11 // pred_check
        %p206 = pneg %p60
      $region14: #{attentive_conv_block.2} parent=11 // pred_check_branch
        %208 = sbr.rel (%p206) target = $region16
      $region15: #{attentive_conv_block.2} parent=11 // pred_region
        _
      $region16: #{attentive_conv_block.2} parent=11 // pred_fallthru
        _
      // Predicated region
      $region17: #{attentive_conv_block.2} parent=11 // pred_check
        %p209 = pneg %p81
      $region18: #{attentive_conv_block.2} parent=11 // pred_check_branch
        %211 = sbr.rel (%p209) target = $region20
      $region19: #{attentive_conv_block.2} parent=11 // pred_region
        _
      $region20: #{attentive_conv_block.2} parent=11 // pred_fallthru
        _
      // Predicated region
      $region21: #{attentive_conv_block.2} parent=11 // pred_check
        %p212 = pneg %p102
      $region22: #{attentive_conv_block.2} parent=11 // pred_check_branch
        %214 = sbr.rel (%p212) target = $region24
      $region23: #{attentive_conv_block.2} parent=11 // pred_region
        _
      $region24: #{attentive_conv_block.2} parent=11 // pred_fallthru
        _
      // Predicated region
      $region25: #{attentive_conv_block.2} parent=11 // pred_check
        %p215 = pneg %p123
      $region26: #{attentive_conv_block.2} parent=11 // pred_check_branch
        %217 = sbr.rel (%p215) target = $region28
      $region27: #{attentive_conv_block.2} parent=11 // pred_region
        _
      $region28: #{attentive_conv_block.2} parent=11 // pred_fallthru
        _
      // Predicated region
      $region29: #{attentive_conv_block.2} parent=11 // pred_check
        %p218 = pneg %p144
      $region30: #{attentive_conv_block.2} parent=11 // pred_check_branch
        %220 = sbr.rel (%p218) target = $region32
      $region31: #{attentive_conv_block.2} parent=11 // pred_region
        _
      $region32: #{attentive_conv_block.2} parent=11 // pred_fallthru
        _
      // Predicated region
      $region33: #{attentive_conv_block.2} parent=11 // pred_check
        %p221 = pneg %p165
      $region34: #{attentive_conv_block.2} parent=11 // pred_check_branch
        %223 = sbr.rel (%p221) target = $region36
      $region35: #{attentive_conv_block.2} parent=11 // pred_region
        _
      $region36: #{attentive_conv_block.2} parent=11 // pred_fallthru
        _
    $region12: #{attentive_conv_block.2} parent=5 // pred_fallthru
      _
    %p224 = scmp.lt.s32.totalorder %s13, 2
    // Predicated region
    $region37: #{attentive_conv_block.2} parent=5 // pred_check
      %p225 = pneg %p224
    $region38: #{attentive_conv_block.2} parent=5 // pred_check_branch
      %227 = sbr.rel (%p225) target = $region40
    $region39: #{attentive_conv_block.2} parent=5 // pred_region
      // Predicated region
      $region41: #{attentive_conv_block.2} parent=39 // pred_check
        %p228 = pneg %p33
      $region42: #{attentive_conv_block.2} parent=39 // pred_check_branch
        %230 = sbr.rel (%p228) target = $region44
      $region43: #{attentive_conv_block.2} parent=39 // pred_region
        %p231 = scmp.lt.s32.totalorder %s13, 1
        %s232 = scalar_select %p231, %s13, 1
        %s233 = smul.addr %s232, 4
        %s234 = smul.addr %s233, 8
        %s235 = scalar_lea.vmem %s0, %s234
      $region44: #{attentive_conv_block.2} parent=39 // pred_fallthru
        _
    $region40: #{attentive_conv_block.2} parent=5 // pred_fallthru
      _
    %p236 = scmp.le.s32.totalorder 1, %s13
    %p237 = scmp.lt.s32.totalorder %s13, 3
    %p238 = pnand %p236, %p237
    %p239 = pneg %p238
    // Predicated region
    $region45: #{attentive_conv_block.2} parent=5 // pred_check
      _
    $region46: #{attentive_conv_block.2} parent=5 // pred_check_branch
      %241 = sbr.rel (%p238) target = $region48
    $region47: #{attentive_conv_block.2} parent=5 // pred_region
      %s242 = ssub.s32 %s13, 1
      %p243 = scmp.lt.s32.totalorder %s18, 1
      %s244 = scalar_select %p243, %s18, 1
      %s245 = smul.addr %s244, 4
      %s246 = smul.addr %s245, 8
      %s247 = scalar_lea.vmem %s0, %s246
      %p248 = pneg %p39
      %p249 = pneg %p36
      %p250 = pneg %p60
      %p251 = pneg %p57
      %p252 = pneg %p81
      %p253 = pneg %p78
      %p254 = pneg %p102
      %p255 = pneg %p99
      %p256 = pneg %p123
      %p257 = pneg %p120
      %p258 = pneg %p144
      %p259 = pneg %p141
      %p260 = pneg %p165
      %p261 = pneg %p162
      %p262 = pneg %p191
      %p263 = pneg %p188
      %p264 = scmp.lt.s32.totalorder %s18, 1
      %s265 = scalar_select %p264, %s18, 1
      %s266 = smul.addr %s265, 8
      %s267 = smul.addr %s266, 8
      %s268 = scalar_lea.vmem %s7, %s267
      %p269 = scmp.lt.s32.totalorder %s18, 1
      %s270 = scalar_select %p269, %s18, 1
      %s271 = smul.addr %s270, 4
      %s272 = smul.addr %s271, 8
      %s273 = scalar_lea.vmem %s0, %s272
      %p274 = scmp.lt.s32.totalorder %s18, 1
      %s275 = scalar_select %p274, %s18, 1
      %s276 = smul.addr %s275, 8
      %s277 = smul.addr %s276, 8
      %s278 = scalar_lea.vmem %s7, %s277
      %v280 = vld [vmem:[%s273] sm:$0xff]
      %v281 = vld [vmem:[%s273 + $0x8] sm:$0xff]
      %v282 = vld [vmem:[%s273 + $0x10] sm:$0xff]
      %v283 = vld [vmem:[%s273 + $0x18] sm:$0xff]
      %284 = vxpose.xlu0.b32.start [1/16] %v280, 128
      %285 = vxpose.xlu0.b32.cont [2/16] %v281, 128
      %286 = vxpose.xlu0.b32.cont [3/16] %v282, 128
      %287 = vxpose.xlu0.b32.cont [4/16] %v283, 128
      %288 = vxpose.xlu0.b32.cont [5/16] 0.0, 128
      %289 = vxpose.xlu0.b32.cont [6/16] 0.0, 128
      %290 = vxpose.xlu0.b32.cont [7/16] 0.0, 128
      %291 = vxpose.xlu0.b32.cont [8/16] 0.0, 128
      %292 = vxpose.xlu0.b32.cont [9/16] 0.0, 128
      %293 = vxpose.xlu0.b32.cont [10/16] 0.0, 128
      %294 = vxpose.xlu0.b32.cont [11/16] 0.0, 128
      %295 = vxpose.xlu0.b32.cont [12/16] 0.0, 128
      %296 = vxpose.xlu0.b32.cont [13/16] 0.0, 128
      %297 = vxpose.xlu0.b32.cont [14/16] 0.0, 128
      %298 = vxpose.xlu0.b32.cont [15/16] 0.0, 128
      %299 = vxpose.xlu0.b32.end [16/16] 0.0, 128
      %v300 = vpop.trf.xlu0
      %v301 = vpop.trf.xlu0
      %v302 = vpop.trf.xlu0
      %v303 = vpop.trf.xlu0
      %v304 = vpop.trf.xlu0
      %v305 = vpop.trf.xlu0
      %v306 = vpop.trf.xlu0
      %v307 = vpop.trf.xlu0
      %v308 = vpop.trf.xlu0
      %v309 = vpop.trf.xlu0
      %v310 = vpop.trf.xlu0
      %v311 = vpop.trf.xlu0
      %v312 = vpop.trf.xlu0
      %v313 = vpop.trf.xlu0
      %v314 = vpop.trf.xlu0
      %v315 = vpop.trf.xlu0
      %v316 = vpack.c.bf16 %v301, %v300
      %v317 = vpack.c.bf16 %v303, %v302
      %v318 = vpack.c.bf16 %v305, %v304
      %v319 = vpack.c.bf16 %v307, %v306
      %v320 = vld [vmem:[%s1] sm:$0xf]
      %v321 = vld [vmem:[%s1 + $0x4] sm:$0xf]
      %v322 = vld [vmem:[%s1 + $0x8] sm:$0xf]
      %v323 = vld [vmem:[%s1 + $0xc] sm:$0xf]
      %v324 = vld [vmem:[%s2] sm:$0x1]
      %v326 = vlaneseq
      %v327 = vshrl.u32 %v326, 7
      %v328 = vsub.s32 0, %v327
      %v329 = vrot.slane %v324, %v328
      %v335 = vunpack.c.l.b16 %v320
      %v336 = vunpack.c.l.b16 %v321
      %v337 = vunpack.c.l.b16 %v322
      %v338 = vunpack.c.l.b16 %v323
      %v339 = vpack.c.b16 %v336, %v335
      %v340 = vpack.c.b16 %v338, %v337
      %vm343 = vcmask 261120
      %v345 = vsel %vm343, %v316, 0
      %v348 = vsel %vm343, %v317, 0
      %v351 = vsel %vm343, %v318, 0
      %v354 = vsel %vm343, %v319, 0
      %356 = vmatprep.subr.bf16.mxu0 0
      %357 = vmatpush1.bf16.msra.mxu0 %v339
      %358 = vmatprep.subr.bf16.mxu0 0
      %359 = vmatpush1.bf16.msra.mxu0 %v340
      %360 = vmatprep.subr.bf16.mxu0 0
      %361 = vmatpush1.bf16.msra.mxu0 0
      %362 = vmatprep.subr.bf16.mxu0 0
      %363 = vmatpush1.bf16.msra.mxu0 0
      %364 = vmatprep.subr.bf16.mxu0 0
      %365 = vmatpush1.bf16.msra.mxu0 0
      %366 = vmatprep.subr.bf16.mxu0 0
      %367 = vmatpush1.bf16.msra.mxu0 0
      %368 = vmatprep.subr.bf16.mxu0 0
      %369 = vmatpush1.bf16.msra.mxu0 0
      %370 = vmatprep.subr.bf16.mxu0 0
      %371 = vmatpush1.bf16.msra.mxu0 0
      %372 = vmatprep.subr.bf16.mxu0 0
      %373 = vmatpush1.bf16.msra.mxu0 0
      %374 = vmatprep.subr.bf16.mxu0 0
      %375 = vmatpush1.bf16.msra.mxu0 0
      %376 = vmatprep.subr.bf16.mxu0 0
      %377 = vmatpush1.bf16.msra.mxu0 0
      %378 = vmatprep.subr.bf16.mxu0 0
      %379 = vmatpush1.bf16.msra.mxu0 0
      %380 = vmatprep.subr.bf16.mxu0 0
      %381 = vmatpush1.bf16.msra.mxu0 0
      %382 = vmatprep.subr.bf16.mxu0 0
      %383 = vmatpush1.bf16.msra.mxu0 0
      %384 = vmatprep.subr.bf16.mxu0 0
      %385 = vmatpush1.bf16.msra.mxu0 0
      %386 = vmatprep.subr.bf16.mxu0 0
      %387 = vmatpush1.bf16.msra.mxu0 0
      %388 = vmatprep.mubr.bf16.mxu0 0
      %389 = vmatmul.mubr.bf16.gmra.mrb[0].mxu0 %v345
      %v390 = vpop.f32.mrb[0].mxu0
      %v391 = vadd.f32 %v329, %v390
      %v392 = vpop.f32.mrb[0].mxu0
      %v393 = vpop.f32.mrb[0].mxu0
      %v394 = vadd.f32 %v329, %v393
      %v395 = vpop.f32.mrb[0].mxu0
      %396 = vmatprep.mubr.bf16.mxu0 0
      %397 = vmatmul.mubr.bf16.gmra.mrb[0].mxu0 %v348
      %v398 = vpop.f32.mrb[0].mxu0
      %v399 = vadd.f32 %v329, %v398
      %v400 = vpop.f32.mrb[0].mxu0
      %v401 = vpop.f32.mrb[0].mxu0
      %v402 = vadd.f32 %v329, %v401
      %v403 = vpop.f32.mrb[0].mxu0
      %404 = vmatprep.mubr.bf16.mxu0 0
      %405 = vmatmul.mubr.bf16.gmra.mrb[0].mxu0 %v351
      %v406 = vpop.f32.mrb[0].mxu0
      %v407 = vadd.f32 %v329, %v406
      %v408 = vpop.f32.mrb[0].mxu0
      %v409 = vpop.f32.mrb[0].mxu0
      %v410 = vadd.f32 %v329, %v409
      %v411 = vpop.f32.mrb[0].mxu0
      %412 = vmatprep.mubr.bf16.mxu0 0
      %413 = vmatmul.mubr.bf16.gmra.mrb[0].mxu0 %v354
      %v414 = vpop.f32.mrb[0].mxu0
      %v415 = vadd.f32 %v329, %v414
      %v416 = vpop.f32.mrb[0].mxu0
      %v417 = vpop.f32.mrb[0].mxu0
      %v418 = vadd.f32 %v329, %v417
      %v419 = vpop.f32.mrb[0].mxu0
      %420 = vdwg.mxu0
      %v429 = vcombine.high %v391, %v391
      %v431 = vunpack.c.l.s4 1966171168
      %v432 = vunpack.c.0.s8 %v431
      %v433 = vlaneseq
      %v434 = vshrl.u32 %v433, 7
      %v435 = vsub.s32 %v432, %v434
      %v436 = vrot.slane %v391, %v435
      %v438 = vunpack.c.l.s4 1966171168
      %v439 = vunpack.c.0.s8 %v438
      %v440 = vlaneseq
      %v441 = vshrl.u32 %v440, 7
      %v442 = vsub.s32 %v439, %v441
      %v443 = vrot.slane %v429, %v442
      %v444 = vcombine.high %v436, %v436
      %v445 = vcombine.high %v443, %v443
      %v447 = vunpack.c.l.s4 1966171168
      %v448 = vunpack.c.0.s8 %v447
      %v449 = vlaneseq
      %v450 = vshrl.u32 %v449, 7
      %v451 = vsub.s32 %v448, %v450
      %v452 = vrot.slane %v436, %v451
      %v454 = vunpack.c.l.s4 1966171168
      %v455 = vunpack.c.0.s8 %v454
      %v456 = vlaneseq
      %v457 = vshrl.u32 %v456, 7
      %v458 = vsub.s32 %v455, %v457
      %v459 = vrot.slane %v443, %v458
      %v461 = vunpack.c.l.s4 1966171168
      %v462 = vunpack.c.0.s8 %v461
      %v463 = vlaneseq
      %v464 = vshrl.u32 %v463, 7
      %v465 = vsub.s32 %v462, %v464
      %v466 = vrot.slane %v444, %v465
      %v468 = vunpack.c.l.s4 1966171168
      %v469 = vunpack.c.0.s8 %v468
      %v470 = vlaneseq
      %v471 = vshrl.u32 %v470, 7
      %v472 = vsub.s32 %v469, %v471
      %v473 = vrot.slane %v445, %v472
      %v474 = vcombine.high %v452, %v452
      %v475 = vcombine.high %v459, %v459
      %v476 = vcombine.high %v466, %v466
      %v477 = vcombine.high %v473, %v473
      %v478 = vcombine.high %v394, %v394
      %v480 = vunpack.c.l.s4 1966171168
      %v481 = vunpack.c.0.s8 %v480
      %v482 = vlaneseq
      %v483 = vshrl.u32 %v482, 7
      %v484 = vsub.s32 %v481, %v483
      %v485 = vrot.slane %v394, %v484
      %v487 = vunpack.c.l.s4 1966171168
      %v488 = vunpack.c.0.s8 %v487
      %v489 = vlaneseq
      %v490 = vshrl.u32 %v489, 7
      %v491 = vsub.s32 %v488, %v490
      %v492 = vrot.slane %v478, %v491
      %v493 = vcombine.high %v485, %v485
      %v494 = vcombine.high %v492, %v492
      %v496 = vunpack.c.l.s4 1966171168
      %v497 = vunpack.c.0.s8 %v496
      %v498 = vlaneseq
      %v499 = vshrl.u32 %v498, 7
      %v500 = vsub.s32 %v497, %v499
      %v501 = vrot.slane %v485, %v500
      %v503 = vunpack.c.l.s4 1966171168
      %v504 = vunpack.c.0.s8 %v503
      %v505 = vlaneseq
      %v506 = vshrl.u32 %v505, 7
      %v507 = vsub.s32 %v504, %v506
      %v508 = vrot.slane %v492, %v507
      %v510 = vunpack.c.l.s4 1966171168
      %v511 = vunpack.c.0.s8 %v510
      %v512 = vlaneseq
      %v513 = vshrl.u32 %v512, 7
      %v514 = vsub.s32 %v511, %v513
      %v515 = vrot.slane %v493, %v514
      %v517 = vunpack.c.l.s4 1966171168
      %v518 = vunpack.c.0.s8 %v517
      %v519 = vlaneseq
      %v520 = vshrl.u32 %v519, 7
      %v521 = vsub.s32 %v518, %v520
      %v522 = vrot.slane %v494, %v521
      %v523 = vcombine.high %v501, %v501
      %v524 = vcombine.high %v508, %v508
      %v525 = vcombine.high %v515, %v515
      %v526 = vcombine.high %v522, %v522
      %v527 = vcombine.high %v399, %v399
      %v529 = vunpack.c.l.s4 1966171168
      %v530 = vunpack.c.0.s8 %v529
      %v531 = vlaneseq
      %v532 = vshrl.u32 %v531, 7
      %v533 = vsub.s32 %v530, %v532
      %v534 = vrot.slane %v399, %v533
      %v536 = vunpack.c.l.s4 1966171168
      %v537 = vunpack.c.0.s8 %v536
      %v538 = vlaneseq
      %v539 = vshrl.u32 %v538, 7
      %v540 = vsub.s32 %v537, %v539
      %v541 = vrot.slane %v527, %v540
      %v542 = vcombine.high %v534, %v534
      %v543 = vcombine.high %v541, %v541
      %v545 = vunpack.c.l.s4 1966171168
      %v546 = vunpack.c.0.s8 %v545
      %v547 = vlaneseq
      %v548 = vshrl.u32 %v547, 7
      %v549 = vsub.s32 %v546, %v548
      %v550 = vrot.slane %v534, %v549
      %v552 = vunpack.c.l.s4 1966171168
      %v553 = vunpack.c.0.s8 %v552
      %v554 = vlaneseq
      %v555 = vshrl.u32 %v554, 7
      %v556 = vsub.s32 %v553, %v555
      %v557 = vrot.slane %v541, %v556
      %v559 = vunpack.c.l.s4 1966171168
      %v560 = vunpack.c.0.s8 %v559
      %v561 = vlaneseq
      %v562 = vshrl.u32 %v561, 7
      %v563 = vsub.s32 %v560, %v562
      %v564 = vrot.slane %v542, %v563
      %v566 = vunpack.c.l.s4 1966171168
      %v567 = vunpack.c.0.s8 %v566
      %v568 = vlaneseq
      %v569 = vshrl.u32 %v568, 7
      %v570 = vsub.s32 %v567, %v569
      %v571 = vrot.slane %v543, %v570
      %v572 = vcombine.high %v550, %v550
      %v573 = vcombine.high %v557, %v557
      %v574 = vcombine.high %v564, %v564
      %v575 = vcombine.high %v571, %v571
      %v576 = vcombine.high %v402, %v402
      %v578 = vunpack.c.l.s4 1966171168
      %v579 = vunpack.c.0.s8 %v578
      %v580 = vlaneseq
      %v581 = vshrl.u32 %v580, 7
      %v582 = vsub.s32 %v579, %v581
      %v583 = vrot.slane %v402, %v582
      %v585 = vunpack.c.l.s4 1966171168
      %v586 = vunpack.c.0.s8 %v585
      %v587 = vlaneseq
      %v588 = vshrl.u32 %v587, 7
      %v589 = vsub.s32 %v586, %v588
      %v590 = vrot.slane %v576, %v589
      %v591 = vcombine.high %v583, %v583
      %v592 = vcombine.high %v590, %v590
      %v594 = vunpack.c.l.s4 1966171168
      %v595 = vunpack.c.0.s8 %v594
      %v596 = vlaneseq
      %v597 = vshrl.u32 %v596, 7
      %v598 = vsub.s32 %v595, %v597
      %v599 = vrot.slane %v583, %v598
      %v601 = vunpack.c.l.s4 1966171168
      %v602 = vunpack.c.0.s8 %v601
      %v603 = vlaneseq
      %v604 = vshrl.u32 %v603, 7
      %v605 = vsub.s32 %v602, %v604
      %v606 = vrot.slane %v590, %v605
      %v608 = vunpack.c.l.s4 1966171168
      %v609 = vunpack.c.0.s8 %v608
      %v610 = vlaneseq
      %v611 = vshrl.u32 %v610, 7
      %v612 = vsub.s32 %v609, %v611
      %v613 = vrot.slane %v591, %v612
      %v615 = vunpack.c.l.s4 1966171168
      %v616 = vunpack.c.0.s8 %v615
      %v617 = vlaneseq
      %v618 = vshrl.u32 %v617, 7
      %v619 = vsub.s32 %v616, %v618
      %v620 = vrot.slane %v592, %v619
      %v621 = vcombine.high %v599, %v599
      %v622 = vcombine.high %v606, %v606
      %v623 = vcombine.high %v613, %v613
      %v624 = vcombine.high %v620, %v620
      %v625 = vcombine.high %v407, %v407
      %v627 = vunpack.c.l.s4 1966171168
      %v628 = vunpack.c.0.s8 %v627
      %v629 = vlaneseq
      %v630 = vshrl.u32 %v629, 7
      %v631 = vsub.s32 %v628, %v630
      %v632 = vrot.slane %v407, %v631
      %v634 = vunpack.c.l.s4 1966171168
      %v635 = vunpack.c.0.s8 %v634
      %v636 = vlaneseq
      %v637 = vshrl.u32 %v636, 7
      %v638 = vsub.s32 %v635, %v637
      %v639 = vrot.slane %v625, %v638
      %v640 = vcombine.high %v632, %v632
      %v641 = vcombine.high %v639, %v639
      %v643 = vunpack.c.l.s4 1966171168
      %v644 = vunpack.c.0.s8 %v643
      %v645 = vlaneseq
      %v646 = vshrl.u32 %v645, 7
      %v647 = vsub.s32 %v644, %v646
      %v648 = vrot.slane %v632, %v647
      %v650 = vunpack.c.l.s4 1966171168
      %v651 = vunpack.c.0.s8 %v650
      %v652 = vlaneseq
      %v653 = vshrl.u32 %v652, 7
      %v654 = vsub.s32 %v651, %v653
      %v655 = vrot.slane %v639, %v654
      %v657 = vunpack.c.l.s4 1966171168
      %v658 = vunpack.c.0.s8 %v657
      %v659 = vlaneseq
      %v660 = vshrl.u32 %v659, 7
      %v661 = vsub.s32 %v658, %v660
      %v662 = vrot.slane %v640, %v661
      %v664 = vunpack.c.l.s4 1966171168
      %v665 = vunpack.c.0.s8 %v664
      %v666 = vlaneseq
      %v667 = vshrl.u32 %v666, 7
      %v668 = vsub.s32 %v665, %v667
      %v669 = vrot.slane %v641, %v668
      %v670 = vcombine.high %v648, %v648
      %v671 = vcombine.high %v655, %v655
      %v672 = vcombine.high %v662, %v662
      %v673 = vcombine.high %v669, %v669
      %v674 = vcombine.high %v410, %v410
      %v676 = vunpack.c.l.s4 1966171168
      %v677 = vunpack.c.0.s8 %v676
      %v678 = vlaneseq
      %v679 = vshrl.u32 %v678, 7
      %v680 = vsub.s32 %v677, %v679
      %v681 = vrot.slane %v410, %v680
      %v683 = vunpack.c.l.s4 1966171168
      %v684 = vunpack.c.0.s8 %v683
      %v685 = vlaneseq
      %v686 = vshrl.u32 %v685, 7
      %v687 = vsub.s32 %v684, %v686
      %v688 = vrot.slane %v674, %v687
      %v689 = vcombine.high %v681, %v681
      %v690 = vcombine.high %v688, %v688
      %v692 = vunpack.c.l.s4 1966171168
      %v693 = vunpack.c.0.s8 %v692
      %v694 = vlaneseq
      %v695 = vshrl.u32 %v694, 7
      %v696 = vsub.s32 %v693, %v695
      %v697 = vrot.slane %v681, %v696
      %v699 = vunpack.c.l.s4 1966171168
      %v700 = vunpack.c.0.s8 %v699
      %v701 = vlaneseq
      %v702 = vshrl.u32 %v701, 7
      %v703 = vsub.s32 %v700, %v702
      %v704 = vrot.slane %v688, %v703
      %v706 = vunpack.c.l.s4 1966171168
      %v707 = vunpack.c.0.s8 %v706
      %v708 = vlaneseq
      %v709 = vshrl.u32 %v708, 7
      %v710 = vsub.s32 %v707, %v709
      %v711 = vrot.slane %v689, %v710
      %v713 = vunpack.c.l.s4 1966171168
      %v714 = vunpack.c.0.s8 %v713
      %v715 = vlaneseq
      %v716 = vshrl.u32 %v715, 7
      %v717 = vsub.s32 %v714, %v716
      %v718 = vrot.slane %v690, %v717
      %v719 = vcombine.high %v697, %v697
      %v720 = vcombine.high %v704, %v704
      %v721 = vcombine.high %v711, %v711
      %v722 = vcombine.high %v718, %v718
      %v723 = vcombine.high %v415, %v415
      %v725 = vunpack.c.l.s4 1966171168
      %v726 = vunpack.c.0.s8 %v725
      %v727 = vlaneseq
      %v728 = vshrl.u32 %v727, 7
      %v729 = vsub.s32 %v726, %v728
      %v730 = vrot.slane %v415, %v729
      %v732 = vunpack.c.l.s4 1966171168
      %v733 = vunpack.c.0.s8 %v732
      %v734 = vlaneseq
      %v735 = vshrl.u32 %v734, 7
      %v736 = vsub.s32 %v733, %v735
      %v737 = vrot.slane %v723, %v736
      %v738 = vcombine.high %v730, %v730
      %v739 = vcombine.high %v737, %v737
      %v741 = vunpack.c.l.s4 1966171168
      %v742 = vunpack.c.0.s8 %v741
      %v743 = vlaneseq
      %v744 = vshrl.u32 %v743, 7
      %v745 = vsub.s32 %v742, %v744
      %v746 = vrot.slane %v730, %v745
      %v748 = vunpack.c.l.s4 1966171168
      %v749 = vunpack.c.0.s8 %v748
      %v750 = vlaneseq
      %v751 = vshrl.u32 %v750, 7
      %v752 = vsub.s32 %v749, %v751
      %v753 = vrot.slane %v737, %v752
      %v755 = vunpack.c.l.s4 1966171168
      %v756 = vunpack.c.0.s8 %v755
      %v757 = vlaneseq
      %v758 = vshrl.u32 %v757, 7
      %v759 = vsub.s32 %v756, %v758
      %v760 = vrot.slane %v738, %v759
      %v762 = vunpack.c.l.s4 1966171168
      %v763 = vunpack.c.0.s8 %v762
      %v764 = vlaneseq
      %v765 = vshrl.u32 %v764, 7
      %v766 = vsub.s32 %v763, %v765
      %v767 = vrot.slane %v739, %v766
      %v768 = vcombine.high %v746, %v746
      %v769 = vcombine.high %v753, %v753
      %v770 = vcombine.high %v760, %v760
      %v771 = vcombine.high %v767, %v767
      %v772 = vcombine.high %v418, %v418
      %v774 = vunpack.c.l.s4 1966171168
      %v775 = vunpack.c.0.s8 %v774
      %v776 = vlaneseq
      %v777 = vshrl.u32 %v776, 7
      %v778 = vsub.s32 %v775, %v777
      %v779 = vrot.slane %v418, %v778
      %v781 = vunpack.c.l.s4 1966171168
      %v782 = vunpack.c.0.s8 %v781
      %v783 = vlaneseq
      %v784 = vshrl.u32 %v783, 7
      %v785 = vsub.s32 %v782, %v784
      %v786 = vrot.slane %v772, %v785
      %v787 = vcombine.high %v779, %v779
      %v788 = vcombine.high %v786, %v786
      %v790 = vunpack.c.l.s4 1966171168
      %v791 = vunpack.c.0.s8 %v790
      %v792 = vlaneseq
      %v793 = vshrl.u32 %v792, 7
      %v794 = vsub.s32 %v791, %v793
      %v795 = vrot.slane %v779, %v794
      %v797 = vunpack.c.l.s4 1966171168
      %v798 = vunpack.c.0.s8 %v797
      %v799 = vlaneseq
      %v800 = vshrl.u32 %v799, 7
      %v801 = vsub.s32 %v798, %v800
      %v802 = vrot.slane %v786, %v801
      %v804 = vunpack.c.l.s4 1966171168
      %v805 = vunpack.c.0.s8 %v804
      %v806 = vlaneseq
      %v807 = vshrl.u32 %v806, 7
      %v808 = vsub.s32 %v805, %v807
      %v809 = vrot.slane %v787, %v808
      %v811 = vunpack.c.l.s4 1966171168
      %v812 = vunpack.c.0.s8 %v811
      %v813 = vlaneseq
      %v814 = vshrl.u32 %v813, 7
      %v815 = vsub.s32 %v812, %v814
      %v816 = vrot.slane %v788, %v815
      %v817 = vcombine.high %v795, %v795
      %v818 = vcombine.high %v802, %v802
      %v819 = vcombine.high %v809, %v809
      %v820 = vcombine.high %v816, %v816
      %v821 = vlaneseq
      %v822 = vshrl.u32 %v821, 7
      %v823 = vsub.s32 0, %v822
      %v824 = vrot.slane %v452, %v823
      %v825 = vlaneseq
      %v826 = vshrl.u32 %v825, 7
      %v827 = vsub.s32 0, %v826
      %v828 = vrot.slane %v466, %v827
      %v829 = vlaneseq
      %v830 = vshrl.u32 %v829, 7
      %v831 = vsub.s32 0, %v830
      %v832 = vrot.slane %v474, %v831
      %v833 = vlaneseq
      %v834 = vshrl.u32 %v833, 7
      %v835 = vsub.s32 0, %v834
      %v836 = vrot.slane %v476, %v835
      %v837 = vlaneseq
      %v838 = vshrl.u32 %v837, 7
      %v839 = vsub.s32 0, %v838
      %v840 = vrot.slane %v459, %v839
      %v841 = vlaneseq
      %v842 = vshrl.u32 %v841, 7
      %v843 = vsub.s32 0, %v842
      %v844 = vrot.slane %v473, %v843
      %v845 = vlaneseq
      %v846 = vshrl.u32 %v845, 7
      %v847 = vsub.s32 0, %v846
      %v848 = vrot.slane %v475, %v847
      %v849 = vlaneseq
      %v850 = vshrl.u32 %v849, 7
      %v851 = vsub.s32 0, %v850
      %v852 = vrot.slane %v477, %v851
      %v853 = vlaneseq
      %v854 = vshrl.u32 %v853, 7
      %v855 = vsub.s32 0, %v854
      %v856 = vrot.slane %v501, %v855
      %v857 = vlaneseq
      %v858 = vshrl.u32 %v857, 7
      %v859 = vsub.s32 0, %v858
      %v860 = vrot.slane %v515, %v859
      %v861 = vlaneseq
      %v862 = vshrl.u32 %v861, 7
      %v863 = vsub.s32 0, %v862
      %v864 = vrot.slane %v523, %v863
      %v865 = vlaneseq
      %v866 = vshrl.u32 %v865, 7
      %v867 = vsub.s32 0, %v866
      %v868 = vrot.slane %v525, %v867
      %v869 = vlaneseq
      %v870 = vshrl.u32 %v869, 7
      %v871 = vsub.s32 0, %v870
      %v872 = vrot.slane %v508, %v871
      %v873 = vlaneseq
      %v874 = vshrl.u32 %v873, 7
      %v875 = vsub.s32 0, %v874
      %v876 = vrot.slane %v522, %v875
      %v877 = vlaneseq
      %v878 = vshrl.u32 %v877, 7
      %v879 = vsub.s32 0, %v878
      %v880 = vrot.slane %v524, %v879
      %v881 = vlaneseq
      %v882 = vshrl.u32 %v881, 7
      %v883 = vsub.s32 0, %v882
      %v884 = vrot.slane %v526, %v883
      %v885 = vlaneseq
      %v886 = vshrl.u32 %v885, 7
      %v887 = vsub.s32 0, %v886
      %v888 = vrot.slane %v550, %v887
      %v889 = vlaneseq
      %v890 = vshrl.u32 %v889, 7
      %v891 = vsub.s32 0, %v890
      %v892 = vrot.slane %v564, %v891
      %v893 = vlaneseq
      %v894 = vshrl.u32 %v893, 7
      %v895 = vsub.s32 0, %v894
      %v896 = vrot.slane %v572, %v895
      %v897 = vlaneseq
      %v898 = vshrl.u32 %v897, 7
      %v899 = vsub.s32 0, %v898
      %v900 = vrot.slane %v574, %v899
      %v901 = vlaneseq
      %v902 = vshrl.u32 %v901, 7
      %v903 = vsub.s32 0, %v902
      %v904 = vrot.slane %v557, %v903
      %v905 = vlaneseq
      %v906 = vshrl.u32 %v905, 7
      %v907 = vsub.s32 0, %v906
      %v908 = vrot.slane %v571, %v907
      %v909 = vlaneseq
      %v910 = vshrl.u32 %v909, 7
      %v911 = vsub.s32 0, %v910
      %v912 = vrot.slane %v573, %v911
      %v913 = vlaneseq
      %v914 = vshrl.u32 %v913, 7
      %v915 = vsub.s32 0, %v914
      %v916 = vrot.slane %v575, %v915
      %v917 = vlaneseq
      %v918 = vshrl.u32 %v917, 7
      %v919 = vsub.s32 0, %v918
      %v920 = vrot.slane %v599, %v919
      %v921 = vlaneseq
      %v922 = vshrl.u32 %v921, 7
      %v923 = vsub.s32 0, %v922
      %v924 = vrot.slane %v613, %v923
      %v925 = vlaneseq
      %v926 = vshrl.u32 %v925, 7
      %v927 = vsub.s32 0, %v926
      %v928 = vrot.slane %v621, %v927
      %v929 = vlaneseq
      %v930 = vshrl.u32 %v929, 7
      %v931 = vsub.s32 0, %v930
      %v932 = vrot.slane %v623, %v931
      %v933 = vlaneseq
      %v934 = vshrl.u32 %v933, 7
      %v935 = vsub.s32 0, %v934
      %v936 = vrot.slane %v606, %v935
      %v937 = vlaneseq
      %v938 = vshrl.u32 %v937, 7
      %v939 = vsub.s32 0, %v938
      %v940 = vrot.slane %v620, %v939
      %v941 = vlaneseq
      %v942 = vshrl.u32 %v941, 7
      %v943 = vsub.s32 0, %v942
      %v944 = vrot.slane %v622, %v943
      %v945 = vlaneseq
      %v946 = vshrl.u32 %v945, 7
      %v947 = vsub.s32 0, %v946
      %v948 = vrot.slane %v624, %v947
      %v949 = vlaneseq
      %v950 = vshrl.u32 %v949, 7
      %v951 = vsub.s32 0, %v950
      %v952 = vrot.slane %v648, %v951
      %v953 = vlaneseq
      %v954 = vshrl.u32 %v953, 7
      %v955 = vsub.s32 0, %v954
      %v956 = vrot.slane %v662, %v955
      %v957 = vlaneseq
      %v958 = vshrl.u32 %v957, 7
      %v959 = vsub.s32 0, %v958
      %v960 = vrot.slane %v670, %v959
      %v961 = vlaneseq
      %v962 = vshrl.u32 %v961, 7
      %v963 = vsub.s32 0, %v962
      %v964 = vrot.slane %v672, %v963
      %v965 = vlaneseq
      %v966 = vshrl.u32 %v965, 7
      %v967 = vsub.s32 0, %v966
      %v968 = vrot.slane %v655, %v967
      %v969 = vlaneseq
      %v970 = vshrl.u32 %v969, 7
      %v971 = vsub.s32 0, %v970
      %v972 = vrot.slane %v669, %v971
      %v973 = vlaneseq
      %v974 = vshrl.u32 %v973, 7
      %v975 = vsub.s32 0, %v974
      %v976 = vrot.slane %v671, %v975
      %v977 = vlaneseq
      %v978 = vshrl.u32 %v977, 7
      %v979 = vsub.s32 0, %v978
      %v980 = vrot.slane %v673, %v979
      %v981 = vlaneseq
      %v982 = vshrl.u32 %v981, 7
      %v983 = vsub.s32 0, %v982
      %v984 = vrot.slane %v697, %v983
      %v985 = vlaneseq
      %v986 = vshrl.u32 %v985, 7
      %v987 = vsub.s32 0, %v986
      %v988 = vrot.slane %v711, %v987
      %v989 = vlaneseq
      %v990 = vshrl.u32 %v989, 7
      %v991 = vsub.s32 0, %v990
      %v992 = vrot.slane %v719, %v991
      %v993 = vlaneseq
      %v994 = vshrl.u32 %v993, 7
      %v995 = vsub.s32 0, %v994
      %v996 = vrot.slane %v721, %v995
      %v997 = vlaneseq
      %v998 = vshrl.u32 %v997, 7
      %v999 = vsub.s32 0, %v998
      %v1000 = vrot.slane %v704, %v999
      %v1001 = vlaneseq
      %v1002 = vshrl.u32 %v1001, 7
      %v1003 = vsub.s32 0, %v1002
      %v1004 = vrot.slane %v718, %v1003
      %v1005 = vlaneseq
      %v1006 = vshrl.u32 %v1005, 7
      %v1007 = vsub.s32 0, %v1006
      %v1008 = vrot.slane %v720, %v1007
      %v1009 = vlaneseq
      %v1010 = vshrl.u32 %v1009, 7
      %v1011 = vsub.s32 0, %v1010
      %v1012 = vrot.slane %v722, %v1011
      %v1013 = vlaneseq
      %v1014 = vshrl.u32 %v1013, 7
      %v1015 = vsub.s32 0, %v1014
      %v1016 = vrot.slane %v746, %v1015
      %v1017 = vlaneseq
      %v1018 = vshrl.u32 %v1017, 7
      %v1019 = vsub.s32 0, %v1018
      %v1020 = vrot.slane %v760, %v1019
      %v1021 = vlaneseq
      %v1022 = vshrl.u32 %v1021, 7
      %v1023 = vsub.s32 0, %v1022
      %v1024 = vrot.slane %v768, %v1023
      %v1025 = vlaneseq
      %v1026 = vshrl.u32 %v1025, 7
      %v1027 = vsub.s32 0, %v1026
      %v1028 = vrot.slane %v770, %v1027
      %v1029 = vlaneseq
      %v1030 = vshrl.u32 %v1029, 7
      %v1031 = vsub.s32 0, %v1030
      %v1032 = vrot.slane %v753, %v1031
      %v1033 = vlaneseq
      %v1034 = vshrl.u32 %v1033, 7
      %v1035 = vsub.s32 0, %v1034
      %v1036 = vrot.slane %v767, %v1035
      %v1037 = vlaneseq
      %v1038 = vshrl.u32 %v1037, 7
      %v1039 = vsub.s32 0, %v1038
      %v1040 = vrot.slane %v769, %v1039
      %v1041 = vlaneseq
      %v1042 = vshrl.u32 %v1041, 7
      %v1043 = vsub.s32 0, %v1042
      %v1044 = vrot.slane %v771, %v1043
      %v1045 = vlaneseq
      %v1046 = vshrl.u32 %v1045, 7
      %v1047 = vsub.s32 0, %v1046
      %v1048 = vrot.slane %v795, %v1047
      %v1049 = vlaneseq
      %v1050 = vshrl.u32 %v1049, 7
      %v1051 = vsub.s32 0, %v1050
      %v1052 = vrot.slane %v809, %v1051
      %v1053 = vlaneseq
      %v1054 = vshrl.u32 %v1053, 7
      %v1055 = vsub.s32 0, %v1054
      %v1056 = vrot.slane %v817, %v1055
      %v1057 = vlaneseq
      %v1058 = vshrl.u32 %v1057, 7
      %v1059 = vsub.s32 0, %v1058
      %v1060 = vrot.slane %v819, %v1059
      %v1061 = vlaneseq
      %v1062 = vshrl.u32 %v1061, 7
      %v1063 = vsub.s32 0, %v1062
      %v1064 = vrot.slane %v802, %v1063
      %v1065 = vlaneseq
      %v1066 = vshrl.u32 %v1065, 7
      %v1067 = vsub.s32 0, %v1066
      %v1068 = vrot.slane %v816, %v1067
      %v1069 = vlaneseq
      %v1070 = vshrl.u32 %v1069, 7
      %v1071 = vsub.s32 0, %v1070
      %v1072 = vrot.slane %v818, %v1071
      %v1073 = vlaneseq
      %v1074 = vshrl.u32 %v1073, 7
      %v1075 = vsub.s32 0, %v1074
      %v1076 = vrot.slane %v820, %v1075
      %1141 = vrot.lane.b32.xlu0 %v391, 96
      %v1142 = vpop.permute.xlu0 %1141
      %1143 = vrot.lane.b32.xlu0 %v394, 96
      %v1144 = vpop.permute.xlu0 %1143
      %1145 = vrot.lane.b32.xlu0 %v399, 96
      %v1146 = vpop.permute.xlu0 %1145
      %1147 = vrot.lane.b32.xlu0 %v402, 96
      %v1148 = vpop.permute.xlu0 %1147
      %1149 = vrot.lane.b32.xlu0 %v407, 96
      %v1150 = vpop.permute.xlu0 %1149
      %1151 = vrot.lane.b32.xlu0 %v410, 96
      %v1152 = vpop.permute.xlu0 %1151
      %1153 = vrot.lane.b32.xlu0 %v415, 96
      %v1154 = vpop.permute.xlu0 %1153
      %1155 = vrot.lane.b32.xlu0 %v418, 96
      %v1156 = vpop.permute.xlu0 %1155
      %v1165 = vmul.f32 %v824, %v1142
      %v1166 = vmul.f32 %v824, %v1144
      %v1167 = vmul.f32 %v828, %v1142
      %v1168 = vmul.f32 %v828, %v1144
      %v1169 = vmul.f32 %v832, %v1142
      %v1170 = vmul.f32 %v832, %v1144
      %v1171 = vmul.f32 %v836, %v1142
      %v1172 = vmul.f32 %v836, %v1144
      %v1173 = vmul.f32 %v840, %v1142
      %v1174 = vmul.f32 %v840, %v1144
      %v1175 = vmul.f32 %v844, %v1142
      %v1176 = vmul.f32 %v844, %v1144
      %v1177 = vmul.f32 %v848, %v1142
      %v1178 = vmul.f32 %v848, %v1144
      %v1179 = vmul.f32 %v852, %v1142
      %v1180 = vmul.f32 %v852, %v1144
      %v1181 = vmul.f32 %v856, %v1142
      %v1182 = vmul.f32 %v856, %v1144
      %v1183 = vmul.f32 %v860, %v1142
      %v1184 = vmul.f32 %v860, %v1144
      %v1185 = vmul.f32 %v864, %v1142
      %v1186 = vmul.f32 %v864, %v1144
      %v1187 = vmul.f32 %v868, %v1142
      %v1188 = vmul.f32 %v868, %v1144
      %v1189 = vmul.f32 %v872, %v1142
      %v1190 = vmul.f32 %v872, %v1144
      %v1191 = vmul.f32 %v876, %v1142
      %v1192 = vmul.f32 %v876, %v1144
      %v1193 = vmul.f32 %v880, %v1142
      %v1194 = vmul.f32 %v880, %v1144
      %v1195 = vmul.f32 %v884, %v1142
      %v1196 = vmul.f32 %v884, %v1144
      %v1197 = vmul.f32 %v888, %v1146
      %v1198 = vmul.f32 %v888, %v1148
      %v1199 = vmul.f32 %v892, %v1146
      %v1200 = vmul.f32 %v892, %v1148
      %v1201 = vmul.f32 %v896, %v1146
      %v1202 = vmul.f32 %v896, %v1148
      %v1203 = vmul.f32 %v900, %v1146
      %v1204 = vmul.f32 %v900, %v1148
      %v1205 = vmul.f32 %v904, %v1146
      %v1206 = vmul.f32 %v904, %v1148
      %v1207 = vmul.f32 %v908, %v1146
      %v1208 = vmul.f32 %v908, %v1148
      %v1209 = vmul.f32 %v912, %v1146
      %v1210 = vmul.f32 %v912, %v1148
      %v1211 = vmul.f32 %v916, %v1146
      %v1212 = vmul.f32 %v916, %v1148
      %v1213 = vmul.f32 %v920, %v1146
      %v1214 = vmul.f32 %v920, %v1148
      %v1215 = vmul.f32 %v924, %v1146
      %v1216 = vmul.f32 %v924, %v1148
      %v1217 = vmul.f32 %v928, %v1146
      %v1218 = vmul.f32 %v928, %v1148
      %v1219 = vmul.f32 %v932, %v1146
      %v1220 = vmul.f32 %v932, %v1148
      %v1221 = vmul.f32 %v936, %v1146
      %v1222 = vmul.f32 %v936, %v1148
      %v1223 = vmul.f32 %v940, %v1146
      %v1224 = vmul.f32 %v940, %v1148
      %v1225 = vmul.f32 %v944, %v1146
      %v1226 = vmul.f32 %v944, %v1148
      %v1227 = vmul.f32 %v948, %v1146
      %v1228 = vmul.f32 %v948, %v1148
      %v1229 = vmul.f32 %v952, %v1150
      %v1230 = vmul.f32 %v952, %v1152
      %v1231 = vmul.f32 %v956, %v1150
      %v1232 = vmul.f32 %v956, %v1152
      %v1233 = vmul.f32 %v960, %v1150
      %v1234 = vmul.f32 %v960, %v1152
      %v1235 = vmul.f32 %v964, %v1150
      %v1236 = vmul.f32 %v964, %v1152
      %v1237 = vmul.f32 %v968, %v1150
      %v1238 = vmul.f32 %v968, %v1152
      %v1239 = vmul.f32 %v972, %v1150
      %v1240 = vmul.f32 %v972, %v1152
      %v1241 = vmul.f32 %v976, %v1150
      %v1242 = vmul.f32 %v976, %v1152
      %v1243 = vmul.f32 %v980, %v1150
      %v1244 = vmul.f32 %v980, %v1152
      %v1245 = vmul.f32 %v984, %v1150
      %v1246 = vmul.f32 %v984, %v1152
      %v1247 = vmul.f32 %v988, %v1150
      %v1248 = vmul.f32 %v988, %v1152
      %v1249 = vmul.f32 %v992, %v1150
      %v1250 = vmul.f32 %v992, %v1152
      %v1251 = vmul.f32 %v996, %v1150
      %v1252 = vmul.f32 %v996, %v1152
      %v1253 = vmul.f32 %v1000, %v1150
      %v1254 = vmul.f32 %v1000, %v1152
      %v1255 = vmul.f32 %v1004, %v1150
      %v1256 = vmul.f32 %v1004, %v1152
      %v1257 = vmul.f32 %v1008, %v1150
      %v1258 = vmul.f32 %v1008, %v1152
      %v1259 = vmul.f32 %v1012, %v1150
      %v1260 = vmul.f32 %v1012, %v1152
      %v1261 = vmul.f32 %v1016, %v1154
      %v1262 = vmul.f32 %v1016, %v1156
      %v1263 = vmul.f32 %v1020, %v1154
      %v1264 = vmul.f32 %v1020, %v1156
      %v1265 = vmul.f32 %v1024, %v1154
      %v1266 = vmul.f32 %v1024, %v1156
      %v1267 = vmul.f32 %v1028, %v1154
      %v1268 = vmul.f32 %v1028, %v1156
      %v1269 = vmul.f32 %v1032, %v1154
      %v1270 = vmul.f32 %v1032, %v1156
      %v1271 = vmul.f32 %v1036, %v1154
      %v1272 = vmul.f32 %v1036, %v1156
      %v1273 = vmul.f32 %v1040, %v1154
      %v1274 = vmul.f32 %v1040, %v1156
      %v1275 = vmul.f32 %v1044, %v1154
      %v1276 = vmul.f32 %v1044, %v1156
      %v1277 = vmul.f32 %v1048, %v1154
      %v1278 = vmul.f32 %v1048, %v1156
      %v1279 = vmul.f32 %v1052, %v1154
      %v1280 = vmul.f32 %v1052, %v1156
      %v1281 = vmul.f32 %v1056, %v1154
      %v1282 = vmul.f32 %v1056, %v1156
      %v1283 = vmul.f32 %v1060, %v1154
      %v1284 = vmul.f32 %v1060, %v1156
      %v1285 = vmul.f32 %v1064, %v1154
      %v1286 = vmul.f32 %v1064, %v1156
      %v1287 = vmul.f32 %v1068, %v1154
      %v1288 = vmul.f32 %v1068, %v1156
      %v1289 = vmul.f32 %v1072, %v1154
      %v1290 = vmul.f32 %v1072, %v1156
      %v1291 = vmul.f32 %v1076, %v1154
      %v1292 = vmul.f32 %v1076, %v1156
      %v1293 = vld [vmem:[%s4] sm:$0xff]
      %v1294 = vld [vmem:[%s4 + $0x8] sm:$0xff]
      %v1295 = vld [vmem:[%s4 + $0x10] sm:$0xff]
      %v1296 = vld [vmem:[%s4 + $0x18] sm:$0xff]
      %v1298 = vsel %vm343, %v1165, 0
      %v1301 = vsel %vm343, %v1166, 0
      %v1304 = vsel %vm343, %v1167, 0
      %v1307 = vsel %vm343, %v1168, 0
      %v1310 = vsel %vm343, %v1169, 0
      %v1313 = vsel %vm343, %v1170, 0
      %v1316 = vsel %vm343, %v1171, 0
      %v1319 = vsel %vm343, %v1172, 0
      %v1322 = vsel %vm343, %v1173, 0
      %v1325 = vsel %vm343, %v1174, 0
      %v1328 = vsel %vm343, %v1175, 0
      %v1331 = vsel %vm343, %v1176, 0
      %v1334 = vsel %vm343, %v1177, 0
      %v1337 = vsel %vm343, %v1178, 0
      %v1340 = vsel %vm343, %v1179, 0
      %v1343 = vsel %vm343, %v1180, 0
      %v1346 = vsel %vm343, %v1181, 0
      %v1349 = vsel %vm343, %v1182, 0
      %v1352 = vsel %vm343, %v1183, 0
      %v1355 = vsel %vm343, %v1184, 0
      %v1358 = vsel %vm343, %v1185, 0
      %v1361 = vsel %vm343, %v1186, 0
      %v1364 = vsel %vm343, %v1187, 0
      %v1367 = vsel %vm343, %v1188, 0
      %v1370 = vsel %vm343, %v1189, 0
      %v1373 = vsel %vm343, %v1190, 0
      %v1376 = vsel %vm343, %v1191, 0
      %v1379 = vsel %vm343, %v1192, 0
      %v1382 = vsel %vm343, %v1193, 0
      %v1385 = vsel %vm343, %v1194, 0
      %v1388 = vsel %vm343, %v1195, 0
      %v1391 = vsel %vm343, %v1196, 0
      %v1394 = vsel %vm343, %v1197, 0
      %v1397 = vsel %vm343, %v1198, 0
      %v1400 = vsel %vm343, %v1199, 0
      %v1403 = vsel %vm343, %v1200, 0
      %v1406 = vsel %vm343, %v1201, 0
      %v1409 = vsel %vm343, %v1202, 0
      %v1412 = vsel %vm343, %v1203, 0
      %v1415 = vsel %vm343, %v1204, 0
      %v1418 = vsel %vm343, %v1205, 0
      %v1421 = vsel %vm343, %v1206, 0
      %v1424 = vsel %vm343, %v1207, 0
      %v1427 = vsel %vm343, %v1208, 0
      %v1430 = vsel %vm343, %v1209, 0
      %v1433 = vsel %vm343, %v1210, 0
      %v1436 = vsel %vm343, %v1211, 0
      %v1439 = vsel %vm343, %v1212, 0
      %v1442 = vsel %vm343, %v1213, 0
      %v1445 = vsel %vm343, %v1214, 0
      %v1448 = vsel %vm343, %v1215, 0
      %v1451 = vsel %vm343, %v1216, 0
      %v1454 = vsel %vm343, %v1217, 0
      %v1457 = vsel %vm343, %v1218, 0
      %v1460 = vsel %vm343, %v1219, 0
      %v1463 = vsel %vm343, %v1220, 0
      %v1466 = vsel %vm343, %v1221, 0
      %v1469 = vsel %vm343, %v1222, 0
      %v1472 = vsel %vm343, %v1223, 0
      %v1475 = vsel %vm343, %v1224, 0
      %v1478 = vsel %vm343, %v1225, 0
      %v1481 = vsel %vm343, %v1226, 0
      %v1484 = vsel %vm343, %v1227, 0
      %v1487 = vsel %vm343, %v1228, 0
      %v1490 = vsel %vm343, %v1229, 0
      %v1493 = vsel %vm343, %v1230, 0
      %v1496 = vsel %vm343, %v1231, 0
      %v1499 = vsel %vm343, %v1232, 0
      %v1502 = vsel %vm343, %v1233, 0
      %v1505 = vsel %vm343, %v1234, 0
      %v1508 = vsel %vm343, %v1235, 0
      %v1511 = vsel %vm343, %v1236, 0
      %v1514 = vsel %vm343, %v1237, 0
      %v1517 = vsel %vm343, %v1238, 0
      %v1520 = vsel %vm343, %v1239, 0
      %v1523 = vsel %vm343, %v1240, 0
      %v1526 = vsel %vm343, %v1241, 0
      %v1529 = vsel %vm343, %v1242, 0
      %v1532 = vsel %vm343, %v1243, 0
      %v1535 = vsel %vm343, %v1244, 0
      %v1538 = vsel %vm343, %v1245, 0
      %v1541 = vsel %vm343, %v1246, 0
      %v1544 = vsel %vm343, %v1247, 0
      %v1547 = vsel %vm343, %v1248, 0
      %v1550 = vsel %vm343, %v1249, 0
      %v1553 = vsel %vm343, %v1250, 0
      %v1556 = vsel %vm343, %v1251, 0
      %v1559 = vsel %vm343, %v1252, 0
      %v1562 = vsel %vm343, %v1253, 0
      %v1565 = vsel %vm343, %v1254, 0
      %v1568 = vsel %vm343, %v1255, 0
      %v1571 = vsel %vm343, %v1256, 0
      %v1574 = vsel %vm343, %v1257, 0
      %v1577 = vsel %vm343, %v1258, 0
      %v1580 = vsel %vm343, %v1259, 0
      %v1583 = vsel %vm343, %v1260, 0
      %v1586 = vsel %vm343, %v1261, 0
      %v1589 = vsel %vm343, %v1262, 0
      %v1592 = vsel %vm343, %v1263, 0
      %v1595 = vsel %vm343, %v1264, 0
      %v1598 = vsel %vm343, %v1265, 0
      %v1601 = vsel %vm343, %v1266, 0
      %v1604 = vsel %vm343, %v1267, 0
      %v1607 = vsel %vm343, %v1268, 0
      %v1610 = vsel %vm343, %v1269, 0
      %v1613 = vsel %vm343, %v1270, 0
      %v1616 = vsel %vm343, %v1271, 0
      %v1619 = vsel %vm343, %v1272, 0
      %v1622 = vsel %vm343, %v1273, 0
      %v1625 = vsel %vm343, %v1274, 0
      %v1628 = vsel %vm343, %v1275, 0
      %v1631 = vsel %vm343, %v1276, 0
      %v1634 = vsel %vm343, %v1277, 0
      %v1637 = vsel %vm343, %v1278, 0
      %v1640 = vsel %vm343, %v1279, 0
      %v1643 = vsel %vm343, %v1280, 0
      %v1646 = vsel %vm343, %v1281, 0
      %v1649 = vsel %vm343, %v1282, 0
      %v1652 = vsel %vm343, %v1283, 0
      %v1655 = vsel %vm343, %v1284, 0
      %v1658 = vsel %vm343, %v1285, 0
      %v1661 = vsel %vm343, %v1286, 0
      %v1664 = vsel %vm343, %v1287, 0
      %v1667 = vsel %vm343, %v1288, 0
      %v1670 = vsel %vm343, %v1289, 0
      %v1673 = vsel %vm343, %v1290, 0
      %v1676 = vsel %vm343, %v1291, 0
      %v1679 = vsel %vm343, %v1292, 0
      %1681 = vmatprep.subr.mxu0 0.0
      %1682 = vmatpush1.msra.mxu0 %v1293
      %1683 = vmatprep.subr.mxu0 0.0
      %1684 = vmatpush1.msra.mxu0 %v1294
      %1685 = vmatprep.subr.mxu0 0.0
      %1686 = vmatpush1.msra.mxu0 %v1295
      %1687 = vmatprep.subr.mxu0 0.0
      %1688 = vmatpush1.msra.mxu0 %v1296
      %1689 = vmatprep.subr.mxu0 0.0
      %1690 = vmatpush1.msra.mxu0 0.0
      %1691 = vmatprep.subr.mxu0 0.0
      %1692 = vmatpush1.msra.mxu0 0.0
      %1693 = vmatprep.subr.mxu0 0.0
      %1694 = vmatpush1.msra.mxu0 0.0
      %1695 = vmatprep.subr.mxu0 0.0
      %1696 = vmatpush1.msra.mxu0 0.0
      %1697 = vmatprep.subr.mxu0 0.0
      %1698 = vmatpush1.msra.mxu0 0.0
      %1699 = vmatprep.subr.mxu0 0.0
      %1700 = vmatpush1.msra.mxu0 0.0
      %1701 = vmatprep.subr.mxu0 0.0
      %1702 = vmatpush1.msra.mxu0 0.0
      %1703 = vmatprep.subr.mxu0 0.0
      %1704 = vmatpush1.msra.mxu0 0.0
      %1705 = vmatprep.subr.mxu0 0.0
      %1706 = vmatpush1.msra.mxu0 0.0
      %1707 = vmatprep.subr.mxu0 0.0
      %1708 = vmatpush1.msra.mxu0 0.0
      %1709 = vmatprep.subr.mxu0 0.0
      %1710 = vmatpush1.msra.mxu0 0.0
      %1711 = vmatprep.subr.mxu0 0.0
      %1712 = vmatpush1.msra.mxu0 0.0
      %1713 = vmatprep.subr.mxu0 0.0
      %1714 = vmatpush1.msra.mxu0 0.0
      %1715 = vmatprep.subr.mxu0 0.0
      %1716 = vmatpush1.msra.mxu0 0.0
      %1717 = vmatprep.subr.mxu0 0.0
      %1718 = vmatpush1.msra.mxu0 0.0
      %1719 = vmatprep.subr.mxu0 0.0
      %1720 = vmatpush1.msra.mxu0 0.0
      %1721 = vmatprep.subr.mxu0 0.0
      %1722 = vmatpush1.msra.mxu0 0.0
      %1723 = vmatprep.subr.mxu0 0.0
      %1724 = vmatpush1.msra.mxu0 0.0
      %1725 = vmatprep.subr.mxu0 0.0
      %1726 = vmatpush1.msra.mxu0 0.0
      %1727 = vmatprep.subr.mxu0 0.0
      %1728 = vmatpush1.msra.mxu0 0.0
      %1729 = vmatprep.subr.mxu0 0.0
      %1730 = vmatpush1.msra.mxu0 0.0
      %1731 = vmatprep.subr.mxu0 0.0
      %1732 = vmatpush1.msra.mxu0 0.0
      %1733 = vmatprep.subr.mxu0 0.0
      %1734 = vmatpush1.msra.mxu0 0.0
      %1735 = vmatprep.subr.mxu0 0.0
      %1736 = vmatpush1.msra.mxu0 0.0
      %1737 = vmatprep.subr.mxu0 0.0
      %1738 = vmatpush1.msra.mxu0 0.0
      %1739 = vmatprep.subr.mxu0 0.0
      %1740 = vmatpush1.msra.mxu0 0.0
      %1741 = vmatprep.subr.mxu0 0.0
      %1742 = vmatpush1.msra.mxu0 0.0
      %1743 = vmatprep.subr.mxu0 0.0
      %1744 = vmatpush1.msra.mxu0 0.0
      %1745 = vmatprep.mubr.f32.mxu0 0.0
      %1746 = vmatmul.mubr.f32.gmra.mrb[0].mxu0 %v1298
      %v1747 = vpop.f32.mrb[0].mxu0
      %v1748 = vadd.f32 0.0, %v1747
      %v1749 = vpop.f32.mrb[0].mxu0
      %1750 = vmatprep.mubr.f32.mxu0 0.0
      %1751 = vmatmul.mubr.f32.gmra.mrb[0].mxu0 %v1301
      %v1752 = vpop.f32.mrb[0].mxu0
      %v1753 = vadd.f32 0.0, %v1752
      %v1754 = vpop.f32.mrb[0].mxu0
      %1755 = vmatprep.mubr.f32.mxu0 0.0
      %1756 = vmatmul.mubr.f32.gmra.mrb[0].mxu0 %v1304
      %v1757 = vpop.f32.mrb[0].mxu0
      %v1758 = vadd.f32 0.0, %v1757
      %v1759 = vpop.f32.mrb[0].mxu0
      %1760 = vmatprep.mubr.f32.mxu0 0.0
      %1761 = vmatmul.mubr.f32.gmra.mrb[0].mxu0 %v1307
      %v1762 = vpop.f32.mrb[0].mxu0
      %v1763 = vadd.f32 0.0, %v1762
      %v1764 = vpop.f32.mrb[0].mxu0
      %1765 = vmatprep.mubr.f32.mxu0 0.0
      %1766 = vmatmul.mubr.f32.gmra.mrb[0].mxu0 %v1310
      %v1767 = vpop.f32.mrb[0].mxu0
      %v1768 = vadd.f32 0.0, %v1767
      %v1769 = vpop.f32.mrb[0].mxu0
      %1770 = vmatprep.mubr.f32.mxu0 0.0
      %1771 = vmatmul.mubr.f32.gmra.mrb[0].mxu0 %v1313
      %v1772 = vpop.f32.mrb[0].mxu0
      %v1773 = vadd.f32 0.0, %v1772
      %v1774 = vpop.f32.mrb[0].mxu0
      %1775 = vmatprep.mubr.f32.mxu0 0.0
      %1776 = vmatmul.mubr.f32.gmra.mrb[0].mxu0 %v1316
      %v1777 = vpop.f32.mrb[0].mxu0
      %v1778 = vadd.f32 0.0, %v1777
      %v1779 = vpop.f32.mrb[0].mxu0
      %1780 = vmatprep.mubr.f32.mxu0 0.0
      %1781 = vmatmul.mubr.f32.gmra.mrb[0].mxu0 %v1319
      %v1782 = vpop.f32.mrb[0].mxu0
      %v1783 = vadd.f32 0.0, %v1782
      %v1784 = vpop.f32.mrb[0].mxu0
      %1785 = vmatprep.mubr.f32.mxu0 0.0
      %1786 = vmatmul.mubr.f32.gmra.mrb[0].mxu0 %v1322
      %v1787 = vpop.f32.mrb[0].mxu0
      %v1788 = vadd.f32 0.0, %v1787
      %v1789 = vpop.f32.mrb[0].mxu0
      %1790 = vmatprep.mubr.f32.mxu0 0.0
      %1791 = vmatmul.mubr.f32.gmra.mrb[0].mxu0 %v1325
      %v1792 = vpop.f32.mrb[0].mxu0
      %v1793 = vadd.f32 0.0, %v1792
      %v1794 = vpop.f32.mrb[0].mxu0
      %1795 = vmatprep.mubr.f32.mxu0 0.0
      %1796 = vmatmul.mubr.f32.gmra.mrb[0].mxu0 %v1328
      %v1797 = vpop.f32.mrb[0].mxu0
      %v1798 = vadd.f32 0.0, %v1797
      %v1799 = vpop.f32.mrb[0].mxu0
      %1800 = vmatprep.mubr.f32.mxu0 0.0
      %1801 = vmatmul.mubr.f32.gmra.mrb[0].mxu0 %v1331
      %v1802 = vpop.f32.mrb[0].mxu0
      %v1803 = vadd.f32 0.0, %v1802
      %v1804 = vpop.f32.mrb[0].mxu0
      %1805 = vmatprep.mubr.f32.mxu0 0.0
      %1806 = vmatmul.mubr.f32.gmra.mrb[0].mxu0 %v1334
      %v1807 = vpop.f32.mrb[0].mxu0
      %v1808 = vadd.f32 0.0, %v1807
      %v1809 = vpop.f32.mrb[0].mxu0
      %1810 = vmatprep.mubr.f32.mxu0 0.0
      %1811 = vmatmul.mubr.f32.gmra.mrb[0].mxu0 %v1337
      %v1812 = vpop.f32.mrb[0].mxu0
      %v1813 = vadd.f32 0.0, %v1812
      %v1814 = vpop.f32.mrb[0].mxu0
      %1815 = vmatprep.mubr.f32.mxu0 0.0
      %1816 = vmatmul.mubr.f32.gmra.mrb[0].mxu0 %v1340
      %v1817 = vpop.f32.mrb[0].mxu0
      %v1818 = vadd.f32 0.0, %v1817
      %v1819 = vpop.f32.mrb[0].mxu0
      %1820 = vmatprep.mubr.f32.mxu0 0.0
      %1821 = vmatmul.mubr.f32.gmra.mrb[0].mxu0 %v1343
      %v1822 = vpop.f32.mrb[0].mxu0
      %v1823 = vadd.f32 0.0, %v1822
      %v1824 = vpop.f32.mrb[0].mxu0
      %1825 = vmatprep.mubr.f32.mxu0 0.0
      %1826 = vmatmul.mubr.f32.gmra.mrb[0].mxu0 %v1346
      %v1827 = vpop.f32.mrb[0].mxu0
      %v1828 = vadd.f32 0.0, %v1827
      %v1829 = vpop.f32.mrb[0].mxu0
      %1830 = vmatprep.mubr.f32.mxu0 0.0
      %1831 = vmatmul.mubr.f32.gmra.mrb[0].mxu0 %v1349
      %v1832 = vpop.f32.mrb[0].mxu0
      %v1833 = vadd.f32 0.0, %v1832
      %v1834 = vpop.f32.mrb[0].mxu0
      %1835 = vmatprep.mubr.f32.mxu0 0.0
      %1836 = vmatmul.mubr.f32.gmra.mrb[0].mxu0 %v1352
      %v1837 = vpop.f32.mrb[0].mxu0
      %v1838 = vadd.f32 0.0, %v1837
      %v1839 = vpop.f32.mrb[0].mxu0
      %1840 = vmatprep.mubr.f32.mxu0 0.0
      %1841 = vmatmul.mubr.f32.gmra.mrb[0].mxu0 %v1355
      %v1842 = vpop.f32.mrb[0].mxu0
      %v1843 = vadd.f32 0.0, %v1842
      %v1844 = vpop.f32.mrb[0].mxu0
      %1845 = vmatprep.mubr.f32.mxu0 0.0
      %1846 = vmatmul.mubr.f32.gmra.mrb[0].mxu0 %v1358
      %v1847 = vpop.f32.mrb[0].mxu0
      %v1848 = vadd.f32 0.0, %v1847
      %v1849 = vpop.f32.mrb[0].mxu0
      %1850 = vmatprep.mubr.f32.mxu0 0.0
      %1851 = vmatmul.mubr.f32.gmra.mrb[0].mxu0 %v1361
      %v1852 = vpop.f32.mrb[0].mxu0
      %v1853 = vadd.f32 0.0, %v1852
      %v1854 = vpop.f32.mrb[0].mxu0
      %1855 = vmatprep.mubr.f32.mxu0 0.0
      %1856 = vmatmul.mubr.f32.gmra.mrb[0].mxu0 %v1364
      %v1857 = vpop.f32.mrb[0].mxu0
      %v1858 = vadd.f32 0.0, %v1857
      %v1859 = vpop.f32.mrb[0].mxu0
      %1860 = vmatprep.mubr.f32.mxu0 0.0
      %1861 = vmatmul.mubr.f32.gmra.mrb[0].mxu0 %v1367
      %v1862 = vpop.f32.mrb[0].mxu0
      %v1863 = vadd.f32 0.0, %v1862
      %v1864 = vpop.f32.mrb[0].mxu0
      %1865 = vmatprep.mubr.f32.mxu0 0.0
      %1866 = vmatmul.mubr.f32.gmra.mrb[0].mxu0 %v1370
      %v1867 = vpop.f32.mrb[0].mxu0
      %v1868 = vadd.f32 0.0, %v1867
      %v1869 = vpop.f32.mrb[0].mxu0
      %1870 = vmatprep.mubr.f32.mxu0 0.0
      %1871 = vmatmul.mubr.f32.gmra.mrb[0].mxu0 %v1373
      %v1872 = vpop.f32.mrb[0].mxu0
      %v1873 = vadd.f32 0.0, %v1872
      %v1874 = vpop.f32.mrb[0].mxu0
      %1875 = vmatprep.mubr.f32.mxu0 0.0
      %1876 = vmatmul.mubr.f32.gmra.mrb[0].mxu0 %v1376
      %v1877 = vpop.f32.mrb[0].mxu0
      %v1878 = vadd.f32 0.0, %v1877
      %v1879 = vpop.f32.mrb[0].mxu0
      %1880 = vmatprep.mubr.f32.mxu0 0.0
      %1881 = vmatmul.mubr.f32.gmra.mrb[0].mxu0 %v1379
      %v1882 = vpop.f32.mrb[0].mxu0
      %v1883 = vadd.f32 0.0, %v1882
      %v1884 = vpop.f32.mrb[0].mxu0
      %1885 = vmatprep.mubr.f32.mxu0 0.0
      %1886 = vmatmul.mubr.f32.gmra.mrb[0].mxu0 %v1382
      %v1887 = vpop.f32.mrb[0].mxu0
      %v1888 = vadd.f32 0.0, %v1887
      %v1889 = vpop.f32.mrb[0].mxu0
      %1890 = vmatprep.mubr.f32.mxu0 0.0
      %1891 = vmatmul.mubr.f32.gmra.mrb[0].mxu0 %v1385
      %v1892 = vpop.f32.mrb[0].mxu0
      %v1893 = vadd.f32 0.0, %v1892
      %v1894 = vpop.f32.mrb[0].mxu0
      %1895 = vmatprep.mubr.f32.mxu0 0.0
      %1896 = vmatmul.mubr.f32.gmra.mrb[0].mxu0 %v1388
      %v1897 = vpop.f32.mrb[0].mxu0
      %v1898 = vadd.f32 0.0, %v1897
      %v1899 = vpop.f32.mrb[0].mxu0
      %1900 = vmatprep.mubr.f32.mxu0 0.0
      %1901 = vmatmul.mubr.f32.gmra.mrb[0].mxu0 %v1391
      %v1902 = vpop.f32.mrb[0].mxu0
      %v1903 = vadd.f32 0.0, %v1902
      %v1904 = vpop.f32.mrb[0].mxu0
      %1905 = vmatprep.mubr.f32.mxu0 0.0
      %1906 = vmatmul.mubr.f32.gmra.mrb[0].mxu0 %v1394
      %v1907 = vpop.f32.mrb[0].mxu0
      %v1908 = vadd.f32 0.0, %v1907
      %v1909 = vpop.f32.mrb[0].mxu0
      %1910 = vmatprep.mubr.f32.mxu0 0.0
      %1911 = vmatmul.mubr.f32.gmra.mrb[0].mxu0 %v1397
      %v1912 = vpop.f32.mrb[0].mxu0
      %v1913 = vadd.f32 0.0, %v1912
      %v1914 = vpop.f32.mrb[0].mxu0
      %1915 = vmatprep.mubr.f32.mxu0 0.0
      %1916 = vmatmul.mubr.f32.gmra.mrb[0].mxu0 %v1400
      %v1917 = vpop.f32.mrb[0].mxu0
      %v1918 = vadd.f32 0.0, %v1917
      %v1919 = vpop.f32.mrb[0].mxu0
      %1920 = vmatprep.mubr.f32.mxu0 0.0
      %1921 = vmatmul.mubr.f32.gmra.mrb[0].mxu0 %v1403
      %v1922 = vpop.f32.mrb[0].mxu0
      %v1923 = vadd.f32 0.0, %v1922
      %v1924 = vpop.f32.mrb[0].mxu0
      %1925 = vmatprep.mubr.f32.mxu0 0.0
      %1926 = vmatmul.mubr.f32.gmra.mrb[0].mxu0 %v1406
      %v1927 = vpop.f32.mrb[0].mxu0
      %v1928 = vadd.f32 0.0, %v1927
      %v1929 = vpop.f32.mrb[0].mxu0
      %1930 = vmatprep.mubr.f32.mxu0 0.0
      %1931 = vmatmul.mubr.f32.gmra.mrb[0].mxu0 %v1409
      %v1932 = vpop.f32.mrb[0].mxu0
      %v1933 = vadd.f32 0.0, %v1932
      %v1934 = vpop.f32.mrb[0].mxu0
      %1935 = vmatprep.mubr.f32.mxu0 0.0
      %1936 = vmatmul.mubr.f32.gmra.mrb[0].mxu0 %v1412
      %v1937 = vpop.f32.mrb[0].mxu0
      %v1938 = vadd.f32 0.0, %v1937
      %v1939 = vpop.f32.mrb[0].mxu0
      %1940 = vmatprep.mubr.f32.mxu0 0.0
      %1941 = vmatmul.mubr.f32.gmra.mrb[0].mxu0 %v1415
      %v1942 = vpop.f32.mrb[0].mxu0
      %v1943 = vadd.f32 0.0, %v1942
      %v1944 = vpop.f32.mrb[0].mxu0
      %1945 = vmatprep.mubr.f32.mxu0 0.0
      %1946 = vmatmul.mubr.f32.gmra.mrb[0].mxu0 %v1418
      %v1947 = vpop.f32.mrb[0].mxu0
      %v1948 = vadd.f32 0.0, %v1947
      %v1949 = vpop.f32.mrb[0].mxu0
      %1950 = vmatprep.mubr.f32.mxu0 0.0
      %1951 = vmatmul.mubr.f32.gmra.mrb[0].mxu0 %v1421
      %v1952 = vpop.f32.mrb[0].mxu0
      %v1953 = vadd.f32 0.0, %v1952
      %v1954 = vpop.f32.mrb[0].mxu0
      %1955 = vmatprep.mubr.f32.mxu0 0.0
      %1956 = vmatmul.mubr.f32.gmra.mrb[0].mxu0 %v1424
      %v1957 = vpop.f32.mrb[0].mxu0
      %v1958 = vadd.f32 0.0, %v1957
      %v1959 = vpop.f32.mrb[0].mxu0
      %1960 = vmatprep.mubr.f32.mxu0 0.0
      %1961 = vmatmul.mubr.f32.gmra.mrb[0].mxu0 %v1427
      %v1962 = vpop.f32.mrb[0].mxu0
      %v1963 = vadd.f32 0.0, %v1962
      %v1964 = vpop.f32.mrb[0].mxu0
      %1965 = vmatprep.mubr.f32.mxu0 0.0
      %1966 = vmatmul.mubr.f32.gmra.mrb[0].mxu0 %v1430
      %v1967 = vpop.f32.mrb[0].mxu0
      %v1968 = vadd.f32 0.0, %v1967
      %v1969 = vpop.f32.mrb[0].mxu0
      %1970 = vmatprep.mubr.f32.mxu0 0.0
      %1971 = vmatmul.mubr.f32.gmra.mrb[0].mxu0 %v1433
      %v1972 = vpop.f32.mrb[0].mxu0
      %v1973 = vadd.f32 0.0, %v1972
      %v1974 = vpop.f32.mrb[0].mxu0
      %1975 = vmatprep.mubr.f32.mxu0 0.0
      %1976 = vmatmul.mubr.f32.gmra.mrb[0].mxu0 %v1436
      %v1977 = vpop.f32.mrb[0].mxu0
      %v1978 = vadd.f32 0.0, %v1977
      %v1979 = vpop.f32.mrb[0].mxu0
      %1980 = vmatprep.mubr.f32.mxu0 0.0
      %1981 = vmatmul.mubr.f32.gmra.mrb[0].mxu0 %v1439
      %v1982 = vpop.f32.mrb[0].mxu0
      %v1983 = vadd.f32 0.0, %v1982
      %v1984 = vpop.f32.mrb[0].mxu0
      %1985 = vmatprep.mubr.f32.mxu0 0.0
      %1986 = vmatmul.mubr.f32.gmra.mrb[0].mxu0 %v1442
      %v1987 = vpop.f32.mrb[0].mxu0
      %v1988 = vadd.f32 0.0, %v1987
      %v1989 = vpop.f32.mrb[0].mxu0
      %1990 = vmatprep.mubr.f32.mxu0 0.0
      %1991 = vmatmul.mubr.f32.gmra.mrb[0].mxu0 %v1445
      %v1992 = vpop.f32.mrb[0].mxu0
      %v1993 = vadd.f32 0.0, %v1992
      %v1994 = vpop.f32.mrb[0].mxu0
      %1995 = vmatprep.mubr.f32.mxu0 0.0
      %1996 = vmatmul.mubr.f32.gmra.mrb[0].mxu0 %v1448
      %v1997 = vpop.f32.mrb[0].mxu0
      %v1998 = vadd.f32 0.0, %v1997
      %v1999 = vpop.f32.mrb[0].mxu0
      %2000 = vmatprep.mubr.f32.mxu0 0.0
      %2001 = vmatmul.mubr.f32.gmra.mrb[0].mxu0 %v1451
      %v2002 = vpop.f32.mrb[0].mxu0
      %v2003 = vadd.f32 0.0, %v2002
      %v2004 = vpop.f32.mrb[0].mxu0
      %2005 = vmatprep.mubr.f32.mxu0 0.0
      %2006 = vmatmul.mubr.f32.gmra.mrb[0].mxu0 %v1454
      %v2007 = vpop.f32.mrb[0].mxu0
      %v2008 = vadd.f32 0.0, %v2007
      %v2009 = vpop.f32.mrb[0].mxu0
      %2010 = vmatprep.mubr.f32.mxu0 0.0
      %2011 = vmatmul.mubr.f32.gmra.mrb[0].mxu0 %v1457
      %v2012 = vpop.f32.mrb[0].mxu0
      %v2013 = vadd.f32 0.0, %v2012
      %v2014 = vpop.f32.mrb[0].mxu0
      %2015 = vmatprep.mubr.f32.mxu0 0.0
      %2016 = vmatmul.mubr.f32.gmra.mrb[0].mxu0 %v1460
      %v2017 = vpop.f32.mrb[0].mxu0
      %v2018 = vadd.f32 0.0, %v2017
      %v2019 = vpop.f32.mrb[0].mxu0
      %2020 = vmatprep.mubr.f32.mxu0 0.0
      %2021 = vmatmul.mubr.f32.gmra.mrb[0].mxu0 %v1463
      %v2022 = vpop.f32.mrb[0].mxu0
      %v2023 = vadd.f32 0.0, %v2022
      %v2024 = vpop.f32.mrb[0].mxu0
      %2025 = vmatprep.mubr.f32.mxu0 0.0
      %2026 = vmatmul.mubr.f32.gmra.mrb[0].mxu0 %v1466
      %v2027 = vpop.f32.mrb[0].mxu0
      %v2028 = vadd.f32 0.0, %v2027
      %v2029 = vpop.f32.mrb[0].mxu0
      %2030 = vmatprep.mubr.f32.mxu0 0.0
      %2031 = vmatmul.mubr.f32.gmra.mrb[0].mxu0 %v1469
      %v2032 = vpop.f32.mrb[0].mxu0
      %v2033 = vadd.f32 0.0, %v2032
      %v2034 = vpop.f32.mrb[0].mxu0
      %2035 = vmatprep.mubr.f32.mxu0 0.0
      %2036 = vmatmul.mubr.f32.gmra.mrb[0].mxu0 %v1472
      %v2037 = vpop.f32.mrb[0].mxu0
      %v2038 = vadd.f32 0.0, %v2037
      %v2039 = vpop.f32.mrb[0].mxu0
      %2040 = vmatprep.mubr.f32.mxu0 0.0
      %2041 = vmatmul.mubr.f32.gmra.mrb[0].mxu0 %v1475
      %v2042 = vpop.f32.mrb[0].mxu0
      %v2043 = vadd.f32 0.0, %v2042
      %v2044 = vpop.f32.mrb[0].mxu0
      %2045 = vmatprep.mubr.f32.mxu0 0.0
      %2046 = vmatmul.mubr.f32.gmra.mrb[0].mxu0 %v1478
      %v2047 = vpop.f32.mrb[0].mxu0
      %v2048 = vadd.f32 0.0, %v2047
      %v2049 = vpop.f32.mrb[0].mxu0
      %2050 = vmatprep.mubr.f32.mxu0 0.0
      %2051 = vmatmul.mubr.f32.gmra.mrb[0].mxu0 %v1481
      %v2052 = vpop.f32.mrb[0].mxu0
      %v2053 = vadd.f32 0.0, %v2052
      %v2054 = vpop.f32.mrb[0].mxu0
      %2055 = vmatprep.mubr.f32.mxu0 0.0
      %2056 = vmatmul.mubr.f32.gmra.mrb[0].mxu0 %v1484
      %v2057 = vpop.f32.mrb[0].mxu0
      %v2058 = vadd.f32 0.0, %v2057
      %v2059 = vpop.f32.mrb[0].mxu0
      %2060 = vmatprep.mubr.f32.mxu0 0.0
      %2061 = vmatmul.mubr.f32.gmra.mrb[0].mxu0 %v1487
      %v2062 = vpop.f32.mrb[0].mxu0
      %v2063 = vadd.f32 0.0, %v2062
      %v2064 = vpop.f32.mrb[0].mxu0
      %2065 = vmatprep.mubr.f32.mxu0 0.0
      %2066 = vmatmul.mubr.f32.gmra.mrb[0].mxu0 %v1490
      %v2067 = vpop.f32.mrb[0].mxu0
      %v2068 = vadd.f32 0.0, %v2067
      %v2069 = vpop.f32.mrb[0].mxu0
      %2070 = vmatprep.mubr.f32.mxu0 0.0
      %2071 = vmatmul.mubr.f32.gmra.mrb[0].mxu0 %v1493
      %v2072 = vpop.f32.mrb[0].mxu0
      %v2073 = vadd.f32 0.0, %v2072
      %v2074 = vpop.f32.mrb[0].mxu0
      %2075 = vmatprep.mubr.f32.mxu0 0.0
      %2076 = vmatmul.mubr.f32.gmra.mrb[0].mxu0 %v1496
      %v2077 = vpop.f32.mrb[0].mxu0
      %v2078 = vadd.f32 0.0, %v2077
      %v2079 = vpop.f32.mrb[0].mxu0
      %2080 = vmatprep.mubr.f32.mxu0 0.0
      %2081 = vmatmul.mubr.f32.gmra.mrb[0].mxu0 %v1499
      %v2082 = vpop.f32.mrb[0].mxu0
      %v2083 = vadd.f32 0.0, %v2082
      %v2084 = vpop.f32.mrb[0].mxu0
      %2085 = vmatprep.mubr.f32.mxu0 0.0
      %2086 = vmatmul.mubr.f32.gmra.mrb[0].mxu0 %v1502
      %v2087 = vpop.f32.mrb[0].mxu0
      %v2088 = vadd.f32 0.0, %v2087
      %v2089 = vpop.f32.mrb[0].mxu0
      %2090 = vmatprep.mubr.f32.mxu0 0.0
      %2091 = vmatmul.mubr.f32.gmra.mrb[0].mxu0 %v1505
      %v2092 = vpop.f32.mrb[0].mxu0
      %v2093 = vadd.f32 0.0, %v2092
      %v2094 = vpop.f32.mrb[0].mxu0
      %2095 = vmatprep.mubr.f32.mxu0 0.0
      %2096 = vmatmul.mubr.f32.gmra.mrb[0].mxu0 %v1508
      %v2097 = vpop.f32.mrb[0].mxu0
      %v2098 = vadd.f32 0.0, %v2097
      %v2099 = vpop.f32.mrb[0].mxu0
      %2100 = vmatprep.mubr.f32.mxu0 0.0
      %2101 = vmatmul.mubr.f32.gmra.mrb[0].mxu0 %v1511
      %v2102 = vpop.f32.mrb[0].mxu0
      %v2103 = vadd.f32 0.0, %v2102
      %v2104 = vpop.f32.mrb[0].mxu0
      %2105 = vmatprep.mubr.f32.mxu0 0.0
      %2106 = vmatmul.mubr.f32.gmra.mrb[0].mxu0 %v1514
      %v2107 = vpop.f32.mrb[0].mxu0
      %v2108 = vadd.f32 0.0, %v2107
      %v2109 = vpop.f32.mrb[0].mxu0
      %2110 = vmatprep.mubr.f32.mxu0 0.0
      %2111 = vmatmul.mubr.f32.gmra.mrb[0].mxu0 %v1517
      %v2112 = vpop.f32.mrb[0].mxu0
      %v2113 = vadd.f32 0.0, %v2112
      %v2114 = vpop.f32.mrb[0].mxu0
      %2115 = vmatprep.mubr.f32.mxu0 0.0
      %2116 = vmatmul.mubr.f32.gmra.mrb[0].mxu0 %v1520
      %v2117 = vpop.f32.mrb[0].mxu0
      %v2118 = vadd.f32 0.0, %v2117
      %v2119 = vpop.f32.mrb[0].mxu0
      %2120 = vmatprep.mubr.f32.mxu0 0.0
      %2121 = vmatmul.mubr.f32.gmra.mrb[0].mxu0 %v1523
      %v2122 = vpop.f32.mrb[0].mxu0
      %v2123 = vadd.f32 0.0, %v2122
      %v2124 = vpop.f32.mrb[0].mxu0
      %2125 = vmatprep.mubr.f32.mxu0 0.0
      %2126 = vmatmul.mubr.f32.gmra.mrb[0].mxu0 %v1526
      %v2127 = vpop.f32.mrb[0].mxu0
      %v2128 = vadd.f32 0.0, %v2127
      %v2129 = vpop.f32.mrb[0].mxu0
      %2130 = vmatprep.mubr.f32.mxu0 0.0
      %2131 = vmatmul.mubr.f32.gmra.mrb[0].mxu0 %v1529
      %v2132 = vpop.f32.mrb[0].mxu0
      %v2133 = vadd.f32 0.0, %v2132
      %v2134 = vpop.f32.mrb[0].mxu0
      %2135 = vmatprep.mubr.f32.mxu0 0.0
      %2136 = vmatmul.mubr.f32.gmra.mrb[0].mxu0 %v1532
      %v2137 = vpop.f32.mrb[0].mxu0
      %v2138 = vadd.f32 0.0, %v2137
      %v2139 = vpop.f32.mrb[0].mxu0
      %2140 = vmatprep.mubr.f32.mxu0 0.0
      %2141 = vmatmul.mubr.f32.gmra.mrb[0].mxu0 %v1535
      %v2142 = vpop.f32.mrb[0].mxu0
      %v2143 = vadd.f32 0.0, %v2142
      %v2144 = vpop.f32.mrb[0].mxu0
      %2145 = vmatprep.mubr.f32.mxu0 0.0
      %2146 = vmatmul.mubr.f32.gmra.mrb[0].mxu0 %v1538
      %v2147 = vpop.f32.mrb[0].mxu0
      %v2148 = vadd.f32 0.0, %v2147
      %v2149 = vpop.f32.mrb[0].mxu0
      %2150 = vmatprep.mubr.f32.mxu0 0.0
      %2151 = vmatmul.mubr.f32.gmra.mrb[0].mxu0 %v1541
      %v2152 = vpop.f32.mrb[0].mxu0
      %v2153 = vadd.f32 0.0, %v2152
      %v2154 = vpop.f32.mrb[0].mxu0
      %2155 = vmatprep.mubr.f32.mxu0 0.0
      %2156 = vmatmul.mubr.f32.gmra.mrb[0].mxu0 %v1544
      %v2157 = vpop.f32.mrb[0].mxu0
      %v2158 = vadd.f32 0.0, %v2157
      %v2159 = vpop.f32.mrb[0].mxu0
      %2160 = vmatprep.mubr.f32.mxu0 0.0
      %2161 = vmatmul.mubr.f32.gmra.mrb[0].mxu0 %v1547
      %v2162 = vpop.f32.mrb[0].mxu0
      %v2163 = vadd.f32 0.0, %v2162
      %v2164 = vpop.f32.mrb[0].mxu0
      %2165 = vmatprep.mubr.f32.mxu0 0.0
      %2166 = vmatmul.mubr.f32.gmra.mrb[0].mxu0 %v1550
      %v2167 = vpop.f32.mrb[0].mxu0
      %v2168 = vadd.f32 0.0, %v2167
      %v2169 = vpop.f32.mrb[0].mxu0
      %2170 = vmatprep.mubr.f32.mxu0 0.0
      %2171 = vmatmul.mubr.f32.gmra.mrb[0].mxu0 %v1553
      %v2172 = vpop.f32.mrb[0].mxu0
      %v2173 = vadd.f32 0.0, %v2172
      %v2174 = vpop.f32.mrb[0].mxu0
      %2175 = vmatprep.mubr.f32.mxu0 0.0
      %2176 = vmatmul.mubr.f32.gmra.mrb[0].mxu0 %v1556
      %v2177 = vpop.f32.mrb[0].mxu0
      %v2178 = vadd.f32 0.0, %v2177
      %v2179 = vpop.f32.mrb[0].mxu0
      %2180 = vmatprep.mubr.f32.mxu0 0.0
      %2181 = vmatmul.mubr.f32.gmra.mrb[0].mxu0 %v1559
      %v2182 = vpop.f32.mrb[0].mxu0
      %v2183 = vadd.f32 0.0, %v2182
      %v2184 = vpop.f32.mrb[0].mxu0
      %2185 = vmatprep.mubr.f32.mxu0 0.0
      %2186 = vmatmul.mubr.f32.gmra.mrb[0].mxu0 %v1562
      %v2187 = vpop.f32.mrb[0].mxu0
      %v2188 = vadd.f32 0.0, %v2187
      %v2189 = vpop.f32.mrb[0].mxu0
      %2190 = vmatprep.mubr.f32.mxu0 0.0
      %2191 = vmatmul.mubr.f32.gmra.mrb[0].mxu0 %v1565
      %v2192 = vpop.f32.mrb[0].mxu0
      %v2193 = vadd.f32 0.0, %v2192
      %v2194 = vpop.f32.mrb[0].mxu0
      %2195 = vmatprep.mubr.f32.mxu0 0.0
      %2196 = vmatmul.mubr.f32.gmra.mrb[0].mxu0 %v1568
      %v2197 = vpop.f32.mrb[0].mxu0
      %v2198 = vadd.f32 0.0, %v2197
      %v2199 = vpop.f32.mrb[0].mxu0
      %2200 = vmatprep.mubr.f32.mxu0 0.0
      %2201 = vmatmul.mubr.f32.gmra.mrb[0].mxu0 %v1571
      %v2202 = vpop.f32.mrb[0].mxu0
      %v2203 = vadd.f32 0.0, %v2202
      %v2204 = vpop.f32.mrb[0].mxu0
      %2205 = vmatprep.mubr.f32.mxu0 0.0
      %2206 = vmatmul.mubr.f32.gmra.mrb[0].mxu0 %v1574
      %v2207 = vpop.f32.mrb[0].mxu0
      %v2208 = vadd.f32 0.0, %v2207
      %v2209 = vpop.f32.mrb[0].mxu0
      %2210 = vmatprep.mubr.f32.mxu0 0.0
      %2211 = vmatmul.mubr.f32.gmra.mrb[0].mxu0 %v1577
      %v2212 = vpop.f32.mrb[0].mxu0
      %v2213 = vadd.f32 0.0, %v2212
      %v2214 = vpop.f32.mrb[0].mxu0
      %2215 = vmatprep.mubr.f32.mxu0 0.0
      %2216 = vmatmul.mubr.f32.gmra.mrb[0].mxu0 %v1580
      %v2217 = vpop.f32.mrb[0].mxu0
      %v2218 = vadd.f32 0.0, %v2217
      %v2219 = vpop.f32.mrb[0].mxu0
      %2220 = vmatprep.mubr.f32.mxu0 0.0
      %2221 = vmatmul.mubr.f32.gmra.mrb[0].mxu0 %v1583
      %v2222 = vpop.f32.mrb[0].mxu0
      %v2223 = vadd.f32 0.0, %v2222
      %v2224 = vpop.f32.mrb[0].mxu0
      %2225 = vmatprep.mubr.f32.mxu0 0.0
      %2226 = vmatmul.mubr.f32.gmra.mrb[0].mxu0 %v1586
      %v2227 = vpop.f32.mrb[0].mxu0
      %v2228 = vadd.f32 0.0, %v2227
      %v2229 = vpop.f32.mrb[0].mxu0
      %2230 = vmatprep.mubr.f32.mxu0 0.0
      %2231 = vmatmul.mubr.f32.gmra.mrb[0].mxu0 %v1589
      %v2232 = vpop.f32.mrb[0].mxu0
      %v2233 = vadd.f32 0.0, %v2232
      %v2234 = vpop.f32.mrb[0].mxu0
      %2235 = vmatprep.mubr.f32.mxu0 0.0
      %2236 = vmatmul.mubr.f32.gmra.mrb[0].mxu0 %v1592
      %v2237 = vpop.f32.mrb[0].mxu0
      %v2238 = vadd.f32 0.0, %v2237
      %v2239 = vpop.f32.mrb[0].mxu0
      %2240 = vmatprep.mubr.f32.mxu0 0.0
      %2241 = vmatmul.mubr.f32.gmra.mrb[0].mxu0 %v1595
      %v2242 = vpop.f32.mrb[0].mxu0
      %v2243 = vadd.f32 0.0, %v2242
      %v2244 = vpop.f32.mrb[0].mxu0
      %2245 = vmatprep.mubr.f32.mxu0 0.0
      %2246 = vmatmul.mubr.f32.gmra.mrb[0].mxu0 %v1598
      %v2247 = vpop.f32.mrb[0].mxu0
      %v2248 = vadd.f32 0.0, %v2247
      %v2249 = vpop.f32.mrb[0].mxu0
      %2250 = vmatprep.mubr.f32.mxu0 0.0
      %2251 = vmatmul.mubr.f32.gmra.mrb[0].mxu0 %v1601
      %v2252 = vpop.f32.mrb[0].mxu0
      %v2253 = vadd.f32 0.0, %v2252
      %v2254 = vpop.f32.mrb[0].mxu0
      %2255 = vmatprep.mubr.f32.mxu0 0.0
      %2256 = vmatmul.mubr.f32.gmra.mrb[0].mxu0 %v1604
      %v2257 = vpop.f32.mrb[0].mxu0
      %v2258 = vadd.f32 0.0, %v2257
      %v2259 = vpop.f32.mrb[0].mxu0
      %2260 = vmatprep.mubr.f32.mxu0 0.0
      %2261 = vmatmul.mubr.f32.gmra.mrb[0].mxu0 %v1607
      %v2262 = vpop.f32.mrb[0].mxu0
      %v2263 = vadd.f32 0.0, %v2262
      %v2264 = vpop.f32.mrb[0].mxu0
      %2265 = vmatprep.mubr.f32.mxu0 0.0
      %2266 = vmatmul.mubr.f32.gmra.mrb[0].mxu0 %v1610
      %v2267 = vpop.f32.mrb[0].mxu0
      %v2268 = vadd.f32 0.0, %v2267
      %v2269 = vpop.f32.mrb[0].mxu0
      %2270 = vmatprep.mubr.f32.mxu0 0.0
      %2271 = vmatmul.mubr.f32.gmra.mrb[0].mxu0 %v1613
      %v2272 = vpop.f32.mrb[0].mxu0
      %v2273 = vadd.f32 0.0, %v2272
      %v2274 = vpop.f32.mrb[0].mxu0
      %2275 = vmatprep.mubr.f32.mxu0 0.0
      %2276 = vmatmul.mubr.f32.gmra.mrb[0].mxu0 %v1616
      %v2277 = vpop.f32.mrb[0].mxu0
      %v2278 = vadd.f32 0.0, %v2277
      %v2279 = vpop.f32.mrb[0].mxu0
      %2280 = vmatprep.mubr.f32.mxu0 0.0
      %2281 = vmatmul.mubr.f32.gmra.mrb[0].mxu0 %v1619
      %v2282 = vpop.f32.mrb[0].mxu0
      %v2283 = vadd.f32 0.0, %v2282
      %v2284 = vpop.f32.mrb[0].mxu0
      %2285 = vmatprep.mubr.f32.mxu0 0.0
      %2286 = vmatmul.mubr.f32.gmra.mrb[0].mxu0 %v1622
      %v2287 = vpop.f32.mrb[0].mxu0
      %v2288 = vadd.f32 0.0, %v2287
      %v2289 = vpop.f32.mrb[0].mxu0
      %2290 = vmatprep.mubr.f32.mxu0 0.0
      %2291 = vmatmul.mubr.f32.gmra.mrb[0].mxu0 %v1625
      %v2292 = vpop.f32.mrb[0].mxu0
      %v2293 = vadd.f32 0.0, %v2292
      %v2294 = vpop.f32.mrb[0].mxu0
      %2295 = vmatprep.mubr.f32.mxu0 0.0
      %2296 = vmatmul.mubr.f32.gmra.mrb[0].mxu0 %v1628
      %v2297 = vpop.f32.mrb[0].mxu0
      %v2298 = vadd.f32 0.0, %v2297
      %v2299 = vpop.f32.mrb[0].mxu0
      %2300 = vmatprep.mubr.f32.mxu0 0.0
      %2301 = vmatmul.mubr.f32.gmra.mrb[0].mxu0 %v1631
      %v2302 = vpop.f32.mrb[0].mxu0
      %v2303 = vadd.f32 0.0, %v2302
      %v2304 = vpop.f32.mrb[0].mxu0
      %2305 = vmatprep.mubr.f32.mxu0 0.0
      %2306 = vmatmul.mubr.f32.gmra.mrb[0].mxu0 %v1634
      %v2307 = vpop.f32.mrb[0].mxu0
      %v2308 = vadd.f32 0.0, %v2307
      %v2309 = vpop.f32.mrb[0].mxu0
      %2310 = vmatprep.mubr.f32.mxu0 0.0
      %2311 = vmatmul.mubr.f32.gmra.mrb[0].mxu0 %v1637
      %v2312 = vpop.f32.mrb[0].mxu0
      %v2313 = vadd.f32 0.0, %v2312
      %v2314 = vpop.f32.mrb[0].mxu0
      %2315 = vmatprep.mubr.f32.mxu0 0.0
      %2316 = vmatmul.mubr.f32.gmra.mrb[0].mxu0 %v1640
      %v2317 = vpop.f32.mrb[0].mxu0
      %v2318 = vadd.f32 0.0, %v2317
      %v2319 = vpop.f32.mrb[0].mxu0
      %2320 = vmatprep.mubr.f32.mxu0 0.0
      %2321 = vmatmul.mubr.f32.gmra.mrb[0].mxu0 %v1643
      %v2322 = vpop.f32.mrb[0].mxu0
      %v2323 = vadd.f32 0.0, %v2322
      %v2324 = vpop.f32.mrb[0].mxu0
      %2325 = vmatprep.mubr.f32.mxu0 0.0
      %2326 = vmatmul.mubr.f32.gmra.mrb[0].mxu0 %v1646
      %v2327 = vpop.f32.mrb[0].mxu0
      %v2328 = vadd.f32 0.0, %v2327
      %v2329 = vpop.f32.mrb[0].mxu0
      %2330 = vmatprep.mubr.f32.mxu0 0.0
      %2331 = vmatmul.mubr.f32.gmra.mrb[0].mxu0 %v1649
      %v2332 = vpop.f32.mrb[0].mxu0
      %v2333 = vadd.f32 0.0, %v2332
      %v2334 = vpop.f32.mrb[0].mxu0
      %2335 = vmatprep.mubr.f32.mxu0 0.0
      %2336 = vmatmul.mubr.f32.gmra.mrb[0].mxu0 %v1652
      %v2337 = vpop.f32.mrb[0].mxu0
      %v2338 = vadd.f32 0.0, %v2337
      %v2339 = vpop.f32.mrb[0].mxu0
      %2340 = vmatprep.mubr.f32.mxu0 0.0
      %2341 = vmatmul.mubr.f32.gmra.mrb[0].mxu0 %v1655
      %v2342 = vpop.f32.mrb[0].mxu0
      %v2343 = vadd.f32 0.0, %v2342
      %v2344 = vpop.f32.mrb[0].mxu0
      %2345 = vmatprep.mubr.f32.mxu0 0.0
      %2346 = vmatmul.mubr.f32.gmra.mrb[0].mxu0 %v1658
      %v2347 = vpop.f32.mrb[0].mxu0
      %v2348 = vadd.f32 0.0, %v2347
      %v2349 = vpop.f32.mrb[0].mxu0
      %2350 = vmatprep.mubr.f32.mxu0 0.0
      %2351 = vmatmul.mubr.f32.gmra.mrb[0].mxu0 %v1661
      %v2352 = vpop.f32.mrb[0].mxu0
      %v2353 = vadd.f32 0.0, %v2352
      %v2354 = vpop.f32.mrb[0].mxu0
      %2355 = vmatprep.mubr.f32.mxu0 0.0
      %2356 = vmatmul.mubr.f32.gmra.mrb[0].mxu0 %v1664
      %v2357 = vpop.f32.mrb[0].mxu0
      %v2358 = vadd.f32 0.0, %v2357
      %v2359 = vpop.f32.mrb[0].mxu0
      %2360 = vmatprep.mubr.f32.mxu0 0.0
      %2361 = vmatmul.mubr.f32.gmra.mrb[0].mxu0 %v1667
      %v2362 = vpop.f32.mrb[0].mxu0
      %v2363 = vadd.f32 0.0, %v2362
      %v2364 = vpop.f32.mrb[0].mxu0
      %2365 = vmatprep.mubr.f32.mxu0 0.0
      %2366 = vmatmul.mubr.f32.gmra.mrb[0].mxu0 %v1670
      %v2367 = vpop.f32.mrb[0].mxu0
      %v2368 = vadd.f32 0.0, %v2367
      %v2369 = vpop.f32.mrb[0].mxu0
      %2370 = vmatprep.mubr.f32.mxu0 0.0
      %2371 = vmatmul.mubr.f32.gmra.mrb[0].mxu0 %v1673
      %v2372 = vpop.f32.mrb[0].mxu0
      %v2373 = vadd.f32 0.0, %v2372
      %v2374 = vpop.f32.mrb[0].mxu0
      %2375 = vmatprep.mubr.f32.mxu0 0.0
      %2376 = vmatmul.mubr.f32.gmra.mrb[0].mxu0 %v1676
      %v2377 = vpop.f32.mrb[0].mxu0
      %v2378 = vadd.f32 0.0, %v2377
      %v2379 = vpop.f32.mrb[0].mxu0
      %2380 = vmatprep.mubr.f32.mxu0 0.0
      %2381 = vmatmul.mubr.f32.gmra.mrb[0].mxu0 %v1679
      %v2382 = vpop.f32.mrb[0].mxu0
      %v2383 = vadd.f32 0.0, %v2382
      %v2384 = vpop.f32.mrb[0].mxu0
      %2385 = vdwg.mxu0
      %v2386 = vld [vmem:[%s3] sm:$0xff]
      %v2387 = vld [vmem:[%s3 + $0x8] sm:$0xff]
      %v2388 = vld [vmem:[%s3 + $0x10] sm:$0xff]
      %v2389 = vld [vmem:[%s3 + $0x18] sm:$0xff]
      %v2390 = vld [vmem:[%s3 + $0x20] sm:$0xff]
      %v2391 = vld [vmem:[%s3 + $0x28] sm:$0xff]
      %v2392 = vld [vmem:[%s3 + $0x30] sm:$0xff]
      %v2393 = vld [vmem:[%s3 + $0x38] sm:$0xff]
      %v2394 = vld [vmem:[%s3 + $0x40] sm:$0xff]
      %v2395 = vld [vmem:[%s3 + $0x48] sm:$0xff]
      %v2396 = vld [vmem:[%s3 + $0x50] sm:$0xff]
      %v2397 = vld [vmem:[%s3 + $0x58] sm:$0xff]
      %v2398 = vld [vmem:[%s3 + $0x60] sm:$0xff]
      %v2399 = vld [vmem:[%s3 + $0x68] sm:$0xff]
      %v2400 = vld [vmem:[%s3 + $0x70] sm:$0xff]
      %v2401 = vld [vmem:[%s3 + $0x78] sm:$0xff]
      %v2402 = vld [vmem:[%s3 + $0x80] sm:$0xff]
      %v2403 = vld [vmem:[%s3 + $0x88] sm:$0xff]
      %v2404 = vld [vmem:[%s3 + $0x90] sm:$0xff]
      %v2405 = vld [vmem:[%s3 + $0x98] sm:$0xff]
      %v2406 = vld [vmem:[%s3 + $0xa0] sm:$0xff]
      %v2407 = vld [vmem:[%s3 + $0xa8] sm:$0xff]
      %v2408 = vld [vmem:[%s3 + $0xb0] sm:$0xff]
      %v2409 = vld [vmem:[%s3 + $0xb8] sm:$0xff]
      %v2410 = vld [vmem:[%s3 + $0xc0] sm:$0xff]
      %v2411 = vld [vmem:[%s3 + $0xc8] sm:$0xff]
      %v2412 = vld [vmem:[%s3 + $0xd0] sm:$0xff]
      %v2413 = vld [vmem:[%s3 + $0xd8] sm:$0xff]
      %v2414 = vld [vmem:[%s3 + $0xe0] sm:$0xff]
      %v2415 = vld [vmem:[%s3 + $0xe8] sm:$0xff]
      %v2416 = vld [vmem:[%s3 + $0xf0] sm:$0xff]
      %v2417 = vld [vmem:[%s3 + $0xf8] sm:$0xff]
      %v2418 = vadd.f32 %v1748, %v2386
      %v2419 = vadd.f32 %v1753, %v2387
      %v2420 = vadd.f32 %v1758, %v2388
      %v2421 = vadd.f32 %v1763, %v2389
      %v2422 = vadd.f32 %v1768, %v2390
      %v2423 = vadd.f32 %v1773, %v2391
      %v2424 = vadd.f32 %v1778, %v2392
      %v2425 = vadd.f32 %v1783, %v2393
      %v2426 = vadd.f32 %v1788, %v2394
      %v2427 = vadd.f32 %v1793, %v2395
      %v2428 = vadd.f32 %v1798, %v2396
      %v2429 = vadd.f32 %v1803, %v2397
      %v2430 = vadd.f32 %v1808, %v2398
      %v2431 = vadd.f32 %v1813, %v2399
      %v2432 = vadd.f32 %v1818, %v2400
      %v2433 = vadd.f32 %v1823, %v2401
      %v2434 = vadd.f32 %v1828, %v2402
      %v2435 = vadd.f32 %v1833, %v2403
      %v2436 = vadd.f32 %v1838, %v2404
      %v2437 = vadd.f32 %v1843, %v2405
      %v2438 = vadd.f32 %v1848, %v2406
      %v2439 = vadd.f32 %v1853, %v2407
      %v2440 = vadd.f32 %v1858, %v2408
      %v2441 = vadd.f32 %v1863, %v2409
      %v2442 = vadd.f32 %v1868, %v2410
      %v2443 = vadd.f32 %v1873, %v2411
      %v2444 = vadd.f32 %v1878, %v2412
      %v2445 = vadd.f32 %v1883, %v2413
      %v2446 = vadd.f32 %v1888, %v2414
      %v2447 = vadd.f32 %v1893, %v2415
      %v2448 = vadd.f32 %v1898, %v2416
      %v2449 = vadd.f32 %v1903, %v2417
      %v2450 = vadd.f32 %v1908, %v2386
      %v2451 = vadd.f32 %v1913, %v2387
      %v2452 = vadd.f32 %v1918, %v2388
      %v2453 = vadd.f32 %v1923, %v2389
      %v2454 = vadd.f32 %v1928, %v2390
      %v2455 = vadd.f32 %v1933, %v2391
      %v2456 = vadd.f32 %v1938, %v2392
      %v2457 = vadd.f32 %v1943, %v2393
      %v2458 = vadd.f32 %v1948, %v2394
      %v2459 = vadd.f32 %v1953, %v2395
      %v2460 = vadd.f32 %v1958, %v2396
      %v2461 = vadd.f32 %v1963, %v2397
      %v2462 = vadd.f32 %v1968, %v2398
      %v2463 = vadd.f32 %v1973, %v2399
      %v2464 = vadd.f32 %v1978, %v2400
      %v2465 = vadd.f32 %v1983, %v2401
      %v2466 = vadd.f32 %v1988, %v2402
      %v2467 = vadd.f32 %v1993, %v2403
      %v2468 = vadd.f32 %v1998, %v2404
      %v2469 = vadd.f32 %v2003, %v2405
      %v2470 = vadd.f32 %v2008, %v2406
      %v2471 = vadd.f32 %v2013, %v2407
      %v2472 = vadd.f32 %v2018, %v2408
      %v2473 = vadd.f32 %v2023, %v2409
      %v2474 = vadd.f32 %v2028, %v2410
      %v2475 = vadd.f32 %v2033, %v2411
      %v2476 = vadd.f32 %v2038, %v2412
      %v2477 = vadd.f32 %v2043, %v2413
      %v2478 = vadd.f32 %v2048, %v2414
      %v2479 = vadd.f32 %v2053, %v2415
      %v2480 = vadd.f32 %v2058, %v2416
      %v2481 = vadd.f32 %v2063, %v2417
      %v2482 = vadd.f32 %v2068, %v2386
      %v2483 = vadd.f32 %v2073, %v2387
      %v2484 = vadd.f32 %v2078, %v2388
      %v2485 = vadd.f32 %v2083, %v2389
      %v2486 = vadd.f32 %v2088, %v2390
      %v2487 = vadd.f32 %v2093, %v2391
      %v2488 = vadd.f32 %v2098, %v2392
      %v2489 = vadd.f32 %v2103, %v2393
      %v2490 = vadd.f32 %v2108, %v2394
      %v2491 = vadd.f32 %v2113, %v2395
      %v2492 = vadd.f32 %v2118, %v2396
      %v2493 = vadd.f32 %v2123, %v2397
      %v2494 = vadd.f32 %v2128, %v2398
      %v2495 = vadd.f32 %v2133, %v2399
      %v2496 = vadd.f32 %v2138, %v2400
      %v2497 = vadd.f32 %v2143, %v2401
      %v2498 = vadd.f32 %v2148, %v2402
      %v2499 = vadd.f32 %v2153, %v2403
      %v2500 = vadd.f32 %v2158, %v2404
      %v2501 = vadd.f32 %v2163, %v2405
      %v2502 = vadd.f32 %v2168, %v2406
      %v2503 = vadd.f32 %v2173, %v2407
      %v2504 = vadd.f32 %v2178, %v2408
      %v2505 = vadd.f32 %v2183, %v2409
      %v2506 = vadd.f32 %v2188, %v2410
      %v2507 = vadd.f32 %v2193, %v2411
      %v2508 = vadd.f32 %v2198, %v2412
      %v2509 = vadd.f32 %v2203, %v2413
      %v2510 = vadd.f32 %v2208, %v2414
      %v2511 = vadd.f32 %v2213, %v2415
      %v2512 = vadd.f32 %v2218, %v2416
      %v2513 = vadd.f32 %v2223, %v2417
      %v2514 = vadd.f32 %v2228, %v2386
      %v2515 = vadd.f32 %v2233, %v2387
      %v2516 = vadd.f32 %v2238, %v2388
      %v2517 = vadd.f32 %v2243, %v2389
      %v2518 = vadd.f32 %v2248, %v2390
      %v2519 = vadd.f32 %v2253, %v2391
      %v2520 = vadd.f32 %v2258, %v2392
      %v2521 = vadd.f32 %v2263, %v2393
      %v2522 = vadd.f32 %v2268, %v2394
      %v2523 = vadd.f32 %v2273, %v2395
      %v2524 = vadd.f32 %v2278, %v2396
      %v2525 = vadd.f32 %v2283, %v2397
      %v2526 = vadd.f32 %v2288, %v2398
      %v2527 = vadd.f32 %v2293, %v2399
      %v2528 = vadd.f32 %v2298, %v2400
      %v2529 = vadd.f32 %v2303, %v2401
      %v2530 = vadd.f32 %v2308, %v2402
      %v2531 = vadd.f32 %v2313, %v2403
      %v2532 = vadd.f32 %v2318, %v2404
      %v2533 = vadd.f32 %v2323, %v2405
      %v2534 = vadd.f32 %v2328, %v2406
      %v2535 = vadd.f32 %v2333, %v2407
      %v2536 = vadd.f32 %v2338, %v2408
      %v2537 = vadd.f32 %v2343, %v2409
      %v2538 = vadd.f32 %v2348, %v2410
      %v2539 = vadd.f32 %v2353, %v2411
      %v2540 = vadd.f32 %v2358, %v2412
      %v2541 = vadd.f32 %v2363, %v2413
      %v2542 = vadd.f32 %v2368, %v2414
      %v2543 = vadd.f32 %v2373, %v2415
      %v2544 = vadd.f32 %v2378, %v2416
      %v2545 = vadd.f32 %v2383, %v2417
      %v2546 = vsel %vm343, %v2418, -inf
      %v2547 = vsel %vm343, %v2419, -inf
      %v2548 = vmax.f32 %v2546, %v2547
      %v2549 = vrot.slane %v2548, 4
      %v2550 = vmax.f32 %v2548, %v2549
      %v2551 = vrot.slane %v2550, 2
      %v2552 = vmax.f32 %v2550, %v2551
      %v2553 = vrot.slane %v2552, 1
      %v2554 = vmax.f32 %v2552, %v2553
      %v2555 = vsel %vm343, %v2420, -inf
      %v2556 = vsel %vm343, %v2421, -inf
      %v2557 = vmax.f32 %v2555, %v2556
      %v2558 = vrot.slane %v2557, 4
      %v2559 = vmax.f32 %v2557, %v2558
      %v2560 = vrot.slane %v2559, 2
      %v2561 = vmax.f32 %v2559, %v2560
      %v2562 = vrot.slane %v2561, 1
      %v2563 = vmax.f32 %v2561, %v2562
      %v2564 = vsel %vm343, %v2422, -inf
      %v2565 = vsel %vm343, %v2423, -inf
      %v2566 = vmax.f32 %v2564, %v2565
      %v2567 = vrot.slane %v2566, 4
      %v2568 = vmax.f32 %v2566, %v2567
      %v2569 = vrot.slane %v2568, 2
      %v2570 = vmax.f32 %v2568, %v2569
      %v2571 = vrot.slane %v2570, 1
      %v2572 = vmax.f32 %v2570, %v2571
      %v2573 = vsel %vm343, %v2424, -inf
      %v2574 = vsel %vm343, %v2425, -inf
      %v2575 = vmax.f32 %v2573, %v2574
      %v2576 = vrot.slane %v2575, 4
      %v2577 = vmax.f32 %v2575, %v2576
      %v2578 = vrot.slane %v2577, 2
      %v2579 = vmax.f32 %v2577, %v2578
      %v2580 = vrot.slane %v2579, 1
      %v2581 = vmax.f32 %v2579, %v2580
      %v2582 = vsel %vm343, %v2426, -inf
      %v2583 = vsel %vm343, %v2427, -inf
      %v2584 = vmax.f32 %v2582, %v2583
      %v2585 = vrot.slane %v2584, 4
      %v2586 = vmax.f32 %v2584, %v2585
      %v2587 = vrot.slane %v2586, 2
      %v2588 = vmax.f32 %v2586, %v2587
      %v2589 = vrot.slane %v2588, 1
      %v2590 = vmax.f32 %v2588, %v2589
      %v2591 = vsel %vm343, %v2428, -inf
      %v2592 = vsel %vm343, %v2429, -inf
      %v2593 = vmax.f32 %v2591, %v2592
      %v2594 = vrot.slane %v2593, 4
      %v2595 = vmax.f32 %v2593, %v2594
      %v2596 = vrot.slane %v2595, 2
      %v2597 = vmax.f32 %v2595, %v2596
      %v2598 = vrot.slane %v2597, 1
      %v2599 = vmax.f32 %v2597, %v2598
      %v2600 = vsel %vm343, %v2430, -inf
      %v2601 = vsel %vm343, %v2431, -inf
      %v2602 = vmax.f32 %v2600, %v2601
      %v2603 = vrot.slane %v2602, 4
      %v2604 = vmax.f32 %v2602, %v2603
      %v2605 = vrot.slane %v2604, 2
      %v2606 = vmax.f32 %v2604, %v2605
      %v2607 = vrot.slane %v2606, 1
      %v2608 = vmax.f32 %v2606, %v2607
      %v2609 = vsel %vm343, %v2432, -inf
      %v2610 = vsel %vm343, %v2433, -inf
      %v2611 = vmax.f32 %v2609, %v2610
      %v2612 = vrot.slane %v2611, 4
      %v2613 = vmax.f32 %v2611, %v2612
      %v2614 = vrot.slane %v2613, 2
      %v2615 = vmax.f32 %v2613, %v2614
      %v2616 = vrot.slane %v2615, 1
      %v2617 = vmax.f32 %v2615, %v2616
      %v2618 = vsel %vm343, %v2434, -inf
      %v2619 = vsel %vm343, %v2435, -inf
      %v2620 = vmax.f32 %v2618, %v2619
      %v2621 = vrot.slane %v2620, 4
      %v2622 = vmax.f32 %v2620, %v2621
      %v2623 = vrot.slane %v2622, 2
      %v2624 = vmax.f32 %v2622, %v2623
      %v2625 = vrot.slane %v2624, 1
      %v2626 = vmax.f32 %v2624, %v2625
      %v2627 = vsel %vm343, %v2436, -inf
      %v2628 = vsel %vm343, %v2437, -inf
      %v2629 = vmax.f32 %v2627, %v2628
      %v2630 = vrot.slane %v2629, 4
      %v2631 = vmax.f32 %v2629, %v2630
      %v2632 = vrot.slane %v2631, 2
      %v2633 = vmax.f32 %v2631, %v2632
      %v2634 = vrot.slane %v2633, 1
      %v2635 = vmax.f32 %v2633, %v2634
      %v2636 = vsel %vm343, %v2438, -inf
      %v2637 = vsel %vm343, %v2439, -inf
      %v2638 = vmax.f32 %v2636, %v2637
      %v2639 = vrot.slane %v2638, 4
      %v2640 = vmax.f32 %v2638, %v2639
      %v2641 = vrot.slane %v2640, 2
      %v2642 = vmax.f32 %v2640, %v2641
      %v2643 = vrot.slane %v2642, 1
      %v2644 = vmax.f32 %v2642, %v2643
      %v2645 = vsel %vm343, %v2440, -inf
      %v2646 = vsel %vm343, %v2441, -inf
      %v2647 = vmax.f32 %v2645, %v2646
      %v2648 = vrot.slane %v2647, 4
      %v2649 = vmax.f32 %v2647, %v2648
      %v2650 = vrot.slane %v2649, 2
      %v2651 = vmax.f32 %v2649, %v2650
      %v2652 = vrot.slane %v2651, 1
      %v2653 = vmax.f32 %v2651, %v2652
      %v2654 = vsel %vm343, %v2442, -inf
      %v2655 = vsel %vm343, %v2443, -inf
      %v2656 = vmax.f32 %v2654, %v2655
      %v2657 = vrot.slane %v2656, 4
      %v2658 = vmax.f32 %v2656, %v2657
      %v2659 = vrot.slane %v2658, 2
      %v2660 = vmax.f32 %v2658, %v2659
      %v2661 = vrot.slane %v2660, 1
      %v2662 = vmax.f32 %v2660, %v2661
      %v2663 = vsel %vm343, %v2444, -inf
      %v2664 = vsel %vm343, %v2445, -inf
      %v2665 = vmax.f32 %v2663, %v2664
      %v2666 = vrot.slane %v2665, 4
      %v2667 = vmax.f32 %v2665, %v2666
      %v2668 = vrot.slane %v2667, 2
      %v2669 = vmax.f32 %v2667, %v2668
      %v2670 = vrot.slane %v2669, 1
      %v2671 = vmax.f32 %v2669, %v2670
      %v2672 = vsel %vm343, %v2446, -inf
      %v2673 = vsel %vm343, %v2447, -inf
      %v2674 = vmax.f32 %v2672, %v2673
      %v2675 = vrot.slane %v2674, 4
      %v2676 = vmax.f32 %v2674, %v2675
      %v2677 = vrot.slane %v2676, 2
      %v2678 = vmax.f32 %v2676, %v2677
      %v2679 = vrot.slane %v2678, 1
      %v2680 = vmax.f32 %v2678, %v2679
      %v2681 = vsel %vm343, %v2448, -inf
      %v2682 = vsel %vm343, %v2449, -inf
      %v2683 = vmax.f32 %v2681, %v2682
      %v2684 = vrot.slane %v2683, 4
      %v2685 = vmax.f32 %v2683, %v2684
      %v2686 = vrot.slane %v2685, 2
      %v2687 = vmax.f32 %v2685, %v2686
      %v2688 = vrot.slane %v2687, 1
      %v2689 = vmax.f32 %v2687, %v2688
      %v2690 = vsel %vm343, %v2450, -inf
      %v2691 = vsel %vm343, %v2451, -inf
      %v2692 = vmax.f32 %v2690, %v2691
      %v2693 = vrot.slane %v2692, 4
      %v2694 = vmax.f32 %v2692, %v2693
      %v2695 = vrot.slane %v2694, 2
      %v2696 = vmax.f32 %v2694, %v2695
      %v2697 = vrot.slane %v2696, 1
      %v2698 = vmax.f32 %v2696, %v2697
      %v2699 = vsel %vm343, %v2452, -inf
      %v2700 = vsel %vm343, %v2453, -inf
      %v2701 = vmax.f32 %v2699, %v2700
      %v2702 = vrot.slane %v2701, 4
      %v2703 = vmax.f32 %v2701, %v2702
      %v2704 = vrot.slane %v2703, 2
      %v2705 = vmax.f32 %v2703, %v2704
      %v2706 = vrot.slane %v2705, 1
      %v2707 = vmax.f32 %v2705, %v2706
      %v2708 = vsel %vm343, %v2454, -inf
      %v2709 = vsel %vm343, %v2455, -inf
      %v2710 = vmax.f32 %v2708, %v2709
      %v2711 = vrot.slane %v2710, 4
      %v2712 = vmax.f32 %v2710, %v2711
      %v2713 = vrot.slane %v2712, 2
      %v2714 = vmax.f32 %v2712, %v2713
      %v2715 = vrot.slane %v2714, 1
      %v2716 = vmax.f32 %v2714, %v2715
      %v2717 = vsel %vm343, %v2456, -inf
      %v2718 = vsel %vm343, %v2457, -inf
      %v2719 = vmax.f32 %v2717, %v2718
      %v2720 = vrot.slane %v2719, 4
      %v2721 = vmax.f32 %v2719, %v2720
      %v2722 = vrot.slane %v2721, 2
      %v2723 = vmax.f32 %v2721, %v2722
      %v2724 = vrot.slane %v2723, 1
      %v2725 = vmax.f32 %v2723, %v2724
      %v2726 = vsel %vm343, %v2458, -inf
      %v2727 = vsel %vm343, %v2459, -inf
      %v2728 = vmax.f32 %v2726, %v2727
      %v2729 = vrot.slane %v2728, 4
      %v2730 = vmax.f32 %v2728, %v2729
      %v2731 = vrot.slane %v2730, 2
      %v2732 = vmax.f32 %v2730, %v2731
      %v2733 = vrot.slane %v2732, 1
      %v2734 = vmax.f32 %v2732, %v2733
      %v2735 = vsel %vm343, %v2460, -inf
      %v2736 = vsel %vm343, %v2461, -inf
      %v2737 = vmax.f32 %v2735, %v2736
      %v2738 = vrot.slane %v2737, 4
      %v2739 = vmax.f32 %v2737, %v2738
      %v2740 = vrot.slane %v2739, 2
      %v2741 = vmax.f32 %v2739, %v2740
      %v2742 = vrot.slane %v2741, 1
      %v2743 = vmax.f32 %v2741, %v2742
      %v2744 = vsel %vm343, %v2462, -inf
      %v2745 = vsel %vm343, %v2463, -inf
      %v2746 = vmax.f32 %v2744, %v2745
      %v2747 = vrot.slane %v2746, 4
      %v2748 = vmax.f32 %v2746, %v2747
      %v2749 = vrot.slane %v2748, 2
      %v2750 = vmax.f32 %v2748, %v2749
      %v2751 = vrot.slane %v2750, 1
      %v2752 = vmax.f32 %v2750, %v2751
      %v2753 = vsel %vm343, %v2464, -inf
      %v2754 = vsel %vm343, %v2465, -inf
      %v2755 = vmax.f32 %v2753, %v2754
      %v2756 = vrot.slane %v2755, 4
      %v2757 = vmax.f32 %v2755, %v2756
      %v2758 = vrot.slane %v2757, 2
      %v2759 = vmax.f32 %v2757, %v2758
      %v2760 = vrot.slane %v2759, 1
      %v2761 = vmax.f32 %v2759, %v2760
      %v2762 = vsel %vm343, %v2466, -inf
      %v2763 = vsel %vm343, %v2467, -inf
      %v2764 = vmax.f32 %v2762, %v2763
      %v2765 = vrot.slane %v2764, 4
      %v2766 = vmax.f32 %v2764, %v2765
      %v2767 = vrot.slane %v2766, 2
      %v2768 = vmax.f32 %v2766, %v2767
      %v2769 = vrot.slane %v2768, 1
      %v2770 = vmax.f32 %v2768, %v2769
      %v2771 = vsel %vm343, %v2468, -inf
      %v2772 = vsel %vm343, %v2469, -inf
      %v2773 = vmax.f32 %v2771, %v2772
      %v2774 = vrot.slane %v2773, 4
      %v2775 = vmax.f32 %v2773, %v2774
      %v2776 = vrot.slane %v2775, 2
      %v2777 = vmax.f32 %v2775, %v2776
      %v2778 = vrot.slane %v2777, 1
      %v2779 = vmax.f32 %v2777, %v2778
      %v2780 = vsel %vm343, %v2470, -inf
      %v2781 = vsel %vm343, %v2471, -inf
      %v2782 = vmax.f32 %v2780, %v2781
      %v2783 = vrot.slane %v2782, 4
      %v2784 = vmax.f32 %v2782, %v2783
      %v2785 = vrot.slane %v2784, 2
      %v2786 = vmax.f32 %v2784, %v2785
      %v2787 = vrot.slane %v2786, 1
      %v2788 = vmax.f32 %v2786, %v2787
      %v2789 = vsel %vm343, %v2472, -inf
      %v2790 = vsel %vm343, %v2473, -inf
      %v2791 = vmax.f32 %v2789, %v2790
      %v2792 = vrot.slane %v2791, 4
      %v2793 = vmax.f32 %v2791, %v2792
      %v2794 = vrot.slane %v2793, 2
      %v2795 = vmax.f32 %v2793, %v2794
      %v2796 = vrot.slane %v2795, 1
      %v2797 = vmax.f32 %v2795, %v2796
      %v2798 = vsel %vm343, %v2474, -inf
      %v2799 = vsel %vm343, %v2475, -inf
      %v2800 = vmax.f32 %v2798, %v2799
      %v2801 = vrot.slane %v2800, 4
      %v2802 = vmax.f32 %v2800, %v2801
      %v2803 = vrot.slane %v2802, 2
      %v2804 = vmax.f32 %v2802, %v2803
      %v2805 = vrot.slane %v2804, 1
      %v2806 = vmax.f32 %v2804, %v2805
      %v2807 = vsel %vm343, %v2476, -inf
      %v2808 = vsel %vm343, %v2477, -inf
      %v2809 = vmax.f32 %v2807, %v2808
      %v2810 = vrot.slane %v2809, 4
      %v2811 = vmax.f32 %v2809, %v2810
      %v2812 = vrot.slane %v2811, 2
      %v2813 = vmax.f32 %v2811, %v2812
      %v2814 = vrot.slane %v2813, 1
      %v2815 = vmax.f32 %v2813, %v2814
      %v2816 = vsel %vm343, %v2478, -inf
      %v2817 = vsel %vm343, %v2479, -inf
      %v2818 = vmax.f32 %v2816, %v2817
      %v2819 = vrot.slane %v2818, 4
      %v2820 = vmax.f32 %v2818, %v2819
      %v2821 = vrot.slane %v2820, 2
      %v2822 = vmax.f32 %v2820, %v2821
      %v2823 = vrot.slane %v2822, 1
      %v2824 = vmax.f32 %v2822, %v2823
      %v2825 = vsel %vm343, %v2480, -inf
      %v2826 = vsel %vm343, %v2481, -inf
      %v2827 = vmax.f32 %v2825, %v2826
      %v2828 = vrot.slane %v2827, 4
      %v2829 = vmax.f32 %v2827, %v2828
      %v2830 = vrot.slane %v2829, 2
      %v2831 = vmax.f32 %v2829, %v2830
      %v2832 = vrot.slane %v2831, 1
      %v2833 = vmax.f32 %v2831, %v2832
      %v2834 = vsel %vm343, %v2482, -inf
      %v2835 = vsel %vm343, %v2483, -inf
      %v2836 = vmax.f32 %v2834, %v2835
      %v2837 = vrot.slane %v2836, 4
      %v2838 = vmax.f32 %v2836, %v2837
      %v2839 = vrot.slane %v2838, 2
      %v2840 = vmax.f32 %v2838, %v2839
      %v2841 = vrot.slane %v2840, 1
      %v2842 = vmax.f32 %v2840, %v2841
      %v2843 = vsel %vm343, %v2484, -inf
      %v2844 = vsel %vm343, %v2485, -inf
      %v2845 = vmax.f32 %v2843, %v2844
      %v2846 = vrot.slane %v2845, 4
      %v2847 = vmax.f32 %v2845, %v2846
      %v2848 = vrot.slane %v2847, 2
      %v2849 = vmax.f32 %v2847, %v2848
      %v2850 = vrot.slane %v2849, 1
      %v2851 = vmax.f32 %v2849, %v2850
      %v2852 = vsel %vm343, %v2486, -inf
      %v2853 = vsel %vm343, %v2487, -inf
      %v2854 = vmax.f32 %v2852, %v2853
      %v2855 = vrot.slane %v2854, 4
      %v2856 = vmax.f32 %v2854, %v2855
      %v2857 = vrot.slane %v2856, 2
      %v2858 = vmax.f32 %v2856, %v2857
      %v2859 = vrot.slane %v2858, 1
      %v2860 = vmax.f32 %v2858, %v2859
      %v2861 = vsel %vm343, %v2488, -inf
      %v2862 = vsel %vm343, %v2489, -inf
      %v2863 = vmax.f32 %v2861, %v2862
      %v2864 = vrot.slane %v2863, 4
      %v2865 = vmax.f32 %v2863, %v2864
      %v2866 = vrot.slane %v2865, 2
      %v2867 = vmax.f32 %v2865, %v2866
      %v2868 = vrot.slane %v2867, 1
      %v2869 = vmax.f32 %v2867, %v2868
      %v2870 = vsel %vm343, %v2490, -inf
      %v2871 = vsel %vm343, %v2491, -inf
      %v2872 = vmax.f32 %v2870, %v2871
      %v2873 = vrot.slane %v2872, 4
      %v2874 = vmax.f32 %v2872, %v2873
      %v2875 = vrot.slane %v2874, 2
      %v2876 = vmax.f32 %v2874, %v2875
      %v2877 = vrot.slane %v2876, 1
      %v2878 = vmax.f32 %v2876, %v2877
      %v2879 = vsel %vm343, %v2492, -inf
      %v2880 = vsel %vm343, %v2493, -inf
      %v2881 = vmax.f32 %v2879, %v2880
      %v2882 = vrot.slane %v2881, 4
      %v2883 = vmax.f32 %v2881, %v2882
      %v2884 = vrot.slane %v2883, 2
      %v2885 = vmax.f32 %v2883, %v2884
      %v2886 = vrot.slane %v2885, 1
      %v2887 = vmax.f32 %v2885, %v2886
      %v2888 = vsel %vm343, %v2494, -inf
      %v2889 = vsel %vm343, %v2495, -inf
      %v2890 = vmax.f32 %v2888, %v2889
      %v2891 = vrot.slane %v2890, 4
      %v2892 = vmax.f32 %v2890, %v2891
      %v2893 = vrot.slane %v2892, 2
      %v2894 = vmax.f32 %v2892, %v2893
      %v2895 = vrot.slane %v2894, 1
      %v2896 = vmax.f32 %v2894, %v2895
      %v2897 = vsel %vm343, %v2496, -inf
      %v2898 = vsel %vm343, %v2497, -inf
      %v2899 = vmax.f32 %v2897, %v2898
      %v2900 = vrot.slane %v2899, 4
      %v2901 = vmax.f32 %v2899, %v2900
      %v2902 = vrot.slane %v2901, 2
      %v2903 = vmax.f32 %v2901, %v2902
      %v2904 = vrot.slane %v2903, 1
      %v2905 = vmax.f32 %v2903, %v2904
      %v2906 = vsel %vm343, %v2498, -inf
      %v2907 = vsel %vm343, %v2499, -inf
      %v2908 = vmax.f32 %v2906, %v2907
      %v2909 = vrot.slane %v2908, 4
      %v2910 = vmax.f32 %v2908, %v2909
      %v2911 = vrot.slane %v2910, 2
      %v2912 = vmax.f32 %v2910, %v2911
      %v2913 = vrot.slane %v2912, 1
      %v2914 = vmax.f32 %v2912, %v2913
      %v2915 = vsel %vm343, %v2500, -inf
      %v2916 = vsel %vm343, %v2501, -inf
      %v2917 = vmax.f32 %v2915, %v2916
      %v2918 = vrot.slane %v2917, 4
      %v2919 = vmax.f32 %v2917, %v2918
      %v2920 = vrot.slane %v2919, 2
      %v2921 = vmax.f32 %v2919, %v2920
      %v2922 = vrot.slane %v2921, 1
      %v2923 = vmax.f32 %v2921, %v2922
      %v2924 = vsel %vm343, %v2502, -inf
      %v2925 = vsel %vm343, %v2503, -inf
      %v2926 = vmax.f32 %v2924, %v2925
      %v2927 = vrot.slane %v2926, 4
      %v2928 = vmax.f32 %v2926, %v2927
      %v2929 = vrot.slane %v2928, 2
      %v2930 = vmax.f32 %v2928, %v2929
      %v2931 = vrot.slane %v2930, 1
      %v2932 = vmax.f32 %v2930, %v2931
      %v2933 = vsel %vm343, %v2504, -inf
      %v2934 = vsel %vm343, %v2505, -inf
      %v2935 = vmax.f32 %v2933, %v2934
      %v2936 = vrot.slane %v2935, 4
      %v2937 = vmax.f32 %v2935, %v2936
      %v2938 = vrot.slane %v2937, 2
      %v2939 = vmax.f32 %v2937, %v2938
      %v2940 = vrot.slane %v2939, 1
      %v2941 = vmax.f32 %v2939, %v2940
      %v2942 = vsel %vm343, %v2506, -inf
      %v2943 = vsel %vm343, %v2507, -inf
      %v2944 = vmax.f32 %v2942, %v2943
      %v2945 = vrot.slane %v2944, 4
      %v2946 = vmax.f32 %v2944, %v2945
      %v2947 = vrot.slane %v2946, 2
      %v2948 = vmax.f32 %v2946, %v2947
      %v2949 = vrot.slane %v2948, 1
      %v2950 = vmax.f32 %v2948, %v2949
      %v2951 = vsel %vm343, %v2508, -inf
      %v2952 = vsel %vm343, %v2509, -inf
      %v2953 = vmax.f32 %v2951, %v2952
      %v2954 = vrot.slane %v2953, 4
      %v2955 = vmax.f32 %v2953, %v2954
      %v2956 = vrot.slane %v2955, 2
      %v2957 = vmax.f32 %v2955, %v2956
      %v2958 = vrot.slane %v2957, 1
      %v2959 = vmax.f32 %v2957, %v2958
      %v2960 = vsel %vm343, %v2510, -inf
      %v2961 = vsel %vm343, %v2511, -inf
      %v2962 = vmax.f32 %v2960, %v2961
      %v2963 = vrot.slane %v2962, 4
      %v2964 = vmax.f32 %v2962, %v2963
      %v2965 = vrot.slane %v2964, 2
      %v2966 = vmax.f32 %v2964, %v2965
      %v2967 = vrot.slane %v2966, 1
      %v2968 = vmax.f32 %v2966, %v2967
      %v2969 = vsel %vm343, %v2512, -inf
      %v2970 = vsel %vm343, %v2513, -inf
      %v2971 = vmax.f32 %v2969, %v2970
      %v2972 = vrot.slane %v2971, 4
      %v2973 = vmax.f32 %v2971, %v2972
      %v2974 = vrot.slane %v2973, 2
      %v2975 = vmax.f32 %v2973, %v2974
      %v2976 = vrot.slane %v2975, 1
      %v2977 = vmax.f32 %v2975, %v2976
      %v2978 = vsel %vm343, %v2514, -inf
      %v2979 = vsel %vm343, %v2515, -inf
      %v2980 = vmax.f32 %v2978, %v2979
      %v2981 = vrot.slane %v2980, 4
      %v2982 = vmax.f32 %v2980, %v2981
      %v2983 = vrot.slane %v2982, 2
      %v2984 = vmax.f32 %v2982, %v2983
      %v2985 = vrot.slane %v2984, 1
      %v2986 = vmax.f32 %v2984, %v2985
      %v2987 = vsel %vm343, %v2516, -inf
      %v2988 = vsel %vm343, %v2517, -inf
      %v2989 = vmax.f32 %v2987, %v2988
      %v2990 = vrot.slane %v2989, 4
      %v2991 = vmax.f32 %v2989, %v2990
      %v2992 = vrot.slane %v2991, 2
      %v2993 = vmax.f32 %v2991, %v2992
      %v2994 = vrot.slane %v2993, 1
      %v2995 = vmax.f32 %v2993, %v2994
      %v2996 = vsel %vm343, %v2518, -inf
      %v2997 = vsel %vm343, %v2519, -inf
      %v2998 = vmax.f32 %v2996, %v2997
      %v2999 = vrot.slane %v2998, 4
      %v3000 = vmax.f32 %v2998, %v2999
      %v3001 = vrot.slane %v3000, 2
      %v3002 = vmax.f32 %v3000, %v3001
      %v3003 = vrot.slane %v3002, 1
      %v3004 = vmax.f32 %v3002, %v3003
      %v3005 = vsel %vm343, %v2520, -inf
      %v3006 = vsel %vm343, %v2521, -inf
      %v3007 = vmax.f32 %v3005, %v3006
      %v3008 = vrot.slane %v3007, 4
      %v3009 = vmax.f32 %v3007, %v3008
      %v3010 = vrot.slane %v3009, 2
      %v3011 = vmax.f32 %v3009, %v3010
      %v3012 = vrot.slane %v3011, 1
      %v3013 = vmax.f32 %v3011, %v3012
      %v3014 = vsel %vm343, %v2522, -inf
      %v3015 = vsel %vm343, %v2523, -inf
      %v3016 = vmax.f32 %v3014, %v3015
      %v3017 = vrot.slane %v3016, 4
      %v3018 = vmax.f32 %v3016, %v3017
      %v3019 = vrot.slane %v3018, 2
      %v3020 = vmax.f32 %v3018, %v3019
      %v3021 = vrot.slane %v3020, 1
      %v3022 = vmax.f32 %v3020, %v3021
      %v3023 = vsel %vm343, %v2524, -inf
      %v3024 = vsel %vm343, %v2525, -inf
      %v3025 = vmax.f32 %v3023, %v3024
      %v3026 = vrot.slane %v3025, 4
      %v3027 = vmax.f32 %v3025, %v3026
      %v3028 = vrot.slane %v3027, 2
      %v3029 = vmax.f32 %v3027, %v3028
      %v3030 = vrot.slane %v3029, 1
      %v3031 = vmax.f32 %v3029, %v3030
      %v3032 = vsel %vm343, %v2526, -inf
      %v3033 = vsel %vm343, %v2527, -inf
      %v3034 = vmax.f32 %v3032, %v3033
      %v3035 = vrot.slane %v3034, 4
      %v3036 = vmax.f32 %v3034, %v3035
      %v3037 = vrot.slane %v3036, 2
      %v3038 = vmax.f32 %v3036, %v3037
      %v3039 = vrot.slane %v3038, 1
      %v3040 = vmax.f32 %v3038, %v3039
      %v3041 = vsel %vm343, %v2528, -inf
      %v3042 = vsel %vm343, %v2529, -inf
      %v3043 = vmax.f32 %v3041, %v3042
      %v3044 = vrot.slane %v3043, 4
      %v3045 = vmax.f32 %v3043, %v3044
      %v3046 = vrot.slane %v3045, 2
      %v3047 = vmax.f32 %v3045, %v3046
      %v3048 = vrot.slane %v3047, 1
      %v3049 = vmax.f32 %v3047, %v3048
      %v3050 = vsel %vm343, %v2530, -inf
      %v3051 = vsel %vm343, %v2531, -inf
      %v3052 = vmax.f32 %v3050, %v3051
      %v3053 = vrot.slane %v3052, 4
      %v3054 = vmax.f32 %v3052, %v3053
      %v3055 = vrot.slane %v3054, 2
      %v3056 = vmax.f32 %v3054, %v3055
      %v3057 = vrot.slane %v3056, 1
      %v3058 = vmax.f32 %v3056, %v3057
      %v3059 = vsel %vm343, %v2532, -inf
      %v3060 = vsel %vm343, %v2533, -inf
      %v3061 = vmax.f32 %v3059, %v3060
      %v3062 = vrot.slane %v3061, 4
      %v3063 = vmax.f32 %v3061, %v3062
      %v3064 = vrot.slane %v3063, 2
      %v3065 = vmax.f32 %v3063, %v3064
      %v3066 = vrot.slane %v3065, 1
      %v3067 = vmax.f32 %v3065, %v3066
      %v3068 = vsel %vm343, %v2534, -inf
      %v3069 = vsel %vm343, %v2535, -inf
      %v3070 = vmax.f32 %v3068, %v3069
      %v3071 = vrot.slane %v3070, 4
      %v3072 = vmax.f32 %v3070, %v3071
      %v3073 = vrot.slane %v3072, 2
      %v3074 = vmax.f32 %v3072, %v3073
      %v3075 = vrot.slane %v3074, 1
      %v3076 = vmax.f32 %v3074, %v3075
      %v3077 = vsel %vm343, %v2536, -inf
      %v3078 = vsel %vm343, %v2537, -inf
      %v3079 = vmax.f32 %v3077, %v3078
      %v3080 = vrot.slane %v3079, 4
      %v3081 = vmax.f32 %v3079, %v3080
      %v3082 = vrot.slane %v3081, 2
      %v3083 = vmax.f32 %v3081, %v3082
      %v3084 = vrot.slane %v3083, 1
      %v3085 = vmax.f32 %v3083, %v3084
      %v3086 = vsel %vm343, %v2538, -inf
      %v3087 = vsel %vm343, %v2539, -inf
      %v3088 = vmax.f32 %v3086, %v3087
      %v3089 = vrot.slane %v3088, 4
      %v3090 = vmax.f32 %v3088, %v3089
      %v3091 = vrot.slane %v3090, 2
      %v3092 = vmax.f32 %v3090, %v3091
      %v3093 = vrot.slane %v3092, 1
      %v3094 = vmax.f32 %v3092, %v3093
      %v3095 = vsel %vm343, %v2540, -inf
      %v3096 = vsel %vm343, %v2541, -inf
      %v3097 = vmax.f32 %v3095, %v3096
      %v3098 = vrot.slane %v3097, 4
      %v3099 = vmax.f32 %v3097, %v3098
      %v3100 = vrot.slane %v3099, 2
      %v3101 = vmax.f32 %v3099, %v3100
      %v3102 = vrot.slane %v3101, 1
      %v3103 = vmax.f32 %v3101, %v3102
      %v3104 = vsel %vm343, %v2542, -inf
      %v3105 = vsel %vm343, %v2543, -inf
      %v3106 = vmax.f32 %v3104, %v3105
      %v3107 = vrot.slane %v3106, 4
      %v3108 = vmax.f32 %v3106, %v3107
      %v3109 = vrot.slane %v3108, 2
      %v3110 = vmax.f32 %v3108, %v3109
      %v3111 = vrot.slane %v3110, 1
      %v3112 = vmax.f32 %v3110, %v3111
      %v3113 = vsel %vm343, %v2544, -inf
      %v3114 = vsel %vm343, %v2545, -inf
      %v3115 = vmax.f32 %v3113, %v3114
      %v3116 = vrot.slane %v3115, 4
      %v3117 = vmax.f32 %v3115, %v3116
      %v3118 = vrot.slane %v3117, 2
      %v3119 = vmax.f32 %v3117, %v3118
      %v3120 = vrot.slane %v3119, 1
      %v3121 = vmax.f32 %v3119, %v3120
      %v3122 = vsub.f32 %v2418, %v2554
      %v3123 = vsub.f32 %v2419, %v2554
      %v3124 = vsub.f32 %v2420, %v2563
      %v3125 = vsub.f32 %v2421, %v2563
      %v3126 = vsub.f32 %v2422, %v2572
      %v3127 = vsub.f32 %v2423, %v2572
      %v3128 = vsub.f32 %v2424, %v2581
      %v3129 = vsub.f32 %v2425, %v2581
      %v3130 = vsub.f32 %v2426, %v2590
      %v3131 = vsub.f32 %v2427, %v2590
      %v3132 = vsub.f32 %v2428, %v2599
      %v3133 = vsub.f32 %v2429, %v2599
      %v3134 = vsub.f32 %v2430, %v2608
      %v3135 = vsub.f32 %v2431, %v2608
      %v3136 = vsub.f32 %v2432, %v2617
      %v3137 = vsub.f32 %v2433, %v2617
      %v3138 = vsub.f32 %v2434, %v2626
      %v3139 = vsub.f32 %v2435, %v2626
      %v3140 = vsub.f32 %v2436, %v2635
      %v3141 = vsub.f32 %v2437, %v2635
      %v3142 = vsub.f32 %v2438, %v2644
      %v3143 = vsub.f32 %v2439, %v2644
      %v3144 = vsub.f32 %v2440, %v2653
      %v3145 = vsub.f32 %v2441, %v2653
      %v3146 = vsub.f32 %v2442, %v2662
      %v3147 = vsub.f32 %v2443, %v2662
      %v3148 = vsub.f32 %v2444, %v2671
      %v3149 = vsub.f32 %v2445, %v2671
      %v3150 = vsub.f32 %v2446, %v2680
      %v3151 = vsub.f32 %v2447, %v2680
      %v3152 = vsub.f32 %v2448, %v2689
      %v3153 = vsub.f32 %v2449, %v2689
      %v3154 = vsub.f32 %v2450, %v2698
      %v3155 = vsub.f32 %v2451, %v2698
      %v3156 = vsub.f32 %v2452, %v2707
      %v3157 = vsub.f32 %v2453, %v2707
      %v3158 = vsub.f32 %v2454, %v2716
      %v3159 = vsub.f32 %v2455, %v2716
      %v3160 = vsub.f32 %v2456, %v2725
      %v3161 = vsub.f32 %v2457, %v2725
      %v3162 = vsub.f32 %v2458, %v2734
      %v3163 = vsub.f32 %v2459, %v2734
      %v3164 = vsub.f32 %v2460, %v2743
      %v3165 = vsub.f32 %v2461, %v2743
      %v3166 = vsub.f32 %v2462, %v2752
      %v3167 = vsub.f32 %v2463, %v2752
      %v3168 = vsub.f32 %v2464, %v2761
      %v3169 = vsub.f32 %v2465, %v2761
      %v3170 = vsub.f32 %v2466, %v2770
      %v3171 = vsub.f32 %v2467, %v2770
      %v3172 = vsub.f32 %v2468, %v2779
      %v3173 = vsub.f32 %v2469, %v2779
      %v3174 = vsub.f32 %v2470, %v2788
      %v3175 = vsub.f32 %v2471, %v2788
      %v3176 = vsub.f32 %v2472, %v2797
      %v3177 = vsub.f32 %v2473, %v2797
      %v3178 = vsub.f32 %v2474, %v2806
      %v3179 = vsub.f32 %v2475, %v2806
      %v3180 = vsub.f32 %v2476, %v2815
      %v3181 = vsub.f32 %v2477, %v2815
      %v3182 = vsub.f32 %v2478, %v2824
      %v3183 = vsub.f32 %v2479, %v2824
      %v3184 = vsub.f32 %v2480, %v2833
      %v3185 = vsub.f32 %v2481, %v2833
      %v3186 = vsub.f32 %v2482, %v2842
      %v3187 = vsub.f32 %v2483, %v2842
      %v3188 = vsub.f32 %v2484, %v2851
      %v3189 = vsub.f32 %v2485, %v2851
      %v3190 = vsub.f32 %v2486, %v2860
      %v3191 = vsub.f32 %v2487, %v2860
      %v3192 = vsub.f32 %v2488, %v2869
      %v3193 = vsub.f32 %v2489, %v2869
      %v3194 = vsub.f32 %v2490, %v2878
      %v3195 = vsub.f32 %v2491, %v2878
      %v3196 = vsub.f32 %v2492, %v2887
      %v3197 = vsub.f32 %v2493, %v2887
      %v3198 = vsub.f32 %v2494, %v2896
      %v3199 = vsub.f32 %v2495, %v2896
      %v3200 = vsub.f32 %v2496, %v2905
      %v3201 = vsub.f32 %v2497, %v2905
      %v3202 = vsub.f32 %v2498, %v2914
      %v3203 = vsub.f32 %v2499, %v2914
      %v3204 = vsub.f32 %v2500, %v2923
      %v3205 = vsub.f32 %v2501, %v2923
      %v3206 = vsub.f32 %v2502, %v2932
      %v3207 = vsub.f32 %v2503, %v2932
      %v3208 = vsub.f32 %v2504, %v2941
      %v3209 = vsub.f32 %v2505, %v2941
      %v3210 = vsub.f32 %v2506, %v2950
      %v3211 = vsub.f32 %v2507, %v2950
      %v3212 = vsub.f32 %v2508, %v2959
      %v3213 = vsub.f32 %v2509, %v2959
      %v3214 = vsub.f32 %v2510, %v2968
      %v3215 = vsub.f32 %v2511, %v2968
      %v3216 = vsub.f32 %v2512, %v2977
      %v3217 = vsub.f32 %v2513, %v2977
      %v3218 = vsub.f32 %v2514, %v2986
      %v3219 = vsub.f32 %v2515, %v2986
      %v3220 = vsub.f32 %v2516, %v2995
      %v3221 = vsub.f32 %v2517, %v2995
      %v3222 = vsub.f32 %v2518, %v3004
      %v3223 = vsub.f32 %v2519, %v3004
      %v3224 = vsub.f32 %v2520, %v3013
      %v3225 = vsub.f32 %v2521, %v3013
      %v3226 = vsub.f32 %v2522, %v3022
      %v3227 = vsub.f32 %v2523, %v3022
      %v3228 = vsub.f32 %v2524, %v3031
      %v3229 = vsub.f32 %v2525, %v3031
      %v3230 = vsub.f32 %v2526, %v3040
      %v3231 = vsub.f32 %v2527, %v3040
      %v3232 = vsub.f32 %v2528, %v3049
      %v3233 = vsub.f32 %v2529, %v3049
      %v3234 = vsub.f32 %v2530, %v3058
      %v3235 = vsub.f32 %v2531, %v3058
      %v3236 = vsub.f32 %v2532, %v3067
      %v3237 = vsub.f32 %v2533, %v3067
      %v3238 = vsub.f32 %v2534, %v3076
      %v3239 = vsub.f32 %v2535, %v3076
      %v3240 = vsub.f32 %v2536, %v3085
      %v3241 = vsub.f32 %v2537, %v3085
      %v3242 = vsub.f32 %v2538, %v3094
      %v3243 = vsub.f32 %v2539, %v3094
      %v3244 = vsub.f32 %v2540, %v3103
      %v3245 = vsub.f32 %v2541, %v3103
      %v3246 = vsub.f32 %v2542, %v3112
      %v3247 = vsub.f32 %v2543, %v3112
      %v3248 = vsub.f32 %v2544, %v3121
      %v3249 = vsub.f32 %v2545, %v3121
      %v3250 = vmul.f32 %v3122, 1.442695
      %v3251 = vpow.pop %v3250
      %v3252 = vmul.f32 %v3123, 1.442695
      %v3253 = vpow.pop %v3252
      %v3254 = vmul.f32 %v3124, 1.442695
      %v3255 = vpow.pop %v3254
      %v3256 = vmul.f32 %v3125, 1.442695
      %v3257 = vpow.pop %v3256
      %v3258 = vmul.f32 %v3126, 1.442695
      %v3259 = vpow.pop %v3258
      %v3260 = vmul.f32 %v3127, 1.442695
      %v3261 = vpow.pop %v3260
      %v3262 = vmul.f32 %v3128, 1.442695
      %v3263 = vpow.pop %v3262
      %v3264 = vmul.f32 %v3129, 1.442695
      %v3265 = vpow.pop %v3264
      %v3266 = vmul.f32 %v3130, 1.442695
      %v3267 = vpow.pop %v3266
      %v3268 = vmul.f32 %v3131, 1.442695
      %v3269 = vpow.pop %v3268
      %v3270 = vmul.f32 %v3132, 1.442695
      %v3271 = vpow.pop %v3270
      %v3272 = vmul.f32 %v3133, 1.442695
      %v3273 = vpow.pop %v3272
      %v3274 = vmul.f32 %v3134, 1.442695
      %v3275 = vpow.pop %v3274
      %v3276 = vmul.f32 %v3135, 1.442695
      %v3277 = vpow.pop %v3276
      %v3278 = vmul.f32 %v3136, 1.442695
      %v3279 = vpow.pop %v3278
      %v3280 = vmul.f32 %v3137, 1.442695
      %v3281 = vpow.pop %v3280
      %v3282 = vmul.f32 %v3138, 1.442695
      %v3283 = vpow.pop %v3282
      %v3284 = vmul.f32 %v3139, 1.442695
      %v3285 = vpow.pop %v3284
      %v3286 = vmul.f32 %v3140, 1.442695
      %v3287 = vpow.pop %v3286
      %v3288 = vmul.f32 %v3141, 1.442695
      %v3289 = vpow.pop %v3288
      %v3290 = vmul.f32 %v3142, 1.442695
      %v3291 = vpow.pop %v3290
      %v3292 = vmul.f32 %v3143, 1.442695
      %v3293 = vpow.pop %v3292
      %v3294 = vmul.f32 %v3144, 1.442695
      %v3295 = vpow.pop %v3294
      %v3296 = vmul.f32 %v3145, 1.442695
      %v3297 = vpow.pop %v3296
      %v3298 = vmul.f32 %v3146, 1.442695
      %v3299 = vpow.pop %v3298
      %v3300 = vmul.f32 %v3147, 1.442695
      %v3301 = vpow.pop %v3300
      %v3302 = vmul.f32 %v3148, 1.442695
      %v3303 = vpow.pop %v3302
      %v3304 = vmul.f32 %v3149, 1.442695
      %v3305 = vpow.pop %v3304
      %v3306 = vmul.f32 %v3150, 1.442695
      %v3307 = vpow.pop %v3306
      %v3308 = vmul.f32 %v3151, 1.442695
      %v3309 = vpow.pop %v3308
      %v3310 = vmul.f32 %v3152, 1.442695
      %v3311 = vpow.pop %v3310
      %v3312 = vmul.f32 %v3153, 1.442695
      %v3313 = vpow.pop %v3312
      %v3314 = vmul.f32 %v3154, 1.442695
      %v3315 = vpow.pop %v3314
      %v3316 = vmul.f32 %v3155, 1.442695
      %v3317 = vpow.pop %v3316
      %v3318 = vmul.f32 %v3156, 1.442695
      %v3319 = vpow.pop %v3318
      %v3320 = vmul.f32 %v3157, 1.442695
      %v3321 = vpow.pop %v3320
      %v3322 = vmul.f32 %v3158, 1.442695
      %v3323 = vpow.pop %v3322
      %v3324 = vmul.f32 %v3159, 1.442695
      %v3325 = vpow.pop %v3324
      %v3326 = vmul.f32 %v3160, 1.442695
      %v3327 = vpow.pop %v3326
      %v3328 = vmul.f32 %v3161, 1.442695
      %v3329 = vpow.pop %v3328
      %v3330 = vmul.f32 %v3162, 1.442695
      %v3331 = vpow.pop %v3330
      %v3332 = vmul.f32 %v3163, 1.442695
      %v3333 = vpow.pop %v3332
      %v3334 = vmul.f32 %v3164, 1.442695
      %v3335 = vpow.pop %v3334
      %v3336 = vmul.f32 %v3165, 1.442695
      %v3337 = vpow.pop %v3336
      %v3338 = vmul.f32 %v3166, 1.442695
      %v3339 = vpow.pop %v3338
      %v3340 = vmul.f32 %v3167, 1.442695
      %v3341 = vpow.pop %v3340
      %v3342 = vmul.f32 %v3168, 1.442695
      %v3343 = vpow.pop %v3342
      %v3344 = vmul.f32 %v3169, 1.442695
      %v3345 = vpow.pop %v3344
      %v3346 = vmul.f32 %v3170, 1.442695
      %v3347 = vpow.pop %v3346
      %v3348 = vmul.f32 %v3171, 1.442695
      %v3349 = vpow.pop %v3348
      %v3350 = vmul.f32 %v3172, 1.442695
      %v3351 = vpow.pop %v3350
      %v3352 = vmul.f32 %v3173, 1.442695
      %v3353 = vpow.pop %v3352
      %v3354 = vmul.f32 %v3174, 1.442695
      %v3355 = vpow.pop %v3354
      %v3356 = vmul.f32 %v3175, 1.442695
      %v3357 = vpow.pop %v3356
      %v3358 = vmul.f32 %v3176, 1.442695
      %v3359 = vpow.pop %v3358
      %v3360 = vmul.f32 %v3177, 1.442695
      %v3361 = vpow.pop %v3360
      %v3362 = vmul.f32 %v3178, 1.442695
      %v3363 = vpow.pop %v3362
      %v3364 = vmul.f32 %v3179, 1.442695
      %v3365 = vpow.pop %v3364
      %v3366 = vmul.f32 %v3180, 1.442695
      %v3367 = vpow.pop %v3366
      %v3368 = vmul.f32 %v3181, 1.442695
      %v3369 = vpow.pop %v3368
      %v3370 = vmul.f32 %v3182, 1.442695
      %v3371 = vpow.pop %v3370
      %v3372 = vmul.f32 %v3183, 1.442695
      %v3373 = vpow.pop %v3372
      %v3374 = vmul.f32 %v3184, 1.442695
      %v3375 = vpow.pop %v3374
      %v3376 = vmul.f32 %v3185, 1.442695
      %v3377 = vpow.pop %v3376
      %v3378 = vmul.f32 %v3186, 1.442695
      %v3379 = vpow.pop %v3378
      %v3380 = vmul.f32 %v3187, 1.442695
      %v3381 = vpow.pop %v3380
      %v3382 = vmul.f32 %v3188, 1.442695
      %v3383 = vpow.pop %v3382
      %v3384 = vmul.f32 %v3189, 1.442695
      %v3385 = vpow.pop %v3384
      %v3386 = vmul.f32 %v3190, 1.442695
      %v3387 = vpow.pop %v3386
      %v3388 = vmul.f32 %v3191, 1.442695
      %v3389 = vpow.pop %v3388
      %v3390 = vmul.f32 %v3192, 1.442695
      %v3391 = vpow.pop %v3390
      %v3392 = vmul.f32 %v3193, 1.442695
      %v3393 = vpow.pop %v3392
      %v3394 = vmul.f32 %v3194, 1.442695
      %v3395 = vpow.pop %v3394
      %v3396 = vmul.f32 %v3195, 1.442695
      %v3397 = vpow.pop %v3396
      %v3398 = vmul.f32 %v3196, 1.442695
      %v3399 = vpow.pop %v3398
      %v3400 = vmul.f32 %v3197, 1.442695
      %v3401 = vpow.pop %v3400
      %v3402 = vmul.f32 %v3198, 1.442695
      %v3403 = vpow.pop %v3402
      %v3404 = vmul.f32 %v3199, 1.442695
      %v3405 = vpow.pop %v3404
      %v3406 = vmul.f32 %v3200, 1.442695
      %v3407 = vpow.pop %v3406
      %v3408 = vmul.f32 %v3201, 1.442695
      %v3409 = vpow.pop %v3408
      %v3410 = vmul.f32 %v3202, 1.442695
      %v3411 = vpow.pop %v3410
      %v3412 = vmul.f32 %v3203, 1.442695
      %v3413 = vpow.pop %v3412
      %v3414 = vmul.f32 %v3204, 1.442695
      %v3415 = vpow.pop %v3414
      %v3416 = vmul.f32 %v3205, 1.442695
      %v3417 = vpow.pop %v3416
      %v3418 = vmul.f32 %v3206, 1.442695
      %v3419 = vpow.pop %v3418
      %v3420 = vmul.f32 %v3207, 1.442695
      %v3421 = vpow.pop %v3420
      %v3422 = vmul.f32 %v3208, 1.442695
      %v3423 = vpow.pop %v3422
      %v3424 = vmul.f32 %v3209, 1.442695
      %v3425 = vpow.pop %v3424
      %v3426 = vmul.f32 %v3210, 1.442695
      %v3427 = vpow.pop %v3426
      %v3428 = vmul.f32 %v3211, 1.442695
      %v3429 = vpow.pop %v3428
      %v3430 = vmul.f32 %v3212, 1.442695
      %v3431 = vpow.pop %v3430
      %v3432 = vmul.f32 %v3213, 1.442695
      %v3433 = vpow.pop %v3432
      %v3434 = vmul.f32 %v3214, 1.442695
      %v3435 = vpow.pop %v3434
      %v3436 = vmul.f32 %v3215, 1.442695
      %v3437 = vpow.pop %v3436
      %v3438 = vmul.f32 %v3216, 1.442695
      %v3439 = vpow.pop %v3438
      %v3440 = vmul.f32 %v3217, 1.442695
      %v3441 = vpow.pop %v3440
      %v3442 = vmul.f32 %v3218, 1.442695
      %v3443 = vpow.pop %v3442
      %v3444 = vmul.f32 %v3219, 1.442695
      %v3445 = vpow.pop %v3444
      %v3446 = vmul.f32 %v3220, 1.442695
      %v3447 = vpow.pop %v3446
      %v3448 = vmul.f32 %v3221, 1.442695
      %v3449 = vpow.pop %v3448
      %v3450 = vmul.f32 %v3222, 1.442695
      %v3451 = vpow.pop %v3450
      %v3452 = vmul.f32 %v3223, 1.442695
      %v3453 = vpow.pop %v3452
      %v3454 = vmul.f32 %v3224, 1.442695
      %v3455 = vpow.pop %v3454
      %v3456 = vmul.f32 %v3225, 1.442695
      %v3457 = vpow.pop %v3456
      %v3458 = vmul.f32 %v3226, 1.442695
      %v3459 = vpow.pop %v3458
      %v3460 = vmul.f32 %v3227, 1.442695
      %v3461 = vpow.pop %v3460
      %v3462 = vmul.f32 %v3228, 1.442695
      %v3463 = vpow.pop %v3462
      %v3464 = vmul.f32 %v3229, 1.442695
      %v3465 = vpow.pop %v3464
      %v3466 = vmul.f32 %v3230, 1.442695
      %v3467 = vpow.pop %v3466
      %v3468 = vmul.f32 %v3231, 1.442695
      %v3469 = vpow.pop %v3468
      %v3470 = vmul.f32 %v3232, 1.442695
      %v3471 = vpow.pop %v3470
      %v3472 = vmul.f32 %v3233, 1.442695
      %v3473 = vpow.pop %v3472
      %v3474 = vmul.f32 %v3234, 1.442695
      %v3475 = vpow.pop %v3474
      %v3476 = vmul.f32 %v3235, 1.442695
      %v3477 = vpow.pop %v3476
      %v3478 = vmul.f32 %v3236, 1.442695
      %v3479 = vpow.pop %v3478
      %v3480 = vmul.f32 %v3237, 1.442695
      %v3481 = vpow.pop %v3480
      %v3482 = vmul.f32 %v3238, 1.442695
      %v3483 = vpow.pop %v3482
      %v3484 = vmul.f32 %v3239, 1.442695
      %v3485 = vpow.pop %v3484
      %v3486 = vmul.f32 %v3240, 1.442695
      %v3487 = vpow.pop %v3486
      %v3488 = vmul.f32 %v3241, 1.442695
      %v3489 = vpow.pop %v3488
      %v3490 = vmul.f32 %v3242, 1.442695
      %v3491 = vpow.pop %v3490
      %v3492 = vmul.f32 %v3243, 1.442695
      %v3493 = vpow.pop %v3492
      %v3494 = vmul.f32 %v3244, 1.442695
      %v3495 = vpow.pop %v3494
      %v3496 = vmul.f32 %v3245, 1.442695
      %v3497 = vpow.pop %v3496
      %v3498 = vmul.f32 %v3246, 1.442695
      %v3499 = vpow.pop %v3498
      %v3500 = vmul.f32 %v3247, 1.442695
      %v3501 = vpow.pop %v3500
      %v3502 = vmul.f32 %v3248, 1.442695
      %v3503 = vpow.pop %v3502
      %v3504 = vmul.f32 %v3249, 1.442695
      %v3505 = vpow.pop %v3504
      %v3506 = vsel %vm343, %v3251, 0.0
      %v3507 = vsel %vm343, %v3253, 0.0
      %v3508 = vadd.f32 %v3506, %v3507
      %v3509 = vrot.slane %v3508, 4
      %v3510 = vadd.f32 %v3508, %v3509
      %v3511 = vrot.slane %v3510, 2
      %v3512 = vadd.f32 %v3510, %v3511
      %v3513 = vrot.slane %v3512, 1
      %v3514 = vadd.f32 %v3512, %v3513
      %v3515 = vsel %vm343, %v3255, 0.0
      %v3516 = vsel %vm343, %v3257, 0.0
      %v3517 = vadd.f32 %v3515, %v3516
      %v3518 = vrot.slane %v3517, 4
      %v3519 = vadd.f32 %v3517, %v3518
      %v3520 = vrot.slane %v3519, 2
      %v3521 = vadd.f32 %v3519, %v3520
      %v3522 = vrot.slane %v3521, 1
      %v3523 = vadd.f32 %v3521, %v3522
      %v3524 = vsel %vm343, %v3259, 0.0
      %v3525 = vsel %vm343, %v3261, 0.0
      %v3526 = vadd.f32 %v3524, %v3525
      %v3527 = vrot.slane %v3526, 4
      %v3528 = vadd.f32 %v3526, %v3527
      %v3529 = vrot.slane %v3528, 2
      %v3530 = vadd.f32 %v3528, %v3529
      %v3531 = vrot.slane %v3530, 1
      %v3532 = vadd.f32 %v3530, %v3531
      %v3533 = vsel %vm343, %v3263, 0.0
      %v3534 = vsel %vm343, %v3265, 0.0
      %v3535 = vadd.f32 %v3533, %v3534
      %v3536 = vrot.slane %v3535, 4
      %v3537 = vadd.f32 %v3535, %v3536
      %v3538 = vrot.slane %v3537, 2
      %v3539 = vadd.f32 %v3537, %v3538
      %v3540 = vrot.slane %v3539, 1
      %v3541 = vadd.f32 %v3539, %v3540
      %v3542 = vsel %vm343, %v3267, 0.0
      %v3543 = vsel %vm343, %v3269, 0.0
      %v3544 = vadd.f32 %v3542, %v3543
      %v3545 = vrot.slane %v3544, 4
      %v3546 = vadd.f32 %v3544, %v3545
      %v3547 = vrot.slane %v3546, 2
      %v3548 = vadd.f32 %v3546, %v3547
      %v3549 = vrot.slane %v3548, 1
      %v3550 = vadd.f32 %v3548, %v3549
      %v3551 = vsel %vm343, %v3271, 0.0
      %v3552 = vsel %vm343, %v3273, 0.0
      %v3553 = vadd.f32 %v3551, %v3552
      %v3554 = vrot.slane %v3553, 4
      %v3555 = vadd.f32 %v3553, %v3554
      %v3556 = vrot.slane %v3555, 2
      %v3557 = vadd.f32 %v3555, %v3556
      %v3558 = vrot.slane %v3557, 1
      %v3559 = vadd.f32 %v3557, %v3558
      %v3560 = vsel %vm343, %v3275, 0.0
      %v3561 = vsel %vm343, %v3277, 0.0
      %v3562 = vadd.f32 %v3560, %v3561
      %v3563 = vrot.slane %v3562, 4
      %v3564 = vadd.f32 %v3562, %v3563
      %v3565 = vrot.slane %v3564, 2
      %v3566 = vadd.f32 %v3564, %v3565
      %v3567 = vrot.slane %v3566, 1
      %v3568 = vadd.f32 %v3566, %v3567
      %v3569 = vsel %vm343, %v3279, 0.0
      %v3570 = vsel %vm343, %v3281, 0.0
      %v3571 = vadd.f32 %v3569, %v3570
      %v3572 = vrot.slane %v3571, 4
      %v3573 = vadd.f32 %v3571, %v3572
      %v3574 = vrot.slane %v3573, 2
      %v3575 = vadd.f32 %v3573, %v3574
      %v3576 = vrot.slane %v3575, 1
      %v3577 = vadd.f32 %v3575, %v3576
      %v3578 = vsel %vm343, %v3283, 0.0
      %v3579 = vsel %vm343, %v3285, 0.0
      %v3580 = vadd.f32 %v3578, %v3579
      %v3581 = vrot.slane %v3580, 4
      %v3582 = vadd.f32 %v3580, %v3581
      %v3583 = vrot.slane %v3582, 2
      %v3584 = vadd.f32 %v3582, %v3583
      %v3585 = vrot.slane %v3584, 1
      %v3586 = vadd.f32 %v3584, %v3585
      %v3587 = vsel %vm343, %v3287, 0.0
      %v3588 = vsel %vm343, %v3289, 0.0
      %v3589 = vadd.f32 %v3587, %v3588
      %v3590 = vrot.slane %v3589, 4
      %v3591 = vadd.f32 %v3589, %v3590
      %v3592 = vrot.slane %v3591, 2
      %v3593 = vadd.f32 %v3591, %v3592
      %v3594 = vrot.slane %v3593, 1
      %v3595 = vadd.f32 %v3593, %v3594
      %v3596 = vsel %vm343, %v3291, 0.0
      %v3597 = vsel %vm343, %v3293, 0.0
      %v3598 = vadd.f32 %v3596, %v3597
      %v3599 = vrot.slane %v3598, 4
      %v3600 = vadd.f32 %v3598, %v3599
      %v3601 = vrot.slane %v3600, 2
      %v3602 = vadd.f32 %v3600, %v3601
      %v3603 = vrot.slane %v3602, 1
      %v3604 = vadd.f32 %v3602, %v3603
      %v3605 = vsel %vm343, %v3295, 0.0
      %v3606 = vsel %vm343, %v3297, 0.0
      %v3607 = vadd.f32 %v3605, %v3606
      %v3608 = vrot.slane %v3607, 4
      %v3609 = vadd.f32 %v3607, %v3608
      %v3610 = vrot.slane %v3609, 2
      %v3611 = vadd.f32 %v3609, %v3610
      %v3612 = vrot.slane %v3611, 1
      %v3613 = vadd.f32 %v3611, %v3612
      %v3614 = vsel %vm343, %v3299, 0.0
      %v3615 = vsel %vm343, %v3301, 0.0
      %v3616 = vadd.f32 %v3614, %v3615
      %v3617 = vrot.slane %v3616, 4
      %v3618 = vadd.f32 %v3616, %v3617
      %v3619 = vrot.slane %v3618, 2
      %v3620 = vadd.f32 %v3618, %v3619
      %v3621 = vrot.slane %v3620, 1
      %v3622 = vadd.f32 %v3620, %v3621
      %v3623 = vsel %vm343, %v3303, 0.0
      %v3624 = vsel %vm343, %v3305, 0.0
      %v3625 = vadd.f32 %v3623, %v3624
      %v3626 = vrot.slane %v3625, 4
      %v3627 = vadd.f32 %v3625, %v3626
      %v3628 = vrot.slane %v3627, 2
      %v3629 = vadd.f32 %v3627, %v3628
      %v3630 = vrot.slane %v3629, 1
      %v3631 = vadd.f32 %v3629, %v3630
      %v3632 = vsel %vm343, %v3307, 0.0
      %v3633 = vsel %vm343, %v3309, 0.0
      %v3634 = vadd.f32 %v3632, %v3633
      %v3635 = vrot.slane %v3634, 4
      %v3636 = vadd.f32 %v3634, %v3635
      %v3637 = vrot.slane %v3636, 2
      %v3638 = vadd.f32 %v3636, %v3637
      %v3639 = vrot.slane %v3638, 1
      %v3640 = vadd.f32 %v3638, %v3639
      %v3641 = vsel %vm343, %v3311, 0.0
      %v3642 = vsel %vm343, %v3313, 0.0
      %v3643 = vadd.f32 %v3641, %v3642
      %v3644 = vrot.slane %v3643, 4
      %v3645 = vadd.f32 %v3643, %v3644
      %v3646 = vrot.slane %v3645, 2
      %v3647 = vadd.f32 %v3645, %v3646
      %v3648 = vrot.slane %v3647, 1
      %v3649 = vadd.f32 %v3647, %v3648
      %v3650 = vsel %vm343, %v3315, 0.0
      %v3651 = vsel %vm343, %v3317, 0.0
      %v3652 = vadd.f32 %v3650, %v3651
      %v3653 = vrot.slane %v3652, 4
      %v3654 = vadd.f32 %v3652, %v3653
      %v3655 = vrot.slane %v3654, 2
      %v3656 = vadd.f32 %v3654, %v3655
      %v3657 = vrot.slane %v3656, 1
      %v3658 = vadd.f32 %v3656, %v3657
      %v3659 = vsel %vm343, %v3319, 0.0
      %v3660 = vsel %vm343, %v3321, 0.0
      %v3661 = vadd.f32 %v3659, %v3660
      %v3662 = vrot.slane %v3661, 4
      %v3663 = vadd.f32 %v3661, %v3662
      %v3664 = vrot.slane %v3663, 2
      %v3665 = vadd.f32 %v3663, %v3664
      %v3666 = vrot.slane %v3665, 1
      %v3667 = vadd.f32 %v3665, %v3666
      %v3668 = vsel %vm343, %v3323, 0.0
      %v3669 = vsel %vm343, %v3325, 0.0
      %v3670 = vadd.f32 %v3668, %v3669
      %v3671 = vrot.slane %v3670, 4
      %v3672 = vadd.f32 %v3670, %v3671
      %v3673 = vrot.slane %v3672, 2
      %v3674 = vadd.f32 %v3672, %v3673
      %v3675 = vrot.slane %v3674, 1
      %v3676 = vadd.f32 %v3674, %v3675
      %v3677 = vsel %vm343, %v3327, 0.0
      %v3678 = vsel %vm343, %v3329, 0.0
      %v3679 = vadd.f32 %v3677, %v3678
      %v3680 = vrot.slane %v3679, 4
      %v3681 = vadd.f32 %v3679, %v3680
      %v3682 = vrot.slane %v3681, 2
      %v3683 = vadd.f32 %v3681, %v3682
      %v3684 = vrot.slane %v3683, 1
      %v3685 = vadd.f32 %v3683, %v3684
      %v3686 = vsel %vm343, %v3331, 0.0
      %v3687 = vsel %vm343, %v3333, 0.0
      %v3688 = vadd.f32 %v3686, %v3687
      %v3689 = vrot.slane %v3688, 4
      %v3690 = vadd.f32 %v3688, %v3689
      %v3691 = vrot.slane %v3690, 2
      %v3692 = vadd.f32 %v3690, %v3691
      %v3693 = vrot.slane %v3692, 1
      %v3694 = vadd.f32 %v3692, %v3693
      %v3695 = vsel %vm343, %v3335, 0.0
      %v3696 = vsel %vm343, %v3337, 0.0
      %v3697 = vadd.f32 %v3695, %v3696
      %v3698 = vrot.slane %v3697, 4
      %v3699 = vadd.f32 %v3697, %v3698
      %v3700 = vrot.slane %v3699, 2
      %v3701 = vadd.f32 %v3699, %v3700
      %v3702 = vrot.slane %v3701, 1
      %v3703 = vadd.f32 %v3701, %v3702
      %v3704 = vsel %vm343, %v3339, 0.0
      %v3705 = vsel %vm343, %v3341, 0.0
      %v3706 = vadd.f32 %v3704, %v3705
      %v3707 = vrot.slane %v3706, 4
      %v3708 = vadd.f32 %v3706, %v3707
      %v3709 = vrot.slane %v3708, 2
      %v3710 = vadd.f32 %v3708, %v3709
      %v3711 = vrot.slane %v3710, 1
      %v3712 = vadd.f32 %v3710, %v3711
      %v3713 = vsel %vm343, %v3343, 0.0
      %v3714 = vsel %vm343, %v3345, 0.0
      %v3715 = vadd.f32 %v3713, %v3714
      %v3716 = vrot.slane %v3715, 4
      %v3717 = vadd.f32 %v3715, %v3716
      %v3718 = vrot.slane %v3717, 2
      %v3719 = vadd.f32 %v3717, %v3718
      %v3720 = vrot.slane %v3719, 1
      %v3721 = vadd.f32 %v3719, %v3720
      %v3722 = vsel %vm343, %v3347, 0.0
      %v3723 = vsel %vm343, %v3349, 0.0
      %v3724 = vadd.f32 %v3722, %v3723
      %v3725 = vrot.slane %v3724, 4
      %v3726 = vadd.f32 %v3724, %v3725
      %v3727 = vrot.slane %v3726, 2
      %v3728 = vadd.f32 %v3726, %v3727
      %v3729 = vrot.slane %v3728, 1
      %v3730 = vadd.f32 %v3728, %v3729
      %v3731 = vsel %vm343, %v3351, 0.0
      %v3732 = vsel %vm343, %v3353, 0.0
      %v3733 = vadd.f32 %v3731, %v3732
      %v3734 = vrot.slane %v3733, 4
      %v3735 = vadd.f32 %v3733, %v3734
      %v3736 = vrot.slane %v3735, 2
      %v3737 = vadd.f32 %v3735, %v3736
      %v3738 = vrot.slane %v3737, 1
      %v3739 = vadd.f32 %v3737, %v3738
      %v3740 = vsel %vm343, %v3355, 0.0
      %v3741 = vsel %vm343, %v3357, 0.0
      %v3742 = vadd.f32 %v3740, %v3741
      %v3743 = vrot.slane %v3742, 4
      %v3744 = vadd.f32 %v3742, %v3743
      %v3745 = vrot.slane %v3744, 2
      %v3746 = vadd.f32 %v3744, %v3745
      %v3747 = vrot.slane %v3746, 1
      %v3748 = vadd.f32 %v3746, %v3747
      %v3749 = vsel %vm343, %v3359, 0.0
      %v3750 = vsel %vm343, %v3361, 0.0
      %v3751 = vadd.f32 %v3749, %v3750
      %v3752 = vrot.slane %v3751, 4
      %v3753 = vadd.f32 %v3751, %v3752
      %v3754 = vrot.slane %v3753, 2
      %v3755 = vadd.f32 %v3753, %v3754
      %v3756 = vrot.slane %v3755, 1
      %v3757 = vadd.f32 %v3755, %v3756
      %v3758 = vsel %vm343, %v3363, 0.0
      %v3759 = vsel %vm343, %v3365, 0.0
      %v3760 = vadd.f32 %v3758, %v3759
      %v3761 = vrot.slane %v3760, 4
      %v3762 = vadd.f32 %v3760, %v3761
      %v3763 = vrot.slane %v3762, 2
      %v3764 = vadd.f32 %v3762, %v3763
      %v3765 = vrot.slane %v3764, 1
      %v3766 = vadd.f32 %v3764, %v3765
      %v3767 = vsel %vm343, %v3367, 0.0
      %v3768 = vsel %vm343, %v3369, 0.0
      %v3769 = vadd.f32 %v3767, %v3768
      %v3770 = vrot.slane %v3769, 4
      %v3771 = vadd.f32 %v3769, %v3770
      %v3772 = vrot.slane %v3771, 2
      %v3773 = vadd.f32 %v3771, %v3772
      %v3774 = vrot.slane %v3773, 1
      %v3775 = vadd.f32 %v3773, %v3774
      %v3776 = vsel %vm343, %v3371, 0.0
      %v3777 = vsel %vm343, %v3373, 0.0
      %v3778 = vadd.f32 %v3776, %v3777
      %v3779 = vrot.slane %v3778, 4
      %v3780 = vadd.f32 %v3778, %v3779
      %v3781 = vrot.slane %v3780, 2
      %v3782 = vadd.f32 %v3780, %v3781
      %v3783 = vrot.slane %v3782, 1
      %v3784 = vadd.f32 %v3782, %v3783
      %v3785 = vsel %vm343, %v3375, 0.0
      %v3786 = vsel %vm343, %v3377, 0.0
      %v3787 = vadd.f32 %v3785, %v3786
      %v3788 = vrot.slane %v3787, 4
      %v3789 = vadd.f32 %v3787, %v3788
      %v3790 = vrot.slane %v3789, 2
      %v3791 = vadd.f32 %v3789, %v3790
      %v3792 = vrot.slane %v3791, 1
      %v3793 = vadd.f32 %v3791, %v3792
      %v3794 = vsel %vm343, %v3379, 0.0
      %v3795 = vsel %vm343, %v3381, 0.0
      %v3796 = vadd.f32 %v3794, %v3795
      %v3797 = vrot.slane %v3796, 4
      %v3798 = vadd.f32 %v3796, %v3797
      %v3799 = vrot.slane %v3798, 2
      %v3800 = vadd.f32 %v3798, %v3799
      %v3801 = vrot.slane %v3800, 1
      %v3802 = vadd.f32 %v3800, %v3801
      %v3803 = vsel %vm343, %v3383, 0.0
      %v3804 = vsel %vm343, %v3385, 0.0
      %v3805 = vadd.f32 %v3803, %v3804
      %v3806 = vrot.slane %v3805, 4
      %v3807 = vadd.f32 %v3805, %v3806
      %v3808 = vrot.slane %v3807, 2
      %v3809 = vadd.f32 %v3807, %v3808
      %v3810 = vrot.slane %v3809, 1
      %v3811 = vadd.f32 %v3809, %v3810
      %v3812 = vsel %vm343, %v3387, 0.0
      %v3813 = vsel %vm343, %v3389, 0.0
      %v3814 = vadd.f32 %v3812, %v3813
      %v3815 = vrot.slane %v3814, 4
      %v3816 = vadd.f32 %v3814, %v3815
      %v3817 = vrot.slane %v3816, 2
      %v3818 = vadd.f32 %v3816, %v3817
      %v3819 = vrot.slane %v3818, 1
      %v3820 = vadd.f32 %v3818, %v3819
      %v3821 = vsel %vm343, %v3391, 0.0
      %v3822 = vsel %vm343, %v3393, 0.0
      %v3823 = vadd.f32 %v3821, %v3822
      %v3824 = vrot.slane %v3823, 4
      %v3825 = vadd.f32 %v3823, %v3824
      %v3826 = vrot.slane %v3825, 2
      %v3827 = vadd.f32 %v3825, %v3826
      %v3828 = vrot.slane %v3827, 1
      %v3829 = vadd.f32 %v3827, %v3828
      %v3830 = vsel %vm343, %v3395, 0.0
      %v3831 = vsel %vm343, %v3397, 0.0
      %v3832 = vadd.f32 %v3830, %v3831
      %v3833 = vrot.slane %v3832, 4
      %v3834 = vadd.f32 %v3832, %v3833
      %v3835 = vrot.slane %v3834, 2
      %v3836 = vadd.f32 %v3834, %v3835
      %v3837 = vrot.slane %v3836, 1
      %v3838 = vadd.f32 %v3836, %v3837
      %v3839 = vsel %vm343, %v3399, 0.0
      %v3840 = vsel %vm343, %v3401, 0.0
      %v3841 = vadd.f32 %v3839, %v3840
      %v3842 = vrot.slane %v3841, 4
      %v3843 = vadd.f32 %v3841, %v3842
      %v3844 = vrot.slane %v3843, 2
      %v3845 = vadd.f32 %v3843, %v3844
      %v3846 = vrot.slane %v3845, 1
      %v3847 = vadd.f32 %v3845, %v3846
      %v3848 = vsel %vm343, %v3403, 0.0
      %v3849 = vsel %vm343, %v3405, 0.0
      %v3850 = vadd.f32 %v3848, %v3849
      %v3851 = vrot.slane %v3850, 4
      %v3852 = vadd.f32 %v3850, %v3851
      %v3853 = vrot.slane %v3852, 2
      %v3854 = vadd.f32 %v3852, %v3853
      %v3855 = vrot.slane %v3854, 1
      %v3856 = vadd.f32 %v3854, %v3855
      %v3857 = vsel %vm343, %v3407, 0.0
      %v3858 = vsel %vm343, %v3409, 0.0
      %v3859 = vadd.f32 %v3857, %v3858
      %v3860 = vrot.slane %v3859, 4
      %v3861 = vadd.f32 %v3859, %v3860
      %v3862 = vrot.slane %v3861, 2
      %v3863 = vadd.f32 %v3861, %v3862
      %v3864 = vrot.slane %v3863, 1
      %v3865 = vadd.f32 %v3863, %v3864
      %v3866 = vsel %vm343, %v3411, 0.0
      %v3867 = vsel %vm343, %v3413, 0.0
      %v3868 = vadd.f32 %v3866, %v3867
      %v3869 = vrot.slane %v3868, 4
      %v3870 = vadd.f32 %v3868, %v3869
      %v3871 = vrot.slane %v3870, 2
      %v3872 = vadd.f32 %v3870, %v3871
      %v3873 = vrot.slane %v3872, 1
      %v3874 = vadd.f32 %v3872, %v3873
      %v3875 = vsel %vm343, %v3415, 0.0
      %v3876 = vsel %vm343, %v3417, 0.0
      %v3877 = vadd.f32 %v3875, %v3876
      %v3878 = vrot.slane %v3877, 4
      %v3879 = vadd.f32 %v3877, %v3878
      %v3880 = vrot.slane %v3879, 2
      %v3881 = vadd.f32 %v3879, %v3880
      %v3882 = vrot.slane %v3881, 1
      %v3883 = vadd.f32 %v3881, %v3882
      %v3884 = vsel %vm343, %v3419, 0.0
      %v3885 = vsel %vm343, %v3421, 0.0
      %v3886 = vadd.f32 %v3884, %v3885
      %v3887 = vrot.slane %v3886, 4
      %v3888 = vadd.f32 %v3886, %v3887
      %v3889 = vrot.slane %v3888, 2
      %v3890 = vadd.f32 %v3888, %v3889
      %v3891 = vrot.slane %v3890, 1
      %v3892 = vadd.f32 %v3890, %v3891
      %v3893 = vsel %vm343, %v3423, 0.0
      %v3894 = vsel %vm343, %v3425, 0.0
      %v3895 = vadd.f32 %v3893, %v3894
      %v3896 = vrot.slane %v3895, 4
      %v3897 = vadd.f32 %v3895, %v3896
      %v3898 = vrot.slane %v3897, 2
      %v3899 = vadd.f32 %v3897, %v3898
      %v3900 = vrot.slane %v3899, 1
      %v3901 = vadd.f32 %v3899, %v3900
      %v3902 = vsel %vm343, %v3427, 0.0
      %v3903 = vsel %vm343, %v3429, 0.0
      %v3904 = vadd.f32 %v3902, %v3903
      %v3905 = vrot.slane %v3904, 4
      %v3906 = vadd.f32 %v3904, %v3905
      %v3907 = vrot.slane %v3906, 2
      %v3908 = vadd.f32 %v3906, %v3907
      %v3909 = vrot.slane %v3908, 1
      %v3910 = vadd.f32 %v3908, %v3909
      %v3911 = vsel %vm343, %v3431, 0.0
      %v3912 = vsel %vm343, %v3433, 0.0
      %v3913 = vadd.f32 %v3911, %v3912
      %v3914 = vrot.slane %v3913, 4
      %v3915 = vadd.f32 %v3913, %v3914
      %v3916 = vrot.slane %v3915, 2
      %v3917 = vadd.f32 %v3915, %v3916
      %v3918 = vrot.slane %v3917, 1
      %v3919 = vadd.f32 %v3917, %v3918
      %v3920 = vsel %vm343, %v3435, 0.0
      %v3921 = vsel %vm343, %v3437, 0.0
      %v3922 = vadd.f32 %v3920, %v3921
      %v3923 = vrot.slane %v3922, 4
      %v3924 = vadd.f32 %v3922, %v3923
      %v3925 = vrot.slane %v3924, 2
      %v3926 = vadd.f32 %v3924, %v3925
      %v3927 = vrot.slane %v3926, 1
      %v3928 = vadd.f32 %v3926, %v3927
      %v3929 = vsel %vm343, %v3439, 0.0
      %v3930 = vsel %vm343, %v3441, 0.0
      %v3931 = vadd.f32 %v3929, %v3930
      %v3932 = vrot.slane %v3931, 4
      %v3933 = vadd.f32 %v3931, %v3932
      %v3934 = vrot.slane %v3933, 2
      %v3935 = vadd.f32 %v3933, %v3934
      %v3936 = vrot.slane %v3935, 1
      %v3937 = vadd.f32 %v3935, %v3936
      %v3938 = vsel %vm343, %v3443, 0.0
      %v3939 = vsel %vm343, %v3445, 0.0
      %v3940 = vadd.f32 %v3938, %v3939
      %v3941 = vrot.slane %v3940, 4
      %v3942 = vadd.f32 %v3940, %v3941
      %v3943 = vrot.slane %v3942, 2
      %v3944 = vadd.f32 %v3942, %v3943
      %v3945 = vrot.slane %v3944, 1
      %v3946 = vadd.f32 %v3944, %v3945
      %v3947 = vsel %vm343, %v3447, 0.0
      %v3948 = vsel %vm343, %v3449, 0.0
      %v3949 = vadd.f32 %v3947, %v3948
      %v3950 = vrot.slane %v3949, 4
      %v3951 = vadd.f32 %v3949, %v3950
      %v3952 = vrot.slane %v3951, 2
      %v3953 = vadd.f32 %v3951, %v3952
      %v3954 = vrot.slane %v3953, 1
      %v3955 = vadd.f32 %v3953, %v3954
      %v3956 = vsel %vm343, %v3451, 0.0
      %v3957 = vsel %vm343, %v3453, 0.0
      %v3958 = vadd.f32 %v3956, %v3957
      %v3959 = vrot.slane %v3958, 4
      %v3960 = vadd.f32 %v3958, %v3959
      %v3961 = vrot.slane %v3960, 2
      %v3962 = vadd.f32 %v3960, %v3961
      %v3963 = vrot.slane %v3962, 1
      %v3964 = vadd.f32 %v3962, %v3963
      %v3965 = vsel %vm343, %v3455, 0.0
      %v3966 = vsel %vm343, %v3457, 0.0
      %v3967 = vadd.f32 %v3965, %v3966
      %v3968 = vrot.slane %v3967, 4
      %v3969 = vadd.f32 %v3967, %v3968
      %v3970 = vrot.slane %v3969, 2
      %v3971 = vadd.f32 %v3969, %v3970
      %v3972 = vrot.slane %v3971, 1
      %v3973 = vadd.f32 %v3971, %v3972
      %v3974 = vsel %vm343, %v3459, 0.0
      %v3975 = vsel %vm343, %v3461, 0.0
      %v3976 = vadd.f32 %v3974, %v3975
      %v3977 = vrot.slane %v3976, 4
      %v3978 = vadd.f32 %v3976, %v3977
      %v3979 = vrot.slane %v3978, 2
      %v3980 = vadd.f32 %v3978, %v3979
      %v3981 = vrot.slane %v3980, 1
      %v3982 = vadd.f32 %v3980, %v3981
      %v3983 = vsel %vm343, %v3463, 0.0
      %v3984 = vsel %vm343, %v3465, 0.0
      %v3985 = vadd.f32 %v3983, %v3984
      %v3986 = vrot.slane %v3985, 4
      %v3987 = vadd.f32 %v3985, %v3986
      %v3988 = vrot.slane %v3987, 2
      %v3989 = vadd.f32 %v3987, %v3988
      %v3990 = vrot.slane %v3989, 1
      %v3991 = vadd.f32 %v3989, %v3990
      %v3992 = vsel %vm343, %v3467, 0.0
      %v3993 = vsel %vm343, %v3469, 0.0
      %v3994 = vadd.f32 %v3992, %v3993
      %v3995 = vrot.slane %v3994, 4
      %v3996 = vadd.f32 %v3994, %v3995
      %v3997 = vrot.slane %v3996, 2
      %v3998 = vadd.f32 %v3996, %v3997
      %v3999 = vrot.slane %v3998, 1
      %v4000 = vadd.f32 %v3998, %v3999
      %v4001 = vsel %vm343, %v3471, 0.0
      %v4002 = vsel %vm343, %v3473, 0.0
      %v4003 = vadd.f32 %v4001, %v4002
      %v4004 = vrot.slane %v4003, 4
      %v4005 = vadd.f32 %v4003, %v4004
      %v4006 = vrot.slane %v4005, 2
      %v4007 = vadd.f32 %v4005, %v4006
      %v4008 = vrot.slane %v4007, 1
      %v4009 = vadd.f32 %v4007, %v4008
      %v4010 = vsel %vm343, %v3475, 0.0
      %v4011 = vsel %vm343, %v3477, 0.0
      %v4012 = vadd.f32 %v4010, %v4011
      %v4013 = vrot.slane %v4012, 4
      %v4014 = vadd.f32 %v4012, %v4013
      %v4015 = vrot.slane %v4014, 2
      %v4016 = vadd.f32 %v4014, %v4015
      %v4017 = vrot.slane %v4016, 1
      %v4018 = vadd.f32 %v4016, %v4017
      %v4019 = vsel %vm343, %v3479, 0.0
      %v4020 = vsel %vm343, %v3481, 0.0
      %v4021 = vadd.f32 %v4019, %v4020
      %v4022 = vrot.slane %v4021, 4
      %v4023 = vadd.f32 %v4021, %v4022
      %v4024 = vrot.slane %v4023, 2
      %v4025 = vadd.f32 %v4023, %v4024
      %v4026 = vrot.slane %v4025, 1
      %v4027 = vadd.f32 %v4025, %v4026
      %v4028 = vsel %vm343, %v3483, 0.0
      %v4029 = vsel %vm343, %v3485, 0.0
      %v4030 = vadd.f32 %v4028, %v4029
      %v4031 = vrot.slane %v4030, 4
      %v4032 = vadd.f32 %v4030, %v4031
      %v4033 = vrot.slane %v4032, 2
      %v4034 = vadd.f32 %v4032, %v4033
      %v4035 = vrot.slane %v4034, 1
      %v4036 = vadd.f32 %v4034, %v4035
      %v4037 = vsel %vm343, %v3487, 0.0
      %v4038 = vsel %vm343, %v3489, 0.0
      %v4039 = vadd.f32 %v4037, %v4038
      %v4040 = vrot.slane %v4039, 4
      %v4041 = vadd.f32 %v4039, %v4040
      %v4042 = vrot.slane %v4041, 2
      %v4043 = vadd.f32 %v4041, %v4042
      %v4044 = vrot.slane %v4043, 1
      %v4045 = vadd.f32 %v4043, %v4044
      %v4046 = vsel %vm343, %v3491, 0.0
      %v4047 = vsel %vm343, %v3493, 0.0
      %v4048 = vadd.f32 %v4046, %v4047
      %v4049 = vrot.slane %v4048, 4
      %v4050 = vadd.f32 %v4048, %v4049
      %v4051 = vrot.slane %v4050, 2
      %v4052 = vadd.f32 %v4050, %v4051
      %v4053 = vrot.slane %v4052, 1
      %v4054 = vadd.f32 %v4052, %v4053
      %v4055 = vsel %vm343, %v3495, 0.0
      %v4056 = vsel %vm343, %v3497, 0.0
      %v4057 = vadd.f32 %v4055, %v4056
      %v4058 = vrot.slane %v4057, 4
      %v4059 = vadd.f32 %v4057, %v4058
      %v4060 = vrot.slane %v4059, 2
      %v4061 = vadd.f32 %v4059, %v4060
      %v4062 = vrot.slane %v4061, 1
      %v4063 = vadd.f32 %v4061, %v4062
      %v4064 = vsel %vm343, %v3499, 0.0
      %v4065 = vsel %vm343, %v3501, 0.0
      %v4066 = vadd.f32 %v4064, %v4065
      %v4067 = vrot.slane %v4066, 4
      %v4068 = vadd.f32 %v4066, %v4067
      %v4069 = vrot.slane %v4068, 2
      %v4070 = vadd.f32 %v4068, %v4069
      %v4071 = vrot.slane %v4070, 1
      %v4072 = vadd.f32 %v4070, %v4071
      %v4073 = vsel %vm343, %v3503, 0.0
      %v4074 = vsel %vm343, %v3505, 0.0
      %v4075 = vadd.f32 %v4073, %v4074
      %v4076 = vrot.slane %v4075, 4
      %v4077 = vadd.f32 %v4075, %v4076
      %v4078 = vrot.slane %v4077, 2
      %v4079 = vadd.f32 %v4077, %v4078
      %v4080 = vrot.slane %v4079, 1
      %v4081 = vadd.f32 %v4079, %v4080
      %v4082 = vrcp.pop %v3514
      %v4083 = vrcp.pop %v3523
      %v4084 = vrcp.pop %v3532
      %v4085 = vrcp.pop %v3541
      %v4086 = vrcp.pop %v3550
      %v4087 = vrcp.pop %v3559
      %v4088 = vrcp.pop %v3568
      %v4089 = vrcp.pop %v3577
      %v4090 = vrcp.pop %v3586
      %v4091 = vrcp.pop %v3595
      %v4092 = vrcp.pop %v3604
      %v4093 = vrcp.pop %v3613
      %v4094 = vrcp.pop %v3622
      %v4095 = vrcp.pop %v3631
      %v4096 = vrcp.pop %v3640
      %v4097 = vrcp.pop %v3649
      %v4098 = vrcp.pop %v3658
      %v4099 = vrcp.pop %v3667
      %v4100 = vrcp.pop %v3676
      %v4101 = vrcp.pop %v3685
      %v4102 = vrcp.pop %v3694
      %v4103 = vrcp.pop %v3703
      %v4104 = vrcp.pop %v3712
      %v4105 = vrcp.pop %v3721
      %v4106 = vrcp.pop %v3730
      %v4107 = vrcp.pop %v3739
      %v4108 = vrcp.pop %v3748
      %v4109 = vrcp.pop %v3757
      %v4110 = vrcp.pop %v3766
      %v4111 = vrcp.pop %v3775
      %v4112 = vrcp.pop %v3784
      %v4113 = vrcp.pop %v3793
      %v4114 = vrcp.pop %v3802
      %v4115 = vrcp.pop %v3811
      %v4116 = vrcp.pop %v3820
      %v4117 = vrcp.pop %v3829
      %v4118 = vrcp.pop %v3838
      %v4119 = vrcp.pop %v3847
      %v4120 = vrcp.pop %v3856
      %v4121 = vrcp.pop %v3865
      %v4122 = vrcp.pop %v3874
      %v4123 = vrcp.pop %v3883
      %v4124 = vrcp.pop %v3892
      %v4125 = vrcp.pop %v3901
      %v4126 = vrcp.pop %v3910
      %v4127 = vrcp.pop %v3919
      %v4128 = vrcp.pop %v3928
      %v4129 = vrcp.pop %v3937
      %v4130 = vrcp.pop %v3946
      %v4131 = vrcp.pop %v3955
      %v4132 = vrcp.pop %v3964
      %v4133 = vrcp.pop %v3973
      %v4134 = vrcp.pop %v3982
      %v4135 = vrcp.pop %v3991
      %v4136 = vrcp.pop %v4000
      %v4137 = vrcp.pop %v4009
      %v4138 = vrcp.pop %v4018
      %v4139 = vrcp.pop %v4027
      %v4140 = vrcp.pop %v4036
      %v4141 = vrcp.pop %v4045
      %v4142 = vrcp.pop %v4054
      %v4143 = vrcp.pop %v4063
      %v4144 = vrcp.pop %v4072
      %v4145 = vrcp.pop %v4081
      %v4146 = vmul.f32 %v3251, %v4082
      %v4147 = vmul.f32 %v3253, %v4082
      %v4148 = vmul.f32 %v3255, %v4083
      %v4149 = vmul.f32 %v3257, %v4083
      %v4150 = vmul.f32 %v3259, %v4084
      %v4151 = vmul.f32 %v3261, %v4084
      %v4152 = vmul.f32 %v3263, %v4085
      %v4153 = vmul.f32 %v3265, %v4085
      %v4154 = vmul.f32 %v3267, %v4086
      %v4155 = vmul.f32 %v3269, %v4086
      %v4156 = vmul.f32 %v3271, %v4087
      %v4157 = vmul.f32 %v3273, %v4087
      %v4158 = vmul.f32 %v3275, %v4088
      %v4159 = vmul.f32 %v3277, %v4088
      %v4160 = vmul.f32 %v3279, %v4089
      %v4161 = vmul.f32 %v3281, %v4089
      %v4162 = vmul.f32 %v3283, %v4090
      %v4163 = vmul.f32 %v3285, %v4090
      %v4164 = vmul.f32 %v3287, %v4091
      %v4165 = vmul.f32 %v3289, %v4091
      %v4166 = vmul.f32 %v3291, %v4092
      %v4167 = vmul.f32 %v3293, %v4092
      %v4168 = vmul.f32 %v3295, %v4093
      %v4169 = vmul.f32 %v3297, %v4093
      %v4170 = vmul.f32 %v3299, %v4094
      %v4171 = vmul.f32 %v3301, %v4094
      %v4172 = vmul.f32 %v3303, %v4095
      %v4173 = vmul.f32 %v3305, %v4095
      %v4174 = vmul.f32 %v3307, %v4096
      %v4175 = vmul.f32 %v3309, %v4096
      %v4176 = vmul.f32 %v3311, %v4097
      %v4177 = vmul.f32 %v3313, %v4097
      %v4178 = vmul.f32 %v3315, %v4098
      %v4179 = vmul.f32 %v3317, %v4098
      %v4180 = vmul.f32 %v3319, %v4099
      %v4181 = vmul.f32 %v3321, %v4099
      %v4182 = vmul.f32 %v3323, %v4100
      %v4183 = vmul.f32 %v3325, %v4100
      %v4184 = vmul.f32 %v3327, %v4101
      %v4185 = vmul.f32 %v3329, %v4101
      %v4186 = vmul.f32 %v3331, %v4102
      %v4187 = vmul.f32 %v3333, %v4102
      %v4188 = vmul.f32 %v3335, %v4103
      %v4189 = vmul.f32 %v3337, %v4103
      %v4190 = vmul.f32 %v3339, %v4104
      %v4191 = vmul.f32 %v3341, %v4104
      %v4192 = vmul.f32 %v3343, %v4105
      %v4193 = vmul.f32 %v3345, %v4105
      %v4194 = vmul.f32 %v3347, %v4106
      %v4195 = vmul.f32 %v3349, %v4106
      %v4196 = vmul.f32 %v3351, %v4107
      %v4197 = vmul.f32 %v3353, %v4107
      %v4198 = vmul.f32 %v3355, %v4108
      %v4199 = vmul.f32 %v3357, %v4108
      %v4200 = vmul.f32 %v3359, %v4109
      %v4201 = vmul.f32 %v3361, %v4109
      %v4202 = vmul.f32 %v3363, %v4110
      %v4203 = vmul.f32 %v3365, %v4110
      %v4204 = vmul.f32 %v3367, %v4111
      %v4205 = vmul.f32 %v3369, %v4111
      %v4206 = vmul.f32 %v3371, %v4112
      %v4207 = vmul.f32 %v3373, %v4112
      %v4208 = vmul.f32 %v3375, %v4113
      %v4209 = vmul.f32 %v3377, %v4113
      %v4210 = vmul.f32 %v3379, %v4114
      %v4211 = vmul.f32 %v3381, %v4114
      %v4212 = vmul.f32 %v3383, %v4115
      %v4213 = vmul.f32 %v3385, %v4115
      %v4214 = vmul.f32 %v3387, %v4116
      %v4215 = vmul.f32 %v3389, %v4116
      %v4216 = vmul.f32 %v3391, %v4117
      %v4217 = vmul.f32 %v3393, %v4117
      %v4218 = vmul.f32 %v3395, %v4118
      %v4219 = vmul.f32 %v3397, %v4118
      %v4220 = vmul.f32 %v3399, %v4119
      %v4221 = vmul.f32 %v3401, %v4119
      %v4222 = vmul.f32 %v3403, %v4120
      %v4223 = vmul.f32 %v3405, %v4120
      %v4224 = vmul.f32 %v3407, %v4121
      %v4225 = vmul.f32 %v3409, %v4121
      %v4226 = vmul.f32 %v3411, %v4122
      %v4227 = vmul.f32 %v3413, %v4122
      %v4228 = vmul.f32 %v3415, %v4123
      %v4229 = vmul.f32 %v3417, %v4123
      %v4230 = vmul.f32 %v3419, %v4124
      %v4231 = vmul.f32 %v3421, %v4124
      %v4232 = vmul.f32 %v3423, %v4125
      %v4233 = vmul.f32 %v3425, %v4125
      %v4234 = vmul.f32 %v3427, %v4126
      %v4235 = vmul.f32 %v3429, %v4126
      %v4236 = vmul.f32 %v3431, %v4127
      %v4237 = vmul.f32 %v3433, %v4127
      %v4238 = vmul.f32 %v3435, %v4128
      %v4239 = vmul.f32 %v3437, %v4128
      %v4240 = vmul.f32 %v3439, %v4129
      %v4241 = vmul.f32 %v3441, %v4129
      %v4242 = vmul.f32 %v3443, %v4130
      %v4243 = vmul.f32 %v3445, %v4130
      %v4244 = vmul.f32 %v3447, %v4131
      %v4245 = vmul.f32 %v3449, %v4131
      %v4246 = vmul.f32 %v3451, %v4132
      %v4247 = vmul.f32 %v3453, %v4132
      %v4248 = vmul.f32 %v3455, %v4133
      %v4249 = vmul.f32 %v3457, %v4133
      %v4250 = vmul.f32 %v3459, %v4134
      %v4251 = vmul.f32 %v3461, %v4134
      %v4252 = vmul.f32 %v3463, %v4135
      %v4253 = vmul.f32 %v3465, %v4135
      %v4254 = vmul.f32 %v3467, %v4136
      %v4255 = vmul.f32 %v3469, %v4136
      %v4256 = vmul.f32 %v3471, %v4137
      %v4257 = vmul.f32 %v3473, %v4137
      %v4258 = vmul.f32 %v3475, %v4138
      %v4259 = vmul.f32 %v3477, %v4138
      %v4260 = vmul.f32 %v3479, %v4139
      %v4261 = vmul.f32 %v3481, %v4139
      %v4262 = vmul.f32 %v3483, %v4140
      %v4263 = vmul.f32 %v3485, %v4140
      %v4264 = vmul.f32 %v3487, %v4141
      %v4265 = vmul.f32 %v3489, %v4141
      %v4266 = vmul.f32 %v3491, %v4142
      %v4267 = vmul.f32 %v3493, %v4142
      %v4268 = vmul.f32 %v3495, %v4143
      %v4269 = vmul.f32 %v3497, %v4143
      %v4270 = vmul.f32 %v3499, %v4144
      %v4271 = vmul.f32 %v3501, %v4144
      %v4272 = vmul.f32 %v3503, %v4145
      %v4273 = vmul.f32 %v3505, %v4145
      %4274 = vrot.lane.b32.xlu0 %v391, 64
      %v4275 = vpop.permute.xlu0 %4274
      %4276 = vrot.lane.b32.xlu0 %v394, 64
      %v4277 = vpop.permute.xlu0 %4276
      %4278 = vrot.lane.b32.xlu0 %v399, 64
      %v4279 = vpop.permute.xlu0 %4278
      %4280 = vrot.lane.b32.xlu0 %v402, 64
      %v4281 = vpop.permute.xlu0 %4280
      %4282 = vrot.lane.b32.xlu0 %v407, 64
      %v4283 = vpop.permute.xlu0 %4282
      %4284 = vrot.lane.b32.xlu0 %v410, 64
      %v4285 = vpop.permute.xlu0 %4284
      %4286 = vrot.lane.b32.xlu0 %v415, 64
      %v4287 = vpop.permute.xlu0 %4286
      %4288 = vrot.lane.b32.xlu0 %v418, 64
      %v4289 = vpop.permute.xlu0 %4288
      %v4298 = vmul.f32 %v4146, %v4275
      %v4299 = vmul.f32 %v4147, %v4277
      %v4300 = vmul.f32 %v4148, %v4275
      %v4301 = vmul.f32 %v4149, %v4277
      %v4302 = vmul.f32 %v4150, %v4275
      %v4303 = vmul.f32 %v4151, %v4277
      %v4304 = vmul.f32 %v4152, %v4275
      %v4305 = vmul.f32 %v4153, %v4277
      %v4306 = vmul.f32 %v4154, %v4275
      %v4307 = vmul.f32 %v4155, %v4277
      %v4308 = vmul.f32 %v4156, %v4275
      %v4309 = vmul.f32 %v4157, %v4277
      %v4310 = vmul.f32 %v4158, %v4275
      %v4311 = vmul.f32 %v4159, %v4277
      %v4312 = vmul.f32 %v4160, %v4275
      %v4313 = vmul.f32 %v4161, %v4277
      %v4314 = vmul.f32 %v4162, %v4275
      %v4315 = vmul.f32 %v4163, %v4277
      %v4316 = vmul.f32 %v4164, %v4275
      %v4317 = vmul.f32 %v4165, %v4277
      %v4318 = vmul.f32 %v4166, %v4275
      %v4319 = vmul.f32 %v4167, %v4277
      %v4320 = vmul.f32 %v4168, %v4275
      %v4321 = vmul.f32 %v4169, %v4277
      %v4322 = vmul.f32 %v4170, %v4275
      %v4323 = vmul.f32 %v4171, %v4277
      %v4324 = vmul.f32 %v4172, %v4275
      %v4325 = vmul.f32 %v4173, %v4277
      %v4326 = vmul.f32 %v4174, %v4275
      %v4327 = vmul.f32 %v4175, %v4277
      %v4328 = vmul.f32 %v4176, %v4275
      %v4329 = vmul.f32 %v4177, %v4277
      %v4330 = vmul.f32 %v4178, %v4279
      %v4331 = vmul.f32 %v4179, %v4281
      %v4332 = vmul.f32 %v4180, %v4279
      %v4333 = vmul.f32 %v4181, %v4281
      %v4334 = vmul.f32 %v4182, %v4279
      %v4335 = vmul.f32 %v4183, %v4281
      %v4336 = vmul.f32 %v4184, %v4279
      %v4337 = vmul.f32 %v4185, %v4281
      %v4338 = vmul.f32 %v4186, %v4279
      %v4339 = vmul.f32 %v4187, %v4281
      %v4340 = vmul.f32 %v4188, %v4279
      %v4341 = vmul.f32 %v4189, %v4281
      %v4342 = vmul.f32 %v4190, %v4279
      %v4343 = vmul.f32 %v4191, %v4281
      %v4344 = vmul.f32 %v4192, %v4279
      %v4345 = vmul.f32 %v4193, %v4281
      %v4346 = vmul.f32 %v4194, %v4279
      %v4347 = vmul.f32 %v4195, %v4281
      %v4348 = vmul.f32 %v4196, %v4279
      %v4349 = vmul.f32 %v4197, %v4281
      %v4350 = vmul.f32 %v4198, %v4279
      %v4351 = vmul.f32 %v4199, %v4281
      %v4352 = vmul.f32 %v4200, %v4279
      %v4353 = vmul.f32 %v4201, %v4281
      %v4354 = vmul.f32 %v4202, %v4279
      %v4355 = vmul.f32 %v4203, %v4281
      %v4356 = vmul.f32 %v4204, %v4279
      %v4357 = vmul.f32 %v4205, %v4281
      %v4358 = vmul.f32 %v4206, %v4279
      %v4359 = vmul.f32 %v4207, %v4281
      %v4360 = vmul.f32 %v4208, %v4279
      %v4361 = vmul.f32 %v4209, %v4281
      %v4362 = vmul.f32 %v4210, %v4283
      %v4363 = vmul.f32 %v4211, %v4285
      %v4364 = vmul.f32 %v4212, %v4283
      %v4365 = vmul.f32 %v4213, %v4285
      %v4366 = vmul.f32 %v4214, %v4283
      %v4367 = vmul.f32 %v4215, %v4285
      %v4368 = vmul.f32 %v4216, %v4283
      %v4369 = vmul.f32 %v4217, %v4285
      %v4370 = vmul.f32 %v4218, %v4283
      %v4371 = vmul.f32 %v4219, %v4285
      %v4372 = vmul.f32 %v4220, %v4283
      %v4373 = vmul.f32 %v4221, %v4285
      %v4374 = vmul.f32 %v4222, %v4283
      %v4375 = vmul.f32 %v4223, %v4285
      %v4376 = vmul.f32 %v4224, %v4283
      %v4377 = vmul.f32 %v4225, %v4285
      %v4378 = vmul.f32 %v4226, %v4283
      %v4379 = vmul.f32 %v4227, %v4285
      %v4380 = vmul.f32 %v4228, %v4283
      %v4381 = vmul.f32 %v4229, %v4285
      %v4382 = vmul.f32 %v4230, %v4283
      %v4383 = vmul.f32 %v4231, %v4285
      %v4384 = vmul.f32 %v4232, %v4283
      %v4385 = vmul.f32 %v4233, %v4285
      %v4386 = vmul.f32 %v4234, %v4283
      %v4387 = vmul.f32 %v4235, %v4285
      %v4388 = vmul.f32 %v4236, %v4283
      %v4389 = vmul.f32 %v4237, %v4285
      %v4390 = vmul.f32 %v4238, %v4283
      %v4391 = vmul.f32 %v4239, %v4285
      %v4392 = vmul.f32 %v4240, %v4283
      %v4393 = vmul.f32 %v4241, %v4285
      %v4394 = vmul.f32 %v4242, %v4287
      %v4395 = vmul.f32 %v4243, %v4289
      %v4396 = vmul.f32 %v4244, %v4287
      %v4397 = vmul.f32 %v4245, %v4289
      %v4398 = vmul.f32 %v4246, %v4287
      %v4399 = vmul.f32 %v4247, %v4289
      %v4400 = vmul.f32 %v4248, %v4287
      %v4401 = vmul.f32 %v4249, %v4289
      %v4402 = vmul.f32 %v4250, %v4287
      %v4403 = vmul.f32 %v4251, %v4289
      %v4404 = vmul.f32 %v4252, %v4287
      %v4405 = vmul.f32 %v4253, %v4289
      %v4406 = vmul.f32 %v4254, %v4287
      %v4407 = vmul.f32 %v4255, %v4289
      %v4408 = vmul.f32 %v4256, %v4287
      %v4409 = vmul.f32 %v4257, %v4289
      %v4410 = vmul.f32 %v4258, %v4287
      %v4411 = vmul.f32 %v4259, %v4289
      %v4412 = vmul.f32 %v4260, %v4287
      %v4413 = vmul.f32 %v4261, %v4289
      %v4414 = vmul.f32 %v4262, %v4287
      %v4415 = vmul.f32 %v4263, %v4289
      %v4416 = vmul.f32 %v4264, %v4287
      %v4417 = vmul.f32 %v4265, %v4289
      %v4418 = vmul.f32 %v4266, %v4287
      %v4419 = vmul.f32 %v4267, %v4289
      %v4420 = vmul.f32 %v4268, %v4287
      %v4421 = vmul.f32 %v4269, %v4289
      %v4422 = vmul.f32 %v4270, %v4287
      %v4423 = vmul.f32 %v4271, %v4289
      %v4424 = vmul.f32 %v4272, %v4287
      %v4425 = vmul.f32 %v4273, %v4289
      %v4426 = vsel %vm343, %v4298, 0.0
      %v4427 = vsel %vm343, %v4299, 0.0
      %v4428 = vadd.f32 %v4426, %v4427
      %v4429 = vrot.slane %v4428, 4
      %v4430 = vadd.f32 %v4428, %v4429
      %v4431 = vrot.slane %v4430, 2
      %v4432 = vadd.f32 %v4430, %v4431
      %v4433 = vrot.slane %v4432, 1
      %v4434 = vadd.f32 %v4432, %v4433
      %v4435 = vsel %vm343, %v4300, 0.0
      %v4436 = vsel %vm343, %v4301, 0.0
      %v4437 = vadd.f32 %v4435, %v4436
      %v4438 = vrot.slane %v4437, 4
      %v4439 = vadd.f32 %v4437, %v4438
      %v4440 = vrot.slane %v4439, 2
      %v4441 = vadd.f32 %v4439, %v4440
      %v4442 = vrot.slane %v4441, 1
      %v4443 = vadd.f32 %v4441, %v4442
      %v4444 = vsel %vm343, %v4302, 0.0
      %v4445 = vsel %vm343, %v4303, 0.0
      %v4446 = vadd.f32 %v4444, %v4445
      %v4447 = vrot.slane %v4446, 4
      %v4448 = vadd.f32 %v4446, %v4447
      %v4449 = vrot.slane %v4448, 2
      %v4450 = vadd.f32 %v4448, %v4449
      %v4451 = vrot.slane %v4450, 1
      %v4452 = vadd.f32 %v4450, %v4451
      %v4453 = vsel %vm343, %v4304, 0.0
      %v4454 = vsel %vm343, %v4305, 0.0
      %v4455 = vadd.f32 %v4453, %v4454
      %v4456 = vrot.slane %v4455, 4
      %v4457 = vadd.f32 %v4455, %v4456
      %v4458 = vrot.slane %v4457, 2
      %v4459 = vadd.f32 %v4457, %v4458
      %v4460 = vrot.slane %v4459, 1
      %v4461 = vadd.f32 %v4459, %v4460
      %v4462 = vsel %vm343, %v4306, 0.0
      %v4463 = vsel %vm343, %v4307, 0.0
      %v4464 = vadd.f32 %v4462, %v4463
      %v4465 = vrot.slane %v4464, 4
      %v4466 = vadd.f32 %v4464, %v4465
      %v4467 = vrot.slane %v4466, 2
      %v4468 = vadd.f32 %v4466, %v4467
      %v4469 = vrot.slane %v4468, 1
      %v4470 = vadd.f32 %v4468, %v4469
      %v4471 = vsel %vm343, %v4308, 0.0
      %v4472 = vsel %vm343, %v4309, 0.0
      %v4473 = vadd.f32 %v4471, %v4472
      %v4474 = vrot.slane %v4473, 4
      %v4475 = vadd.f32 %v4473, %v4474
      %v4476 = vrot.slane %v4475, 2
      %v4477 = vadd.f32 %v4475, %v4476
      %v4478 = vrot.slane %v4477, 1
      %v4479 = vadd.f32 %v4477, %v4478
      %v4480 = vsel %vm343, %v4310, 0.0
      %v4481 = vsel %vm343, %v4311, 0.0
      %v4482 = vadd.f32 %v4480, %v4481
      %v4483 = vrot.slane %v4482, 4
      %v4484 = vadd.f32 %v4482, %v4483
      %v4485 = vrot.slane %v4484, 2
      %v4486 = vadd.f32 %v4484, %v4485
      %v4487 = vrot.slane %v4486, 1
      %v4488 = vadd.f32 %v4486, %v4487
      %v4489 = vsel %vm343, %v4312, 0.0
      %v4490 = vsel %vm343, %v4313, 0.0
      %v4491 = vadd.f32 %v4489, %v4490
      %v4492 = vrot.slane %v4491, 4
      %v4493 = vadd.f32 %v4491, %v4492
      %v4494 = vrot.slane %v4493, 2
      %v4495 = vadd.f32 %v4493, %v4494
      %v4496 = vrot.slane %v4495, 1
      %v4497 = vadd.f32 %v4495, %v4496
      %v4498 = vsel %vm343, %v4314, 0.0
      %v4499 = vsel %vm343, %v4315, 0.0
      %v4500 = vadd.f32 %v4498, %v4499
      %v4501 = vrot.slane %v4500, 4
      %v4502 = vadd.f32 %v4500, %v4501
      %v4503 = vrot.slane %v4502, 2
      %v4504 = vadd.f32 %v4502, %v4503
      %v4505 = vrot.slane %v4504, 1
      %v4506 = vadd.f32 %v4504, %v4505
      %v4507 = vsel %vm343, %v4316, 0.0
      %v4508 = vsel %vm343, %v4317, 0.0
      %v4509 = vadd.f32 %v4507, %v4508
      %v4510 = vrot.slane %v4509, 4
      %v4511 = vadd.f32 %v4509, %v4510
      %v4512 = vrot.slane %v4511, 2
      %v4513 = vadd.f32 %v4511, %v4512
      %v4514 = vrot.slane %v4513, 1
      %v4515 = vadd.f32 %v4513, %v4514
      %v4516 = vsel %vm343, %v4318, 0.0
      %v4517 = vsel %vm343, %v4319, 0.0
      %v4518 = vadd.f32 %v4516, %v4517
      %v4519 = vrot.slane %v4518, 4
      %v4520 = vadd.f32 %v4518, %v4519
      %v4521 = vrot.slane %v4520, 2
      %v4522 = vadd.f32 %v4520, %v4521
      %v4523 = vrot.slane %v4522, 1
      %v4524 = vadd.f32 %v4522, %v4523
      %v4525 = vsel %vm343, %v4320, 0.0
      %v4526 = vsel %vm343, %v4321, 0.0
      %v4527 = vadd.f32 %v4525, %v4526
      %v4528 = vrot.slane %v4527, 4
      %v4529 = vadd.f32 %v4527, %v4528
      %v4530 = vrot.slane %v4529, 2
      %v4531 = vadd.f32 %v4529, %v4530
      %v4532 = vrot.slane %v4531, 1
      %v4533 = vadd.f32 %v4531, %v4532
      %v4534 = vsel %vm343, %v4322, 0.0
      %v4535 = vsel %vm343, %v4323, 0.0
      %v4536 = vadd.f32 %v4534, %v4535
      %v4537 = vrot.slane %v4536, 4
      %v4538 = vadd.f32 %v4536, %v4537
      %v4539 = vrot.slane %v4538, 2
      %v4540 = vadd.f32 %v4538, %v4539
      %v4541 = vrot.slane %v4540, 1
      %v4542 = vadd.f32 %v4540, %v4541
      %v4543 = vsel %vm343, %v4324, 0.0
      %v4544 = vsel %vm343, %v4325, 0.0
      %v4545 = vadd.f32 %v4543, %v4544
      %v4546 = vrot.slane %v4545, 4
      %v4547 = vadd.f32 %v4545, %v4546
      %v4548 = vrot.slane %v4547, 2
      %v4549 = vadd.f32 %v4547, %v4548
      %v4550 = vrot.slane %v4549, 1
      %v4551 = vadd.f32 %v4549, %v4550
      %v4552 = vsel %vm343, %v4326, 0.0
      %v4553 = vsel %vm343, %v4327, 0.0
      %v4554 = vadd.f32 %v4552, %v4553
      %v4555 = vrot.slane %v4554, 4
      %v4556 = vadd.f32 %v4554, %v4555
      %v4557 = vrot.slane %v4556, 2
      %v4558 = vadd.f32 %v4556, %v4557
      %v4559 = vrot.slane %v4558, 1
      %v4560 = vadd.f32 %v4558, %v4559
      %v4561 = vsel %vm343, %v4328, 0.0
      %v4562 = vsel %vm343, %v4329, 0.0
      %v4563 = vadd.f32 %v4561, %v4562
      %v4564 = vrot.slane %v4563, 4
      %v4565 = vadd.f32 %v4563, %v4564
      %v4566 = vrot.slane %v4565, 2
      %v4567 = vadd.f32 %v4565, %v4566
      %v4568 = vrot.slane %v4567, 1
      %v4569 = vadd.f32 %v4567, %v4568
      %v4570 = vsel %vm343, %v4330, 0.0
      %v4571 = vsel %vm343, %v4331, 0.0
      %v4572 = vadd.f32 %v4570, %v4571
      %v4573 = vrot.slane %v4572, 4
      %v4574 = vadd.f32 %v4572, %v4573
      %v4575 = vrot.slane %v4574, 2
      %v4576 = vadd.f32 %v4574, %v4575
      %v4577 = vrot.slane %v4576, 1
      %v4578 = vadd.f32 %v4576, %v4577
      %v4579 = vsel %vm343, %v4332, 0.0
      %v4580 = vsel %vm343, %v4333, 0.0
      %v4581 = vadd.f32 %v4579, %v4580
      %v4582 = vrot.slane %v4581, 4
      %v4583 = vadd.f32 %v4581, %v4582
      %v4584 = vrot.slane %v4583, 2
      %v4585 = vadd.f32 %v4583, %v4584
      %v4586 = vrot.slane %v4585, 1
      %v4587 = vadd.f32 %v4585, %v4586
      %v4588 = vsel %vm343, %v4334, 0.0
      %v4589 = vsel %vm343, %v4335, 0.0
      %v4590 = vadd.f32 %v4588, %v4589
      %v4591 = vrot.slane %v4590, 4
      %v4592 = vadd.f32 %v4590, %v4591
      %v4593 = vrot.slane %v4592, 2
      %v4594 = vadd.f32 %v4592, %v4593
      %v4595 = vrot.slane %v4594, 1
      %v4596 = vadd.f32 %v4594, %v4595
      %v4597 = vsel %vm343, %v4336, 0.0
      %v4598 = vsel %vm343, %v4337, 0.0
      %v4599 = vadd.f32 %v4597, %v4598
      %v4600 = vrot.slane %v4599, 4
      %v4601 = vadd.f32 %v4599, %v4600
      %v4602 = vrot.slane %v4601, 2
      %v4603 = vadd.f32 %v4601, %v4602
      %v4604 = vrot.slane %v4603, 1
      %v4605 = vadd.f32 %v4603, %v4604
      %v4606 = vsel %vm343, %v4338, 0.0
      %v4607 = vsel %vm343, %v4339, 0.0
      %v4608 = vadd.f32 %v4606, %v4607
      %v4609 = vrot.slane %v4608, 4
      %v4610 = vadd.f32 %v4608, %v4609
      %v4611 = vrot.slane %v4610, 2
      %v4612 = vadd.f32 %v4610, %v4611
      %v4613 = vrot.slane %v4612, 1
      %v4614 = vadd.f32 %v4612, %v4613
      %v4615 = vsel %vm343, %v4340, 0.0
      %v4616 = vsel %vm343, %v4341, 0.0
      %v4617 = vadd.f32 %v4615, %v4616
      %v4618 = vrot.slane %v4617, 4
      %v4619 = vadd.f32 %v4617, %v4618
      %v4620 = vrot.slane %v4619, 2
      %v4621 = vadd.f32 %v4619, %v4620
      %v4622 = vrot.slane %v4621, 1
      %v4623 = vadd.f32 %v4621, %v4622
      %v4624 = vsel %vm343, %v4342, 0.0
      %v4625 = vsel %vm343, %v4343, 0.0
      %v4626 = vadd.f32 %v4624, %v4625
      %v4627 = vrot.slane %v4626, 4
      %v4628 = vadd.f32 %v4626, %v4627
      %v4629 = vrot.slane %v4628, 2
      %v4630 = vadd.f32 %v4628, %v4629
      %v4631 = vrot.slane %v4630, 1
      %v4632 = vadd.f32 %v4630, %v4631
      %v4633 = vsel %vm343, %v4344, 0.0
      %v4634 = vsel %vm343, %v4345, 0.0
      %v4635 = vadd.f32 %v4633, %v4634
      %v4636 = vrot.slane %v4635, 4
      %v4637 = vadd.f32 %v4635, %v4636
      %v4638 = vrot.slane %v4637, 2
      %v4639 = vadd.f32 %v4637, %v4638
      %v4640 = vrot.slane %v4639, 1
      %v4641 = vadd.f32 %v4639, %v4640
      %v4642 = vsel %vm343, %v4346, 0.0
      %v4643 = vsel %vm343, %v4347, 0.0
      %v4644 = vadd.f32 %v4642, %v4643
      %v4645 = vrot.slane %v4644, 4
      %v4646 = vadd.f32 %v4644, %v4645
      %v4647 = vrot.slane %v4646, 2
      %v4648 = vadd.f32 %v4646, %v4647
      %v4649 = vrot.slane %v4648, 1
      %v4650 = vadd.f32 %v4648, %v4649
      %v4651 = vsel %vm343, %v4348, 0.0
      %v4652 = vsel %vm343, %v4349, 0.0
      %v4653 = vadd.f32 %v4651, %v4652
      %v4654 = vrot.slane %v4653, 4
      %v4655 = vadd.f32 %v4653, %v4654
      %v4656 = vrot.slane %v4655, 2
      %v4657 = vadd.f32 %v4655, %v4656
      %v4658 = vrot.slane %v4657, 1
      %v4659 = vadd.f32 %v4657, %v4658
      %v4660 = vsel %vm343, %v4350, 0.0
      %v4661 = vsel %vm343, %v4351, 0.0
      %v4662 = vadd.f32 %v4660, %v4661
      %v4663 = vrot.slane %v4662, 4
      %v4664 = vadd.f32 %v4662, %v4663
      %v4665 = vrot.slane %v4664, 2
      %v4666 = vadd.f32 %v4664, %v4665
      %v4667 = vrot.slane %v4666, 1
      %v4668 = vadd.f32 %v4666, %v4667
      %v4669 = vsel %vm343, %v4352, 0.0
      %v4670 = vsel %vm343, %v4353, 0.0
      %v4671 = vadd.f32 %v4669, %v4670
      %v4672 = vrot.slane %v4671, 4
      %v4673 = vadd.f32 %v4671, %v4672
      %v4674 = vrot.slane %v4673, 2
      %v4675 = vadd.f32 %v4673, %v4674
      %v4676 = vrot.slane %v4675, 1
      %v4677 = vadd.f32 %v4675, %v4676
      %v4678 = vsel %vm343, %v4354, 0.0
      %v4679 = vsel %vm343, %v4355, 0.0
      %v4680 = vadd.f32 %v4678, %v4679
      %v4681 = vrot.slane %v4680, 4
      %v4682 = vadd.f32 %v4680, %v4681
      %v4683 = vrot.slane %v4682, 2
      %v4684 = vadd.f32 %v4682, %v4683
      %v4685 = vrot.slane %v4684, 1
      %v4686 = vadd.f32 %v4684, %v4685
      %v4687 = vsel %vm343, %v4356, 0.0
      %v4688 = vsel %vm343, %v4357, 0.0
      %v4689 = vadd.f32 %v4687, %v4688
      %v4690 = vrot.slane %v4689, 4
      %v4691 = vadd.f32 %v4689, %v4690
      %v4692 = vrot.slane %v4691, 2
      %v4693 = vadd.f32 %v4691, %v4692
      %v4694 = vrot.slane %v4693, 1
      %v4695 = vadd.f32 %v4693, %v4694
      %v4696 = vsel %vm343, %v4358, 0.0
      %v4697 = vsel %vm343, %v4359, 0.0
      %v4698 = vadd.f32 %v4696, %v4697
      %v4699 = vrot.slane %v4698, 4
      %v4700 = vadd.f32 %v4698, %v4699
      %v4701 = vrot.slane %v4700, 2
      %v4702 = vadd.f32 %v4700, %v4701
      %v4703 = vrot.slane %v4702, 1
      %v4704 = vadd.f32 %v4702, %v4703
      %v4705 = vsel %vm343, %v4360, 0.0
      %v4706 = vsel %vm343, %v4361, 0.0
      %v4707 = vadd.f32 %v4705, %v4706
      %v4708 = vrot.slane %v4707, 4
      %v4709 = vadd.f32 %v4707, %v4708
      %v4710 = vrot.slane %v4709, 2
      %v4711 = vadd.f32 %v4709, %v4710
      %v4712 = vrot.slane %v4711, 1
      %v4713 = vadd.f32 %v4711, %v4712
      %v4714 = vsel %vm343, %v4362, 0.0
      %v4715 = vsel %vm343, %v4363, 0.0
      %v4716 = vadd.f32 %v4714, %v4715
      %v4717 = vrot.slane %v4716, 4
      %v4718 = vadd.f32 %v4716, %v4717
      %v4719 = vrot.slane %v4718, 2
      %v4720 = vadd.f32 %v4718, %v4719
      %v4721 = vrot.slane %v4720, 1
      %v4722 = vadd.f32 %v4720, %v4721
      %v4723 = vsel %vm343, %v4364, 0.0
      %v4724 = vsel %vm343, %v4365, 0.0
      %v4725 = vadd.f32 %v4723, %v4724
      %v4726 = vrot.slane %v4725, 4
      %v4727 = vadd.f32 %v4725, %v4726
      %v4728 = vrot.slane %v4727, 2
      %v4729 = vadd.f32 %v4727, %v4728
      %v4730 = vrot.slane %v4729, 1
      %v4731 = vadd.f32 %v4729, %v4730
      %v4732 = vsel %vm343, %v4366, 0.0
      %v4733 = vsel %vm343, %v4367, 0.0
      %v4734 = vadd.f32 %v4732, %v4733
      %v4735 = vrot.slane %v4734, 4
      %v4736 = vadd.f32 %v4734, %v4735
      %v4737 = vrot.slane %v4736, 2
      %v4738 = vadd.f32 %v4736, %v4737
      %v4739 = vrot.slane %v4738, 1
      %v4740 = vadd.f32 %v4738, %v4739
      %v4741 = vsel %vm343, %v4368, 0.0
      %v4742 = vsel %vm343, %v4369, 0.0
      %v4743 = vadd.f32 %v4741, %v4742
      %v4744 = vrot.slane %v4743, 4
      %v4745 = vadd.f32 %v4743, %v4744
      %v4746 = vrot.slane %v4745, 2
      %v4747 = vadd.f32 %v4745, %v4746
      %v4748 = vrot.slane %v4747, 1
      %v4749 = vadd.f32 %v4747, %v4748
      %v4750 = vsel %vm343, %v4370, 0.0
      %v4751 = vsel %vm343, %v4371, 0.0
      %v4752 = vadd.f32 %v4750, %v4751
      %v4753 = vrot.slane %v4752, 4
      %v4754 = vadd.f32 %v4752, %v4753
      %v4755 = vrot.slane %v4754, 2
      %v4756 = vadd.f32 %v4754, %v4755
      %v4757 = vrot.slane %v4756, 1
      %v4758 = vadd.f32 %v4756, %v4757
      %v4759 = vsel %vm343, %v4372, 0.0
      %v4760 = vsel %vm343, %v4373, 0.0
      %v4761 = vadd.f32 %v4759, %v4760
      %v4762 = vrot.slane %v4761, 4
      %v4763 = vadd.f32 %v4761, %v4762
      %v4764 = vrot.slane %v4763, 2
      %v4765 = vadd.f32 %v4763, %v4764
      %v4766 = vrot.slane %v4765, 1
      %v4767 = vadd.f32 %v4765, %v4766
      %v4768 = vsel %vm343, %v4374, 0.0
      %v4769 = vsel %vm343, %v4375, 0.0
      %v4770 = vadd.f32 %v4768, %v4769
      %v4771 = vrot.slane %v4770, 4
      %v4772 = vadd.f32 %v4770, %v4771
      %v4773 = vrot.slane %v4772, 2
      %v4774 = vadd.f32 %v4772, %v4773
      %v4775 = vrot.slane %v4774, 1
      %v4776 = vadd.f32 %v4774, %v4775
      %v4777 = vsel %vm343, %v4376, 0.0
      %v4778 = vsel %vm343, %v4377, 0.0
      %v4779 = vadd.f32 %v4777, %v4778
      %v4780 = vrot.slane %v4779, 4
      %v4781 = vadd.f32 %v4779, %v4780
      %v4782 = vrot.slane %v4781, 2
      %v4783 = vadd.f32 %v4781, %v4782
      %v4784 = vrot.slane %v4783, 1
      %v4785 = vadd.f32 %v4783, %v4784
      %v4786 = vsel %vm343, %v4378, 0.0
      %v4787 = vsel %vm343, %v4379, 0.0
      %v4788 = vadd.f32 %v4786, %v4787
      %v4789 = vrot.slane %v4788, 4
      %v4790 = vadd.f32 %v4788, %v4789
      %v4791 = vrot.slane %v4790, 2
      %v4792 = vadd.f32 %v4790, %v4791
      %v4793 = vrot.slane %v4792, 1
      %v4794 = vadd.f32 %v4792, %v4793
      %v4795 = vsel %vm343, %v4380, 0.0
      %v4796 = vsel %vm343, %v4381, 0.0
      %v4797 = vadd.f32 %v4795, %v4796
      %v4798 = vrot.slane %v4797, 4
      %v4799 = vadd.f32 %v4797, %v4798
      %v4800 = vrot.slane %v4799, 2
      %v4801 = vadd.f32 %v4799, %v4800
      %v4802 = vrot.slane %v4801, 1
      %v4803 = vadd.f32 %v4801, %v4802
      %v4804 = vsel %vm343, %v4382, 0.0
      %v4805 = vsel %vm343, %v4383, 0.0
      %v4806 = vadd.f32 %v4804, %v4805
      %v4807 = vrot.slane %v4806, 4
      %v4808 = vadd.f32 %v4806, %v4807
      %v4809 = vrot.slane %v4808, 2
      %v4810 = vadd.f32 %v4808, %v4809
      %v4811 = vrot.slane %v4810, 1
      %v4812 = vadd.f32 %v4810, %v4811
      %v4813 = vsel %vm343, %v4384, 0.0
      %v4814 = vsel %vm343, %v4385, 0.0
      %v4815 = vadd.f32 %v4813, %v4814
      %v4816 = vrot.slane %v4815, 4
      %v4817 = vadd.f32 %v4815, %v4816
      %v4818 = vrot.slane %v4817, 2
      %v4819 = vadd.f32 %v4817, %v4818
      %v4820 = vrot.slane %v4819, 1
      %v4821 = vadd.f32 %v4819, %v4820
      %v4822 = vsel %vm343, %v4386, 0.0
      %v4823 = vsel %vm343, %v4387, 0.0
      %v4824 = vadd.f32 %v4822, %v4823
      %v4825 = vrot.slane %v4824, 4
      %v4826 = vadd.f32 %v4824, %v4825
      %v4827 = vrot.slane %v4826, 2
      %v4828 = vadd.f32 %v4826, %v4827
      %v4829 = vrot.slane %v4828, 1
      %v4830 = vadd.f32 %v4828, %v4829
      %v4831 = vsel %vm343, %v4388, 0.0
      %v4832 = vsel %vm343, %v4389, 0.0
      %v4833 = vadd.f32 %v4831, %v4832
      %v4834 = vrot.slane %v4833, 4
      %v4835 = vadd.f32 %v4833, %v4834
      %v4836 = vrot.slane %v4835, 2
      %v4837 = vadd.f32 %v4835, %v4836
      %v4838 = vrot.slane %v4837, 1
      %v4839 = vadd.f32 %v4837, %v4838
      %v4840 = vsel %vm343, %v4390, 0.0
      %v4841 = vsel %vm343, %v4391, 0.0
      %v4842 = vadd.f32 %v4840, %v4841
      %v4843 = vrot.slane %v4842, 4
      %v4844 = vadd.f32 %v4842, %v4843
      %v4845 = vrot.slane %v4844, 2
      %v4846 = vadd.f32 %v4844, %v4845
      %v4847 = vrot.slane %v4846, 1
      %v4848 = vadd.f32 %v4846, %v4847
      %v4849 = vsel %vm343, %v4392, 0.0
      %v4850 = vsel %vm343, %v4393, 0.0
      %v4851 = vadd.f32 %v4849, %v4850
      %v4852 = vrot.slane %v4851, 4
      %v4853 = vadd.f32 %v4851, %v4852
      %v4854 = vrot.slane %v4853, 2
      %v4855 = vadd.f32 %v4853, %v4854
      %v4856 = vrot.slane %v4855, 1
      %v4857 = vadd.f32 %v4855, %v4856
      %v4858 = vsel %vm343, %v4394, 0.0
      %v4859 = vsel %vm343, %v4395, 0.0
      %v4860 = vadd.f32 %v4858, %v4859
      %v4861 = vrot.slane %v4860, 4
      %v4862 = vadd.f32 %v4860, %v4861
      %v4863 = vrot.slane %v4862, 2
      %v4864 = vadd.f32 %v4862, %v4863
      %v4865 = vrot.slane %v4864, 1
      %v4866 = vadd.f32 %v4864, %v4865
      %v4867 = vsel %vm343, %v4396, 0.0
      %v4868 = vsel %vm343, %v4397, 0.0
      %v4869 = vadd.f32 %v4867, %v4868
      %v4870 = vrot.slane %v4869, 4
      %v4871 = vadd.f32 %v4869, %v4870
      %v4872 = vrot.slane %v4871, 2
      %v4873 = vadd.f32 %v4871, %v4872
      %v4874 = vrot.slane %v4873, 1
      %v4875 = vadd.f32 %v4873, %v4874
      %v4876 = vsel %vm343, %v4398, 0.0
      %v4877 = vsel %vm343, %v4399, 0.0
      %v4878 = vadd.f32 %v4876, %v4877
      %v4879 = vrot.slane %v4878, 4
      %v4880 = vadd.f32 %v4878, %v4879
      %v4881 = vrot.slane %v4880, 2
      %v4882 = vadd.f32 %v4880, %v4881
      %v4883 = vrot.slane %v4882, 1
      %v4884 = vadd.f32 %v4882, %v4883
      %v4885 = vsel %vm343, %v4400, 0.0
      %v4886 = vsel %vm343, %v4401, 0.0
      %v4887 = vadd.f32 %v4885, %v4886
      %v4888 = vrot.slane %v4887, 4
      %v4889 = vadd.f32 %v4887, %v4888
      %v4890 = vrot.slane %v4889, 2
      %v4891 = vadd.f32 %v4889, %v4890
      %v4892 = vrot.slane %v4891, 1
      %v4893 = vadd.f32 %v4891, %v4892
      %v4894 = vsel %vm343, %v4402, 0.0
      %v4895 = vsel %vm343, %v4403, 0.0
      %v4896 = vadd.f32 %v4894, %v4895
      %v4897 = vrot.slane %v4896, 4
      %v4898 = vadd.f32 %v4896, %v4897
      %v4899 = vrot.slane %v4898, 2
      %v4900 = vadd.f32 %v4898, %v4899
      %v4901 = vrot.slane %v4900, 1
      %v4902 = vadd.f32 %v4900, %v4901
      %v4903 = vsel %vm343, %v4404, 0.0
      %v4904 = vsel %vm343, %v4405, 0.0
      %v4905 = vadd.f32 %v4903, %v4904
      %v4906 = vrot.slane %v4905, 4
      %v4907 = vadd.f32 %v4905, %v4906
      %v4908 = vrot.slane %v4907, 2
      %v4909 = vadd.f32 %v4907, %v4908
      %v4910 = vrot.slane %v4909, 1
      %v4911 = vadd.f32 %v4909, %v4910
      %v4912 = vsel %vm343, %v4406, 0.0
      %v4913 = vsel %vm343, %v4407, 0.0
      %v4914 = vadd.f32 %v4912, %v4913
      %v4915 = vrot.slane %v4914, 4
      %v4916 = vadd.f32 %v4914, %v4915
      %v4917 = vrot.slane %v4916, 2
      %v4918 = vadd.f32 %v4916, %v4917
      %v4919 = vrot.slane %v4918, 1
      %v4920 = vadd.f32 %v4918, %v4919
      %v4921 = vsel %vm343, %v4408, 0.0
      %v4922 = vsel %vm343, %v4409, 0.0
      %v4923 = vadd.f32 %v4921, %v4922
      %v4924 = vrot.slane %v4923, 4
      %v4925 = vadd.f32 %v4923, %v4924
      %v4926 = vrot.slane %v4925, 2
      %v4927 = vadd.f32 %v4925, %v4926
      %v4928 = vrot.slane %v4927, 1
      %v4929 = vadd.f32 %v4927, %v4928
      %v4930 = vsel %vm343, %v4410, 0.0
      %v4931 = vsel %vm343, %v4411, 0.0
      %v4932 = vadd.f32 %v4930, %v4931
      %v4933 = vrot.slane %v4932, 4
      %v4934 = vadd.f32 %v4932, %v4933
      %v4935 = vrot.slane %v4934, 2
      %v4936 = vadd.f32 %v4934, %v4935
      %v4937 = vrot.slane %v4936, 1
      %v4938 = vadd.f32 %v4936, %v4937
      %v4939 = vsel %vm343, %v4412, 0.0
      %v4940 = vsel %vm343, %v4413, 0.0
      %v4941 = vadd.f32 %v4939, %v4940
      %v4942 = vrot.slane %v4941, 4
      %v4943 = vadd.f32 %v4941, %v4942
      %v4944 = vrot.slane %v4943, 2
      %v4945 = vadd.f32 %v4943, %v4944
      %v4946 = vrot.slane %v4945, 1
      %v4947 = vadd.f32 %v4945, %v4946
      %v4948 = vsel %vm343, %v4414, 0.0
      %v4949 = vsel %vm343, %v4415, 0.0
      %v4950 = vadd.f32 %v4948, %v4949
      %v4951 = vrot.slane %v4950, 4
      %v4952 = vadd.f32 %v4950, %v4951
      %v4953 = vrot.slane %v4952, 2
      %v4954 = vadd.f32 %v4952, %v4953
      %v4955 = vrot.slane %v4954, 1
      %v4956 = vadd.f32 %v4954, %v4955
      %v4957 = vsel %vm343, %v4416, 0.0
      %v4958 = vsel %vm343, %v4417, 0.0
      %v4959 = vadd.f32 %v4957, %v4958
      %v4960 = vrot.slane %v4959, 4
      %v4961 = vadd.f32 %v4959, %v4960
      %v4962 = vrot.slane %v4961, 2
      %v4963 = vadd.f32 %v4961, %v4962
      %v4964 = vrot.slane %v4963, 1
      %v4965 = vadd.f32 %v4963, %v4964
      %v4966 = vsel %vm343, %v4418, 0.0
      %v4967 = vsel %vm343, %v4419, 0.0
      %v4968 = vadd.f32 %v4966, %v4967
      %v4969 = vrot.slane %v4968, 4
      %v4970 = vadd.f32 %v4968, %v4969
      %v4971 = vrot.slane %v4970, 2
      %v4972 = vadd.f32 %v4970, %v4971
      %v4973 = vrot.slane %v4972, 1
      %v4974 = vadd.f32 %v4972, %v4973
      %v4975 = vsel %vm343, %v4420, 0.0
      %v4976 = vsel %vm343, %v4421, 0.0
      %v4977 = vadd.f32 %v4975, %v4976
      %v4978 = vrot.slane %v4977, 4
      %v4979 = vadd.f32 %v4977, %v4978
      %v4980 = vrot.slane %v4979, 2
      %v4981 = vadd.f32 %v4979, %v4980
      %v4982 = vrot.slane %v4981, 1
      %v4983 = vadd.f32 %v4981, %v4982
      %v4984 = vsel %vm343, %v4422, 0.0
      %v4985 = vsel %vm343, %v4423, 0.0
      %v4986 = vadd.f32 %v4984, %v4985
      %v4987 = vrot.slane %v4986, 4
      %v4988 = vadd.f32 %v4986, %v4987
      %v4989 = vrot.slane %v4988, 2
      %v4990 = vadd.f32 %v4988, %v4989
      %v4991 = vrot.slane %v4990, 1
      %v4992 = vadd.f32 %v4990, %v4991
      %v4993 = vsel %vm343, %v4424, 0.0
      %v4994 = vsel %vm343, %v4425, 0.0
      %v4995 = vadd.f32 %v4993, %v4994
      %v4996 = vrot.slane %v4995, 4
      %v4997 = vadd.f32 %v4995, %v4996
      %v4998 = vrot.slane %v4997, 2
      %v4999 = vadd.f32 %v4997, %v4998
      %v5000 = vrot.slane %v4999, 1
      %v5001 = vadd.f32 %v4999, %v5000
      %v5002 = vpack.c.bf16 %v4434, %v4434
      %v5003 = vpack.c.bf16 %v4443, %v4443
      %v5004 = vpack.c.bf16 %v4452, %v4452
      %v5005 = vpack.c.bf16 %v4461, %v4461
      %v5006 = vpack.c.bf16 %v4470, %v4470
      %v5007 = vpack.c.bf16 %v4479, %v4479
      %v5008 = vpack.c.bf16 %v4488, %v4488
      %v5009 = vpack.c.bf16 %v4497, %v4497
      %v5010 = vpack.c.bf16 %v4506, %v4506
      %v5011 = vpack.c.bf16 %v4515, %v4515
      %v5012 = vpack.c.bf16 %v4524, %v4524
      %v5013 = vpack.c.bf16 %v4533, %v4533
      %v5014 = vpack.c.bf16 %v4542, %v4542
      %v5015 = vpack.c.bf16 %v4551, %v4551
      %v5016 = vpack.c.bf16 %v4560, %v4560
      %v5017 = vpack.c.bf16 %v4569, %v4569
      %v5018 = vpack.c.bf16 %v4578, %v4578
      %v5019 = vpack.c.bf16 %v4587, %v4587
      %v5020 = vpack.c.bf16 %v4596, %v4596
      %v5021 = vpack.c.bf16 %v4605, %v4605
      %v5022 = vpack.c.bf16 %v4614, %v4614
      %v5023 = vpack.c.bf16 %v4623, %v4623
      %v5024 = vpack.c.bf16 %v4632, %v4632
      %v5025 = vpack.c.bf16 %v4641, %v4641
      %v5026 = vpack.c.bf16 %v4650, %v4650
      %v5027 = vpack.c.bf16 %v4659, %v4659
      %v5028 = vpack.c.bf16 %v4668, %v4668
      %v5029 = vpack.c.bf16 %v4677, %v4677
      %v5030 = vpack.c.bf16 %v4686, %v4686
      %v5031 = vpack.c.bf16 %v4695, %v4695
      %v5032 = vpack.c.bf16 %v4704, %v4704
      %v5033 = vpack.c.bf16 %v4713, %v4713
      %v5034 = vpack.c.bf16 %v4722, %v4722
      %v5035 = vpack.c.bf16 %v4731, %v4731
      %v5036 = vpack.c.bf16 %v4740, %v4740
      %v5037 = vpack.c.bf16 %v4749, %v4749
      %v5038 = vpack.c.bf16 %v4758, %v4758
      %v5039 = vpack.c.bf16 %v4767, %v4767
      %v5040 = vpack.c.bf16 %v4776, %v4776
      %v5041 = vpack.c.bf16 %v4785, %v4785
      %v5042 = vpack.c.bf16 %v4794, %v4794
      %v5043 = vpack.c.bf16 %v4803, %v4803
      %v5044 = vpack.c.bf16 %v4812, %v4812
      %v5045 = vpack.c.bf16 %v4821, %v4821
      %v5046 = vpack.c.bf16 %v4830, %v4830
      %v5047 = vpack.c.bf16 %v4839, %v4839
      %v5048 = vpack.c.bf16 %v4848, %v4848
      %v5049 = vpack.c.bf16 %v4857, %v4857
      %v5050 = vpack.c.bf16 %v4866, %v4866
      %v5051 = vpack.c.bf16 %v4875, %v4875
      %v5052 = vpack.c.bf16 %v4884, %v4884
      %v5053 = vpack.c.bf16 %v4893, %v4893
      %v5054 = vpack.c.bf16 %v4902, %v4902
      %v5055 = vpack.c.bf16 %v4911, %v4911
      %v5056 = vpack.c.bf16 %v4920, %v4920
      %v5057 = vpack.c.bf16 %v4929, %v4929
      %v5058 = vpack.c.bf16 %v4938, %v4938
      %v5059 = vpack.c.bf16 %v4947, %v4947
      %v5060 = vpack.c.bf16 %v4956, %v4956
      %v5061 = vpack.c.bf16 %v4965, %v4965
      %v5062 = vpack.c.bf16 %v4974, %v4974
      %v5063 = vpack.c.bf16 %v4983, %v4983
      %v5064 = vpack.c.bf16 %v4992, %v4992
      %v5065 = vpack.c.bf16 %v5001, %v5001
      %v5066 = vld [vmem:[%s5] sm:$0xf]
      %v5067 = vld [vmem:[%s5 + $0x4] sm:$0xf]
      %v5068 = vld [vmem:[%s5 + $0x8] sm:$0xf]
      %v5069 = vld [vmem:[%s5 + $0xc] sm:$0xf]
      %v5070 = vld [vmem:[%s6] sm:$0x1]
      %v5072 = vlaneseq
      %v5073 = vshrl.u32 %v5072, 7
      %v5074 = vsub.s32 0, %v5073
      %v5075 = vrot.slane %v5070, %v5074
      %v5141 = vunpack.c.l.b16 %v5002
      %v5142 = vunpack.c.l.b16 %v5003
      %v5143 = vunpack.c.l.b16 %v5004
      %v5144 = vunpack.c.l.b16 %v5005
      %v5145 = vunpack.c.l.b16 %v5006
      %v5146 = vunpack.c.l.b16 %v5007
      %v5147 = vunpack.c.l.b16 %v5008
      %v5148 = vunpack.c.l.b16 %v5009
      %v5149 = vunpack.c.l.b16 %v5010
      %v5150 = vunpack.c.l.b16 %v5011
      %v5151 = vunpack.c.l.b16 %v5012
      %v5152 = vunpack.c.l.b16 %v5013
      %v5153 = vunpack.c.l.b16 %v5014
      %v5154 = vunpack.c.l.b16 %v5015
      %v5155 = vunpack.c.l.b16 %v5016
      %v5156 = vunpack.c.l.b16 %v5017
      %v5157 = vunpack.c.l.b16 %v5018
      %v5158 = vunpack.c.l.b16 %v5019
      %v5159 = vunpack.c.l.b16 %v5020
      %v5160 = vunpack.c.l.b16 %v5021
      %v5161 = vunpack.c.l.b16 %v5022
      %v5162 = vunpack.c.l.b16 %v5023
      %v5163 = vunpack.c.l.b16 %v5024
      %v5164 = vunpack.c.l.b16 %v5025
      %v5165 = vunpack.c.l.b16 %v5026
      %v5166 = vunpack.c.l.b16 %v5027
      %v5167 = vunpack.c.l.b16 %v5028
      %v5168 = vunpack.c.l.b16 %v5029
      %v5169 = vunpack.c.l.b16 %v5030
      %v5170 = vunpack.c.l.b16 %v5031
      %v5171 = vunpack.c.l.b16 %v5032
      %v5172 = vunpack.c.l.b16 %v5033
      %v5173 = vunpack.c.l.b16 %v5034
      %v5174 = vunpack.c.l.b16 %v5035
      %v5175 = vunpack.c.l.b16 %v5036
      %v5176 = vunpack.c.l.b16 %v5037
      %v5177 = vunpack.c.l.b16 %v5038
      %v5178 = vunpack.c.l.b16 %v5039
      %v5179 = vunpack.c.l.b16 %v5040
      %v5180 = vunpack.c.l.b16 %v5041
      %v5181 = vunpack.c.l.b16 %v5042
      %v5182 = vunpack.c.l.b16 %v5043
      %v5183 = vunpack.c.l.b16 %v5044
      %v5184 = vunpack.c.l.b16 %v5045
      %v5185 = vunpack.c.l.b16 %v5046
      %v5186 = vunpack.c.l.b16 %v5047
      %v5187 = vunpack.c.l.b16 %v5048
      %v5188 = vunpack.c.l.b16 %v5049
      %v5189 = vunpack.c.l.b16 %v5050
      %v5190 = vunpack.c.l.b16 %v5051
      %v5191 = vunpack.c.l.b16 %v5052
      %v5192 = vunpack.c.l.b16 %v5053
      %v5193 = vunpack.c.l.b16 %v5054
      %v5194 = vunpack.c.l.b16 %v5055
      %v5195 = vunpack.c.l.b16 %v5056
      %v5196 = vunpack.c.l.b16 %v5057
      %v5197 = vunpack.c.l.b16 %v5058
      %v5198 = vunpack.c.l.b16 %v5059
      %v5199 = vunpack.c.l.b16 %v5060
      %v5200 = vunpack.c.l.b16 %v5061
      %v5201 = vunpack.c.l.b16 %v5062
      %v5202 = vunpack.c.l.b16 %v5063
      %v5203 = vunpack.c.l.b16 %v5064
      %v5204 = vunpack.c.l.b16 %v5065
      %vm5205 = vcmask 1041409
      %v5206 = vsel %vm5205, %v5142, %v5141
      %vm5207 = vcmask 1042434
      %v5208 = vsel %vm5207, %v5143, %v5206
      %vm5209 = vcmask 1043459
      %v5210 = vsel %vm5209, %v5144, %v5208
      %vm5211 = vcmask 1044484
      %v5212 = vsel %vm5211, %v5145, %v5210
      %vm5213 = vcmask 1045509
      %v5214 = vsel %vm5213, %v5146, %v5212
      %vm5215 = vcmask 1046534
      %v5216 = vsel %vm5215, %v5147, %v5214
      %vm5217 = vcmask 1047559
      %v5218 = vsel %vm5217, %v5148, %v5216
      %v5219 = vsel %vm5205, %v5150, %v5149
      %v5220 = vsel %vm5207, %v5151, %v5219
      %v5221 = vsel %vm5209, %v5152, %v5220
      %v5222 = vsel %vm5211, %v5153, %v5221
      %v5223 = vsel %vm5213, %v5154, %v5222
      %v5224 = vsel %vm5215, %v5155, %v5223
      %v5225 = vsel %vm5217, %v5156, %v5224
      %v5226 = vsel %vm5205, %v5158, %v5157
      %v5227 = vsel %vm5207, %v5159, %v5226
      %v5228 = vsel %vm5209, %v5160, %v5227
      %v5229 = vsel %vm5211, %v5161, %v5228
      %v5230 = vsel %vm5213, %v5162, %v5229
      %v5231 = vsel %vm5215, %v5163, %v5230
      %v5232 = vsel %vm5217, %v5164, %v5231
      %v5233 = vsel %vm5205, %v5166, %v5165
      %v5234 = vsel %vm5207, %v5167, %v5233
      %v5235 = vsel %vm5209, %v5168, %v5234
      %v5236 = vsel %vm5211, %v5169, %v5235
      %v5237 = vsel %vm5213, %v5170, %v5236
      %v5238 = vsel %vm5215, %v5171, %v5237
      %v5239 = vsel %vm5217, %v5172, %v5238
      %v5240 = vsel %vm5205, %v5174, %v5173
      %v5241 = vsel %vm5207, %v5175, %v5240
      %v5242 = vsel %vm5209, %v5176, %v5241
      %v5243 = vsel %vm5211, %v5177, %v5242
      %v5244 = vsel %vm5213, %v5178, %v5243
      %v5245 = vsel %vm5215, %v5179, %v5244
      %v5246 = vsel %vm5217, %v5180, %v5245
      %v5247 = vsel %vm5205, %v5182, %v5181
      %v5248 = vsel %vm5207, %v5183, %v5247
      %v5249 = vsel %vm5209, %v5184, %v5248
      %v5250 = vsel %vm5211, %v5185, %v5249
      %v5251 = vsel %vm5213, %v5186, %v5250
      %v5252 = vsel %vm5215, %v5187, %v5251
      %v5253 = vsel %vm5217, %v5188, %v5252
      %v5254 = vsel %vm5205, %v5190, %v5189
      %v5255 = vsel %vm5207, %v5191, %v5254
      %v5256 = vsel %vm5209, %v5192, %v5255
      %v5257 = vsel %vm5211, %v5193, %v5256
      %v5258 = vsel %vm5213, %v5194, %v5257
      %v5259 = vsel %vm5215, %v5195, %v5258
      %v5260 = vsel %vm5217, %v5196, %v5259
      %v5261 = vsel %vm5205, %v5198, %v5197
      %v5262 = vsel %vm5207, %v5199, %v5261
      %v5263 = vsel %vm5209, %v5200, %v5262
      %v5264 = vsel %vm5211, %v5201, %v5263
      %v5265 = vsel %vm5213, %v5202, %v5264
      %v5266 = vsel %vm5215, %v5203, %v5265
      %v5267 = vsel %vm5217, %v5204, %v5266
      %v5268 = vpack.c.b16 %v5225, %v5218
      %v5269 = vpack.c.b16 %v5239, %v5232
      %v5270 = vpack.c.b16 %v5253, %v5246
      %v5271 = vpack.c.b16 %v5267, %v5260
      %v5276 = vunpack.c.l.b16 %v5066
      %v5277 = vunpack.c.l.b16 %v5067
      %v5278 = vunpack.c.l.b16 %v5068
      %v5279 = vunpack.c.l.b16 %v5069
      %v5280 = vpack.c.b16 %v5277, %v5276
      %v5281 = vpack.c.b16 %v5279, %v5278
      %v5285 = vsel %vm343, %v5268, 0
      %v5288 = vsel %vm343, %v5269, 0
      %v5291 = vsel %vm343, %v5270, 0
      %v5294 = vsel %vm343, %v5271, 0
      %5296 = vmatprep.subr.bf16.mxu0 0
      %5297 = vmatpush1.bf16.msra.mxu0 %v5280
      %5298 = vmatprep.subr.bf16.mxu0 0
      %5299 = vmatpush1.bf16.msra.mxu0 %v5281
      %5300 = vmatprep.subr.bf16.mxu0 0
      %5301 = vmatpush1.bf16.msra.mxu0 0
      %5302 = vmatprep.subr.bf16.mxu0 0
      %5303 = vmatpush1.bf16.msra.mxu0 0
      %5304 = vmatprep.subr.bf16.mxu0 0
      %5305 = vmatpush1.bf16.msra.mxu0 0
      %5306 = vmatprep.subr.bf16.mxu0 0
      %5307 = vmatpush1.bf16.msra.mxu0 0
      %5308 = vmatprep.subr.bf16.mxu0 0
      %5309 = vmatpush1.bf16.msra.mxu0 0
      %5310 = vmatprep.subr.bf16.mxu0 0
      %5311 = vmatpush1.bf16.msra.mxu0 0
      %5312 = vmatprep.subr.bf16.mxu0 0
      %5313 = vmatpush1.bf16.msra.mxu0 0
      %5314 = vmatprep.subr.bf16.mxu0 0
      %5315 = vmatpush1.bf16.msra.mxu0 0
      %5316 = vmatprep.subr.bf16.mxu0 0
      %5317 = vmatpush1.bf16.msra.mxu0 0
      %5318 = vmatprep.subr.bf16.mxu0 0
      %5319 = vmatpush1.bf16.msra.mxu0 0
      %5320 = vmatprep.subr.bf16.mxu0 0
      %5321 = vmatpush1.bf16.msra.mxu0 0
      %5322 = vmatprep.subr.bf16.mxu0 0
      %5323 = vmatpush1.bf16.msra.mxu0 0
      %5324 = vmatprep.subr.bf16.mxu0 0
      %5325 = vmatpush1.bf16.msra.mxu0 0
      %5326 = vmatprep.subr.bf16.mxu0 0
      %5327 = vmatpush1.bf16.msra.mxu0 0
      %5328 = vmatprep.mubr.bf16.mxu0 0
      %5329 = vmatmul.mubr.bf16.gmra.mrb[0].mxu0 %v5285
      %v5330 = vpop.f32.mrb[0].mxu0
      %v5331 = vadd.f32 %v5075, %v5330
      %v5332 = vpop.f32.mrb[0].mxu0
      %v5333 = vpop.f32.mrb[0].mxu0
      %v5334 = vadd.f32 %v5075, %v5333
      %v5335 = vpop.f32.mrb[0].mxu0
      %5336 = vmatprep.mubr.bf16.mxu0 0
      %5337 = vmatmul.mubr.bf16.gmra.mrb[0].mxu0 %v5288
      %v5338 = vpop.f32.mrb[0].mxu0
      %v5339 = vadd.f32 %v5075, %v5338
      %v5340 = vpop.f32.mrb[0].mxu0
      %v5341 = vpop.f32.mrb[0].mxu0
      %v5342 = vadd.f32 %v5075, %v5341
      %v5343 = vpop.f32.mrb[0].mxu0
      %5344 = vmatprep.mubr.bf16.mxu0 0
      %5345 = vmatmul.mubr.bf16.gmra.mrb[0].mxu0 %v5291
      %v5346 = vpop.f32.mrb[0].mxu0
      %v5347 = vadd.f32 %v5075, %v5346
      %v5348 = vpop.f32.mrb[0].mxu0
      %v5349 = vpop.f32.mrb[0].mxu0
      %v5350 = vadd.f32 %v5075, %v5349
      %v5351 = vpop.f32.mrb[0].mxu0
      %5352 = vmatprep.mubr.bf16.mxu0 0
      %5353 = vmatmul.mubr.bf16.gmra.mrb[0].mxu0 %v5294
      %v5354 = vpop.f32.mrb[0].mxu0
      %v5355 = vadd.f32 %v5075, %v5354
      %v5356 = vpop.f32.mrb[0].mxu0
      %v5357 = vpop.f32.mrb[0].mxu0
      %v5358 = vadd.f32 %v5075, %v5357
      %v5359 = vpop.f32.mrb[0].mxu0
      %5360 = vdwg.mxu0
      %v5361 = vadd.f32 %v5331, %v300
      %v5362 = vadd.f32 %v5334, %v301
      %v5363 = vadd.f32 %v5339, %v302
      %v5364 = vadd.f32 %v5342, %v303
      %v5365 = vadd.f32 %v5347, %v304
      %v5366 = vadd.f32 %v5350, %v305
      %v5367 = vadd.f32 %v5355, %v306
      %v5368 = vadd.f32 %v5358, %v307
      %5369 = vst.msk [vmem:[%s278] sm:$0xff] %vm343, %v5361
      %5370 = vst.msk [vmem:[%s278 + $0x8] sm:$0xff] %vm343, %v5362
      %5371 = vst.msk [vmem:[%s278 + $0x10] sm:$0xff] %vm343, %v5363
      %5372 = vst.msk [vmem:[%s278 + $0x18] sm:$0xff] %vm343, %v5364
      %5373 = vst.msk [vmem:[%s278 + $0x20] sm:$0xff] %vm343, %v5365
      %5374 = vst.msk [vmem:[%s278 + $0x28] sm:$0xff] %vm343, %v5366
      %5375 = vst.msk [vmem:[%s278 + $0x30] sm:$0xff] %vm343, %v5367
      %5376 = vst.msk [vmem:[%s278 + $0x38] sm:$0xff] %vm343, %v5368
      %p5377 = scmp.lt.s32.totalorder %s18, 1
      %s5378 = scalar_select %p5377, %s18, 1
      %s5379 = smul.addr %s5378, 8
      %s5380 = smul.addr %s5379, 8
      %s5381 = scalar_lea.vmem %s7, %s5380
      // Predicated region
      $region49: #{attentive_conv_block.2} parent=47 // pred_check
        %p5382 = pneg %p188
      $region50: #{attentive_conv_block.2} parent=47 // pred_check_branch
        %5384 = sbr.rel (%p5382) target = $region52
      $region51: #{attentive_conv_block.2} parent=47 // pred_region
        _
      $region52: #{attentive_conv_block.2} parent=47 // pred_fallthru
        _
    $region48: #{attentive_conv_block.2} parent=5 // pred_fallthru
      _
    %p5385 = scmp.le.s32.totalorder 2, %s13
    // Predicated region
    $region53: #{attentive_conv_block.2} parent=5 // pred_check
      %p5386 = pneg %p5385
    $region54: #{attentive_conv_block.2} parent=5 // pred_check_branch
      %5388 = sbr.rel (%p5386) target = $region56
    $region55: #{attentive_conv_block.2} parent=5 // pred_region
      %s5389 = ssub.s32 %s13, 2
      // Predicated region
      $region57: #{attentive_conv_block.2} parent=55 // pred_check
        %p5390 = pneg %p194
      $region58: #{attentive_conv_block.2} parent=55 // pred_check_branch
        %5392 = sbr.rel (%p5390) target = $region60
      $region59: #{attentive_conv_block.2} parent=55 // pred_region
        %p5393 = scmp.lt.s32.totalorder %s19, 1
        %s5394 = scalar_select %p5393, %s19, 1
        %s5395 = smul.addr %s5394, 8
        %s5396 = smul.addr %s5395, 8
        %s5397 = scalar_lea.vmem %s7, %s5396
      $region60: #{attentive_conv_block.2} parent=55 // pred_fallthru
        _
    $region56: #{attentive_conv_block.2} parent=5 // pred_fallthru
      _
  $region6: #{attentive_conv_block.2} parent=0 // loop_footer
    %s17 = sadd.s32 1, %s13
  $region7: #{attentive_conv_block.2} parent=0 // loop_footer_branch
    %12 = sbr.rel target = $region3
  $region8: #{attentive_conv_block.2} parent=0 // loop_exit
    _

</llo_original>
